<compile_context>
chip_gen: v6e
topology: v6e:2x2x1
jax: 0.10.0
libtpu: 0.0.40
codegen_flags: <defaults>
</compile_context>

<pallas_src>
import functools
import math

import jax
import jax.numpy as jnp
from jax.experimental import pallas as pl
from jax.experimental.pallas import tpu as pltpu

# Preferred MXU-shaped tiles. 256x256 matches the v6e/v7x 2x256^2 MXU and is still
# lane-dense / fine on v5e's 4x128^2 MXUs (256 = 2*128). Tiles shrink automatically
# for small problem dims. Double-buffered bf16 input tiles + f32 accumulator stay
# well under the 32 MiB scoped VMEM budget (and v7x's 64 MiB physical VMEM).
_TM, _TN, _TK = 256, 256, 256
_VMEM_LIMIT = 32 * 1024 * 1024


def _round_up(x, m):
    return (x + m - 1) // m * m


# ----------------------------- Pallas kernels -----------------------------

def _matmul_bn_kernel(x_ref, w_ref, s_ref, b_ref, o_ref, acc_ref, *, relu):
    """bf16 matmul tile, f32 accumulation; BN affine (+ReLU) epilogue at last K step."""
    k = pl.program_id(2)

    @pl.when(k == 0)
    def _():
        acc_ref[...] = jnp.zeros_like(acc_ref)

    acc_ref[...] += jnp.dot(x_ref[...], w_ref[...],
                            preferred_element_type=jnp.float32)

    @pl.when(k == pl.num_programs(2) - 1)
    def _():
        y = acc_ref[...] * s_ref[...] + b_ref[...]
        if relu:
            y = jnp.maximum(y, 0.0)
        o_ref[...] = y.astype(o_ref.dtype)


def _matmul_bn_add_kernel(x_ref, w_ref, s_ref, b_ref, r_ref, o_ref, acc_ref, *, relu):
    """Same as above + residual add (BasicBlock tail). Residual tile mirrors the
    output tile, so it is loaded once per (i, j) and stays resident across K."""
    k = pl.program_id(2)

    @pl.when(k == 0)
    def _():
        acc_ref[...] = jnp.zeros_like(acc_ref)

    acc_ref[...] += jnp.dot(x_ref[...], w_ref[...],
                            preferred_element_type=jnp.float32)

    @pl.when(k == pl.num_programs(2) - 1)
    def _():
        y = acc_ref[...] * s_ref[...] + b_ref[...] + r_ref[...]
        if relu:
            y = jnp.maximum(y, 0.0)
        o_ref[...] = y.astype(o_ref.dtype)


def _maxpool_kernel(x_ref, o_ref):
    # x_ref: (9, tm, C) shifted window views for this M tile, o_ref: (tm, C).
    o_ref[...] = jnp.max(x_ref[...], axis=0)


# -------------------------- kernel-calling wrappers --------------------------

def _fused_matmul(patches, wmat, scale, bias, residual, relu):
    """(M,K) @ (K,Cout) with folded-BN scale/bias, optional residual add + ReLU.

    Tiled over (M//tm, Cout//tn, K//tk); bf16 operands, f32 accumulator scratch,
    f32 epilogue and output.
    """
    M, K = patches.shape
    Cout = wmat.shape[1]

    tm = min(_TM, _round_up(M, 16))      # 16: bf16 sublane packing
    tn = min(_TN, _round_up(Cout, 128))  # lane-dense output stores
    tk = min(_TK, _round_up(K, 128))
    Mp, Kp, Cp = _round_up(M, tm), _round_up(K, tk), _round_up(Cout, tn)

    x = patches.astype(jnp.bfloat16)
    w = wmat.astype(jnp.bfloat16)
    if (Mp, Kp) != (M, K):
        x = jnp.pad(x, ((0, Mp - M), (0, Kp - K)))
    if (Kp, Cp) != (K, Cout):
        w = jnp.pad(w, ((0, Kp - K), (0, Cp - Cout)))
    s = jnp.pad(scale.astype(jnp.float32).reshape(1, Cout), ((0, 0), (0, Cp - Cout)))
    b = jnp.pad(bias.astype(jnp.float32).reshape(1, Cout), ((0, 0), (0, Cp - Cout)))

    in_specs = [
        pl.BlockSpec((tm, tk), lambda i, j, k: (i, k)),   # patches
        pl.BlockSpec((tk, tn), lambda i, j, k: (k, j)),   # weights
        pl.BlockSpec((1, tn), lambda i, j, k: (0, j)),    # BN scale
        pl.BlockSpec((1, tn), lambda i, j, k: (0, j)),    # BN bias
    ]
    args = [x, w, s, b]

    if residual is None:
        kernel = functools.partial(_matmul_bn_kernel, relu=relu)
    else:
        r = residual.astype(jnp.float32)
        if (Mp, Cp) != (M, Cout):
            r = jnp.pad(r, ((0, Mp - M), (0, Cp - Cout)))
        in_specs.append(pl.BlockSpec((tm, tn), lambda i, j, k: (i, j)))
        args.append(r)
        kernel = functools.partial(_matmul_bn_add_kernel, relu=relu)

    n_res = 1 if residual is not None else 0
    cost = pl.CostEstimate(
        flops=2 * Mp * Kp * Cp,
        transcendentals=0,
        bytes_accessed=(Mp * Kp + Kp * Cp) * 2 + (1 + n_res) * Mp * Cp * 4,
    )

    out = pl.pallas_call(
        kernel,
        out_shape=jax.ShapeDtypeStruct((Mp, Cp), jnp.float32),
        grid=(Mp // tm, Cp // tn, Kp // tk),
        in_specs=in_specs,
        out_specs=pl.BlockSpec((tm, tn), lambda i, j, k: (i, j)),
        scratch_shapes=[pltpu.VMEM((tm, tn), jnp.float32)],
        compiler_params=pltpu.CompilerParams(
            dimension_semantics=("parallel", "parallel", "arbitrary"),
            vmem_limit_bytes=_VMEM_LIMIT),
        cost_estimate=cost,
    )(*args)

    if (Mp, Cp) != (M, Cout):
        out = out[:M, :Cout]
    return out


def _extract_patches(x, kh, kw, stride, pad):
    """x: (N, H, W, C) -> patches (N, Ho, Wo, kh*kw*C), ordering (kh, kw, C)."""
    # TODO(synk): build patches per-M-tile inside the kernel (or use a kh*kw grid
    # axis) to avoid materializing the im2col matrix in HBM; done at XLA level for
    # now (bf16 activations halve this traffic).
    N, H, W, C = x.shape
    Ho = (H + 2 * pad - kh) // stride + 1
    Wo = (W + 2 * pad - kw) // stride + 1
    xp = jnp.pad(x, ((0, 0), (pad, pad), (pad, pad), (0, 0)))
    cols = []
    for i in range(kh):
        for j in range(kw):
            cols.append(xp[:, i:i + stride * Ho:stride, j:j + stride * Wo:stride, :])
    patches = jnp.concatenate(cols, axis=-1)
    return patches, Ho, Wo


def _conv_bn(x, w, bn, *, stride, pad, relu, residual=None):
    """Conv2d(no bias) + BatchNorm (running-stat / inference semantics) [+res +ReLU]."""
    Cout, Cin, KH, KW = w.shape
    N = x.shape[0]
    # bf16 activations before im2col: halves HBM traffic of the patch matrix and
    # feeds the MXU at native rate; accumulation & epilogue stay f32 in-kernel.
    patches, Ho, Wo = _extract_patches(x.astype(jnp.bfloat16), KH, KW, stride, pad)
    M = N * Ho * Wo
    pm = patches.reshape(M, KH * KW * Cin)
    # PyTorch weight (Cout, Cin, KH, KW) -> (KH*KW*Cin, Cout) matching patch order.
    wmat = jnp.transpose(w, (2, 3, 1, 0)).reshape(KH * KW * Cin, Cout)
    eps = 1e-5
    scale = bn["gamma"] / jnp.sqrt(bn["var"] + eps)
    bias = bn["beta"] - bn["mean"] * scale
    res = residual.reshape(M, Cout) if residual is not None else None
    out = _fused_matmul(pm, wmat, scale, bias, res, relu)
    return out.reshape(N, Ho, Wo, Cout)


def _maxpool_3x3_s2_p1(x):
    """nn.MaxPool2d(kernel_size=3, stride=2, padding=1) on NHWC input, tiled over M."""
    N, H, W, C = x.shape
    Ho = (H + 2 - 3) // 2 + 1
    Wo = (W + 2 - 3) // 2 + 1
    xp = jnp.pad(x, ((0, 0), (1, 1), (1, 1), (0, 0)), constant_values=-jnp.inf)
    views = []
    for i in range(3):
        for j in range(3):
            views.append(xp[:, i:i + 2 * Ho:2, j:j + 2 * Wo:2, :])
    M = N * Ho * Wo
    stacked = jnp.stack(views, axis=0).reshape(9, M, C)

    tm = min(512, _round_up(M, 8))
    Mp = _round_up(M, tm)
    if Mp != M:
        stacked = jnp.pad(stacked, ((0, 0), (0, Mp - M), (0, 0)),
                          constant_values=-jnp.inf)

    out = pl.pallas_call(
        _maxpool_kernel,
        out_shape=jax.ShapeDtypeStruct((Mp, C), jnp.float32),
        grid=(Mp // tm,),
        in_specs=[pl.BlockSpec((9, tm, C), lambda i: (0, i, 0))],
        out_specs=pl.BlockSpec((tm, C), lambda i: (i, 0)),
        compiler_params=pltpu.CompilerParams(
            dimension_semantics=("parallel",),
            vmem_limit_bytes=_VMEM_LIMIT),
    )(stacked)
    return out[:M, :].reshape(N, Ho, Wo, C)


# ----------------------------- model definition -----------------------------

def _basic_block(x, p, stride):
    """torchvision-style BasicBlock (expansion = 1)."""
    identity = x
    if "ds_w" in p:
        identity = _conv_bn(x, p["ds_w"], p["ds_bn"], stride=stride, pad=0, relu=False)
    out = _conv_bn(x, p["conv1_w"], p["bn1"], stride=stride, pad=1, relu=True)
    # second conv fused with residual add + ReLU inside the Pallas kernel
    out = _conv_bn(out, p["conv2_w"], p["bn2"], stride=1, pad=1, relu=True,
                   residual=identity)
    return out


def _init_bn(c):
    # BatchNorm init per module __init__: weight=1, bias=0; running stats 0/1.
    # TODO(synk): PyTorch training-mode BN would use batch statistics; inference
    # (running-stat) semantics are implemented here and folded into scale/bias.
    return dict(gamma=jnp.ones((c,), jnp.float32),
                beta=jnp.zeros((c,), jnp.float32),
                mean=jnp.zeros((c,), jnp.float32),
                var=jnp.ones((c,), jnp.float32))


def _init_conv(key, cout, cin, kh, kw):
    # kaiming_normal_(mode='fan_out', nonlinearity='relu')
    fan_out = cout * kh * kw
    std = math.sqrt(2.0 / fan_out)
    return std * jax.random.normal(key, (cout, cin, kh, kw), jnp.float32)


def init_resnet_trunk_params(key, layers=(1, 1, 1, 1)):
    keys = iter(jax.random.split(key, 256))
    params = {"conv1_w": _init_conv(next(keys), 64, 3, 7, 7), "bn1": _init_bn(64)}
    inplanes = 64
    for li, (planes, nblocks, stride) in enumerate(
            zip((64, 128, 256, 512), layers, (1, 2, 2, 2)), start=1):
        blocks = []
        for b in range(nblocks):
            s = stride if b == 0 else 1
            p = {}
            if s != 1 or inplanes != planes:
                p["ds_w"] = _init_conv(next(keys), planes, inplanes, 1, 1)
                p["ds_bn"] = _init_bn(planes)
            p["conv1_w"] = _init_conv(next(keys), planes, inplanes, 3, 3)
            p["bn1"] = _init_bn(planes)
            p["conv2_w"] = _init_conv(next(keys), planes, planes, 3, 3)
            p["bn2"] = _init_bn(planes)
            blocks.append(p)
            inplanes = planes
        params[f"layer{li}"] = blocks
    return params


def resnet_trunk_forward(params, x_nchw):
    """ResNetTrunk.forward: conv1 -> bn1 -> relu -> maxpool -> layer1..4."""
    x = jnp.transpose(x_nchw, (0, 2, 3, 1))  # NCHW -> NHWC
    x = _conv_bn(x, params["conv1_w"], params["bn1"], stride=2, pad=3, relu=True)
    x = _maxpool_3x3_s2_p1(x)
    for li, stride in enumerate((1, 2, 2, 2), start=1):
        for b, p in enumerate(params[f"layer{li}"]):
            x = _basic_block(x, p, stride if b == 0 else 1)
    return jnp.transpose(x, (0, 3, 1, 2))  # NHWC -> NCHW


if __name__ == "__main__":
    key = jax.random.PRNGKey(0)
    pkey, xkey = jax.random.split(key)
    params = init_resnet_trunk_params(pkey, layers=(1, 1, 1, 1))
    x = jax.random.normal(xkey, (2, 3, 16, 16), jnp.float32)  # NCHW like PyTorch
    out = jax.jit(resnet_trunk_forward)(params, x)
    jax.block_until_ready(out)
    assert out.shape == (2, 512, 1, 1), out.shape
    assert jnp.all(jnp.isfinite(out))
    print("KERNEL_OK")
</pallas_src>

<mosaic_0001>
module attributes {stable_mosaic.version = 11 : i64} {
  func.func @_matmul_bn_kernel(%arg0: i32, %arg1: i32, %arg2: i32, %arg3: memref<128x256xbf16, #tpu.memory_space<vmem>>, %arg4: memref<256x128xbf16, #tpu.memory_space<vmem>>, %arg5: memref<1x128xf32, #tpu.memory_space<vmem>>, %arg6: memref<1x128xf32, #tpu.memory_space<vmem>>, %arg7: memref<128x128xf32, #tpu.memory_space<vmem>>, %arg8: memref<128x128xf32, #tpu.memory_space<vmem>>) attributes {dimension_semantics = [#tpu.dimension_semantics<parallel>, #tpu.dimension_semantics<parallel>, #tpu.dimension_semantics<arbitrary>], iteration_bounds = array<i64: 1, 1, 1>, scalar_prefetch = 0 : i64, scratch_operands = 1 : i64, tpu.core_type = #tpu.core_type<tc>, window_params = [{transform_indices = @transform_0, window_bounds = array<i64: 128, 256>}, {transform_indices = @transform_1, window_bounds = array<i64: 256, 128>}, {transform_indices = @transform_2, window_bounds = array<i64: 1, 128>}, {transform_indices = @transform_3, window_bounds = array<i64: 1, 128>}, {transform_indices = @transform_4, window_bounds = array<i64: 128, 128>}]} {
    %c0_i32 = arith.constant 0 : i32
    %0 = arith.cmpi eq, %arg2, %c0_i32 : i32
    %1 = arith.extui %0 : i1 to i32
    %c0_i32_0 = arith.constant 0 : i32
    %2 = arith.cmpi ne, %1, %c0_i32_0 : i32
    scf.if %2 {
      %cst_10 = arith.constant 0.000000e+00 : f32
      %12 = vector.broadcast %cst_10 : f32 to vector<128x128xf32>
      %c0_11 = arith.constant 0 : index
      %c0_12 = arith.constant 0 : index
      %13 = vector.load %arg8[%c0_11, %c0_12] : memref<128x128xf32, #tpu.memory_space<vmem>>, vector<128x128xf32>
      tpu.vector_store %arg8[%c0_11, %c0_12], %12 {strides = array<i32>} : memref<128x128xf32, #tpu.memory_space<vmem>>, vector<128x128xf32>,
    } else {
    }
    %c0 = arith.constant 0 : index
    %c0_1 = arith.constant 0 : index
    %3 = vector.load %arg8[%c0, %c0_1] : memref<128x128xf32, #tpu.memory_space<vmem>>, vector<128x128xf32>
    %c0_2 = arith.constant 0 : index
    %c0_3 = arith.constant 0 : index
    %4 = vector.load %arg3[%c0_2, %c0_3] : memref<128x256xbf16, #tpu.memory_space<vmem>>, vector<128x256xbf16>
    %c0_4 = arith.constant 0 : index
    %c0_5 = arith.constant 0 : index
    %5 = vector.load %arg4[%c0_4, %c0_5] : memref<256x128xbf16, #tpu.memory_space<vmem>>, vector<256x128xbf16>
    %cst = arith.constant dense<0.000000e+00> : vector<128x128xf32>
    %6 = tpu.matmul %4, %5, %cst {dimension_numbers = #tpu.dot_dimension_numbers<[1], [0], [0], [1], [0, 0, 1, 1], [], []>} : vector<128x256xbf16>, vector<256x128xbf16>, vector<128x128xf32> -> vector<128x128xf32>
    %7 = arith.addf %3, %6 : vector<128x128xf32>
    %c0_6 = arith.constant 0 : index
    %c0_7 = arith.constant 0 : index
    %8 = vector.load %arg8[%c0_6, %c0_7] : memref<128x128xf32, #tpu.memory_space<vmem>>, vector<128x128xf32>
    tpu.vector_store %arg8[%c0_6, %c0_7], %7 {strides = array<i32>} : memref<128x128xf32, #tpu.memory_space<vmem>>, vector<128x128xf32>,
    %c0_i32_8 = arith.constant 0 : i32
    %9 = arith.cmpi eq, %arg2, %c0_i32_8 : i32
    %10 = arith.extui %9 : i1 to i32
    %c0_i32_9 = arith.constant 0 : i32
    %11 = arith.cmpi ne, %10, %c0_i32_9 : i32
    scf.if %11 {
      %c0_10 = arith.constant 0 : index
      %c0_11 = arith.constant 0 : index
      %12 = vector.load %arg8[%c0_10, %c0_11] : memref<128x128xf32, #tpu.memory_space<vmem>>, vector<128x128xf32>
      %c0_12 = arith.constant 0 : index
      %c0_13 = arith.constant 0 : index
      %13 = vector.load %arg5[%c0_12, %c0_13] : memref<1x128xf32, #tpu.memory_space<vmem>>, vector<1x128xf32>
      %14 = vector.broadcast %13 : vector<1x128xf32> to vector<128x128xf32>
      %15 = arith.mulf %12, %14 : vector<128x128xf32>
      %c0_14 = arith.constant 0 : index
      %c0_15 = arith.constant 0 : index
      %16 = vector.load %arg6[%c0_14, %c0_15] : memref<1x128xf32, #tpu.memory_space<vmem>>, vector<1x128xf32>
      %17 = vector.broadcast %16 : vector<1x128xf32> to vector<128x128xf32>
      %18 = arith.addf %15, %17 : vector<128x128xf32>
      %cst_16 = arith.constant 0.000000e+00 : f32
      %19 = vector.broadcast %cst_16 : f32 to vector<128x128xf32>
      %20 = arith.maximumf %18, %19 : vector<128x128xf32>
      %c0_17 = arith.constant 0 : index
      %c0_18 = arith.constant 0 : index
      %21 = vector.load %arg7[%c0_17, %c0_18] : memref<128x128xf32, #tpu.memory_space<vmem>>, vector<128x128xf32>
      tpu.vector_store %arg7[%c0_17, %c0_18], %20 {strides = array<i32>} : memref<128x128xf32, #tpu.memory_space<vmem>>, vector<128x128xf32>,
    } else {
    }
    return
  }
  func.func @transform_0(%arg0: i32, %arg1: i32, %arg2: i32) -> (i32, i32) {
    %c0_i32 = arith.constant 0 : i32
    return %arg0, %arg2 : i32, i32
  }
  func.func @transform_1(%arg0: i32, %arg1: i32, %arg2: i32) -> (i32, i32) {
    %c0_i32 = arith.constant 0 : i32
    return %arg2, %arg1 : i32, i32
  }
  func.func @transform_2(%arg0: i32, %arg1: i32, %arg2: i32) -> (i32, i32) {
    %c0_i32 = arith.constant 0 : i32
    %c0_i32_0 = arith.constant 0 : i32
    return %c0_i32, %arg1 : i32, i32
  }
  func.func @transform_3(%arg0: i32, %arg1: i32, %arg2: i32) -> (i32, i32) {
    %c0_i32 = arith.constant 0 : i32
    %c0_i32_0 = arith.constant 0 : i32
    return %c0_i32, %arg1 : i32, i32
  }
  func.func @transform_4(%arg0: i32, %arg1: i32, %arg2: i32) -> (i32, i32) {
    %c0_i32 = arith.constant 0 : i32
    return %arg0, %arg1 : i32, i32
  }
}

module attributes {stable_mosaic.version = 11 : i64} {
  func.func @_maxpool_kernel(%arg0: i32, %arg1: memref<9x32x64xf32, #tpu.memory_space<vmem>>, %arg2: memref<32x64xf32, #tpu.memory_space<vmem>>) attributes {dimension_semantics = [#tpu.dimension_semantics<parallel>], iteration_bounds = array<i64: 1>, scalar_prefetch = 0 : i64, scratch_operands = 0 : i64, tpu.core_type = #tpu.core_type<tc>, window_params = [{transform_indices = @transform_0, window_bounds = array<i64: 9, 32, 64>}, {transform_indices = @transform_1, window_bounds = array<i64: 32, 64>}]} {
    %c0 = arith.constant 0 : index
    %c0_0 = arith.constant 0 : index
    %c0_1 = arith.constant 0 : index
    %0 = vector.load %arg1[%c0, %c0_0, %c0_1] : memref<9x32x64xf32, #tpu.memory_space<vmem>>, vector<9x32x64xf32>
    %cst = arith.constant dense<0xFF800000> : vector<32x64xf32>
    %1 = vector.multi_reduction <maximumf>, %0, %cst [0] : vector<9x32x64xf32> to vector<32x64xf32>
    %c0_2 = arith.constant 0 : index
    %c0_3 = arith.constant 0 : index
    %2 = vector.load %arg2[%c0_2, %c0_3] : memref<32x64xf32, #tpu.memory_space<vmem>>, vector<32x64xf32>
    tpu.vector_store %arg2[%c0_2, %c0_3], %1 {strides = array<i32>} : memref<32x64xf32, #tpu.memory_space<vmem>>, vector<32x64xf32>,
    return
  }
  func.func @transform_0(%arg0: i32) -> (i32, i32, i32) {
    %c0_i32 = arith.constant 0 : i32
    %c0_i32_0 = arith.constant 0 : i32
    %c0_i32_1 = arith.constant 0 : i32
    return %c0_i32, %arg0, %c0_i32_0 : i32, i32, i32
  }
  func.func @transform_1(%arg0: i32) -> (i32, i32) {
    %c0_i32 = arith.constant 0 : i32
    %c0_i32_0 = arith.constant 0 : i32
    return %arg0, %c0_i32 : i32, i32
  }
}

module attributes {stable_mosaic.version = 11 : i64} {
  func.func @_matmul_bn_kernel(%arg0: i32, %arg1: i32, %arg2: i32, %arg3: memref<32x256xbf16, #tpu.memory_space<vmem>>, %arg4: memref<256x128xbf16, #tpu.memory_space<vmem>>, %arg5: memref<1x128xf32, #tpu.memory_space<vmem>>, %arg6: memref<1x128xf32, #tpu.memory_space<vmem>>, %arg7: memref<32x128xf32, #tpu.memory_space<vmem>>, %arg8: memref<32x128xf32, #tpu.memory_space<vmem>>) attributes {dimension_semantics = [#tpu.dimension_semantics<parallel>, #tpu.dimension_semantics<parallel>, #tpu.dimension_semantics<arbitrary>], iteration_bounds = array<i64: 1, 1, 3>, scalar_prefetch = 0 : i64, scratch_operands = 1 : i64, tpu.core_type = #tpu.core_type<tc>, window_params = [{transform_indices = @transform_0, window_bounds = array<i64: 32, 256>}, {transform_indices = @transform_1, window_bounds = array<i64: 256, 128>}, {transform_indices = @transform_2, window_bounds = array<i64: 1, 128>}, {transform_indices = @transform_3, window_bounds = array<i64: 1, 128>}, {transform_indices = @transform_4, window_bounds = array<i64: 32, 128>}]} {
    %c0_i32 = arith.constant 0 : i32
    %0 = arith.cmpi eq, %arg2, %c0_i32 : i32
    %1 = arith.extui %0 : i1 to i32
    %c0_i32_0 = arith.constant 0 : i32
    %2 = arith.cmpi ne, %1, %c0_i32_0 : i32
    scf.if %2 {
      %cst_9 = arith.constant 0.000000e+00 : f32
      %12 = vector.broadcast %cst_9 : f32 to vector<32x128xf32>
      %c0_10 = arith.constant 0 : index
      %c0_11 = arith.constant 0 : index
      %13 = vector.load %arg8[%c0_10, %c0_11] : memref<32x128xf32, #tpu.memory_space<vmem>>, vector<32x128xf32>
      tpu.vector_store %arg8[%c0_10, %c0_11], %12 {strides = array<i32>} : memref<32x128xf32, #tpu.memory_space<vmem>>, vector<32x128xf32>,
    } else {
    }
    %c0 = arith.constant 0 : index
    %c0_1 = arith.constant 0 : index
    %3 = vector.load %arg8[%c0, %c0_1] : memref<32x128xf32, #tpu.memory_space<vmem>>, vector<32x128xf32>
    %c0_2 = arith.constant 0 : index
    %c0_3 = arith.constant 0 : index
    %4 = vector.load %arg3[%c0_2, %c0_3] : memref<32x256xbf16, #tpu.memory_space<vmem>>, vector<32x256xbf16>
    %c0_4 = arith.constant 0 : index
    %c0_5 = arith.constant 0 : index
    %5 = vector.load %arg4[%c0_4, %c0_5] : memref<256x128xbf16, #tpu.memory_space<vmem>>, vector<256x128xbf16>
    %cst = arith.constant dense<0.000000e+00> : vector<32x128xf32>
    %6 = tpu.matmul %4, %5, %cst {dimension_numbers = #tpu.dot_dimension_numbers<[1], [0], [0], [1], [0, 0, 1, 1], [], []>} : vector<32x256xbf16>, vector<256x128xbf16>, vector<32x128xf32> -> vector<32x128xf32>
    %7 = arith.addf %3, %6 : vector<32x128xf32>
    %c0_6 = arith.constant 0 : index
    %c0_7 = arith.constant 0 : index
    %8 = vector.load %arg8[%c0_6, %c0_7] : memref<32x128xf32, #tpu.memory_space<vmem>>, vector<32x128xf32>
    tpu.vector_store %arg8[%c0_6, %c0_7], %7 {strides = array<i32>} : memref<32x128xf32, #tpu.memory_space<vmem>>, vector<32x128xf32>,
    %c2_i32 = arith.constant 2 : i32
    %9 = arith.cmpi eq, %arg2, %c2_i32 : i32
    %10 = arith.extui %9 : i1 to i32
    %c0_i32_8 = arith.constant 0 : i32
    %11 = arith.cmpi ne, %10, %c0_i32_8 : i32
    scf.if %11 {
      %c0_9 = arith.constant 0 : index
      %c0_10 = arith.constant 0 : index
      %12 = vector.load %arg8[%c0_9, %c0_10] : memref<32x128xf32, #tpu.memory_space<vmem>>, vector<32x128xf32>
      %c0_11 = arith.constant 0 : index
      %c0_12 = arith.constant 0 : index
      %13 = vector.load %arg5[%c0_11, %c0_12] : memref<1x128xf32, #tpu.memory_space<vmem>>, vector<1x128xf32>
      %14 = vector.broadcast %13 : vector<1x128xf32> to vector<32x128xf32>
      %15 = arith.mulf %12, %14 : vector<32x128xf32>
      %c0_13 = arith.constant 0 : index
      %c0_14 = arith.constant 0 : index
      %16 = vector.load %arg6[%c0_13, %c0_14] : memref<1x128xf32, #tpu.memory_space<vmem>>, vector<1x128xf32>
      %17 = vector.broadcast %16 : vector<1x128xf32> to vector<32x128xf32>
      %18 = arith.addf %15, %17 : vector<32x128xf32>
      %cst_15 = arith.constant 0.000000e+00 : f32
      %19 = vector.broadcast %cst_15 : f32 to vector<32x128xf32>
      %20 = arith.maximumf %18, %19 : vector<32x128xf32>
      %c0_16 = arith.constant 0 : index
      %c0_17 = arith.constant 0 : index
      %21 = vector.load %arg7[%c0_16, %c0_17] : memref<32x128xf32, #tpu.memory_space<vmem>>, vector<32x128xf32>
      tpu.vector_store %arg7[%c0_16, %c0_17], %20 {strides = array<i32>} : memref<32x128xf32, #tpu.memory_space<vmem>>, vector<32x128xf32>,
    } else {
    }
    return
  }
  func.func @transform_0(%arg0: i32, %arg1: i32, %arg2: i32) -> (i32, i32) {
    %c0_i32 = arith.constant 0 : i32
    return %arg0, %arg2 : i32, i32
  }
  func.func @transform_1(%arg0: i32, %arg1: i32, %arg2: i32) -> (i32, i32) {
    %c0_i32 = arith.constant 0 : i32
    return %arg2, %arg1 : i32, i32
  }
  func.func @transform_2(%arg0: i32, %arg1: i32, %arg2: i32) -> (i32, i32) {
    %c0_i32 = arith.constant 0 : i32
    %c0_i32_0 = arith.constant 0 : i32
    return %c0_i32, %arg1 : i32, i32
  }
  func.func @transform_3(%arg0: i32, %arg1: i32, %arg2: i32) -> (i32, i32) {
    %c0_i32 = arith.constant 0 : i32
    %c0_i32_0 = arith.constant 0 : i32
    return %c0_i32, %arg1 : i32, i32
  }
  func.func @transform_4(%arg0: i32, %arg1: i32, %arg2: i32) -> (i32, i32) {
    %c0_i32 = arith.constant 0 : i32
    return %arg0, %arg1 : i32, i32
  }
}

module attributes {stable_mosaic.version = 11 : i64} {
  func.func @_matmul_bn_add_kernel(%arg0: i32, %arg1: i32, %arg2: i32, %arg3: memref<32x256xbf16, #tpu.memory_space<vmem>>, %arg4: memref<256x128xbf16, #tpu.memory_space<vmem>>, %arg5: memref<1x128xf32, #tpu.memory_space<vmem>>, %arg6: memref<1x128xf32, #tpu.memory_space<vmem>>, %arg7: memref<32x128xf32, #tpu.memory_space<vmem>>, %arg8: memref<32x128xf32, #tpu.memory_space<vmem>>, %arg9: memref<32x128xf32, #tpu.memory_space<vmem>>) attributes {dimension_semantics = [#tpu.dimension_semantics<parallel>, #tpu.dimension_semantics<parallel>, #tpu.dimension_semantics<arbitrary>], iteration_bounds = array<i64: 1, 1, 3>, scalar_prefetch = 0 : i64, scratch_operands = 1 : i64, tpu.core_type = #tpu.core_type<tc>, window_params = [{transform_indices = @transform_0, window_bounds = array<i64: 32, 256>}, {transform_indices = @transform_1, window_bounds = array<i64: 256, 128>}, {transform_indices = @transform_2, window_bounds = array<i64: 1, 128>}, {transform_indices = @transform_3, window_bounds = array<i64: 1, 128>}, {transform_indices = @transform_4, window_bounds = array<i64: 32, 128>}, {transform_indices = @transform_5, window_bounds = array<i64: 32, 128>}]} {
    %c0_i32 = arith.constant 0 : i32
    %0 = arith.cmpi eq, %arg2, %c0_i32 : i32
    %1 = arith.extui %0 : i1 to i32
    %c0_i32_0 = arith.constant 0 : i32
    %2 = arith.cmpi ne, %1, %c0_i32_0 : i32
    scf.if %2 {
      %cst_9 = arith.constant 0.000000e+00 : f32
      %12 = vector.broadcast %cst_9 : f32 to vector<32x128xf32>
      %c0_10 = arith.constant 0 : index
      %c0_11 = arith.constant 0 : index
      %13 = vector.load %arg9[%c0_10, %c0_11] : memref<32x128xf32, #tpu.memory_space<vmem>>, vector<32x128xf32>
      tpu.vector_store %arg9[%c0_10, %c0_11], %12 {strides = array<i32>} : memref<32x128xf32, #tpu.memory_space<vmem>>, vector<32x128xf32>,
    } else {
    }
    %c0 = arith.constant 0 : index
    %c0_1 = arith.constant 0 : index
    %3 = vector.load %arg9[%c0, %c0_1] : memref<32x128xf32, #tpu.memory_space<vmem>>, vector<32x128xf32>
    %c0_2 = arith.constant 0 : index
    %c0_3 = arith.constant 0 : index
    %4 = vector.load %arg3[%c0_2, %c0_3] : memref<32x256xbf16, #tpu.memory_space<vmem>>, vector<32x256xbf16>
    %c0_4 = arith.constant 0 : index
    %c0_5 = arith.constant 0 : index
    %5 = vector.load %arg4[%c0_4, %c0_5] : memref<256x128xbf16, #tpu.memory_space<vmem>>, vector<256x128xbf16>
    %cst = arith.constant dense<0.000000e+00> : vector<32x128xf32>
    %6 = tpu.matmul %4, %5, %cst {dimension_numbers = #tpu.dot_dimension_numbers<[1], [0], [0], [1], [0, 0, 1, 1], [], []>} : vector<32x256xbf16>, vector<256x128xbf16>, vector<32x128xf32> -> vector<32x128xf32>
    %7 = arith.addf %3, %6 : vector<32x128xf32>
    %c0_6 = arith.constant 0 : index
    %c0_7 = arith.constant 0 : index
    %8 = vector.load %arg9[%c0_6, %c0_7] : memref<32x128xf32, #tpu.memory_space<vmem>>, vector<32x128xf32>
    tpu.vector_store %arg9[%c0_6, %c0_7], %7 {strides = array<i32>} : memref<32x128xf32, #tpu.memory_space<vmem>>, vector<32x128xf32>,
    %c2_i32 = arith.constant 2 : i32
    %9 = arith.cmpi eq, %arg2, %c2_i32 : i32
    %10 = arith.extui %9 : i1 to i32
    %c0_i32_8 = arith.constant 0 : i32
    %11 = arith.cmpi ne, %10, %c0_i32_8 : i32
    scf.if %11 {
      %c0_9 = arith.constant 0 : index
      %c0_10 = arith.constant 0 : index
      %12 = vector.load %arg9[%c0_9, %c0_10] : memref<32x128xf32, #tpu.memory_space<vmem>>, vector<32x128xf32>
      %c0_11 = arith.constant 0 : index
      %c0_12 = arith.constant 0 : index
      %13 = vector.load %arg5[%c0_11, %c0_12] : memref<1x128xf32, #tpu.memory_space<vmem>>, vector<1x128xf32>
      %14 = vector.broadcast %13 : vector<1x128xf32> to vector<32x128xf32>
      %15 = arith.mulf %12, %14 : vector<32x128xf32>
      %c0_13 = arith.constant 0 : index
      %c0_14 = arith.constant 0 : index
      %16 = vector.load %arg6[%c0_13, %c0_14] : memref<1x128xf32, #tpu.memory_space<vmem>>, vector<1x128xf32>
      %17 = vector.broadcast %16 : vector<1x128xf32> to vector<32x128xf32>
      %18 = arith.addf %15, %17 : vector<32x128xf32>
      %c0_15 = arith.constant 0 : index
      %c0_16 = arith.constant 0 : index
      %19 = vector.load %arg7[%c0_15, %c0_16] : memref<32x128xf32, #tpu.memory_space<vmem>>, vector<32x128xf32>
      %20 = arith.addf %18, %19 : vector<32x128xf32>
      %cst_17 = arith.constant 0.000000e+00 : f32
      %21 = vector.broadcast %cst_17 : f32 to vector<32x128xf32>
      %22 = arith.maximumf %20, %21 : vector<32x128xf32>
      %c0_18 = arith.constant 0 : index
      %c0_19 = arith.constant 0 : index
      %23 = vector.load %arg8[%c0_18, %c0_19] : memref<32x128xf32, #tpu.memory_space<vmem>>, vector<32x128xf32>
      tpu.vector_store %arg8[%c0_18, %c0_19], %22 {strides = array<i32>} : memref<32x128xf32, #tpu.memory_space<vmem>>, vector<32x128xf32>,
    } else {
    }
    return
  }
  func.func @transform_0(%arg0: i32, %arg1: i32, %arg2: i32) -> (i32, i32) {
    %c0_i32 = arith.constant 0 : i32
    return %arg0, %arg2 : i32, i32
  }
  func.func @transform_1(%arg0: i32, %arg1: i32, %arg2: i32) -> (i32, i32) {
    %c0_i32 = arith.constant 0 : i32
    return %arg2, %arg1 : i32, i32
  }
  func.func @transform_2(%arg0: i32, %arg1: i32, %arg2: i32) -> (i32, i32) {
    %c0_i32 = arith.constant 0 : i32
    %c0_i32_0 = arith.constant 0 : i32
    return %c0_i32, %arg1 : i32, i32
  }
  func.func @transform_3(%arg0: i32, %arg1: i32, %arg2: i32) -> (i32, i32) {
    %c0_i32 = arith.constant 0 : i32
    %c0_i32_0 = arith.constant 0 : i32
    return %c0_i32, %arg1 : i32, i32
  }
  func.func @transform_4(%arg0: i32, %arg1: i32, %arg2: i32) -> (i32, i32) {
    %c0_i32 = arith.constant 0 : i32
    return %arg0, %arg1 : i32, i32
  }
  func.func @transform_5(%arg0: i32, %arg1: i32, %arg2: i32) -> (i32, i32) {
    %c0_i32 = arith.constant 0 : i32
    return %arg0, %arg1 : i32, i32
  }
}

module attributes {stable_mosaic.version = 11 : i64} {
  func.func @_matmul_bn_kernel(%arg0: i32, %arg1: i32, %arg2: i32, %arg3: memref<16x256xbf16, #tpu.memory_space<vmem>>, %arg4: memref<256x128xbf16, #tpu.memory_space<vmem>>, %arg5: memref<1x128xf32, #tpu.memory_space<vmem>>, %arg6: memref<1x128xf32, #tpu.memory_space<vmem>>, %arg7: memref<16x128xf32, #tpu.memory_space<vmem>>, %arg8: memref<16x128xf32, #tpu.memory_space<vmem>>) attributes {dimension_semantics = [#tpu.dimension_semantics<parallel>, #tpu.dimension_semantics<parallel>, #tpu.dimension_semantics<arbitrary>], iteration_bounds = array<i64: 1, 1, 3>, scalar_prefetch = 0 : i64, scratch_operands = 1 : i64, tpu.core_type = #tpu.core_type<tc>, window_params = [{transform_indices = @transform_0, window_bounds = array<i64: 16, 256>}, {transform_indices = @transform_1, window_bounds = array<i64: 256, 128>}, {transform_indices = @transform_2, window_bounds = array<i64: 1, 128>}, {transform_indices = @transform_3, window_bounds = array<i64: 1, 128>}, {transform_indices = @transform_4, window_bounds = array<i64: 16, 128>}]} {
    %c0_i32 = arith.constant 0 : i32
    %0 = arith.cmpi eq, %arg2, %c0_i32 : i32
    %1 = arith.extui %0 : i1 to i32
    %c0_i32_0 = arith.constant 0 : i32
    %2 = arith.cmpi ne, %1, %c0_i32_0 : i32
    scf.if %2 {
      %cst_9 = arith.constant 0.000000e+00 : f32
      %12 = vector.broadcast %cst_9 : f32 to vector<16x128xf32>
      %c0_10 = arith.constant 0 : index
      %c0_11 = arith.constant 0 : index
      %13 = vector.load %arg8[%c0_10, %c0_11] : memref<16x128xf32, #tpu.memory_space<vmem>>, vector<16x128xf32>
      tpu.vector_store %arg8[%c0_10, %c0_11], %12 {strides = array<i32>} : memref<16x128xf32, #tpu.memory_space<vmem>>, vector<16x128xf32>,
    } else {
    }
    %c0 = arith.constant 0 : index
    %c0_1 = arith.constant 0 : index
    %3 = vector.load %arg8[%c0, %c0_1] : memref<16x128xf32, #tpu.memory_space<vmem>>, vector<16x128xf32>
    %c0_2 = arith.constant 0 : index
    %c0_3 = arith.constant 0 : index
    %4 = vector.load %arg3[%c0_2, %c0_3] : memref<16x256xbf16, #tpu.memory_space<vmem>>, vector<16x256xbf16>
    %c0_4 = arith.constant 0 : index
    %c0_5 = arith.constant 0 : index
    %5 = vector.load %arg4[%c0_4, %c0_5] : memref<256x128xbf16, #tpu.memory_space<vmem>>, vector<256x128xbf16>
    %cst = arith.constant dense<0.000000e+00> : vector<16x128xf32>
    %6 = tpu.matmul %4, %5, %cst {dimension_numbers = #tpu.dot_dimension_numbers<[1], [0], [0], [1], [0, 0, 1, 1], [], []>} : vector<16x256xbf16>, vector<256x128xbf16>, vector<16x128xf32> -> vector<16x128xf32>
    %7 = arith.addf %3, %6 : vector<16x128xf32>
    %c0_6 = arith.constant 0 : index
    %c0_7 = arith.constant 0 : index
    %8 = vector.load %arg8[%c0_6, %c0_7] : memref<16x128xf32, #tpu.memory_space<vmem>>, vector<16x128xf32>
    tpu.vector_store %arg8[%c0_6, %c0_7], %7 {strides = array<i32>} : memref<16x128xf32, #tpu.memory_space<vmem>>, vector<16x128xf32>,
    %c2_i32 = arith.constant 2 : i32
    %9 = arith.cmpi eq, %arg2, %c2_i32 : i32
    %10 = arith.extui %9 : i1 to i32
    %c0_i32_8 = arith.constant 0 : i32
    %11 = arith.cmpi ne, %10, %c0_i32_8 : i32
    scf.if %11 {
      %c0_9 = arith.constant 0 : index
      %c0_10 = arith.constant 0 : index
      %12 = vector.load %arg8[%c0_9, %c0_10] : memref<16x128xf32, #tpu.memory_space<vmem>>, vector<16x128xf32>
      %c0_11 = arith.constant 0 : index
      %c0_12 = arith.constant 0 : index
      %13 = vector.load %arg5[%c0_11, %c0_12] : memref<1x128xf32, #tpu.memory_space<vmem>>, vector<1x128xf32>
      %14 = vector.broadcast %13 : vector<1x128xf32> to vector<16x128xf32>
      %15 = arith.mulf %12, %14 : vector<16x128xf32>
      %c0_13 = arith.constant 0 : index
      %c0_14 = arith.constant 0 : index
      %16 = vector.load %arg6[%c0_13, %c0_14] : memref<1x128xf32, #tpu.memory_space<vmem>>, vector<1x128xf32>
      %17 = vector.broadcast %16 : vector<1x128xf32> to vector<16x128xf32>
      %18 = arith.addf %15, %17 : vector<16x128xf32>
      %cst_15 = arith.constant 0.000000e+00 : f32
      %19 = vector.broadcast %cst_15 : f32 to vector<16x128xf32>
      %20 = arith.maximumf %18, %19 : vector<16x128xf32>
      %c0_16 = arith.constant 0 : index
      %c0_17 = arith.constant 0 : index
      %21 = vector.load %arg7[%c0_16, %c0_17] : memref<16x128xf32, #tpu.memory_space<vmem>>, vector<16x128xf32>
      tpu.vector_store %arg7[%c0_16, %c0_17], %20 {strides = array<i32>} : memref<16x128xf32, #tpu.memory_space<vmem>>, vector<16x128xf32>,
    } else {
    }
    return
  }
  func.func @transform_0(%arg0: i32, %arg1: i32, %arg2: i32) -> (i32, i32) {
    %c0_i32 = arith.constant 0 : i32
    return %arg0, %arg2 : i32, i32
  }
  func.func @transform_1(%arg0: i32, %arg1: i32, %arg2: i32) -> (i32, i32) {
    %c0_i32 = arith.constant 0 : i32
    return %arg2, %arg1 : i32, i32
  }
  func.func @transform_2(%arg0: i32, %arg1: i32, %arg2: i32) -> (i32, i32) {
    %c0_i32 = arith.constant 0 : i32
    %c0_i32_0 = arith.constant 0 : i32
    return %c0_i32, %arg1 : i32, i32
  }
  func.func @transform_3(%arg0: i32, %arg1: i32, %arg2: i32) -> (i32, i32) {
    %c0_i32 = arith.constant 0 : i32
    %c0_i32_0 = arith.constant 0 : i32
    return %c0_i32, %arg1 : i32, i32
  }
  func.func @transform_4(%arg0: i32, %arg1: i32, %arg2: i32) -> (i32, i32) {
    %c0_i32 = arith.constant 0 : i32
    return %arg0, %arg1 : i32, i32
  }
}

module attributes {stable_mosaic.version = 11 : i64} {
  func.func @_matmul_bn_kernel(%arg0: i32, %arg1: i32, %arg2: i32, %arg3: memref<16x128xbf16, #tpu.memory_space<vmem>>, %arg4: memref<128x128xbf16, #tpu.memory_space<vmem>>, %arg5: memref<1x128xf32, #tpu.memory_space<vmem>>, %arg6: memref<1x128xf32, #tpu.memory_space<vmem>>, %arg7: memref<16x128xf32, #tpu.memory_space<vmem>>, %arg8: memref<16x128xf32, #tpu.memory_space<vmem>>) attributes {dimension_semantics = [#tpu.dimension_semantics<parallel>, #tpu.dimension_semantics<parallel>, #tpu.dimension_semantics<arbitrary>], iteration_bounds = array<i64: 1, 1, 1>, scalar_prefetch = 0 : i64, scratch_operands = 1 : i64, tpu.core_type = #tpu.core_type<tc>, window_params = [{transform_indices = @transform_0, window_bounds = array<i64: 16, 128>}, {transform_indices = @transform_1, window_bounds = array<i64: 128, 128>}, {transform_indices = @transform_2, window_bounds = array<i64: 1, 128>}, {transform_indices = @transform_3, window_bounds = array<i64: 1, 128>}, {transform_indices = @transform_4, window_bounds = array<i64: 16, 128>}]} {
    %c0_i32 = arith.constant 0 : i32
    %0 = arith.cmpi eq, %arg2, %c0_i32 : i32
    %1 = arith.extui %0 : i1 to i32
    %c0_i32_0 = arith.constant 0 : i32
    %2 = arith.cmpi ne, %1, %c0_i32_0 : i32
    scf.if %2 {
      %cst_10 = arith.constant 0.000000e+00 : f32
      %12 = vector.broadcast %cst_10 : f32 to vector<16x128xf32>
      %c0_11 = arith.constant 0 : index
      %c0_12 = arith.constant 0 : index
      %13 = vector.load %arg8[%c0_11, %c0_12] : memref<16x128xf32, #tpu.memory_space<vmem>>, vector<16x128xf32>
      tpu.vector_store %arg8[%c0_11, %c0_12], %12 {strides = array<i32>} : memref<16x128xf32, #tpu.memory_space<vmem>>, vector<16x128xf32>,
    } else {
    }
    %c0 = arith.constant 0 : index
    %c0_1 = arith.constant 0 : index
    %3 = vector.load %arg8[%c0, %c0_1] : memref<16x128xf32, #tpu.memory_space<vmem>>, vector<16x128xf32>
    %c0_2 = arith.constant 0 : index
    %c0_3 = arith.constant 0 : index
    %4 = vector.load %arg3[%c0_2, %c0_3] : memref<16x128xbf16, #tpu.memory_space<vmem>>, vector<16x128xbf16>
    %c0_4 = arith.constant 0 : index
    %c0_5 = arith.constant 0 : index
    %5 = vector.load %arg4[%c0_4, %c0_5] : memref<128x128xbf16, #tpu.memory_space<vmem>>, vector<128x128xbf16>
    %cst = arith.constant dense<0.000000e+00> : vector<16x128xf32>
    %6 = tpu.matmul %4, %5, %cst {dimension_numbers = #tpu.dot_dimension_numbers<[1], [0], [0], [1], [0, 0, 1, 1], [], []>} : vector<16x128xbf16>, vector<128x128xbf16>, vector<16x128xf32> -> vector<16x128xf32>
    %7 = arith.addf %3, %6 : vector<16x128xf32>
    %c0_6 = arith.constant 0 : index
    %c0_7 = arith.constant 0 : index
    %8 = vector.load %arg8[%c0_6, %c0_7] : memref<16x128xf32, #tpu.memory_space<vmem>>, vector<16x128xf32>
    tpu.vector_store %arg8[%c0_6, %c0_7], %7 {strides = array<i32>} : memref<16x128xf32, #tpu.memory_space<vmem>>, vector<16x128xf32>,
    %c0_i32_8 = arith.constant 0 : i32
    %9 = arith.cmpi eq, %arg2, %c0_i32_8 : i32
    %10 = arith.extui %9 : i1 to i32
    %c0_i32_9 = arith.constant 0 : i32
    %11 = arith.cmpi ne, %10, %c0_i32_9 : i32
    scf.if %11 {
      %c0_10 = arith.constant 0 : index
      %c0_11 = arith.constant 0 : index
      %12 = vector.load %arg8[%c0_10, %c0_11] : memref<16x128xf32, #tpu.memory_space<vmem>>, vector<16x128xf32>
      %c0_12 = arith.constant 0 : index
      %c0_13 = arith.constant 0 : index
      %13 = vector.load %arg5[%c0_12, %c0_13] : memref<1x128xf32, #tpu.memory_space<vmem>>, vector<1x128xf32>
      %14 = vector.broadcast %13 : vector<1x128xf32> to vector<16x128xf32>
      %15 = arith.mulf %12, %14 : vector<16x128xf32>
      %c0_14 = arith.constant 0 : index
      %c0_15 = arith.constant 0 : index
      %16 = vector.load %arg6[%c0_14, %c0_15] : memref<1x128xf32, #tpu.memory_space<vmem>>, vector<1x128xf32>
      %17 = vector.broadcast %16 : vector<1x128xf32> to vector<16x128xf32>
      %18 = arith.addf %15, %17 : vector<16x128xf32>
      %c0_16 = arith.constant 0 : index
      %c0_17 = arith.constant 0 : index
      %19 = vector.load %arg7[%c0_16, %c0_17] : memref<16x128xf32, #tpu.memory_space<vmem>>, vector<16x128xf32>
      tpu.vector_store %arg7[%c0_16, %c0_17], %18 {strides = array<i32>} : memref<16x128xf32, #tpu.memory_space<vmem>>, vector<16x128xf32>,
    } else {
    }
    return
  }
  func.func @transform_0(%arg0: i32, %arg1: i32, %arg2: i32) -> (i32, i32) {
    %c0_i32 = arith.constant 0 : i32
    return %arg0, %arg2 : i32, i32
  }
  func.func @transform_1(%arg0: i32, %arg1: i32, %arg2: i32) -> (i32, i32) {
    %c0_i32 = arith.constant 0 : i32
    return %arg2, %arg1 : i32, i32
  }
  func.func @transform_2(%arg0: i32, %arg1: i32, %arg2: i32) -> (i32, i32) {
    %c0_i32 = arith.constant 0 : i32
    %c0_i32_0 = arith.constant 0 : i32
    return %c0_i32, %arg1 : i32, i32
  }
  func.func @transform_3(%arg0: i32, %arg1: i32, %arg2: i32) -> (i32, i32) {
    %c0_i32 = arith.constant 0 : i32
    %c0_i32_0 = arith.constant 0 : i32
    return %c0_i32, %arg1 : i32, i32
  }
  func.func @transform_4(%arg0: i32, %arg1: i32, %arg2: i32) -> (i32, i32) {
    %c0_i32 = arith.constant 0 : i32
    return %arg0, %arg1 : i32, i32
  }
}

module attributes {stable_mosaic.version = 11 : i64} {
  func.func @_matmul_bn_add_kernel(%arg0: i32, %arg1: i32, %arg2: i32, %arg3: memref<16x256xbf16, #tpu.memory_space<vmem>>, %arg4: memref<256x128xbf16, #tpu.memory_space<vmem>>, %arg5: memref<1x128xf32, #tpu.memory_space<vmem>>, %arg6: memref<1x128xf32, #tpu.memory_space<vmem>>, %arg7: memref<16x128xf32, #tpu.memory_space<vmem>>, %arg8: memref<16x128xf32, #tpu.memory_space<vmem>>, %arg9: memref<16x128xf32, #tpu.memory_space<vmem>>) attributes {dimension_semantics = [#tpu.dimension_semantics<parallel>, #tpu.dimension_semantics<parallel>, #tpu.dimension_semantics<arbitrary>], iteration_bounds = array<i64: 1, 1, 5>, scalar_prefetch = 0 : i64, scratch_operands = 1 : i64, tpu.core_type = #tpu.core_type<tc>, window_params = [{transform_indices = @transform_0, window_bounds = array<i64: 16, 256>}, {transform_indices = @transform_1, window_bounds = array<i64: 256, 128>}, {transform_indices = @transform_2, window_bounds = array<i64: 1, 128>}, {transform_indices = @transform_3, window_bounds = array<i64: 1, 128>}, {transform_indices = @transform_4, window_bounds = array<i64: 16, 128>}, {transform_indices = @transform_5, window_bounds = array<i64: 16, 128>}]} {
    %c0_i32 = arith.constant 0 : i32
    %0 = arith.cmpi eq, %arg2, %c0_i32 : i32
    %1 = arith.extui %0 : i1 to i32
    %c0_i32_0 = arith.constant 0 : i32
    %2 = arith.cmpi ne, %1, %c0_i32_0 : i32
    scf.if %2 {
      %cst_9 = arith.constant 0.000000e+00 : f32
      %12 = vector.broadcast %cst_9 : f32 to vector<16x128xf32>
      %c0_10 = arith.constant 0 : index
      %c0_11 = arith.constant 0 : index
      %13 = vector.load %arg9[%c0_10, %c0_11] : memref<16x128xf32, #tpu.memory_space<vmem>>, vector<16x128xf32>
      tpu.vector_store %arg9[%c0_10, %c0_11], %12 {strides = array<i32>} : memref<16x128xf32, #tpu.memory_space<vmem>>, vector<16x128xf32>,
    } else {
    }
    %c0 = arith.constant 0 : index
    %c0_1 = arith.constant 0 : index
    %3 = vector.load %arg9[%c0, %c0_1] : memref<16x128xf32, #tpu.memory_space<vmem>>, vector<16x128xf32>
    %c0_2 = arith.constant 0 : index
    %c0_3 = arith.constant 0 : index
    %4 = vector.load %arg3[%c0_2, %c0_3] : memref<16x256xbf16, #tpu.memory_space<vmem>>, vector<16x256xbf16>
    %c0_4 = arith.constant 0 : index
    %c0_5 = arith.constant 0 : index
    %5 = vector.load %arg4[%c0_4, %c0_5] : memref<256x128xbf16, #tpu.memory_space<vmem>>, vector<256x128xbf16>
    %cst = arith.constant dense<0.000000e+00> : vector<16x128xf32>
    %6 = tpu.matmul %4, %5, %cst {dimension_numbers = #tpu.dot_dimension_numbers<[1], [0], [0], [1], [0, 0, 1, 1], [], []>} : vector<16x256xbf16>, vector<256x128xbf16>, vector<16x128xf32> -> vector<16x128xf32>
    %7 = arith.addf %3, %6 : vector<16x128xf32>
    %c0_6 = arith.constant 0 : index
    %c0_7 = arith.constant 0 : index
    %8 = vector.load %arg9[%c0_6, %c0_7] : memref<16x128xf32, #tpu.memory_space<vmem>>, vector<16x128xf32>
    tpu.vector_store %arg9[%c0_6, %c0_7], %7 {strides = array<i32>} : memref<16x128xf32, #tpu.memory_space<vmem>>, vector<16x128xf32>,
    %c4_i32 = arith.constant 4 : i32
    %9 = arith.cmpi eq, %arg2, %c4_i32 : i32
    %10 = arith.extui %9 : i1 to i32
    %c0_i32_8 = arith.constant 0 : i32
    %11 = arith.cmpi ne, %10, %c0_i32_8 : i32
    scf.if %11 {
      %c0_9 = arith.constant 0 : index
      %c0_10 = arith.constant 0 : index
      %12 = vector.load %arg9[%c0_9, %c0_10] : memref<16x128xf32, #tpu.memory_space<vmem>>, vector<16x128xf32>
      %c0_11 = arith.constant 0 : index
      %c0_12 = arith.constant 0 : index
      %13 = vector.load %arg5[%c0_11, %c0_12] : memref<1x128xf32, #tpu.memory_space<vmem>>, vector<1x128xf32>
      %14 = vector.broadcast %13 : vector<1x128xf32> to vector<16x128xf32>
      %15 = arith.mulf %12, %14 : vector<16x128xf32>
      %c0_13 = arith.constant 0 : index
      %c0_14 = arith.constant 0 : index
      %16 = vector.load %arg6[%c0_13, %c0_14] : memref<1x128xf32, #tpu.memory_space<vmem>>, vector<1x128xf32>
      %17 = vector.broadcast %16 : vector<1x128xf32> to vector<16x128xf32>
      %18 = arith.addf %15, %17 : vector<16x128xf32>
      %c0_15 = arith.constant 0 : index
      %c0_16 = arith.constant 0 : index
      %19 = vector.load %arg7[%c0_15, %c0_16] : memref<16x128xf32, #tpu.memory_space<vmem>>, vector<16x128xf32>
      %20 = arith.addf %18, %19 : vector<16x128xf32>
      %cst_17 = arith.constant 0.000000e+00 : f32
      %21 = vector.broadcast %cst_17 : f32 to vector<16x128xf32>
      %22 = arith.maximumf %20, %21 : vector<16x128xf32>
      %c0_18 = arith.constant 0 : index
      %c0_19 = arith.constant 0 : index
      %23 = vector.load %arg8[%c0_18, %c0_19] : memref<16x128xf32, #tpu.memory_space<vmem>>, vector<16x128xf32>
      tpu.vector_store %arg8[%c0_18, %c0_19], %22 {strides = array<i32>} : memref<16x128xf32, #tpu.memory_space<vmem>>, vector<16x128xf32>,
    } else {
    }
    return
  }
  func.func @transform_0(%arg0: i32, %arg1: i32, %arg2: i32) -> (i32, i32) {
    %c0_i32 = arith.constant 0 : i32
    return %arg0, %arg2 : i32, i32
  }
  func.func @transform_1(%arg0: i32, %arg1: i32, %arg2: i32) -> (i32, i32) {
    %c0_i32 = arith.constant 0 : i32
    return %arg2, %arg1 : i32, i32
  }
  func.func @transform_2(%arg0: i32, %arg1: i32, %arg2: i32) -> (i32, i32) {
    %c0_i32 = arith.constant 0 : i32
    %c0_i32_0 = arith.constant 0 : i32
    return %c0_i32, %arg1 : i32, i32
  }
  func.func @transform_3(%arg0: i32, %arg1: i32, %arg2: i32) -> (i32, i32) {
    %c0_i32 = arith.constant 0 : i32
    %c0_i32_0 = arith.constant 0 : i32
    return %c0_i32, %arg1 : i32, i32
  }
  func.func @transform_4(%arg0: i32, %arg1: i32, %arg2: i32) -> (i32, i32) {
    %c0_i32 = arith.constant 0 : i32
    return %arg0, %arg1 : i32, i32
  }
  func.func @transform_5(%arg0: i32, %arg1: i32, %arg2: i32) -> (i32, i32) {
    %c0_i32 = arith.constant 0 : i32
    return %arg0, %arg1 : i32, i32
  }
}

module attributes {stable_mosaic.version = 11 : i64} {
  func.func @_matmul_bn_kernel(%arg0: i32, %arg1: i32, %arg2: i32, %arg3: memref<16x256xbf16, #tpu.memory_space<vmem>>, %arg4: memref<256x256xbf16, #tpu.memory_space<vmem>>, %arg5: memref<1x256xf32, #tpu.memory_space<vmem>>, %arg6: memref<1x256xf32, #tpu.memory_space<vmem>>, %arg7: memref<16x256xf32, #tpu.memory_space<vmem>>, %arg8: memref<16x256xf32, #tpu.memory_space<vmem>>) attributes {dimension_semantics = [#tpu.dimension_semantics<parallel>, #tpu.dimension_semantics<parallel>, #tpu.dimension_semantics<arbitrary>], iteration_bounds = array<i64: 1, 1, 5>, scalar_prefetch = 0 : i64, scratch_operands = 1 : i64, tpu.core_type = #tpu.core_type<tc>, window_params = [{transform_indices = @transform_0, window_bounds = array<i64: 16, 256>}, {transform_indices = @transform_1, window_bounds = array<i64: 256, 256>}, {transform_indices = @transform_2, window_bounds = array<i64: 1, 256>}, {transform_indices = @transform_3, window_bounds = array<i64: 1, 256>}, {transform_indices = @transform_4, window_bounds = array<i64: 16, 256>}]} {
    %c0_i32 = arith.constant 0 : i32
    %0 = arith.cmpi eq, %arg2, %c0_i32 : i32
    %1 = arith.extui %0 : i1 to i32
    %c0_i32_0 = arith.constant 0 : i32
    %2 = arith.cmpi ne, %1, %c0_i32_0 : i32
    scf.if %2 {
      %cst_9 = arith.constant 0.000000e+00 : f32
      %12 = vector.broadcast %cst_9 : f32 to vector<16x256xf32>
      %c0_10 = arith.constant 0 : index
      %c0_11 = arith.constant 0 : index
      %13 = vector.load %arg8[%c0_10, %c0_11] : memref<16x256xf32, #tpu.memory_space<vmem>>, vector<16x256xf32>
      tpu.vector_store %arg8[%c0_10, %c0_11], %12 {strides = array<i32>} : memref<16x256xf32, #tpu.memory_space<vmem>>, vector<16x256xf32>,
    } else {
    }
    %c0 = arith.constant 0 : index
    %c0_1 = arith.constant 0 : index
    %3 = vector.load %arg8[%c0, %c0_1] : memref<16x256xf32, #tpu.memory_space<vmem>>, vector<16x256xf32>
    %c0_2 = arith.constant 0 : index
    %c0_3 = arith.constant 0 : index
    %4 = vector.load %arg3[%c0_2, %c0_3] : memref<16x256xbf16, #tpu.memory_space<vmem>>, vector<16x256xbf16>
    %c0_4 = arith.constant 0 : index
    %c0_5 = arith.constant 0 : index
    %5 = vector.load %arg4[%c0_4, %c0_5] : memref<256x256xbf16, #tpu.memory_space<vmem>>, vector<256x256xbf16>
    %cst = arith.constant dense<0.000000e+00> : vector<16x256xf32>
    %6 = tpu.matmul %4, %5, %cst {dimension_numbers = #tpu.dot_dimension_numbers<[1], [0], [0], [1], [0, 0, 1, 1], [], []>} : vector<16x256xbf16>, vector<256x256xbf16>, vector<16x256xf32> -> vector<16x256xf32>
    %7 = arith.addf %3, %6 : vector<16x256xf32>
    %c0_6 = arith.constant 0 : index
    %c0_7 = arith.constant 0 : index
    %8 = vector.load %arg8[%c0_6, %c0_7] : memref<16x256xf32, #tpu.memory_space<vmem>>, vector<16x256xf32>
    tpu.vector_store %arg8[%c0_6, %c0_7], %7 {strides = array<i32>} : memref<16x256xf32, #tpu.memory_space<vmem>>, vector<16x256xf32>,
    %c4_i32 = arith.constant 4 : i32
    %9 = arith.cmpi eq, %arg2, %c4_i32 : i32
    %10 = arith.extui %9 : i1 to i32
    %c0_i32_8 = arith.constant 0 : i32
    %11 = arith.cmpi ne, %10, %c0_i32_8 : i32
    scf.if %11 {
      %c0_9 = arith.constant 0 : index
      %c0_10 = arith.constant 0 : index
      %12 = vector.load %arg8[%c0_9, %c0_10] : memref<16x256xf32, #tpu.memory_space<vmem>>, vector<16x256xf32>
      %c0_11 = arith.constant 0 : index
      %c0_12 = arith.constant 0 : index
      %13 = vector.load %arg5[%c0_11, %c0_12] : memref<1x256xf32, #tpu.memory_space<vmem>>, vector<1x256xf32>
      %14 = vector.broadcast %13 : vector<1x256xf32> to vector<16x256xf32>
      %15 = arith.mulf %12, %14 : vector<16x256xf32>
      %c0_13 = arith.constant 0 : index
      %c0_14 = arith.constant 0 : index
      %16 = vector.load %arg6[%c0_13, %c0_14] : memref<1x256xf32, #tpu.memory_space<vmem>>, vector<1x256xf32>
      %17 = vector.broadcast %16 : vector<1x256xf32> to vector<16x256xf32>
      %18 = arith.addf %15, %17 : vector<16x256xf32>
      %cst_15 = arith.constant 0.000000e+00 : f32
      %19 = vector.broadcast %cst_15 : f32 to vector<16x256xf32>
      %20 = arith.maximumf %18, %19 : vector<16x256xf32>
      %c0_16 = arith.constant 0 : index
      %c0_17 = arith.constant 0 : index
      %21 = vector.load %arg7[%c0_16, %c0_17] : memref<16x256xf32, #tpu.memory_space<vmem>>, vector<16x256xf32>
      tpu.vector_store %arg7[%c0_16, %c0_17], %20 {strides = array<i32>} : memref<16x256xf32, #tpu.memory_space<vmem>>, vector<16x256xf32>,
    } else {
    }
    return
  }
  func.func @transform_0(%arg0: i32, %arg1: i32, %arg2: i32) -> (i32, i32) {
    %c0_i32 = arith.constant 0 : i32
    return %arg0, %arg2 : i32, i32
  }
  func.func @transform_1(%arg0: i32, %arg1: i32, %arg2: i32) -> (i32, i32) {
    %c0_i32 = arith.constant 0 : i32
    return %arg2, %arg1 : i32, i32
  }
  func.func @transform_2(%arg0: i32, %arg1: i32, %arg2: i32) -> (i32, i32) {
    %c0_i32 = arith.constant 0 : i32
    %c0_i32_0 = arith.constant 0 : i32
    return %c0_i32, %arg1 : i32, i32
  }
  func.func @transform_3(%arg0: i32, %arg1: i32, %arg2: i32) -> (i32, i32) {
    %c0_i32 = arith.constant 0 : i32
    %c0_i32_0 = arith.constant 0 : i32
    return %c0_i32, %arg1 : i32, i32
  }
  func.func @transform_4(%arg0: i32, %arg1: i32, %arg2: i32) -> (i32, i32) {
    %c0_i32 = arith.constant 0 : i32
    return %arg0, %arg1 : i32, i32
  }
}

module attributes {stable_mosaic.version = 11 : i64} {
  func.func @_matmul_bn_kernel(%arg0: i32, %arg1: i32, %arg2: i32, %arg3: memref<16x128xbf16, #tpu.memory_space<vmem>>, %arg4: memref<128x256xbf16, #tpu.memory_space<vmem>>, %arg5: memref<1x256xf32, #tpu.memory_space<vmem>>, %arg6: memref<1x256xf32, #tpu.memory_space<vmem>>, %arg7: memref<16x256xf32, #tpu.memory_space<vmem>>, %arg8: memref<16x256xf32, #tpu.memory_space<vmem>>) attributes {dimension_semantics = [#tpu.dimension_semantics<parallel>, #tpu.dimension_semantics<parallel>, #tpu.dimension_semantics<arbitrary>], iteration_bounds = array<i64: 1, 1, 1>, scalar_prefetch = 0 : i64, scratch_operands = 1 : i64, tpu.core_type = #tpu.core_type<tc>, window_params = [{transform_indices = @transform_0, window_bounds = array<i64: 16, 128>}, {transform_indices = @transform_1, window_bounds = array<i64: 128, 256>}, {transform_indices = @transform_2, window_bounds = array<i64: 1, 256>}, {transform_indices = @transform_3, window_bounds = array<i64: 1, 256>}, {transform_indices = @transform_4, window_bounds = array<i64: 16, 256>}]} {
    %c0_i32 = arith.constant 0 : i32
    %0 = arith.cmpi eq, %arg2, %c0_i32 : i32
    %1 = arith.extui %0 : i1 to i32
    %c0_i32_0 = arith.constant 0 : i32
    %2 = arith.cmpi ne, %1, %c0_i32_0 : i32
    scf.if %2 {
      %cst_10 = arith.constant 0.000000e+00 : f32
      %12 = vector.broadcast %cst_10 : f32 to vector<16x256xf32>
      %c0_11 = arith.constant 0 : index
      %c0_12 = arith.constant 0 : index
      %13 = vector.load %arg8[%c0_11, %c0_12] : memref<16x256xf32, #tpu.memory_space<vmem>>, vector<16x256xf32>
      tpu.vector_store %arg8[%c0_11, %c0_12], %12 {strides = array<i32>} : memref<16x256xf32, #tpu.memory_space<vmem>>, vector<16x256xf32>,
    } else {
    }
    %c0 = arith.constant 0 : index
    %c0_1 = arith.constant 0 : index
    %3 = vector.load %arg8[%c0, %c0_1] : memref<16x256xf32, #tpu.memory_space<vmem>>, vector<16x256xf32>
    %c0_2 = arith.constant 0 : index
    %c0_3 = arith.constant 0 : index
    %4 = vector.load %arg3[%c0_2, %c0_3] : memref<16x128xbf16, #tpu.memory_space<vmem>>, vector<16x128xbf16>
    %c0_4 = arith.constant 0 : index
    %c0_5 = arith.constant 0 : index
    %5 = vector.load %arg4[%c0_4, %c0_5] : memref<128x256xbf16, #tpu.memory_space<vmem>>, vector<128x256xbf16>
    %cst = arith.constant dense<0.000000e+00> : vector<16x256xf32>
    %6 = tpu.matmul %4, %5, %cst {dimension_numbers = #tpu.dot_dimension_numbers<[1], [0], [0], [1], [0, 0, 1, 1], [], []>} : vector<16x128xbf16>, vector<128x256xbf16>, vector<16x256xf32> -> vector<16x256xf32>
    %7 = arith.addf %3, %6 : vector<16x256xf32>
    %c0_6 = arith.constant 0 : index
    %c0_7 = arith.constant 0 : index
    %8 = vector.load %arg8[%c0_6, %c0_7] : memref<16x256xf32, #tpu.memory_space<vmem>>, vector<16x256xf32>
    tpu.vector_store %arg8[%c0_6, %c0_7], %7 {strides = array<i32>} : memref<16x256xf32, #tpu.memory_space<vmem>>, vector<16x256xf32>,
    %c0_i32_8 = arith.constant 0 : i32
    %9 = arith.cmpi eq, %arg2, %c0_i32_8 : i32
    %10 = arith.extui %9 : i1 to i32
    %c0_i32_9 = arith.constant 0 : i32
    %11 = arith.cmpi ne, %10, %c0_i32_9 : i32
    scf.if %11 {
      %c0_10 = arith.constant 0 : index
      %c0_11 = arith.constant 0 : index
      %12 = vector.load %arg8[%c0_10, %c0_11] : memref<16x256xf32, #tpu.memory_space<vmem>>, vector<16x256xf32>
      %c0_12 = arith.constant 0 : index
      %c0_13 = arith.constant 0 : index
      %13 = vector.load %arg5[%c0_12, %c0_13] : memref<1x256xf32, #tpu.memory_space<vmem>>, vector<1x256xf32>
      %14 = vector.broadcast %13 : vector<1x256xf32> to vector<16x256xf32>
      %15 = arith.mulf %12, %14 : vector<16x256xf32>
      %c0_14 = arith.constant 0 : index
      %c0_15 = arith.constant 0 : index
      %16 = vector.load %arg6[%c0_14, %c0_15] : memref<1x256xf32, #tpu.memory_space<vmem>>, vector<1x256xf32>
      %17 = vector.broadcast %16 : vector<1x256xf32> to vector<16x256xf32>
      %18 = arith.addf %15, %17 : vector<16x256xf32>
      %c0_16 = arith.constant 0 : index
      %c0_17 = arith.constant 0 : index
      %19 = vector.load %arg7[%c0_16, %c0_17] : memref<16x256xf32, #tpu.memory_space<vmem>>, vector<16x256xf32>
      tpu.vector_store %arg7[%c0_16, %c0_17], %18 {strides = array<i32>} : memref<16x256xf32, #tpu.memory_space<vmem>>, vector<16x256xf32>,
    } else {
    }
    return
  }
  func.func @transform_0(%arg0: i32, %arg1: i32, %arg2: i32) -> (i32, i32) {
    %c0_i32 = arith.constant 0 : i32
    return %arg0, %arg2 : i32, i32
  }
  func.func @transform_1(%arg0: i32, %arg1: i32, %arg2: i32) -> (i32, i32) {
    %c0_i32 = arith.constant 0 : i32
    return %arg2, %arg1 : i32, i32
  }
  func.func @transform_2(%arg0: i32, %arg1: i32, %arg2: i32) -> (i32, i32) {
    %c0_i32 = arith.constant 0 : i32
    %c0_i32_0 = arith.constant 0 : i32
    return %c0_i32, %arg1 : i32, i32
  }
  func.func @transform_3(%arg0: i32, %arg1: i32, %arg2: i32) -> (i32, i32) {
    %c0_i32 = arith.constant 0 : i32
    %c0_i32_0 = arith.constant 0 : i32
    return %c0_i32, %arg1 : i32, i32
  }
  func.func @transform_4(%arg0: i32, %arg1: i32, %arg2: i32) -> (i32, i32) {
    %c0_i32 = arith.constant 0 : i32
    return %arg0, %arg1 : i32, i32
  }
}

module attributes {stable_mosaic.version = 11 : i64} {
  func.func @_matmul_bn_add_kernel(%arg0: i32, %arg1: i32, %arg2: i32, %arg3: memref<16x256xbf16, #tpu.memory_space<vmem>>, %arg4: memref<256x256xbf16, #tpu.memory_space<vmem>>, %arg5: memref<1x256xf32, #tpu.memory_space<vmem>>, %arg6: memref<1x256xf32, #tpu.memory_space<vmem>>, %arg7: memref<16x256xf32, #tpu.memory_space<vmem>>, %arg8: memref<16x256xf32, #tpu.memory_space<vmem>>, %arg9: memref<16x256xf32, #tpu.memory_space<vmem>>) attributes {dimension_semantics = [#tpu.dimension_semantics<parallel>, #tpu.dimension_semantics<parallel>, #tpu.dimension_semantics<arbitrary>], iteration_bounds = array<i64: 1, 1, 9>, scalar_prefetch = 0 : i64, scratch_operands = 1 : i64, tpu.core_type = #tpu.core_type<tc>, window_params = [{transform_indices = @transform_0, window_bounds = array<i64: 16, 256>}, {transform_indices = @transform_1, window_bounds = array<i64: 256, 256>}, {transform_indices = @transform_2, window_bounds = array<i64: 1, 256>}, {transform_indices = @transform_3, window_bounds = array<i64: 1, 256>}, {transform_indices = @transform_4, window_bounds = array<i64: 16, 256>}, {transform_indices = @transform_5, window_bounds = array<i64: 16, 256>}]} {
    %c0_i32 = arith.constant 0 : i32
    %0 = arith.cmpi eq, %arg2, %c0_i32 : i32
    %1 = arith.extui %0 : i1 to i32
    %c0_i32_0 = arith.constant 0 : i32
    %2 = arith.cmpi ne, %1, %c0_i32_0 : i32
    scf.if %2 {
      %cst_9 = arith.constant 0.000000e+00 : f32
      %12 = vector.broadcast %cst_9 : f32 to vector<16x256xf32>
      %c0_10 = arith.constant 0 : index
      %c0_11 = arith.constant 0 : index
      %13 = vector.load %arg9[%c0_10, %c0_11] : memref<16x256xf32, #tpu.memory_space<vmem>>, vector<16x256xf32>
      tpu.vector_store %arg9[%c0_10, %c0_11], %12 {strides = array<i32>} : memref<16x256xf32, #tpu.memory_space<vmem>>, vector<16x256xf32>,
    } else {
    }
    %c0 = arith.constant 0 : index
    %c0_1 = arith.constant 0 : index
    %3 = vector.load %arg9[%c0, %c0_1] : memref<16x256xf32, #tpu.memory_space<vmem>>, vector<16x256xf32>
    %c0_2 = arith.constant 0 : index
    %c0_3 = arith.constant 0 : index
    %4 = vector.load %arg3[%c0_2, %c0_3] : memref<16x256xbf16, #tpu.memory_space<vmem>>, vector<16x256xbf16>
    %c0_4 = arith.constant 0 : index
    %c0_5 = arith.constant 0 : index
    %5 = vector.load %arg4[%c0_4, %c0_5] : memref<256x256xbf16, #tpu.memory_space<vmem>>, vector<256x256xbf16>
    %cst = arith.constant dense<0.000000e+00> : vector<16x256xf32>
    %6 = tpu.matmul %4, %5, %cst {dimension_numbers = #tpu.dot_dimension_numbers<[1], [0], [0], [1], [0, 0, 1, 1], [], []>} : vector<16x256xbf16>, vector<256x256xbf16>, vector<16x256xf32> -> vector<16x256xf32>
    %7 = arith.addf %3, %6 : vector<16x256xf32>
    %c0_6 = arith.constant 0 : index
    %c0_7 = arith.constant 0 : index
    %8 = vector.load %arg9[%c0_6, %c0_7] : memref<16x256xf32, #tpu.memory_space<vmem>>, vector<16x256xf32>
    tpu.vector_store %arg9[%c0_6, %c0_7], %7 {strides = array<i32>} : memref<16x256xf32, #tpu.memory_space<vmem>>, vector<16x256xf32>,
    %c8_i32 = arith.constant 8 : i32
    %9 = arith.cmpi eq, %arg2, %c8_i32 : i32
    %10 = arith.extui %9 : i1 to i32
    %c0_i32_8 = arith.constant 0 : i32
    %11 = arith.cmpi ne, %10, %c0_i32_8 : i32
    scf.if %11 {
      %c0_9 = arith.constant 0 : index
      %c0_10 = arith.constant 0 : index
      %12 = vector.load %arg9[%c0_9, %c0_10] : memref<16x256xf32, #tpu.memory_space<vmem>>, vector<16x256xf32>
      %c0_11 = arith.constant 0 : index
      %c0_12 = arith.constant 0 : index
      %13 = vector.load %arg5[%c0_11, %c0_12] : memref<1x256xf32, #tpu.memory_space<vmem>>, vector<1x256xf32>
      %14 = vector.broadcast %13 : vector<1x256xf32> to vector<16x256xf32>
      %15 = arith.mulf %12, %14 : vector<16x256xf32>
      %c0_13 = arith.constant 0 : index
      %c0_14 = arith.constant 0 : index
      %16 = vector.load %arg6[%c0_13, %c0_14] : memref<1x256xf32, #tpu.memory_space<vmem>>, vector<1x256xf32>
      %17 = vector.broadcast %16 : vector<1x256xf32> to vector<16x256xf32>
      %18 = arith.addf %15, %17 : vector<16x256xf32>
      %c0_15 = arith.constant 0 : index
      %c0_16 = arith.constant 0 : index
      %19 = vector.load %arg7[%c0_15, %c0_16] : memref<16x256xf32, #tpu.memory_space<vmem>>, vector<16x256xf32>
      %20 = arith.addf %18, %19 : vector<16x256xf32>
      %cst_17 = arith.constant 0.000000e+00 : f32
      %21 = vector.broadcast %cst_17 : f32 to vector<16x256xf32>
      %22 = arith.maximumf %20, %21 : vector<16x256xf32>
      %c0_18 = arith.constant 0 : index
      %c0_19 = arith.constant 0 : index
      %23 = vector.load %arg8[%c0_18, %c0_19] : memref<16x256xf32, #tpu.memory_space<vmem>>, vector<16x256xf32>
      tpu.vector_store %arg8[%c0_18, %c0_19], %22 {strides = array<i32>} : memref<16x256xf32, #tpu.memory_space<vmem>>, vector<16x256xf32>,
    } else {
    }
    return
  }
  func.func @transform_0(%arg0: i32, %arg1: i32, %arg2: i32) -> (i32, i32) {
    %c0_i32 = arith.constant 0 : i32
    return %arg0, %arg2 : i32, i32
  }
  func.func @transform_1(%arg0: i32, %arg1: i32, %arg2: i32) -> (i32, i32) {
    %c0_i32 = arith.constant 0 : i32
    return %arg2, %arg1 : i32, i32
  }
  func.func @transform_2(%arg0: i32, %arg1: i32, %arg2: i32) -> (i32, i32) {
    %c0_i32 = arith.constant 0 : i32
    %c0_i32_0 = arith.constant 0 : i32
    return %c0_i32, %arg1 : i32, i32
  }
  func.func @transform_3(%arg0: i32, %arg1: i32, %arg2: i32) -> (i32, i32) {
    %c0_i32 = arith.constant 0 : i32
    %c0_i32_0 = arith.constant 0 : i32
    return %c0_i32, %arg1 : i32, i32
  }
  func.func @transform_4(%arg0: i32, %arg1: i32, %arg2: i32) -> (i32, i32) {
    %c0_i32 = arith.constant 0 : i32
    return %arg0, %arg1 : i32, i32
  }
  func.func @transform_5(%arg0: i32, %arg1: i32, %arg2: i32) -> (i32, i32) {
    %c0_i32 = arith.constant 0 : i32
    return %arg0, %arg1 : i32, i32
  }
}

module attributes {stable_mosaic.version = 11 : i64} {
  func.func @_matmul_bn_kernel(%arg0: i32, %arg1: i32, %arg2: i32, %arg3: memref<16x256xbf16, #tpu.memory_space<vmem>>, %arg4: memref<256x256xbf16, #tpu.memory_space<vmem>>, %arg5: memref<1x256xf32, #tpu.memory_space<vmem>>, %arg6: memref<1x256xf32, #tpu.memory_space<vmem>>, %arg7: memref<16x256xf32, #tpu.memory_space<vmem>>, %arg8: memref<16x256xf32, #tpu.memory_space<vmem>>) attributes {dimension_semantics = [#tpu.dimension_semantics<parallel>, #tpu.dimension_semantics<parallel>, #tpu.dimension_semantics<arbitrary>], iteration_bounds = array<i64: 1, 2, 9>, scalar_prefetch = 0 : i64, scratch_operands = 1 : i64, tpu.core_type = #tpu.core_type<tc>, window_params = [{transform_indices = @transform_0, window_bounds = array<i64: 16, 256>}, {transform_indices = @transform_1, window_bounds = array<i64: 256, 256>}, {transform_indices = @transform_2, window_bounds = array<i64: 1, 256>}, {transform_indices = @transform_3, window_bounds = array<i64: 1, 256>}, {transform_indices = @transform_4, window_bounds = array<i64: 16, 256>}]} {
    %c0_i32 = arith.constant 0 : i32
    %0 = arith.cmpi eq, %arg2, %c0_i32 : i32
    %1 = arith.extui %0 : i1 to i32
    %c0_i32_0 = arith.constant 0 : i32
    %2 = arith.cmpi ne, %1, %c0_i32_0 : i32
    scf.if %2 {
      %cst_9 = arith.constant 0.000000e+00 : f32
      %12 = vector.broadcast %cst_9 : f32 to vector<16x256xf32>
      %c0_10 = arith.constant 0 : index
      %c0_11 = arith.constant 0 : index
      %13 = vector.load %arg8[%c0_10, %c0_11] : memref<16x256xf32, #tpu.memory_space<vmem>>, vector<16x256xf32>
      tpu.vector_store %arg8[%c0_10, %c0_11], %12 {strides = array<i32>} : memref<16x256xf32, #tpu.memory_space<vmem>>, vector<16x256xf32>,
    } else {
    }
    %c0 = arith.constant 0 : index
    %c0_1 = arith.constant 0 : index
    %3 = vector.load %arg8[%c0, %c0_1] : memref<16x256xf32, #tpu.memory_space<vmem>>, vector<16x256xf32>
    %c0_2 = arith.constant 0 : index
    %c0_3 = arith.constant 0 : index
    %4 = vector.load %arg3[%c0_2, %c0_3] : memref<16x256xbf16, #tpu.memory_space<vmem>>, vector<16x256xbf16>
    %c0_4 = arith.constant 0 : index
    %c0_5 = arith.constant 0 : index
    %5 = vector.load %arg4[%c0_4, %c0_5] : memref<256x256xbf16, #tpu.memory_space<vmem>>, vector<256x256xbf16>
    %cst = arith.constant dense<0.000000e+00> : vector<16x256xf32>
    %6 = tpu.matmul %4, %5, %cst {dimension_numbers = #tpu.dot_dimension_numbers<[1], [0], [0], [1], [0, 0, 1, 1], [], []>} : vector<16x256xbf16>, vector<256x256xbf16>, vector<16x256xf32> -> vector<16x256xf32>
    %7 = arith.addf %3, %6 : vector<16x256xf32>
    %c0_6 = arith.constant 0 : index
    %c0_7 = arith.constant 0 : index
    %8 = vector.load %arg8[%c0_6, %c0_7] : memref<16x256xf32, #tpu.memory_space<vmem>>, vector<16x256xf32>
    tpu.vector_store %arg8[%c0_6, %c0_7], %7 {strides = array<i32>} : memref<16x256xf32, #tpu.memory_space<vmem>>, vector<16x256xf32>,
    %c8_i32 = arith.constant 8 : i32
    %9 = arith.cmpi eq, %arg2, %c8_i32 : i32
    %10 = arith.extui %9 : i1 to i32
    %c0_i32_8 = arith.constant 0 : i32
    %11 = arith.cmpi ne, %10, %c0_i32_8 : i32
    scf.if %11 {
      %c0_9 = arith.constant 0 : index
      %c0_10 = arith.constant 0 : index
      %12 = vector.load %arg8[%c0_9, %c0_10] : memref<16x256xf32, #tpu.memory_space<vmem>>, vector<16x256xf32>
      %c0_11 = arith.constant 0 : index
      %c0_12 = arith.constant 0 : index
      %13 = vector.load %arg5[%c0_11, %c0_12] : memref<1x256xf32, #tpu.memory_space<vmem>>, vector<1x256xf32>
      %14 = vector.broadcast %13 : vector<1x256xf32> to vector<16x256xf32>
      %15 = arith.mulf %12, %14 : vector<16x256xf32>
      %c0_13 = arith.constant 0 : index
      %c0_14 = arith.constant 0 : index
      %16 = vector.load %arg6[%c0_13, %c0_14] : memref<1x256xf32, #tpu.memory_space<vmem>>, vector<1x256xf32>
      %17 = vector.broadcast %16 : vector<1x256xf32> to vector<16x256xf32>
      %18 = arith.addf %15, %17 : vector<16x256xf32>
      %cst_15 = arith.constant 0.000000e+00 : f32
      %19 = vector.broadcast %cst_15 : f32 to vector<16x256xf32>
      %20 = arith.maximumf %18, %19 : vector<16x256xf32>
      %c0_16 = arith.constant 0 : index
      %c0_17 = arith.constant 0 : index
      %21 = vector.load %arg7[%c0_16, %c0_17] : memref<16x256xf32, #tpu.memory_space<vmem>>, vector<16x256xf32>
      tpu.vector_store %arg7[%c0_16, %c0_17], %20 {strides = array<i32>} : memref<16x256xf32, #tpu.memory_space<vmem>>, vector<16x256xf32>,
    } else {
    }
    return
  }
  func.func @transform_0(%arg0: i32, %arg1: i32, %arg2: i32) -> (i32, i32) {
    %c0_i32 = arith.constant 0 : i32
    return %arg0, %arg2 : i32, i32
  }
  func.func @transform_1(%arg0: i32, %arg1: i32, %arg2: i32) -> (i32, i32) {
    %c0_i32 = arith.constant 0 : i32
    return %arg2, %arg1 : i32, i32
  }
  func.func @transform_2(%arg0: i32, %arg1: i32, %arg2: i32) -> (i32, i32) {
    %c0_i32 = arith.constant 0 : i32
    %c0_i32_0 = arith.constant 0 : i32
    return %c0_i32, %arg1 : i32, i32
  }
  func.func @transform_3(%arg0: i32, %arg1: i32, %arg2: i32) -> (i32, i32) {
    %c0_i32 = arith.constant 0 : i32
    %c0_i32_0 = arith.constant 0 : i32
    return %c0_i32, %arg1 : i32, i32
  }
  func.func @transform_4(%arg0: i32, %arg1: i32, %arg2: i32) -> (i32, i32) {
    %c0_i32 = arith.constant 0 : i32
    return %arg0, %arg1 : i32, i32
  }
}

module attributes {stable_mosaic.version = 11 : i64} {
  func.func @_matmul_bn_kernel(%arg0: i32, %arg1: i32, %arg2: i32, %arg3: memref<16x256xbf16, #tpu.memory_space<vmem>>, %arg4: memref<256x256xbf16, #tpu.memory_space<vmem>>, %arg5: memref<1x256xf32, #tpu.memory_space<vmem>>, %arg6: memref<1x256xf32, #tpu.memory_space<vmem>>, %arg7: memref<16x256xf32, #tpu.memory_space<vmem>>, %arg8: memref<16x256xf32, #tpu.memory_space<vmem>>) attributes {dimension_semantics = [#tpu.dimension_semantics<parallel>, #tpu.dimension_semantics<parallel>, #tpu.dimension_semantics<arbitrary>], iteration_bounds = array<i64: 1, 2, 1>, scalar_prefetch = 0 : i64, scratch_operands = 1 : i64, tpu.core_type = #tpu.core_type<tc>, window_params = [{transform_indices = @transform_0, window_bounds = array<i64: 16, 256>}, {transform_indices = @transform_1, window_bounds = array<i64: 256, 256>}, {transform_indices = @transform_2, window_bounds = array<i64: 1, 256>}, {transform_indices = @transform_3, window_bounds = array<i64: 1, 256>}, {transform_indices = @transform_4, window_bounds = array<i64: 16, 256>}]} {
    %c0_i32 = arith.constant 0 : i32
    %0 = arith.cmpi eq, %arg2, %c0_i32 : i32
    %1 = arith.extui %0 : i1 to i32
    %c0_i32_0 = arith.constant 0 : i32
    %2 = arith.cmpi ne, %1, %c0_i32_0 : i32
    scf.if %2 {
      %cst_10 = arith.constant 0.000000e+00 : f32
      %12 = vector.broadcast %cst_10 : f32 to vector<16x256xf32>
      %c0_11 = arith.constant 0 : index
      %c0_12 = arith.constant 0 : index
      %13 = vector.load %arg8[%c0_11, %c0_12] : memref<16x256xf32, #tpu.memory_space<vmem>>, vector<16x256xf32>
      tpu.vector_store %arg8[%c0_11, %c0_12], %12 {strides = array<i32>} : memref<16x256xf32, #tpu.memory_space<vmem>>, vector<16x256xf32>,
    } else {
    }
    %c0 = arith.constant 0 : index
    %c0_1 = arith.constant 0 : index
    %3 = vector.load %arg8[%c0, %c0_1] : memref<16x256xf32, #tpu.memory_space<vmem>>, vector<16x256xf32>
    %c0_2 = arith.constant 0 : index
    %c0_3 = arith.constant 0 : index
    %4 = vector.load %arg3[%c0_2, %c0_3] : memref<16x256xbf16, #tpu.memory_space<vmem>>, vector<16x256xbf16>
    %c0_4 = arith.constant 0 : index
    %c0_5 = arith.constant 0 : index
    %5 = vector.load %arg4[%c0_4, %c0_5] : memref<256x256xbf16, #tpu.memory_space<vmem>>, vector<256x256xbf16>
    %cst = arith.constant dense<0.000000e+00> : vector<16x256xf32>
    %6 = tpu.matmul %4, %5, %cst {dimension_numbers = #tpu.dot_dimension_numbers<[1], [0], [0], [1], [0, 0, 1, 1], [], []>} : vector<16x256xbf16>, vector<256x256xbf16>, vector<16x256xf32> -> vector<16x256xf32>
    %7 = arith.addf %3, %6 : vector<16x256xf32>
    %c0_6 = arith.constant 0 : index
    %c0_7 = arith.constant 0 : index
    %8 = vector.load %arg8[%c0_6, %c0_7] : memref<16x256xf32, #tpu.memory_space<vmem>>, vector<16x256xf32>
    tpu.vector_store %arg8[%c0_6, %c0_7], %7 {strides = array<i32>} : memref<16x256xf32, #tpu.memory_space<vmem>>, vector<16x256xf32>,
    %c0_i32_8 = arith.constant 0 : i32
    %9 = arith.cmpi eq, %arg2, %c0_i32_8 : i32
    %10 = arith.extui %9 : i1 to i32
    %c0_i32_9 = arith.constant 0 : i32
    %11 = arith.cmpi ne, %10, %c0_i32_9 : i32
    scf.if %11 {
      %c0_10 = arith.constant 0 : index
      %c0_11 = arith.constant 0 : index
      %12 = vector.load %arg8[%c0_10, %c0_11] : memref<16x256xf32, #tpu.memory_space<vmem>>, vector<16x256xf32>
      %c0_12 = arith.constant 0 : index
      %c0_13 = arith.constant 0 : index
      %13 = vector.load %arg5[%c0_12, %c0_13] : memref<1x256xf32, #tpu.memory_space<vmem>>, vector<1x256xf32>
      %14 = vector.broadcast %13 : vector<1x256xf32> to vector<16x256xf32>
      %15 = arith.mulf %12, %14 : vector<16x256xf32>
      %c0_14 = arith.constant 0 : index
      %c0_15 = arith.constant 0 : index
      %16 = vector.load %arg6[%c0_14, %c0_15] : memref<1x256xf32, #tpu.memory_space<vmem>>, vector<1x256xf32>
      %17 = vector.broadcast %16 : vector<1x256xf32> to vector<16x256xf32>
      %18 = arith.addf %15, %17 : vector<16x256xf32>
      %c0_16 = arith.constant 0 : index
      %c0_17 = arith.constant 0 : index
      %19 = vector.load %arg7[%c0_16, %c0_17] : memref<16x256xf32, #tpu.memory_space<vmem>>, vector<16x256xf32>
      tpu.vector_store %arg7[%c0_16, %c0_17], %18 {strides = array<i32>} : memref<16x256xf32, #tpu.memory_space<vmem>>, vector<16x256xf32>,
    } else {
    }
    return
  }
  func.func @transform_0(%arg0: i32, %arg1: i32, %arg2: i32) -> (i32, i32) {
    %c0_i32 = arith.constant 0 : i32
    return %arg0, %arg2 : i32, i32
  }
  func.func @transform_1(%arg0: i32, %arg1: i32, %arg2: i32) -> (i32, i32) {
    %c0_i32 = arith.constant 0 : i32
    return %arg2, %arg1 : i32, i32
  }
  func.func @transform_2(%arg0: i32, %arg1: i32, %arg2: i32) -> (i32, i32) {
    %c0_i32 = arith.constant 0 : i32
    %c0_i32_0 = arith.constant 0 : i32
    return %c0_i32, %arg1 : i32, i32
  }
  func.func @transform_3(%arg0: i32, %arg1: i32, %arg2: i32) -> (i32, i32) {
    %c0_i32 = arith.constant 0 : i32
    %c0_i32_0 = arith.constant 0 : i32
    return %c0_i32, %arg1 : i32, i32
  }
  func.func @transform_4(%arg0: i32, %arg1: i32, %arg2: i32) -> (i32, i32) {
    %c0_i32 = arith.constant 0 : i32
    return %arg0, %arg1 : i32, i32
  }
}

module attributes {stable_mosaic.version = 11 : i64} {
  func.func @_matmul_bn_add_kernel(%arg0: i32, %arg1: i32, %arg2: i32, %arg3: memref<16x256xbf16, #tpu.memory_space<vmem>>, %arg4: memref<256x256xbf16, #tpu.memory_space<vmem>>, %arg5: memref<1x256xf32, #tpu.memory_space<vmem>>, %arg6: memref<1x256xf32, #tpu.memory_space<vmem>>, %arg7: memref<16x256xf32, #tpu.memory_space<vmem>>, %arg8: memref<16x256xf32, #tpu.memory_space<vmem>>, %arg9: memref<16x256xf32, #tpu.memory_space<vmem>>) attributes {dimension_semantics = [#tpu.dimension_semantics<parallel>, #tpu.dimension_semantics<parallel>, #tpu.dimension_semantics<arbitrary>], iteration_bounds = array<i64: 1, 2, 18>, scalar_prefetch = 0 : i64, scratch_operands = 1 : i64, tpu.core_type = #tpu.core_type<tc>, window_params = [{transform_indices = @transform_0, window_bounds = array<i64: 16, 256>}, {transform_indices = @transform_1, window_bounds = array<i64: 256, 256>}, {transform_indices = @transform_2, window_bounds = array<i64: 1, 256>}, {transform_indices = @transform_3, window_bounds = array<i64: 1, 256>}, {transform_indices = @transform_4, window_bounds = array<i64: 16, 256>}, {transform_indices = @transform_5, window_bounds = array<i64: 16, 256>}]} {
    %c0_i32 = arith.constant 0 : i32
    %0 = arith.cmpi eq, %arg2, %c0_i32 : i32
    %1 = arith.extui %0 : i1 to i32
    %c0_i32_0 = arith.constant 0 : i32
    %2 = arith.cmpi ne, %1, %c0_i32_0 : i32
    scf.if %2 {
      %cst_9 = arith.constant 0.000000e+00 : f32
      %12 = vector.broadcast %cst_9 : f32 to vector<16x256xf32>
      %c0_10 = arith.constant 0 : index
      %c0_11 = arith.constant 0 : index
      %13 = vector.load %arg9[%c0_10, %c0_11] : memref<16x256xf32, #tpu.memory_space<vmem>>, vector<16x256xf32>
      tpu.vector_store %arg9[%c0_10, %c0_11], %12 {strides = array<i32>} : memref<16x256xf32, #tpu.memory_space<vmem>>, vector<16x256xf32>,
    } else {
    }
    %c0 = arith.constant 0 : index
    %c0_1 = arith.constant 0 : index
    %3 = vector.load %arg9[%c0, %c0_1] : memref<16x256xf32, #tpu.memory_space<vmem>>, vector<16x256xf32>
    %c0_2 = arith.constant 0 : index
    %c0_3 = arith.constant 0 : index
    %4 = vector.load %arg3[%c0_2, %c0_3] : memref<16x256xbf16, #tpu.memory_space<vmem>>, vector<16x256xbf16>
    %c0_4 = arith.constant 0 : index
    %c0_5 = arith.constant 0 : index
    %5 = vector.load %arg4[%c0_4, %c0_5] : memref<256x256xbf16, #tpu.memory_space<vmem>>, vector<256x256xbf16>
    %cst = arith.constant dense<0.000000e+00> : vector<16x256xf32>
    %6 = tpu.matmul %4, %5, %cst {dimension_numbers = #tpu.dot_dimension_numbers<[1], [0], [0], [1], [0, 0, 1, 1], [], []>} : vector<16x256xbf16>, vector<256x256xbf16>, vector<16x256xf32> -> vector<16x256xf32>
    %7 = arith.addf %3, %6 : vector<16x256xf32>
    %c0_6 = arith.constant 0 : index
    %c0_7 = arith.constant 0 : index
    %8 = vector.load %arg9[%c0_6, %c0_7] : memref<16x256xf32, #tpu.memory_space<vmem>>, vector<16x256xf32>
    tpu.vector_store %arg9[%c0_6, %c0_7], %7 {strides = array<i32>} : memref<16x256xf32, #tpu.memory_space<vmem>>, vector<16x256xf32>,
    %c17_i32 = arith.constant 17 : i32
    %9 = arith.cmpi eq, %arg2, %c17_i32 : i32
    %10 = arith.extui %9 : i1 to i32
    %c0_i32_8 = arith.constant 0 : i32
    %11 = arith.cmpi ne, %10, %c0_i32_8 : i32
    scf.if %11 {
      %c0_9 = arith.constant 0 : index
      %c0_10 = arith.constant 0 : index
      %12 = vector.load %arg9[%c0_9, %c0_10] : memref<16x256xf32, #tpu.memory_space<vmem>>, vector<16x256xf32>
      %c0_11 = arith.constant 0 : index
      %c0_12 = arith.constant 0 : index
      %13 = vector.load %arg5[%c0_11, %c0_12] : memref<1x256xf32, #tpu.memory_space<vmem>>, vector<1x256xf32>
      %14 = vector.broadcast %13 : vector<1x256xf32> to vector<16x256xf32>
      %15 = arith.mulf %12, %14 : vector<16x256xf32>
      %c0_13 = arith.constant 0 : index
      %c0_14 = arith.constant 0 : index
      %16 = vector.load %arg6[%c0_13, %c0_14] : memref<1x256xf32, #tpu.memory_space<vmem>>, vector<1x256xf32>
      %17 = vector.broadcast %16 : vector<1x256xf32> to vector<16x256xf32>
      %18 = arith.addf %15, %17 : vector<16x256xf32>
      %c0_15 = arith.constant 0 : index
      %c0_16 = arith.constant 0 : index
      %19 = vector.load %arg7[%c0_15, %c0_16] : memref<16x256xf32, #tpu.memory_space<vmem>>, vector<16x256xf32>
      %20 = arith.addf %18, %19 : vector<16x256xf32>
      %cst_17 = arith.constant 0.000000e+00 : f32
      %21 = vector.broadcast %cst_17 : f32 to vector<16x256xf32>
      %22 = arith.maximumf %20, %21 : vector<16x256xf32>
      %c0_18 = arith.constant 0 : index
      %c0_19 = arith.constant 0 : index
      %23 = vector.load %arg8[%c0_18, %c0_19] : memref<16x256xf32, #tpu.memory_space<vmem>>, vector<16x256xf32>
      tpu.vector_store %arg8[%c0_18, %c0_19], %22 {strides = array<i32>} : memref<16x256xf32, #tpu.memory_space<vmem>>, vector<16x256xf32>,
    } else {
    }
    return
  }
  func.func @transform_0(%arg0: i32, %arg1: i32, %arg2: i32) -> (i32, i32) {
    %c0_i32 = arith.constant 0 : i32
    return %arg0, %arg2 : i32, i32
  }
  func.func @transform_1(%arg0: i32, %arg1: i32, %arg2: i32) -> (i32, i32) {
    %c0_i32 = arith.constant 0 : i32
    return %arg2, %arg1 : i32, i32
  }
  func.func @transform_2(%arg0: i32, %arg1: i32, %arg2: i32) -> (i32, i32) {
    %c0_i32 = arith.constant 0 : i32
    %c0_i32_0 = arith.constant 0 : i32
    return %c0_i32, %arg1 : i32, i32
  }
  func.func @transform_3(%arg0: i32, %arg1: i32, %arg2: i32) -> (i32, i32) {
    %c0_i32 = arith.constant 0 : i32
    %c0_i32_0 = arith.constant 0 : i32
    return %c0_i32, %arg1 : i32, i32
  }
  func.func @transform_4(%arg0: i32, %arg1: i32, %arg2: i32) -> (i32, i32) {
    %c0_i32 = arith.constant 0 : i32
    return %arg0, %arg1 : i32, i32
  }
  func.func @transform_5(%arg0: i32, %arg1: i32, %arg2: i32) -> (i32, i32) {
    %c0_i32 = arith.constant 0 : i32
    return %arg0, %arg1 : i32, i32
  }
}

</mosaic_0001>

<llo_original>
// kernel: resnet_trunk_forward.14
$region0: #{resnet_trunk_forward.14}
  #allocation0 [shape = 'u32[]', space=smem, size = 0x4, offset = 0x4, fixed_abs, tag = 'smem constant byte address 0x4 - core index']
  #allocation1 [shape = 'u32[144,128]{1,0:T(1,128)}', space=vmem, size = 0x12000, scoped, tag = 'internal scratch']
  %s0 = inlined_call_operand.vmem [shape: f32[9,32,64], index: 0, kind: input, shape index: {}]
  %s1 = inlined_call_operand.vmem [shape: f32[32,64], index: 1, kind: output, shape index: {}]
  %s2 = sld [smem:[#allocation0]]
  $region14: #{resnet_trunk_forward.14} parent=0
    _
  %s4 = ssub.s32 1, %s2
  %s5 = scalar_select 0, %s4, %s2
  // Predicated region
  $region2: #{resnet_trunk_forward.14} parent=0 // pred_check
    _
  $region3: #{resnet_trunk_forward.14} parent=0 // pred_check_branch
    %7 = sbr.rel (0) target = $region5
  $region4: #{resnet_trunk_forward.14} parent=0 // pred_region
    _
  $region5: #{resnet_trunk_forward.14} parent=0 // pred_fallthru
    _
  %v8 = vld [vmem:[%s0] sm:$0xff]
  %v9 = vld [vmem:[%s0 + $0x8] sm:$0xff]
  %v10 = vld [vmem:[%s0 + $0x10] sm:$0xff]
  %v11 = vld [vmem:[%s0 + $0x18] sm:$0xff]
  %v12 = vld [vmem:[%s0 + $0x20] sm:$0xff]
  %v13 = vld [vmem:[%s0 + $0x28] sm:$0xff]
  %v14 = vld [vmem:[%s0 + $0x30] sm:$0xff]
  %v15 = vld [vmem:[%s0 + $0x38] sm:$0xff]
  %v16 = vld [vmem:[%s0 + $0x40] sm:$0xff]
  %v17 = vld [vmem:[%s0 + $0x48] sm:$0xff]
  %v18 = vld [vmem:[%s0 + $0x50] sm:$0xff]
  %v19 = vld [vmem:[%s0 + $0x58] sm:$0xff]
  %v20 = vld [vmem:[%s0 + $0x60] sm:$0xff]
  %v21 = vld [vmem:[%s0 + $0x68] sm:$0xff]
  %v22 = vld [vmem:[%s0 + $0x70] sm:$0xff]
  %v23 = vld [vmem:[%s0 + $0x78] sm:$0xff]
  %v24 = vld [vmem:[%s0 + $0x80] sm:$0xff]
  %v25 = vld [vmem:[%s0 + $0x88] sm:$0xff]
  %v26 = vld [vmem:[%s0 + $0x90] sm:$0xff]
  %v27 = vld [vmem:[%s0 + $0x98] sm:$0xff]
  %v28 = vld [vmem:[%s0 + $0xa0] sm:$0xff]
  %v29 = vld [vmem:[%s0 + $0xa8] sm:$0xff]
  %v30 = vld [vmem:[%s0 + $0xb0] sm:$0xff]
  %v31 = vld [vmem:[%s0 + $0xb8] sm:$0xff]
  %v32 = vld [vmem:[%s0 + $0xc0] sm:$0xff]
  %v33 = vld [vmem:[%s0 + $0xc8] sm:$0xff]
  %v34 = vld [vmem:[%s0 + $0xd0] sm:$0xff]
  %v35 = vld [vmem:[%s0 + $0xd8] sm:$0xff]
  %v36 = vld [vmem:[%s0 + $0xe0] sm:$0xff]
  %v37 = vld [vmem:[%s0 + $0xe8] sm:$0xff]
  %v38 = vld [vmem:[%s0 + $0xf0] sm:$0xff]
  %v39 = vld [vmem:[%s0 + $0xf8] sm:$0xff]
  %v40 = vld [vmem:[%s0 + $0x100] sm:$0xff]
  %v41 = vld [vmem:[%s0 + $0x108] sm:$0xff]
  %v42 = vld [vmem:[%s0 + $0x110] sm:$0xff]
  %v43 = vld [vmem:[%s0 + $0x118] sm:$0xff]
  %vm44 = vcmask 523264
  %v45 = vsel %vm44, %v8, -inf
  %v46 = vsel %vm44, %v12, -inf
  %v47 = vmax.f32 %v45, %v46
  %v48 = vsel %vm44, %v16, -inf
  %v49 = vmax.f32 %v47, %v48
  %v50 = vsel %vm44, %v20, -inf
  %v51 = vmax.f32 %v49, %v50
  %v52 = vsel %vm44, %v24, -inf
  %v53 = vmax.f32 %v51, %v52
  %v54 = vsel %vm44, %v28, -inf
  %v55 = vmax.f32 %v53, %v54
  %v56 = vsel %vm44, %v32, -inf
  %v57 = vmax.f32 %v55, %v56
  %v58 = vsel %vm44, %v36, -inf
  %v59 = vmax.f32 %v57, %v58
  %v60 = vsel %vm44, %v40, -inf
  %v61 = vmax.f32 %v59, %v60
  %v62 = vsel %vm44, %v9, -inf
  %v63 = vsel %vm44, %v13, -inf
  %v64 = vmax.f32 %v62, %v63
  %v65 = vsel %vm44, %v17, -inf
  %v66 = vmax.f32 %v64, %v65
  %v67 = vsel %vm44, %v21, -inf
  %v68 = vmax.f32 %v66, %v67
  %v69 = vsel %vm44, %v25, -inf
  %v70 = vmax.f32 %v68, %v69
  %v71 = vsel %vm44, %v29, -inf
  %v72 = vmax.f32 %v70, %v71
  %v73 = vsel %vm44, %v33, -inf
  %v74 = vmax.f32 %v72, %v73
  %v75 = vsel %vm44, %v37, -inf
  %v76 = vmax.f32 %v74, %v75
  %v77 = vsel %vm44, %v41, -inf
  %v78 = vmax.f32 %v76, %v77
  %v79 = vsel %vm44, %v10, -inf
  %v80 = vsel %vm44, %v14, -inf
  %v81 = vmax.f32 %v79, %v80
  %v82 = vsel %vm44, %v18, -inf
  %v83 = vmax.f32 %v81, %v82
  %v84 = vsel %vm44, %v22, -inf
  %v85 = vmax.f32 %v83, %v84
  %v86 = vsel %vm44, %v26, -inf
  %v87 = vmax.f32 %v85, %v86
  %v88 = vsel %vm44, %v30, -inf
  %v89 = vmax.f32 %v87, %v88
  %v90 = vsel %vm44, %v34, -inf
  %v91 = vmax.f32 %v89, %v90
  %v92 = vsel %vm44, %v38, -inf
  %v93 = vmax.f32 %v91, %v92
  %v94 = vsel %vm44, %v42, -inf
  %v95 = vmax.f32 %v93, %v94
  %v96 = vsel %vm44, %v11, -inf
  %v97 = vsel %vm44, %v15, -inf
  %v98 = vmax.f32 %v96, %v97
  %v99 = vsel %vm44, %v19, -inf
  %v100 = vmax.f32 %v98, %v99
  %v101 = vsel %vm44, %v23, -inf
  %v102 = vmax.f32 %v100, %v101
  %v103 = vsel %vm44, %v27, -inf
  %v104 = vmax.f32 %v102, %v103
  %v105 = vsel %vm44, %v31, -inf
  %v106 = vmax.f32 %v104, %v105
  %v107 = vsel %vm44, %v35, -inf
  %v108 = vmax.f32 %v106, %v107
  %v109 = vsel %vm44, %v39, -inf
  %v110 = vmax.f32 %v108, %v109
  %v111 = vsel %vm44, %v43, -inf
  %v112 = vmax.f32 %v110, %v111
  %113 = vst.msk [vmem:[%s1] sm:$0xff] %vm44, %v61
  %114 = vst.msk [vmem:[%s1 + $0x8] sm:$0xff] %vm44, %v78
  %115 = vst.msk [vmem:[%s1 + $0x10] sm:$0xff] %vm44, %v95
  %116 = vst.msk [vmem:[%s1 + $0x18] sm:$0xff] %vm44, %v112
  // Predicated region
  $region6: #{resnet_trunk_forward.14} parent=0 // pred_check
    _
  $region7: #{resnet_trunk_forward.14} parent=0 // pred_check_branch
    %118 = sbr.rel (0) target = $region9
  $region8: #{resnet_trunk_forward.14} parent=0 // pred_region
    _
  $region9: #{resnet_trunk_forward.14} parent=0 // pred_fallthru
    _
  // Predicated region
  $region10: #{resnet_trunk_forward.14} parent=0 // pred_check
    _
  $region11: #{resnet_trunk_forward.14} parent=0 // pred_check_branch
    %120 = sbr.rel (0) target = $region13
  $region12: #{resnet_trunk_forward.14} parent=0 // pred_region
    _
  $region13: #{resnet_trunk_forward.14} parent=0 // pred_fallthru
    _

// kernel: resnet_trunk_forward.13
$region0: #{resnet_trunk_forward.13}
  #allocation0 [shape = 'u32[]', space=smem, size = 0x4, offset = 0x4, fixed_abs, tag = 'smem constant byte address 0x4 - core index']
  #allocation1 [shape = 'u32[144,128]{1,0:T(1,128)}', space=vmem, size = 0x12000, scoped, tag = 'internal scratch']
  #allocation2 [shape = 'f32[128,128]{1,0:T(8,128)}', space=vmem, size = 0x10000, scoped, tag = 'scratch operand']
  %s0 = inlined_call_operand.vmem [shape: bf16[128,256], index: 0, kind: input, shape index: {}]
  %s1 = inlined_call_operand.vmem [shape: bf16[256,128], index: 1, kind: input, shape index: {}]
  %s2 = inlined_call_operand.vmem [shape: f32[1,128], index: 2, kind: input, shape index: {}]
  %s3 = inlined_call_operand.vmem [shape: f32[1,128], index: 3, kind: input, shape index: {}]
  %s4 = inlined_call_operand.vmem [shape: f32[128,128], index: 4, kind: output, shape index: {}]
  %s5 = sld [smem:[#allocation0]]
  $region34: #{resnet_trunk_forward.13} parent=0
    _
  %s7 = ssub.s32 1, %s5
  %s8 = scalar_select 0, %s7, %s5
  // Predicated region
  $region2: #{resnet_trunk_forward.13} parent=0 // pred_check
    _
  $region3: #{resnet_trunk_forward.13} parent=0 // pred_check_branch
    %10 = sbr.rel (0) target = $region5
  $region4: #{resnet_trunk_forward.13} parent=0 // pred_region
    _
  $region5: #{resnet_trunk_forward.13} parent=0 // pred_fallthru
    _
  // Predicated region
  $region6: #{resnet_trunk_forward.13} parent=0 // pred_check
    _
  $region7: #{resnet_trunk_forward.13} parent=0 // pred_check_branch
    %12 = sbr.rel (0) target = $region9
  $region8: #{resnet_trunk_forward.13} parent=0 // pred_region
    _
  $region9: #{resnet_trunk_forward.13} parent=0 // pred_fallthru
    _
  // Predicated region
  $region10: #{resnet_trunk_forward.13} parent=0 // pred_check
    _
  $region11: #{resnet_trunk_forward.13} parent=0 // pred_check_branch
    %14 = sbr.rel (0) target = $region13
  $region12: #{resnet_trunk_forward.13} parent=0 // pred_region
    _
  $region13: #{resnet_trunk_forward.13} parent=0 // pred_fallthru
    _
  // Predicated region
  $region14: #{resnet_trunk_forward.13} parent=0 // pred_check
    _
  $region15: #{resnet_trunk_forward.13} parent=0 // pred_check_branch
    %16 = sbr.rel (0) target = $region17
  $region16: #{resnet_trunk_forward.13} parent=0 // pred_region
    _
  $region17: #{resnet_trunk_forward.13} parent=0 // pred_fallthru
    _
  %p18 = scmp.eq.s32.totalorder 0, 0
  // Predicated region
  $region18: #{resnet_trunk_forward.13} parent=0 // pred_check
    %p19 = pneg %p18
  $region19: #{resnet_trunk_forward.13} parent=0 // pred_check_branch
    %21 = sbr.rel (%p19) target = $region21
  $region20: #{resnet_trunk_forward.13} parent=0 // pred_region
    %22 = vst [vmem:[#allocation2] sm:$0xff] 0.0
    %23 = vst [vmem:[#allocation2 + $0x8] sm:$0xff] 0.0
    %24 = vst [vmem:[#allocation2 + $0x10] sm:$0xff] 0.0
    %25 = vst [vmem:[#allocation2 + $0x18] sm:$0xff] 0.0
    %26 = vst [vmem:[#allocation2 + $0x20] sm:$0xff] 0.0
    %27 = vst [vmem:[#allocation2 + $0x28] sm:$0xff] 0.0
    %28 = vst [vmem:[#allocation2 + $0x30] sm:$0xff] 0.0
    %29 = vst [vmem:[#allocation2 + $0x38] sm:$0xff] 0.0
    %30 = vst [vmem:[#allocation2 + $0x40] sm:$0xff] 0.0
    %31 = vst [vmem:[#allocation2 + $0x48] sm:$0xff] 0.0
    %32 = vst [vmem:[#allocation2 + $0x50] sm:$0xff] 0.0
    %33 = vst [vmem:[#allocation2 + $0x58] sm:$0xff] 0.0
    %34 = vst [vmem:[#allocation2 + $0x60] sm:$0xff] 0.0
    %35 = vst [vmem:[#allocation2 + $0x68] sm:$0xff] 0.0
    %36 = vst [vmem:[#allocation2 + $0x70] sm:$0xff] 0.0
    %37 = vst [vmem:[#allocation2 + $0x78] sm:$0xff] 0.0
  $region21: #{resnet_trunk_forward.13} parent=0 // pred_fallthru
    _
  %v38 = vld [vmem:[#allocation2] sm:$0xff]
  %v39 = vld [vmem:[#allocation2 + $0x8] sm:$0xff]
  %v40 = vld [vmem:[#allocation2 + $0x10] sm:$0xff]
  %v41 = vld [vmem:[#allocation2 + $0x18] sm:$0xff]
  %v42 = vld [vmem:[#allocation2 + $0x20] sm:$0xff]
  %v43 = vld [vmem:[#allocation2 + $0x28] sm:$0xff]
  %v44 = vld [vmem:[#allocation2 + $0x30] sm:$0xff]
  %v45 = vld [vmem:[#allocation2 + $0x38] sm:$0xff]
  %v46 = vld [vmem:[#allocation2 + $0x40] sm:$0xff]
  %v47 = vld [vmem:[#allocation2 + $0x48] sm:$0xff]
  %v48 = vld [vmem:[#allocation2 + $0x50] sm:$0xff]
  %v49 = vld [vmem:[#allocation2 + $0x58] sm:$0xff]
  %v50 = vld [vmem:[#allocation2 + $0x60] sm:$0xff]
  %v51 = vld [vmem:[#allocation2 + $0x68] sm:$0xff]
  %v52 = vld [vmem:[#allocation2 + $0x70] sm:$0xff]
  %v53 = vld [vmem:[#allocation2 + $0x78] sm:$0xff]
  %v54 = vld [vmem:[%s0] sm:$0xff]
  %v55 = vld [vmem:[%s0 + $0x8] sm:$0xff]
  %v56 = vld [vmem:[%s0 + $0x10] sm:$0xff]
  %v57 = vld [vmem:[%s0 + $0x18] sm:$0xff]
  %v58 = vld [vmem:[%s0 + $0x20] sm:$0xff]
  %v59 = vld [vmem:[%s0 + $0x28] sm:$0xff]
  %v60 = vld [vmem:[%s0 + $0x30] sm:$0xff]
  %v61 = vld [vmem:[%s0 + $0x38] sm:$0xff]
  %v62 = vld [vmem:[%s0 + $0x40] sm:$0xff]
  %v63 = vld [vmem:[%s0 + $0x48] sm:$0xff]
  %v64 = vld [vmem:[%s0 + $0x50] sm:$0xff]
  %v65 = vld [vmem:[%s0 + $0x58] sm:$0xff]
  %v66 = vld [vmem:[%s0 + $0x60] sm:$0xff]
  %v67 = vld [vmem:[%s0 + $0x68] sm:$0xff]
  %v68 = vld [vmem:[%s0 + $0x70] sm:$0xff]
  %v69 = vld [vmem:[%s0 + $0x78] sm:$0xff]
  %v70 = vld [vmem:[%s1] sm:$0xf]
  %v71 = vld [vmem:[%s1 + $0x4] sm:$0xf]
  %v72 = vld [vmem:[%s1 + $0x8] sm:$0xf]
  %v73 = vld [vmem:[%s1 + $0xc] sm:$0xf]
  %v74 = vld [vmem:[%s1 + $0x10] sm:$0xf]
  %v75 = vld [vmem:[%s1 + $0x14] sm:$0xf]
  %v76 = vld [vmem:[%s1 + $0x18] sm:$0xf]
  %v77 = vld [vmem:[%s1 + $0x1c] sm:$0xf]
  %v78 = vld [vmem:[%s1 + $0x20] sm:$0xf]
  %v79 = vld [vmem:[%s1 + $0x24] sm:$0xf]
  %v80 = vld [vmem:[%s1 + $0x28] sm:$0xf]
  %v81 = vld [vmem:[%s1 + $0x2c] sm:$0xf]
  %v82 = vld [vmem:[%s1 + $0x30] sm:$0xf]
  %v83 = vld [vmem:[%s1 + $0x34] sm:$0xf]
  %v84 = vld [vmem:[%s1 + $0x38] sm:$0xf]
  %v85 = vld [vmem:[%s1 + $0x3c] sm:$0xf]
  %v86 = vld [vmem:[%s1 + $0x40] sm:$0xf]
  %v87 = vld [vmem:[%s1 + $0x44] sm:$0xf]
  %v88 = vld [vmem:[%s1 + $0x48] sm:$0xf]
  %v89 = vld [vmem:[%s1 + $0x4c] sm:$0xf]
  %v90 = vld [vmem:[%s1 + $0x50] sm:$0xf]
  %v91 = vld [vmem:[%s1 + $0x54] sm:$0xf]
  %v92 = vld [vmem:[%s1 + $0x58] sm:$0xf]
  %v93 = vld [vmem:[%s1 + $0x5c] sm:$0xf]
  %v94 = vld [vmem:[%s1 + $0x60] sm:$0xf]
  %v95 = vld [vmem:[%s1 + $0x64] sm:$0xf]
  %v96 = vld [vmem:[%s1 + $0x68] sm:$0xf]
  %v97 = vld [vmem:[%s1 + $0x6c] sm:$0xf]
  %v98 = vld [vmem:[%s1 + $0x70] sm:$0xf]
  %v99 = vld [vmem:[%s1 + $0x74] sm:$0xf]
  %v100 = vld [vmem:[%s1 + $0x78] sm:$0xf]
  %v101 = vld [vmem:[%s1 + $0x7c] sm:$0xf]
  %v118 = vunpack.c.l.b16 %v54
  %v119 = vunpack.c.h.b16 %v54
  %v120 = vunpack.c.l.b16 %v55
  %v121 = vunpack.c.h.b16 %v55
  %v122 = vunpack.c.l.b16 %v56
  %v123 = vunpack.c.h.b16 %v56
  %v124 = vunpack.c.l.b16 %v57
  %v125 = vunpack.c.h.b16 %v57
  %v126 = vunpack.c.l.b16 %v58
  %v127 = vunpack.c.h.b16 %v58
  %v128 = vunpack.c.l.b16 %v59
  %v129 = vunpack.c.h.b16 %v59
  %v130 = vunpack.c.l.b16 %v60
  %v131 = vunpack.c.h.b16 %v60
  %v132 = vunpack.c.l.b16 %v61
  %v133 = vunpack.c.h.b16 %v61
  %v134 = vunpack.c.l.b16 %v62
  %v135 = vunpack.c.h.b16 %v62
  %v136 = vunpack.c.l.b16 %v63
  %v137 = vunpack.c.h.b16 %v63
  %v138 = vunpack.c.l.b16 %v64
  %v139 = vunpack.c.h.b16 %v64
  %v140 = vunpack.c.l.b16 %v65
  %v141 = vunpack.c.h.b16 %v65
  %v142 = vunpack.c.l.b16 %v66
  %v143 = vunpack.c.h.b16 %v66
  %v144 = vunpack.c.l.b16 %v67
  %v145 = vunpack.c.h.b16 %v67
  %v146 = vunpack.c.l.b16 %v68
  %v147 = vunpack.c.h.b16 %v68
  %v148 = vunpack.c.l.b16 %v69
  %v149 = vunpack.c.h.b16 %v69
  %v150 = vpack.c.b16 %v120, %v118
  %v151 = vpack.c.b16 %v121, %v119
  %v152 = vpack.c.b16 %v124, %v122
  %v153 = vpack.c.b16 %v125, %v123
  %v154 = vpack.c.b16 %v128, %v126
  %v155 = vpack.c.b16 %v129, %v127
  %v156 = vpack.c.b16 %v132, %v130
  %v157 = vpack.c.b16 %v133, %v131
  %v158 = vpack.c.b16 %v136, %v134
  %v159 = vpack.c.b16 %v137, %v135
  %v160 = vpack.c.b16 %v140, %v138
  %v161 = vpack.c.b16 %v141, %v139
  %v162 = vpack.c.b16 %v144, %v142
  %v163 = vpack.c.b16 %v145, %v143
  %v164 = vpack.c.b16 %v148, %v146
  %v165 = vpack.c.b16 %v149, %v147
  %v214 = vunpack.c.l.b16 %v70
  %v215 = vunpack.c.l.b16 %v71
  %v216 = vunpack.c.l.b16 %v72
  %v217 = vunpack.c.l.b16 %v73
  %v218 = vunpack.c.l.b16 %v74
  %v219 = vunpack.c.l.b16 %v75
  %v220 = vunpack.c.l.b16 %v76
  %v221 = vunpack.c.l.b16 %v77
  %v222 = vunpack.c.l.b16 %v78
  %v223 = vunpack.c.l.b16 %v79
  %v224 = vunpack.c.l.b16 %v80
  %v225 = vunpack.c.l.b16 %v81
  %v226 = vunpack.c.l.b16 %v82
  %v227 = vunpack.c.l.b16 %v83
  %v228 = vunpack.c.l.b16 %v84
  %v229 = vunpack.c.l.b16 %v85
  %v230 = vunpack.c.l.b16 %v86
  %v231 = vunpack.c.l.b16 %v87
  %v232 = vunpack.c.l.b16 %v88
  %v233 = vunpack.c.l.b16 %v89
  %v234 = vunpack.c.l.b16 %v90
  %v235 = vunpack.c.l.b16 %v91
  %v236 = vunpack.c.l.b16 %v92
  %v237 = vunpack.c.l.b16 %v93
  %v238 = vunpack.c.l.b16 %v94
  %v239 = vunpack.c.l.b16 %v95
  %v240 = vunpack.c.l.b16 %v96
  %v241 = vunpack.c.l.b16 %v97
  %v242 = vunpack.c.l.b16 %v98
  %v243 = vunpack.c.l.b16 %v99
  %v244 = vunpack.c.l.b16 %v100
  %v245 = vunpack.c.l.b16 %v101
  %v246 = vpack.c.b16 %v215, %v214
  %v247 = vpack.c.b16 %v217, %v216
  %v248 = vpack.c.b16 %v219, %v218
  %v249 = vpack.c.b16 %v221, %v220
  %v250 = vpack.c.b16 %v223, %v222
  %v251 = vpack.c.b16 %v225, %v224
  %v252 = vpack.c.b16 %v227, %v226
  %v253 = vpack.c.b16 %v229, %v228
  %v254 = vpack.c.b16 %v231, %v230
  %v255 = vpack.c.b16 %v233, %v232
  %v256 = vpack.c.b16 %v235, %v234
  %v257 = vpack.c.b16 %v237, %v236
  %v258 = vpack.c.b16 %v239, %v238
  %v259 = vpack.c.b16 %v241, %v240
  %v260 = vpack.c.b16 %v243, %v242
  %v261 = vpack.c.b16 %v245, %v244
  %278 = vmatprep.subr.bf16.mxu0 0
  %279 = vmatpush1.bf16.msra.mxu0 %v253
  %280 = vmatprep.subr.bf16.mxu0 0
  %281 = vmatpush1.bf16.msra.mxu0 %v252
  %282 = vmatprep.subr.bf16.mxu0 0
  %283 = vmatpush1.bf16.msra.mxu0 %v251
  %284 = vmatprep.subr.bf16.mxu0 0
  %285 = vmatpush1.bf16.msra.mxu0 %v250
  %286 = vmatprep.subr.bf16.mxu0 0
  %287 = vmatpush1.bf16.msra.mxu0 %v249
  %288 = vmatprep.subr.bf16.mxu0 0
  %289 = vmatpush1.bf16.msra.mxu0 %v248
  %290 = vmatprep.subr.bf16.mxu0 0
  %291 = vmatpush1.bf16.msra.mxu0 %v247
  %292 = vmatprep.subr.bf16.mxu0 0
  %293 = vmatpush1.bf16.msra.mxu0 %v246
  %294 = vmatprep.subr.bf16.mxu0 0
  %295 = vmatpush2.bf16.msra.mxu0 %v261
  %296 = vmatprep.subr.bf16.mxu0 0
  %297 = vmatpush2.bf16.msra.mxu0 %v260
  %298 = vmatprep.subr.bf16.mxu0 0
  %299 = vmatpush2.bf16.msra.mxu0 %v259
  %300 = vmatprep.subr.bf16.mxu0 0
  %301 = vmatpush2.bf16.msra.mxu0 %v258
  %302 = vmatprep.subr.bf16.mxu0 0
  %303 = vmatpush2.bf16.msra.mxu0 %v257
  %304 = vmatprep.subr.bf16.mxu0 0
  %305 = vmatpush2.bf16.msra.mxu0 %v256
  %306 = vmatprep.subr.bf16.mxu0 0
  %307 = vmatpush2.bf16.msra.mxu0 %v255
  %308 = vmatprep.subr.bf16.mxu0 0
  %309 = vmatpush2.bf16.msra.mxu0 %v254
  %310 = vmatprep.mubr.bf16.mxu0 %v151
  %311 = vmatmul.mubr.bf16.gmra.mxu0 %v150
  %v312 = vpop.f32.mrf.mxu0
  %v313 = vadd.f32 0.0, %v312
  %v314 = vpop.f32.mrf.mxu0
  %v315 = vpop.f32.mrf.mxu0
  %v316 = vadd.f32 0.0, %v315
  %v317 = vpop.f32.mrf.mxu0
  %318 = vmatprep.mubr.bf16.mxu0 %v153
  %319 = vmatmul.mubr.bf16.gmra.mxu0 %v152
  %v320 = vpop.f32.mrf.mxu0
  %v321 = vadd.f32 0.0, %v320
  %v322 = vpop.f32.mrf.mxu0
  %v323 = vpop.f32.mrf.mxu0
  %v324 = vadd.f32 0.0, %v323
  %v325 = vpop.f32.mrf.mxu0
  %326 = vmatprep.mubr.bf16.mxu0 %v155
  %327 = vmatmul.mubr.bf16.gmra.mxu0 %v154
  %v328 = vpop.f32.mrf.mxu0
  %v329 = vadd.f32 0.0, %v328
  %v330 = vpop.f32.mrf.mxu0
  %v331 = vpop.f32.mrf.mxu0
  %v332 = vadd.f32 0.0, %v331
  %v333 = vpop.f32.mrf.mxu0
  %334 = vmatprep.mubr.bf16.mxu0 %v157
  %335 = vmatmul.mubr.bf16.gmra.mxu0 %v156
  %v336 = vpop.f32.mrf.mxu0
  %v337 = vadd.f32 0.0, %v336
  %v338 = vpop.f32.mrf.mxu0
  %v339 = vpop.f32.mrf.mxu0
  %v340 = vadd.f32 0.0, %v339
  %v341 = vpop.f32.mrf.mxu0
  %342 = vmatprep.mubr.bf16.mxu0 %v159
  %343 = vmatmul.mubr.bf16.gmra.mxu0 %v158
  %v344 = vpop.f32.mrf.mxu0
  %v345 = vadd.f32 0.0, %v344
  %v346 = vpop.f32.mrf.mxu0
  %v347 = vpop.f32.mrf.mxu0
  %v348 = vadd.f32 0.0, %v347
  %v349 = vpop.f32.mrf.mxu0
  %350 = vmatprep.mubr.bf16.mxu0 %v161
  %351 = vmatmul.mubr.bf16.gmra.mxu0 %v160
  %v352 = vpop.f32.mrf.mxu0
  %v353 = vadd.f32 0.0, %v352
  %v354 = vpop.f32.mrf.mxu0
  %v355 = vpop.f32.mrf.mxu0
  %v356 = vadd.f32 0.0, %v355
  %v357 = vpop.f32.mrf.mxu0
  %358 = vmatprep.mubr.bf16.mxu0 %v163
  %359 = vmatmul.mubr.bf16.gmra.mxu0 %v162
  %v360 = vpop.f32.mrf.mxu0
  %v361 = vadd.f32 0.0, %v360
  %v362 = vpop.f32.mrf.mxu0
  %v363 = vpop.f32.mrf.mxu0
  %v364 = vadd.f32 0.0, %v363
  %v365 = vpop.f32.mrf.mxu0
  %366 = vmatprep.mubr.bf16.mxu0 %v165
  %367 = vmatmul.mubr.bf16.gmra.mxu0 %v164
  %v368 = vpop.f32.mrf.mxu0
  %v369 = vadd.f32 0.0, %v368
  %v370 = vpop.f32.mrf.mxu0
  %v371 = vpop.f32.mrf.mxu0
  %v372 = vadd.f32 0.0, %v371
  %v373 = vpop.f32.mrf.mxu0
  %374 = vdwg.mxu0
  %v375 = vadd.f32 %v38, %v313
  %v376 = vadd.f32 %v39, %v316
  %v377 = vadd.f32 %v40, %v321
  %v378 = vadd.f32 %v41, %v324
  %v379 = vadd.f32 %v42, %v329
  %v380 = vadd.f32 %v43, %v332
  %v381 = vadd.f32 %v44, %v337
  %v382 = vadd.f32 %v45, %v340
  %v383 = vadd.f32 %v46, %v345
  %v384 = vadd.f32 %v47, %v348
  %v385 = vadd.f32 %v48, %v353
  %v386 = vadd.f32 %v49, %v356
  %v387 = vadd.f32 %v50, %v361
  %v388 = vadd.f32 %v51, %v364
  %v389 = vadd.f32 %v52, %v369
  %v390 = vadd.f32 %v53, %v372
  %391 = vst [vmem:[#allocation2] sm:$0xff] %v375
  %392 = vst [vmem:[#allocation2 + $0x8] sm:$0xff] %v376
  %393 = vst [vmem:[#allocation2 + $0x10] sm:$0xff] %v377
  %394 = vst [vmem:[#allocation2 + $0x18] sm:$0xff] %v378
  %395 = vst [vmem:[#allocation2 + $0x20] sm:$0xff] %v379
  %396 = vst [vmem:[#allocation2 + $0x28] sm:$0xff] %v380
  %397 = vst [vmem:[#allocation2 + $0x30] sm:$0xff] %v381
  %398 = vst [vmem:[#allocation2 + $0x38] sm:$0xff] %v382
  %399 = vst [vmem:[#allocation2 + $0x40] sm:$0xff] %v383
  %400 = vst [vmem:[#allocation2 + $0x48] sm:$0xff] %v384
  %401 = vst [vmem:[#allocation2 + $0x50] sm:$0xff] %v385
  %402 = vst [vmem:[#allocation2 + $0x58] sm:$0xff] %v386
  %403 = vst [vmem:[#allocation2 + $0x60] sm:$0xff] %v387
  %404 = vst [vmem:[#allocation2 + $0x68] sm:$0xff] %v388
  %405 = vst [vmem:[#allocation2 + $0x70] sm:$0xff] %v389
  %406 = vst [vmem:[#allocation2 + $0x78] sm:$0xff] %v390
  // Predicated region
  $region22: #{resnet_trunk_forward.13} parent=0 // pred_check
    %p407 = pneg %p18
  $region23: #{resnet_trunk_forward.13} parent=0 // pred_check_branch
    %409 = sbr.rel (%p407) target = $region25
  $region24: #{resnet_trunk_forward.13} parent=0 // pred_region
    %v410 = vld [vmem:[#allocation2] sm:$0xff]
    %v411 = vld [vmem:[#allocation2 + $0x8] sm:$0xff]
    %v412 = vld [vmem:[#allocation2 + $0x10] sm:$0xff]
    %v413 = vld [vmem:[#allocation2 + $0x18] sm:$0xff]
    %v414 = vld [vmem:[#allocation2 + $0x20] sm:$0xff]
    %v415 = vld [vmem:[#allocation2 + $0x28] sm:$0xff]
    %v416 = vld [vmem:[#allocation2 + $0x30] sm:$0xff]
    %v417 = vld [vmem:[#allocation2 + $0x38] sm:$0xff]
    %v418 = vld [vmem:[#allocation2 + $0x40] sm:$0xff]
    %v419 = vld [vmem:[#allocation2 + $0x48] sm:$0xff]
    %v420 = vld [vmem:[#allocation2 + $0x50] sm:$0xff]
    %v421 = vld [vmem:[#allocation2 + $0x58] sm:$0xff]
    %v422 = vld [vmem:[#allocation2 + $0x60] sm:$0xff]
    %v423 = vld [vmem:[#allocation2 + $0x68] sm:$0xff]
    %v424 = vld [vmem:[#allocation2 + $0x70] sm:$0xff]
    %v425 = vld [vmem:[#allocation2 + $0x78] sm:$0xff]
    %v426 = vld [vmem:[%s2] sm:$0x1]
    %v428 = vlaneseq
    %v429 = vshrl.u32 %v428, 7
    %v430 = vsub.s32 0, %v429
    %v431 = vrot.slane %v426, %v430
    %v433 = vmul.f32 %v410, %v431
    %v434 = vmul.f32 %v411, %v431
    %v435 = vmul.f32 %v412, %v431
    %v436 = vmul.f32 %v413, %v431
    %v437 = vmul.f32 %v414, %v431
    %v438 = vmul.f32 %v415, %v431
    %v439 = vmul.f32 %v416, %v431
    %v440 = vmul.f32 %v417, %v431
    %v441 = vmul.f32 %v418, %v431
    %v442 = vmul.f32 %v419, %v431
    %v443 = vmul.f32 %v420, %v431
    %v444 = vmul.f32 %v421, %v431
    %v445 = vmul.f32 %v422, %v431
    %v446 = vmul.f32 %v423, %v431
    %v447 = vmul.f32 %v424, %v431
    %v448 = vmul.f32 %v425, %v431
    %v449 = vld [vmem:[%s3] sm:$0x1]
    %v451 = vlaneseq
    %v452 = vshrl.u32 %v451, 7
    %v453 = vsub.s32 0, %v452
    %v454 = vrot.slane %v449, %v453
    %v456 = vadd.f32 %v433, %v454
    %v457 = vadd.f32 %v434, %v454
    %v458 = vadd.f32 %v435, %v454
    %v459 = vadd.f32 %v436, %v454
    %v460 = vadd.f32 %v437, %v454
    %v461 = vadd.f32 %v438, %v454
    %v462 = vadd.f32 %v439, %v454
    %v463 = vadd.f32 %v440, %v454
    %v464 = vadd.f32 %v441, %v454
    %v465 = vadd.f32 %v442, %v454
    %v466 = vadd.f32 %v443, %v454
    %v467 = vadd.f32 %v444, %v454
    %v468 = vadd.f32 %v445, %v454
    %v469 = vadd.f32 %v446, %v454
    %v470 = vadd.f32 %v447, %v454
    %v471 = vadd.f32 %v448, %v454
    %v472 = vmax.f32 %v456, 0.0
    %v473 = vmax.f32 %v457, 0.0
    %v474 = vmax.f32 %v458, 0.0
    %v475 = vmax.f32 %v459, 0.0
    %v476 = vmax.f32 %v460, 0.0
    %v477 = vmax.f32 %v461, 0.0
    %v478 = vmax.f32 %v462, 0.0
    %v479 = vmax.f32 %v463, 0.0
    %v480 = vmax.f32 %v464, 0.0
    %v481 = vmax.f32 %v465, 0.0
    %v482 = vmax.f32 %v466, 0.0
    %v483 = vmax.f32 %v467, 0.0
    %v484 = vmax.f32 %v468, 0.0
    %v485 = vmax.f32 %v469, 0.0
    %v486 = vmax.f32 %v470, 0.0
    %v487 = vmax.f32 %v471, 0.0
    %488 = vst [vmem:[%s4] sm:$0xff] %v472
    %489 = vst [vmem:[%s4 + $0x8] sm:$0xff] %v473
    %490 = vst [vmem:[%s4 + $0x10] sm:$0xff] %v474
    %491 = vst [vmem:[%s4 + $0x18] sm:$0xff] %v475
    %492 = vst [vmem:[%s4 + $0x20] sm:$0xff] %v476
    %493 = vst [vmem:[%s4 + $0x28] sm:$0xff] %v477
    %494 = vst [vmem:[%s4 + $0x30] sm:$0xff] %v478
    %495 = vst [vmem:[%s4 + $0x38] sm:$0xff] %v479
    %496 = vst [vmem:[%s4 + $0x40] sm:$0xff] %v480
    %497 = vst [vmem:[%s4 + $0x48] sm:$0xff] %v481
    %498 = vst [vmem:[%s4 + $0x50] sm:$0xff] %v482
    %499 = vst [vmem:[%s4 + $0x58] sm:$0xff] %v483
    %500 = vst [vmem:[%s4 + $0x60] sm:$0xff] %v484
    %501 = vst [vmem:[%s4 + $0x68] sm:$0xff] %v485
    %502 = vst [vmem:[%s4 + $0x70] sm:$0xff] %v486
    %503 = vst [vmem:[%s4 + $0x78] sm:$0xff] %v487
  $region25: #{resnet_trunk_forward.13} parent=0 // pred_fallthru
    _
  // Predicated region
  $region26: #{resnet_trunk_forward.13} parent=0 // pred_check
    _
  $region27: #{resnet_trunk_forward.13} parent=0 // pred_check_branch
    %505 = sbr.rel (0) target = $region29
  $region28: #{resnet_trunk_forward.13} parent=0 // pred_region
    _
  $region29: #{resnet_trunk_forward.13} parent=0 // pred_fallthru
    _
  // Predicated region
  $region30: #{resnet_trunk_forward.13} parent=0 // pred_check
    _
  $region31: #{resnet_trunk_forward.13} parent=0 // pred_check_branch
    %507 = sbr.rel (0) target = $region33
  $region32: #{resnet_trunk_forward.13} parent=0 // pred_region
    _
  $region33: #{resnet_trunk_forward.13} parent=0 // pred_fallthru
    _

// kernel: resnet_trunk_forward.15
$region0: #{resnet_trunk_forward.15}
  #allocation0 [shape = 'u32[]', space=smem, size = 0x4, offset = 0x4, fixed_abs, tag = 'smem constant byte address 0x4 - core index']
  #allocation1 [shape = 'u32[144,128]{1,0:T(1,128)}', space=vmem, size = 0x12000, scoped, tag = 'internal scratch']
  #allocation2 [shape = 'f32[32,128]{1,0:T(8,128)}', space=vmem, size = 0x4000, scoped, tag = 'scratch operand']
  %s0 = inlined_call_operand.vmem [shape: bf16[32,768], index: 0, kind: input, shape index: {}]
  %s1 = inlined_call_operand.vmem [shape: bf16[768,128], index: 1, kind: input, shape index: {}]
  %s2 = inlined_call_operand.vmem [shape: f32[1,128], index: 2, kind: input, shape index: {}]
  %s3 = inlined_call_operand.vmem [shape: f32[1,128], index: 3, kind: input, shape index: {}]
  %s4 = inlined_call_operand.vmem [shape: f32[32,128], index: 4, kind: output, shape index: {}]
  %s5 = sld [smem:[#allocation0]]
  $region95: #{resnet_trunk_forward.15} parent=0
    _
  %s7 = ssub.s32 1, %s5
  %s8 = scalar_select 0, %s7, %s5
  $region1: #{resnet_trunk_forward.15} parent=0
    #allocation3 [shape = 'u8[32768]{0}', space=vmem, size = 0x8000, scoped, tag = 'input window, operand 0']
    loop: start=0, step=1, limit=5
    $region2: #{resnet_trunk_forward.15} parent=1 // loop_pre_header
      _
    $region3: #{resnet_trunk_forward.15} parent=1 // loop_header
      %s10 = sphi 0, %s14
      %p11 = scmp.ge.s32.totalorder %s10, 5
      %s17 = sphi 0, %s36
      %s18 = sphi 0, %s32
      %s19 = sphi 0, %s28
      %s20 = sphi 0, %s17
      %s21 = sphi 0, %s18
      %s22 = sphi 0, %s19
      %s23 = sphi 0, %s20
      %s24 = sphi 0, %s21
      %s25 = sphi 0, %s22
      %s41 = sphi 0, %s43
      %s44 = sphi 0, %s41
      %s45 = sphi 0, %s44
      %s61 = sphi 0, %s45
      %s69 = sphi 0, %s71
      %s72 = sphi 0, %s69
      %s73 = sphi 0, %s72
      %s89 = sphi 0, %s73
      %s95 = sphi 0, %s97
      %s98 = sphi 0, %s95
      %s99 = sphi 0, %s98
      %s115 = sphi 0, %s99
      %s121 = sphi 0, %s123
      %s124 = sphi 0, %s121
      %s125 = sphi 0, %s124
      %s141 = sphi 0, %s125
      %s149 = sphi 0, %s151
      %s152 = sphi 0, %s149
      %s153 = sphi 0, %s152
      %s169 = sphi 0, %s153
    $region4: #{resnet_trunk_forward.15} parent=1 // loop_header_branch
      %13 = sbr.rel (%p11) target = $region8
    $region5: #{resnet_trunk_forward.15} parent=1 // loop_body
      %s15 = ssub.s32 %s10, 1
      %s16 = ssub.s32 %s10, 2
      %s26 = sadd.s32 1, %s19
      %p27 = scmp.ge.s32.totalorder %s26, 3
      %s28 = scalar_select %p27, 0, %s26
      %s29 = sadd.s32 1, %s18
      %s30 = scalar_select %p27, %s29, %s18
      %p31 = scmp.ge.s32.totalorder %s30, 1
      %s32 = scalar_select %p31, 0, %s30
      %s33 = sadd.s32 1, %s17
      %s34 = scalar_select %p31, %s33, %s17
      %p35 = scmp.ge.s32.totalorder %s34, 1
      %s36 = scalar_select %p35, 0, %s34
      %s37 = ssub.s32 %s17, %s36
      %s38 = ssub.s32 %s19, %s28
      %s39 = sor.u32 %s37, %s38
      %p40 = scmp.eq.s32.totalorder %s39, 0
      %s42 = sadd.s32 %s41, 1
      %s43 = scalar_select %p40, %s41, %s42
      %p46 = pneg %p40
      %p47 = scmp.eq.s32.totalorder %s10, 2
      %p48 = por %p46, %p47
      %p49 = scmp.ne.s32.totalorder %s41, %s44
      %p50 = scmp.eq.s32.totalorder %s10, 0
      %p51 = por %p49, %p50
      %p52 = scmp.ne.s32.totalorder %s41, %s44
      %p53 = scmp.eq.s32.totalorder %s15, 2
      %p54 = por %p52, %p53
      %p55 = scmp.ne.s32.totalorder %s44, %s45
      %p56 = scmp.eq.s32.totalorder %s15, 0
      %p57 = por %p55, %p56
      %p58 = scmp.ne.s32.totalorder %s44, %s45
      %p59 = scmp.eq.s32.totalorder %s16, 2
      %p60 = por %p58, %p59
      %p62 = scmp.ne.s32.totalorder %s45, %s61
      %p63 = scmp.eq.s32.totalorder %s16, 0
      %p64 = por %p62, %p63
      %s65 = ssub.s32 %s19, %s28
      %s66 = ssub.s32 %s18, %s32
      %s67 = sor.u32 %s65, %s66
      %p68 = scmp.eq.s32.totalorder %s67, 0
      %s70 = sadd.s32 %s69, 1
      %s71 = scalar_select %p68, %s69, %s70
      %p74 = pneg %p68
      %p75 = scmp.eq.s32.totalorder %s10, 2
      %p76 = por %p74, %p75
      %p77 = scmp.ne.s32.totalorder %s69, %s72
      %p78 = scmp.eq.s32.totalorder %s10, 0
      %p79 = por %p77, %p78
      %p80 = scmp.ne.s32.totalorder %s69, %s72
      %p81 = scmp.eq.s32.totalorder %s15, 2
      %p82 = por %p80, %p81
      %p83 = scmp.ne.s32.totalorder %s72, %s73
      %p84 = scmp.eq.s32.totalorder %s15, 0
      %p85 = por %p83, %p84
      %p86 = scmp.ne.s32.totalorder %s72, %s73
      %p87 = scmp.eq.s32.totalorder %s16, 2
      %p88 = por %p86, %p87
      %p90 = scmp.ne.s32.totalorder %s73, %s89
      %p91 = scmp.eq.s32.totalorder %s16, 0
      %p92 = por %p90, %p91
      %s93 = ssub.s32 %s18, %s32
      %p94 = scmp.eq.s32.totalorder %s93, 0
      %s96 = sadd.s32 %s95, 1
      %s97 = scalar_select %p94, %s95, %s96
      %p100 = pneg %p94
      %p101 = scmp.eq.s32.totalorder %s10, 2
      %p102 = por %p100, %p101
      %p103 = scmp.ne.s32.totalorder %s95, %s98
      %p104 = scmp.eq.s32.totalorder %s10, 0
      %p105 = por %p103, %p104
      %p106 = scmp.ne.s32.totalorder %s95, %s98
      %p107 = scmp.eq.s32.totalorder %s15, 2
      %p108 = por %p106, %p107
      %p109 = scmp.ne.s32.totalorder %s98, %s99
      %p110 = scmp.eq.s32.totalorder %s15, 0
      %p111 = por %p109, %p110
      %p112 = scmp.ne.s32.totalorder %s98, %s99
      %p113 = scmp.eq.s32.totalorder %s16, 2
      %p114 = por %p112, %p113
      %p116 = scmp.ne.s32.totalorder %s99, %s115
      %p117 = scmp.eq.s32.totalorder %s16, 0
      %p118 = por %p116, %p117
      %s119 = ssub.s32 %s18, %s32
      %p120 = scmp.eq.s32.totalorder %s119, 0
      %s122 = sadd.s32 %s121, 1
      %s123 = scalar_select %p120, %s121, %s122
      %p126 = pneg %p120
      %p127 = scmp.eq.s32.totalorder %s10, 2
      %p128 = por %p126, %p127
      %p129 = scmp.ne.s32.totalorder %s121, %s124
      %p130 = scmp.eq.s32.totalorder %s10, 0
      %p131 = por %p129, %p130
      %p132 = scmp.ne.s32.totalorder %s121, %s124
      %p133 = scmp.eq.s32.totalorder %s15, 2
      %p134 = por %p132, %p133
      %p135 = scmp.ne.s32.totalorder %s124, %s125
      %p136 = scmp.eq.s32.totalorder %s15, 0
      %p137 = por %p135, %p136
      %p138 = scmp.ne.s32.totalorder %s124, %s125
      %p139 = scmp.eq.s32.totalorder %s16, 2
      %p140 = por %p138, %p139
      %p142 = scmp.ne.s32.totalorder %s125, %s141
      %p143 = scmp.eq.s32.totalorder %s16, 0
      %p144 = por %p142, %p143
      %s145 = ssub.s32 %s17, %s36
      %s146 = ssub.s32 %s18, %s32
      %s147 = sor.u32 %s145, %s146
      %p148 = scmp.eq.s32.totalorder %s147, 0
      %s150 = sadd.s32 %s149, 1
      %s151 = scalar_select %p148, %s149, %s150
      %p154 = pneg %p148
      %p155 = scmp.eq.s32.totalorder %s10, 2
      %p156 = por %p154, %p155
      %p157 = scmp.ne.s32.totalorder %s149, %s152
      %p158 = scmp.eq.s32.totalorder %s10, 0
      %p159 = por %p157, %p158
      %p160 = scmp.ne.s32.totalorder %s149, %s152
      %p161 = scmp.eq.s32.totalorder %s15, 2
      %p162 = por %p160, %p161
      %p163 = scmp.ne.s32.totalorder %s152, %s153
      %p164 = scmp.eq.s32.totalorder %s15, 0
      %p165 = por %p163, %p164
      %p166 = scmp.ne.s32.totalorder %s152, %s153
      %p167 = scmp.eq.s32.totalorder %s16, 2
      %p168 = por %p166, %p167
      %p170 = scmp.ne.s32.totalorder %s153, %s169
      %p171 = scmp.eq.s32.totalorder %s16, 0
      %p172 = por %p170, %p171
      %p173 = scmp.le.s32.totalorder 1, %s10
      %p174 = scmp.lt.s32.totalorder %s10, 4
      %p175 = pnand %p173, %p174
      %p176 = pneg %p175
      // Predicated region
      $region9: #{resnet_trunk_forward.15} parent=5 // pred_check
        _
      $region10: #{resnet_trunk_forward.15} parent=5 // pred_check_branch
        %178 = sbr.rel (%p175) target = $region12
      $region11: #{resnet_trunk_forward.15} parent=5 // pred_region
        %s179 = ssub.s32 %s10, 1
        // Predicated region
        $region13: #{resnet_trunk_forward.15} parent=11 // pred_check
          %p180 = pneg %p111
        $region14: #{resnet_trunk_forward.15} parent=11 // pred_check_branch
          %182 = sbr.rel (%p180) target = $region16
        $region15: #{resnet_trunk_forward.15} parent=11 // pred_region
          %p183 = scmp.lt.s32.totalorder %s21, 0
          %s184 = scalar_select %p183, %s21, 0
          %s185 = scalar_lea.vmem %s2, %s184
        $region16: #{resnet_trunk_forward.15} parent=11 // pred_fallthru
          _
        // Predicated region
        $region17: #{resnet_trunk_forward.15} parent=11 // pred_check
          %p186 = pneg %p137
        $region18: #{resnet_trunk_forward.15} parent=11 // pred_check_branch
          %188 = sbr.rel (%p186) target = $region20
        $region19: #{resnet_trunk_forward.15} parent=11 // pred_region
          %p189 = scmp.lt.s32.totalorder %s21, 0
          %s190 = scalar_select %p189, %s21, 0
          %s191 = scalar_lea.vmem %s3, %s190
        $region20: #{resnet_trunk_forward.15} parent=11 // pred_fallthru
          _
      $region12: #{resnet_trunk_forward.15} parent=5 // pred_fallthru
        _
      %p192 = scmp.lt.s32.totalorder %s10, 3
      // Predicated region
      $region21: #{resnet_trunk_forward.15} parent=5 // pred_check
        %p193 = pneg %p192
      $region22: #{resnet_trunk_forward.15} parent=5 // pred_check_branch
        %195 = sbr.rel (%p193) target = $region24
      $region23: #{resnet_trunk_forward.15} parent=5 // pred_region
        // Predicated region
        $region25: #{resnet_trunk_forward.15} parent=23 // pred_check
          %p196 = pneg %p51
        $region26: #{resnet_trunk_forward.15} parent=23 // pred_check_branch
          %198 = sbr.rel (%p196) target = $region28
        $region27: #{resnet_trunk_forward.15} parent=23 // pred_region
          %s199 = sand.u32 %s41, 1
          %s200 = sand.u32 %s41, 1
          %s201 = smul.addr %s200, 32
          %s202 = scalar_lea.vmem [#allocation3], %s201
          %s203 = smul.u32 4, %s17
          %s204 = smul.u32 2, %s19
          %s205 = smul.addr %s203, 6
          %s206 = sadd.s32 %s204, %s205
          %s207 = smul.addr %s206, 4
          %s208 = scalar_lea.vmem %s0, %s207
          // Predicated region
          $region29: #{resnet_trunk_forward.15} parent=27 // pred_check
            _
          $region30: #{resnet_trunk_forward.15} parent=27 // pred_check_branch
            %210 = sbr.rel (0) target = $region32
          $region31: #{resnet_trunk_forward.15} parent=27 // pred_region
            // Predicated region
            $region33: #{resnet_trunk_forward.15} parent=31 // pred_check
              _
            $region34: #{resnet_trunk_forward.15} parent=31 // pred_check_branch
              %212 = sbr.rel (0) target = $region36
            $region35: #{resnet_trunk_forward.15} parent=31 // pred_region
              // Predicated region
              $region48: #{resnet_trunk_forward.15} parent=35 // pred_check
                _
              $region49: #{resnet_trunk_forward.15} parent=35 // pred_check_branch
                %234 = sbr.rel (0) target = $region51
              $region50: #{resnet_trunk_forward.15} parent=35 // pred_region
                loop: start=0, step=1, limit=1
                $region52: #{resnet_trunk_forward.15} parent=50 // loop_pre_header
                  _
                $region53: #{resnet_trunk_forward.15} parent=50 // loop_header
                  %s236 = sphi 0, %s240
                  %p237 = scmp.ge.s32.totalorder %s236, 1
                  %s241 = sphi %s208, %s208
                  %s242 = sphi %s202, %s202
                $region54: #{resnet_trunk_forward.15} parent=50 // loop_header_branch
                  %239 = sbr.rel (%p237) target = $region58
                $region55: #{resnet_trunk_forward.15} parent=50 // loop_body
                  %v243 = vld [vmem:[%s241] sm:$0xff]
                  %244 = vst [vmem:[%s242] sm:$0xff] %v243
                  %v245 = vld [vmem:[%s241 + $0x18] sm:$0xff]
                  %246 = vst [vmem:[%s242 + $0x8] sm:$0xff] %v245
                  %v247 = vld [vmem:[%s241 + $0x30] sm:$0xff]
                  %248 = vst [vmem:[%s242 + $0x10] sm:$0xff] %v247
                  %v249 = vld [vmem:[%s241 + $0x48] sm:$0xff]
                  %250 = vst [vmem:[%s242 + $0x18] sm:$0xff] %v249
                $region56: #{resnet_trunk_forward.15} parent=50 // loop_footer
                  %s240 = sadd.s32 1, %s236
                $region57: #{resnet_trunk_forward.15} parent=50 // loop_footer_branch
                  %235 = sbr.rel target = $region53
                $region58: #{resnet_trunk_forward.15} parent=50 // loop_exit
                  _
              $region51: #{resnet_trunk_forward.15} parent=35 // pred_fallthru
                _
              // Predicated region
              $region59: #{resnet_trunk_forward.15} parent=35 // pred_check
                _
              $region60: #{resnet_trunk_forward.15} parent=35 // pred_check_branch
                %252 = sbr.rel target = $region62
              $region61: #{resnet_trunk_forward.15} parent=35 // pred_region
                _
              $region62: #{resnet_trunk_forward.15} parent=35 // pred_fallthru
                _
            $region36: #{resnet_trunk_forward.15} parent=31 // pred_fallthru
              _
            // Predicated region
            $region37: #{resnet_trunk_forward.15} parent=31 // pred_check
              _
            $region38: #{resnet_trunk_forward.15} parent=31 // pred_check_branch
              %214 = sbr.rel target = $region40
            $region39: #{resnet_trunk_forward.15} parent=31 // pred_region
              %s216 = ssub.s32 256, 1
              loop: start=0, step=1, limit=1
              $region41: #{resnet_trunk_forward.15} parent=39 // loop_pre_header
                _
              $region42: #{resnet_trunk_forward.15} parent=39 // loop_header
                %s218 = sphi 0, %s222
                %p219 = scmp.ge.s32.totalorder %s218, 1
                %s223 = sphi %s208, %s208
                %s224 = sphi %s202, %s202
              $region43: #{resnet_trunk_forward.15} parent=39 // loop_header_branch
                %221 = sbr.rel (%p219) target = $region47
              $region44: #{resnet_trunk_forward.15} parent=39 // loop_body
                %v225 = vld [vmem:[%s223] sm:%s216]
                %226 = vst [vmem:[%s224] sm:%s216] %v225
                %v227 = vld [vmem:[%s223 + $0x18] sm:%s216]
                %228 = vst [vmem:[%s224 + $0x8] sm:%s216] %v227
                %v229 = vld [vmem:[%s223 + $0x30] sm:%s216]
                %230 = vst [vmem:[%s224 + $0x10] sm:%s216] %v229
                %v231 = vld [vmem:[%s223 + $0x48] sm:%s216]
                %232 = vst [vmem:[%s224 + $0x18] sm:%s216] %v231
              $region45: #{resnet_trunk_forward.15} parent=39 // loop_footer
                %s222 = sadd.s32 1, %s218
              $region46: #{resnet_trunk_forward.15} parent=39 // loop_footer_branch
                %217 = sbr.rel target = $region42
              $region47: #{resnet_trunk_forward.15} parent=39 // loop_exit
                _
            $region40: #{resnet_trunk_forward.15} parent=31 // pred_fallthru
              _
          $region32: #{resnet_trunk_forward.15} parent=27 // pred_fallthru
            _
          %253 = vnop
        $region28: #{resnet_trunk_forward.15} parent=23 // pred_fallthru
          _
        // Predicated region
        $region63: #{resnet_trunk_forward.15} parent=23 // pred_check
          %p254 = pneg %p79
        $region64: #{resnet_trunk_forward.15} parent=23 // pred_check_branch
          %256 = sbr.rel (%p254) target = $region66
        $region65: #{resnet_trunk_forward.15} parent=23 // pred_region
          %s257 = smul.u32 32, %s19
          %p258 = scmp.lt.s32.totalorder %s257, 95
          %s259 = scalar_select %p258, %s257, 95
          %p260 = scmp.lt.s32.totalorder %s18, 0
          %s261 = scalar_select %p260, %s18, 0
          %s262 = sadd.s32 %s261, %s259
          %s263 = smul.addr %s262, 4
          %s264 = scalar_lea.vmem %s1, %s263
          %s265 = smul.u32 32, %s19
        $region66: #{resnet_trunk_forward.15} parent=23 // pred_fallthru
          _
      $region24: #{resnet_trunk_forward.15} parent=5 // pred_fallthru
        _
      %p266 = scmp.le.s32.totalorder 1, %s10
      %p267 = scmp.lt.s32.totalorder %s10, 4
      %p268 = pnand %p266, %p267
      %p269 = pneg %p268
      // Predicated region
      $region67: #{resnet_trunk_forward.15} parent=5 // pred_check
        _
      $region68: #{resnet_trunk_forward.15} parent=5 // pred_check_branch
        %271 = sbr.rel (%p268) target = $region70
      $region69: #{resnet_trunk_forward.15} parent=5 // pred_region
        %s272 = ssub.s32 %s10, 1
        %s273 = sand.u32 %s44, 1
        %s274 = sand.u32 %s44, 1
        %s275 = smul.addr %s274, 32
        %s276 = scalar_lea.vmem [#allocation3], %s275
        // Predicated region
        $region71: #{resnet_trunk_forward.15} parent=69 // pred_check
          %p277 = pneg %p57
        $region72: #{resnet_trunk_forward.15} parent=69 // pred_check_branch
          %279 = sbr.rel (%p277) target = $region74
        $region73: #{resnet_trunk_forward.15} parent=69 // pred_region
          _
        $region74: #{resnet_trunk_forward.15} parent=69 // pred_fallthru
          _
        %s280 = sand.u32 %s44, 1
        %s281 = sand.u32 %s44, 1
        %s282 = smul.addr %s281, 32
        %s283 = scalar_lea.vmem [#allocation3], %s282
        %p284 = pneg %p57
        %p285 = pneg %p54
        %s286 = smul.u32 32, %s22
        %p287 = scmp.lt.s32.totalorder %s286, 95
        %s288 = scalar_select %p287, %s286, 95
        %p289 = scmp.lt.s32.totalorder %s21, 0
        %s290 = scalar_select %p289, %s21, 0
        %s291 = sadd.s32 %s290, %s288
        %s292 = smul.addr %s291, 4
        %s293 = scalar_lea.vmem %s1, %s292
        %p294 = pneg %p85
        %p295 = pneg %p82
        %p296 = scmp.lt.s32.totalorder %s21, 0
        %s297 = scalar_select %p296, %s21, 0
        %s298 = scalar_lea.vmem %s2, %s297
        %p299 = pneg %p111
        %p300 = pneg %p108
        %p301 = scmp.lt.s32.totalorder %s21, 0
        %s302 = scalar_select %p301, %s21, 0
        %s303 = scalar_lea.vmem %s3, %s302
        %p304 = pneg %p137
        %p305 = pneg %p134
        %p306 = pneg %p165
        %p307 = pneg %p162
        %s308 = smul.u32 4, %s20
        %p309 = scmp.lt.s32.totalorder %s308, 3
        %s310 = scalar_select %p309, %s308, 3
        %p311 = scmp.lt.s32.totalorder %s21, 0
        %s312 = scalar_select %p311, %s21, 0
        %s313 = sadd.s32 %s312, %s310
        %s314 = smul.addr %s313, 8
        %s315 = scalar_lea.vmem %s4, %s314
        %s316 = smul.u32 4, %s20
        %s317 = smul.u32 2, %s22
        %s318 = smul.u32 32, %s22
        %p319 = scmp.lt.s32.totalorder %s318, 95
        %s320 = scalar_select %p319, %s318, 95
        %p321 = scmp.lt.s32.totalorder %s21, 0
        %s322 = scalar_select %p321, %s21, 0
        %s323 = sadd.s32 %s322, %s320
        %s324 = smul.addr %s323, 4
        %s325 = scalar_lea.vmem %s1, %s324
        %s326 = smul.u32 32, %s22
        %p327 = scmp.lt.s32.totalorder %s21, 0
        %s328 = scalar_select %p327, %s21, 0
        %s329 = scalar_lea.vmem %s2, %s328
        %p330 = scmp.lt.s32.totalorder %s21, 0
        %s331 = scalar_select %p330, %s21, 0
        %s332 = scalar_lea.vmem %s3, %s331
        %s333 = smul.u32 4, %s20
        %p334 = scmp.lt.s32.totalorder %s333, 3
        %s335 = scalar_select %p334, %s333, 3
        %p336 = scmp.lt.s32.totalorder %s21, 0
        %s337 = scalar_select %p336, %s21, 0
        %s338 = sadd.s32 %s337, %s335
        %s339 = smul.addr %s338, 8
        %s340 = scalar_lea.vmem %s4, %s339
        %s341 = smul.u32 4, %s20
        %p343 = scmp.eq.s32.totalorder %s22, 0
        // Predicated region
        $region75: #{resnet_trunk_forward.15} parent=69 // pred_check
          %p344 = pneg %p343
        $region76: #{resnet_trunk_forward.15} parent=69 // pred_check_branch
          %346 = sbr.rel (%p344) target = $region78
        $region77: #{resnet_trunk_forward.15} parent=69 // pred_region
          %347 = vst [vmem:[#allocation2] sm:$0xff] 0.0
          %348 = vst [vmem:[#allocation2 + $0x8] sm:$0xff] 0.0
          %349 = vst [vmem:[#allocation2 + $0x10] sm:$0xff] 0.0
          %350 = vst [vmem:[#allocation2 + $0x18] sm:$0xff] 0.0
        $region78: #{resnet_trunk_forward.15} parent=69 // pred_fallthru
          _
        %v351 = vld [vmem:[#allocation2] sm:$0xff]
        %v352 = vld [vmem:[#allocation2 + $0x8] sm:$0xff]
        %v353 = vld [vmem:[#allocation2 + $0x10] sm:$0xff]
        %v354 = vld [vmem:[#allocation2 + $0x18] sm:$0xff]
        %v355 = vld [vmem:[%s276] sm:$0xff]
        %v356 = vld [vmem:[%s276 + $0x8] sm:$0xff]
        %v357 = vld [vmem:[%s276 + $0x10] sm:$0xff]
        %v358 = vld [vmem:[%s276 + $0x18] sm:$0xff]
        %v359 = vld [vmem:[%s325] sm:$0xf]
        %v360 = vld [vmem:[%s325 + $0x4] sm:$0xf]
        %v361 = vld [vmem:[%s325 + $0x8] sm:$0xf]
        %v362 = vld [vmem:[%s325 + $0xc] sm:$0xf]
        %v363 = vld [vmem:[%s325 + $0x10] sm:$0xf]
        %v364 = vld [vmem:[%s325 + $0x14] sm:$0xf]
        %v365 = vld [vmem:[%s325 + $0x18] sm:$0xf]
        %v366 = vld [vmem:[%s325 + $0x1c] sm:$0xf]
        %v367 = vld [vmem:[%s325 + $0x20] sm:$0xf]
        %v368 = vld [vmem:[%s325 + $0x24] sm:$0xf]
        %v369 = vld [vmem:[%s325 + $0x28] sm:$0xf]
        %v370 = vld [vmem:[%s325 + $0x2c] sm:$0xf]
        %v371 = vld [vmem:[%s325 + $0x30] sm:$0xf]
        %v372 = vld [vmem:[%s325 + $0x34] sm:$0xf]
        %v373 = vld [vmem:[%s325 + $0x38] sm:$0xf]
        %v374 = vld [vmem:[%s325 + $0x3c] sm:$0xf]
        %v375 = vld [vmem:[%s325 + $0x40] sm:$0xf]
        %v376 = vld [vmem:[%s325 + $0x44] sm:$0xf]
        %v377 = vld [vmem:[%s325 + $0x48] sm:$0xf]
        %v378 = vld [vmem:[%s325 + $0x4c] sm:$0xf]
        %v379 = vld [vmem:[%s325 + $0x50] sm:$0xf]
        %v380 = vld [vmem:[%s325 + $0x54] sm:$0xf]
        %v381 = vld [vmem:[%s325 + $0x58] sm:$0xf]
        %v382 = vld [vmem:[%s325 + $0x5c] sm:$0xf]
        %v383 = vld [vmem:[%s325 + $0x60] sm:$0xf]
        %v384 = vld [vmem:[%s325 + $0x64] sm:$0xf]
        %v385 = vld [vmem:[%s325 + $0x68] sm:$0xf]
        %v386 = vld [vmem:[%s325 + $0x6c] sm:$0xf]
        %v387 = vld [vmem:[%s325 + $0x70] sm:$0xf]
        %v388 = vld [vmem:[%s325 + $0x74] sm:$0xf]
        %v389 = vld [vmem:[%s325 + $0x78] sm:$0xf]
        %v390 = vld [vmem:[%s325 + $0x7c] sm:$0xf]
        %v395 = vunpack.c.l.b16 %v355
        %v396 = vunpack.c.h.b16 %v355
        %v397 = vunpack.c.l.b16 %v356
        %v398 = vunpack.c.h.b16 %v356
        %v399 = vunpack.c.l.b16 %v357
        %v400 = vunpack.c.h.b16 %v357
        %v401 = vunpack.c.l.b16 %v358
        %v402 = vunpack.c.h.b16 %v358
        %v403 = vpack.c.b16 %v397, %v395
        %v404 = vpack.c.b16 %v398, %v396
        %v405 = vpack.c.b16 %v401, %v399
        %v406 = vpack.c.b16 %v402, %v400
        %v443 = vunpack.c.l.b16 %v359
        %v444 = vunpack.c.l.b16 %v360
        %v445 = vunpack.c.l.b16 %v361
        %v446 = vunpack.c.l.b16 %v362
        %v447 = vunpack.c.l.b16 %v363
        %v448 = vunpack.c.l.b16 %v364
        %v449 = vunpack.c.l.b16 %v365
        %v450 = vunpack.c.l.b16 %v366
        %v451 = vunpack.c.l.b16 %v367
        %v452 = vunpack.c.l.b16 %v368
        %v453 = vunpack.c.l.b16 %v369
        %v454 = vunpack.c.l.b16 %v370
        %v455 = vunpack.c.l.b16 %v371
        %v456 = vunpack.c.l.b16 %v372
        %v457 = vunpack.c.l.b16 %v373
        %v458 = vunpack.c.l.b16 %v374
        %v459 = vunpack.c.l.b16 %v375
        %v460 = vunpack.c.l.b16 %v376
        %v461 = vunpack.c.l.b16 %v377
        %v462 = vunpack.c.l.b16 %v378
        %v463 = vunpack.c.l.b16 %v379
        %v464 = vunpack.c.l.b16 %v380
        %v465 = vunpack.c.l.b16 %v381
        %v466 = vunpack.c.l.b16 %v382
        %v467 = vunpack.c.l.b16 %v383
        %v468 = vunpack.c.l.b16 %v384
        %v469 = vunpack.c.l.b16 %v385
        %v470 = vunpack.c.l.b16 %v386
        %v471 = vunpack.c.l.b16 %v387
        %v472 = vunpack.c.l.b16 %v388
        %v473 = vunpack.c.l.b16 %v389
        %v474 = vunpack.c.l.b16 %v390
        %v475 = vpack.c.b16 %v444, %v443
        %v476 = vpack.c.b16 %v446, %v445
        %v477 = vpack.c.b16 %v448, %v447
        %v478 = vpack.c.b16 %v450, %v449
        %v479 = vpack.c.b16 %v452, %v451
        %v480 = vpack.c.b16 %v454, %v453
        %v481 = vpack.c.b16 %v456, %v455
        %v482 = vpack.c.b16 %v458, %v457
        %v483 = vpack.c.b16 %v460, %v459
        %v484 = vpack.c.b16 %v462, %v461
        %v485 = vpack.c.b16 %v464, %v463
        %v486 = vpack.c.b16 %v466, %v465
        %v487 = vpack.c.b16 %v468, %v467
        %v488 = vpack.c.b16 %v470, %v469
        %v489 = vpack.c.b16 %v472, %v471
        %v490 = vpack.c.b16 %v474, %v473
        %507 = vmatprep.subr.bf16.mxu0 0
        %508 = vmatpush1.bf16.msra.mxu0 %v482
        %509 = vmatprep.subr.bf16.mxu0 0
        %510 = vmatpush1.bf16.msra.mxu0 %v481
        %511 = vmatprep.subr.bf16.mxu0 0
        %512 = vmatpush1.bf16.msra.mxu0 %v480
        %513 = vmatprep.subr.bf16.mxu0 0
        %514 = vmatpush1.bf16.msra.mxu0 %v479
        %515 = vmatprep.subr.bf16.mxu0 0
        %516 = vmatpush1.bf16.msra.mxu0 %v478
        %517 = vmatprep.subr.bf16.mxu0 0
        %518 = vmatpush1.bf16.msra.mxu0 %v477
        %519 = vmatprep.subr.bf16.mxu0 0
        %520 = vmatpush1.bf16.msra.mxu0 %v476
        %521 = vmatprep.subr.bf16.mxu0 0
        %522 = vmatpush1.bf16.msra.mxu0 %v475
        %523 = vmatprep.subr.bf16.mxu0 0
        %524 = vmatpush2.bf16.msra.mxu0 %v490
        %525 = vmatprep.subr.bf16.mxu0 0
        %526 = vmatpush2.bf16.msra.mxu0 %v489
        %527 = vmatprep.subr.bf16.mxu0 0
        %528 = vmatpush2.bf16.msra.mxu0 %v488
        %529 = vmatprep.subr.bf16.mxu0 0
        %530 = vmatpush2.bf16.msra.mxu0 %v487
        %531 = vmatprep.subr.bf16.mxu0 0
        %532 = vmatpush2.bf16.msra.mxu0 %v486
        %533 = vmatprep.subr.bf16.mxu0 0
        %534 = vmatpush2.bf16.msra.mxu0 %v485
        %535 = vmatprep.subr.bf16.mxu0 0
        %536 = vmatpush2.bf16.msra.mxu0 %v484
        %537 = vmatprep.subr.bf16.mxu0 0
        %538 = vmatpush2.bf16.msra.mxu0 %v483
        %539 = vmatprep.mubr.bf16.mxu0 %v404
        %540 = vmatmul.mubr.bf16.gmra.mxu0 %v403
        %v541 = vpop.f32.mrf.mxu0
        %v542 = vadd.f32 0.0, %v541
        %v543 = vpop.f32.mrf.mxu0
        %v544 = vpop.f32.mrf.mxu0
        %v545 = vadd.f32 0.0, %v544
        %v546 = vpop.f32.mrf.mxu0
        %547 = vmatprep.mubr.bf16.mxu0 %v406
        %548 = vmatmul.mubr.bf16.gmra.mxu0 %v405
        %v549 = vpop.f32.mrf.mxu0
        %v550 = vadd.f32 0.0, %v549
        %v551 = vpop.f32.mrf.mxu0
        %v552 = vpop.f32.mrf.mxu0
        %v553 = vadd.f32 0.0, %v552
        %v554 = vpop.f32.mrf.mxu0
        %555 = vdwg.mxu0
        %v556 = vadd.f32 %v351, %v542
        %v557 = vadd.f32 %v352, %v545
        %v558 = vadd.f32 %v353, %v550
        %v559 = vadd.f32 %v354, %v553
        %560 = vst [vmem:[#allocation2] sm:$0xff] %v556
        %561 = vst [vmem:[#allocation2 + $0x8] sm:$0xff] %v557
        %562 = vst [vmem:[#allocation2 + $0x10] sm:$0xff] %v558
        %563 = vst [vmem:[#allocation2 + $0x18] sm:$0xff] %v559
        %p564 = scmp.eq.s32.totalorder %s22, 2
        // Predicated region
        $region79: #{resnet_trunk_forward.15} parent=69 // pred_check
          %p565 = pneg %p564
        $region80: #{resnet_trunk_forward.15} parent=69 // pred_check_branch
          %567 = sbr.rel (%p565) target = $region82
        $region81: #{resnet_trunk_forward.15} parent=69 // pred_region
          %v568 = vld [vmem:[#allocation2] sm:$0xff]
          %v569 = vld [vmem:[#allocation2 + $0x8] sm:$0xff]
          %v570 = vld [vmem:[#allocation2 + $0x10] sm:$0xff]
          %v571 = vld [vmem:[#allocation2 + $0x18] sm:$0xff]
          %v572 = vld [vmem:[%s329] sm:$0x1]
          %v574 = vlaneseq
          %v575 = vshrl.u32 %v574, 7
          %v576 = vsub.s32 0, %v575
          %v577 = vrot.slane %v572, %v576
          %v579 = vmul.f32 %v568, %v577
          %v580 = vmul.f32 %v569, %v577
          %v581 = vmul.f32 %v570, %v577
          %v582 = vmul.f32 %v571, %v577
          %v583 = vld [vmem:[%s332] sm:$0x1]
          %v585 = vlaneseq
          %v586 = vshrl.u32 %v585, 7
          %v587 = vsub.s32 0, %v586
          %v588 = vrot.slane %v583, %v587
          %v590 = vadd.f32 %v579, %v588
          %v591 = vadd.f32 %v580, %v588
          %v592 = vadd.f32 %v581, %v588
          %v593 = vadd.f32 %v582, %v588
          %v594 = vmax.f32 %v590, 0.0
          %v595 = vmax.f32 %v591, 0.0
          %v596 = vmax.f32 %v592, 0.0
          %v597 = vmax.f32 %v593, 0.0
          %598 = vst [vmem:[%s340] sm:$0xff] %v594
          %599 = vst [vmem:[%s340 + $0x8] sm:$0xff] %v595
          %600 = vst [vmem:[%s340 + $0x10] sm:$0xff] %v596
          %601 = vst [vmem:[%s340 + $0x18] sm:$0xff] %v597
        $region82: #{resnet_trunk_forward.15} parent=69 // pred_fallthru
          _
        %s602 = smul.u32 4, %s20
        %p603 = scmp.lt.s32.totalorder %s602, 3
        %s604 = scalar_select %p603, %s602, 3
        %p605 = scmp.lt.s32.totalorder %s21, 0
        %s606 = scalar_select %p605, %s21, 0
        %s607 = sadd.s32 %s606, %s604
        %s608 = smul.addr %s607, 8
        %s609 = scalar_lea.vmem %s4, %s608
        // Predicated region
        $region83: #{resnet_trunk_forward.15} parent=69 // pred_check
          %p610 = pneg %p162
        $region84: #{resnet_trunk_forward.15} parent=69 // pred_check_branch
          %612 = sbr.rel (%p610) target = $region86
        $region85: #{resnet_trunk_forward.15} parent=69 // pred_region
          %s613 = smul.u32 4, %s20
        $region86: #{resnet_trunk_forward.15} parent=69 // pred_fallthru
          _
        // Predicated region
        $region87: #{resnet_trunk_forward.15} parent=69 // pred_check
          %p614 = pneg %p162
        $region88: #{resnet_trunk_forward.15} parent=69 // pred_check_branch
          %616 = sbr.rel (%p614) target = $region90
        $region89: #{resnet_trunk_forward.15} parent=69 // pred_region
          %s617 = smul.u32 4, %s20
          %p618 = scmp.lt.s32.totalorder %s617, 3
          %s619 = scalar_select %p618, %s617, 3
          %p620 = scmp.lt.s32.totalorder %s21, 0
          %s621 = scalar_select %p620, %s21, 0
          %s622 = sadd.s32 %s621, %s619
          %s623 = smul.addr %s622, 8
          %s624 = scalar_lea.vmem %s4, %s623
        $region90: #{resnet_trunk_forward.15} parent=69 // pred_fallthru
          _
      $region70: #{resnet_trunk_forward.15} parent=5 // pred_fallthru
        _
      %p625 = scmp.le.s32.totalorder 2, %s10
      // Predicated region
      $region91: #{resnet_trunk_forward.15} parent=5 // pred_check
        %p626 = pneg %p625
      $region92: #{resnet_trunk_forward.15} parent=5 // pred_check_branch
        %628 = sbr.rel (%p626) target = $region94
      $region93: #{resnet_trunk_forward.15} parent=5 // pred_region
        %s629 = ssub.s32 %s10, 2
      $region94: #{resnet_trunk_forward.15} parent=5 // pred_fallthru
        _
    $region6: #{resnet_trunk_forward.15} parent=1 // loop_footer
      %s14 = sadd.s32 1, %s10
    $region7: #{resnet_trunk_forward.15} parent=1 // loop_footer_branch
      %9 = sbr.rel target = $region3
    $region8: #{resnet_trunk_forward.15} parent=1 // loop_exit
      _

// kernel: resnet_trunk_forward.16
$region0: #{resnet_trunk_forward.16}
  #allocation0 [shape = 'u32[]', space=smem, size = 0x4, offset = 0x4, fixed_abs, tag = 'smem constant byte address 0x4 - core index']
  #allocation1 [shape = 'u32[144,128]{1,0:T(1,128)}', space=vmem, size = 0x12000, scoped, tag = 'internal scratch']
  #allocation2 [shape = 'f32[32,128]{1,0:T(8,128)}', space=vmem, size = 0x4000, scoped, tag = 'scratch operand']
  %s0 = inlined_call_operand.vmem [shape: bf16[32,768], index: 0, kind: input, shape index: {}]
  %s1 = inlined_call_operand.vmem [shape: bf16[768,128], index: 1, kind: input, shape index: {}]
  %s2 = inlined_call_operand.vmem [shape: f32[1,128], index: 2, kind: input, shape index: {}]
  %s3 = inlined_call_operand.vmem [shape: f32[1,128], index: 3, kind: input, shape index: {}]
  %s4 = inlined_call_operand.vmem [shape: f32[32,128], index: 4, kind: input, shape index: {}]
  %s5 = inlined_call_operand.vmem [shape: f32[32,128], index: 5, kind: output, shape index: {}]
  %s6 = sld [smem:[#allocation0]]
  $region99: #{resnet_trunk_forward.16} parent=0
    _
  %s8 = ssub.s32 1, %s6
  %s9 = scalar_select 0, %s8, %s6
  $region1: #{resnet_trunk_forward.16} parent=0
    #allocation3 [shape = 'u8[32768]{0}', space=vmem, size = 0x8000, scoped, tag = 'input window, operand 0']
    loop: start=0, step=1, limit=5
    $region2: #{resnet_trunk_forward.16} parent=1 // loop_pre_header
      _
    $region3: #{resnet_trunk_forward.16} parent=1 // loop_header
      %s11 = sphi 0, %s15
      %p12 = scmp.ge.s32.totalorder %s11, 5
      %s18 = sphi 0, %s37
      %s19 = sphi 0, %s33
      %s20 = sphi 0, %s29
      %s21 = sphi 0, %s18
      %s22 = sphi 0, %s19
      %s23 = sphi 0, %s20
      %s24 = sphi 0, %s21
      %s25 = sphi 0, %s22
      %s26 = sphi 0, %s23
      %s42 = sphi 0, %s44
      %s45 = sphi 0, %s42
      %s46 = sphi 0, %s45
      %s62 = sphi 0, %s46
      %s70 = sphi 0, %s72
      %s73 = sphi 0, %s70
      %s74 = sphi 0, %s73
      %s90 = sphi 0, %s74
      %s96 = sphi 0, %s98
      %s99 = sphi 0, %s96
      %s100 = sphi 0, %s99
      %s116 = sphi 0, %s100
      %s122 = sphi 0, %s124
      %s125 = sphi 0, %s122
      %s126 = sphi 0, %s125
      %s142 = sphi 0, %s126
      %s150 = sphi 0, %s152
      %s153 = sphi 0, %s150
      %s154 = sphi 0, %s153
      %s170 = sphi 0, %s154
      %s178 = sphi 0, %s180
      %s181 = sphi 0, %s178
      %s182 = sphi 0, %s181
      %s198 = sphi 0, %s182
    $region4: #{resnet_trunk_forward.16} parent=1 // loop_header_branch
      %14 = sbr.rel (%p12) target = $region8
    $region5: #{resnet_trunk_forward.16} parent=1 // loop_body
      %s16 = ssub.s32 %s11, 1
      %s17 = ssub.s32 %s11, 2
      %s27 = sadd.s32 1, %s20
      %p28 = scmp.ge.s32.totalorder %s27, 3
      %s29 = scalar_select %p28, 0, %s27
      %s30 = sadd.s32 1, %s19
      %s31 = scalar_select %p28, %s30, %s19
      %p32 = scmp.ge.s32.totalorder %s31, 1
      %s33 = scalar_select %p32, 0, %s31
      %s34 = sadd.s32 1, %s18
      %s35 = scalar_select %p32, %s34, %s18
      %p36 = scmp.ge.s32.totalorder %s35, 1
      %s37 = scalar_select %p36, 0, %s35
      %s38 = ssub.s32 %s18, %s37
      %s39 = ssub.s32 %s20, %s29
      %s40 = sor.u32 %s38, %s39
      %p41 = scmp.eq.s32.totalorder %s40, 0
      %s43 = sadd.s32 %s42, 1
      %s44 = scalar_select %p41, %s42, %s43
      %p47 = pneg %p41
      %p48 = scmp.eq.s32.totalorder %s11, 2
      %p49 = por %p47, %p48
      %p50 = scmp.ne.s32.totalorder %s42, %s45
      %p51 = scmp.eq.s32.totalorder %s11, 0
      %p52 = por %p50, %p51
      %p53 = scmp.ne.s32.totalorder %s42, %s45
      %p54 = scmp.eq.s32.totalorder %s16, 2
      %p55 = por %p53, %p54
      %p56 = scmp.ne.s32.totalorder %s45, %s46
      %p57 = scmp.eq.s32.totalorder %s16, 0
      %p58 = por %p56, %p57
      %p59 = scmp.ne.s32.totalorder %s45, %s46
      %p60 = scmp.eq.s32.totalorder %s17, 2
      %p61 = por %p59, %p60
      %p63 = scmp.ne.s32.totalorder %s46, %s62
      %p64 = scmp.eq.s32.totalorder %s17, 0
      %p65 = por %p63, %p64
      %s66 = ssub.s32 %s20, %s29
      %s67 = ssub.s32 %s19, %s33
      %s68 = sor.u32 %s66, %s67
      %p69 = scmp.eq.s32.totalorder %s68, 0
      %s71 = sadd.s32 %s70, 1
      %s72 = scalar_select %p69, %s70, %s71
      %p75 = pneg %p69
      %p76 = scmp.eq.s32.totalorder %s11, 2
      %p77 = por %p75, %p76
      %p78 = scmp.ne.s32.totalorder %s70, %s73
      %p79 = scmp.eq.s32.totalorder %s11, 0
      %p80 = por %p78, %p79
      %p81 = scmp.ne.s32.totalorder %s70, %s73
      %p82 = scmp.eq.s32.totalorder %s16, 2
      %p83 = por %p81, %p82
      %p84 = scmp.ne.s32.totalorder %s73, %s74
      %p85 = scmp.eq.s32.totalorder %s16, 0
      %p86 = por %p84, %p85
      %p87 = scmp.ne.s32.totalorder %s73, %s74
      %p88 = scmp.eq.s32.totalorder %s17, 2
      %p89 = por %p87, %p88
      %p91 = scmp.ne.s32.totalorder %s74, %s90
      %p92 = scmp.eq.s32.totalorder %s17, 0
      %p93 = por %p91, %p92
      %s94 = ssub.s32 %s19, %s33
      %p95 = scmp.eq.s32.totalorder %s94, 0
      %s97 = sadd.s32 %s96, 1
      %s98 = scalar_select %p95, %s96, %s97
      %p101 = pneg %p95
      %p102 = scmp.eq.s32.totalorder %s11, 2
      %p103 = por %p101, %p102
      %p104 = scmp.ne.s32.totalorder %s96, %s99
      %p105 = scmp.eq.s32.totalorder %s11, 0
      %p106 = por %p104, %p105
      %p107 = scmp.ne.s32.totalorder %s96, %s99
      %p108 = scmp.eq.s32.totalorder %s16, 2
      %p109 = por %p107, %p108
      %p110 = scmp.ne.s32.totalorder %s99, %s100
      %p111 = scmp.eq.s32.totalorder %s16, 0
      %p112 = por %p110, %p111
      %p113 = scmp.ne.s32.totalorder %s99, %s100
      %p114 = scmp.eq.s32.totalorder %s17, 2
      %p115 = por %p113, %p114
      %p117 = scmp.ne.s32.totalorder %s100, %s116
      %p118 = scmp.eq.s32.totalorder %s17, 0
      %p119 = por %p117, %p118
      %s120 = ssub.s32 %s19, %s33
      %p121 = scmp.eq.s32.totalorder %s120, 0
      %s123 = sadd.s32 %s122, 1
      %s124 = scalar_select %p121, %s122, %s123
      %p127 = pneg %p121
      %p128 = scmp.eq.s32.totalorder %s11, 2
      %p129 = por %p127, %p128
      %p130 = scmp.ne.s32.totalorder %s122, %s125
      %p131 = scmp.eq.s32.totalorder %s11, 0
      %p132 = por %p130, %p131
      %p133 = scmp.ne.s32.totalorder %s122, %s125
      %p134 = scmp.eq.s32.totalorder %s16, 2
      %p135 = por %p133, %p134
      %p136 = scmp.ne.s32.totalorder %s125, %s126
      %p137 = scmp.eq.s32.totalorder %s16, 0
      %p138 = por %p136, %p137
      %p139 = scmp.ne.s32.totalorder %s125, %s126
      %p140 = scmp.eq.s32.totalorder %s17, 2
      %p141 = por %p139, %p140
      %p143 = scmp.ne.s32.totalorder %s126, %s142
      %p144 = scmp.eq.s32.totalorder %s17, 0
      %p145 = por %p143, %p144
      %s146 = ssub.s32 %s18, %s37
      %s147 = ssub.s32 %s19, %s33
      %s148 = sor.u32 %s146, %s147
      %p149 = scmp.eq.s32.totalorder %s148, 0
      %s151 = sadd.s32 %s150, 1
      %s152 = scalar_select %p149, %s150, %s151
      %p155 = pneg %p149
      %p156 = scmp.eq.s32.totalorder %s11, 2
      %p157 = por %p155, %p156
      %p158 = scmp.ne.s32.totalorder %s150, %s153
      %p159 = scmp.eq.s32.totalorder %s11, 0
      %p160 = por %p158, %p159
      %p161 = scmp.ne.s32.totalorder %s150, %s153
      %p162 = scmp.eq.s32.totalorder %s16, 2
      %p163 = por %p161, %p162
      %p164 = scmp.ne.s32.totalorder %s153, %s154
      %p165 = scmp.eq.s32.totalorder %s16, 0
      %p166 = por %p164, %p165
      %p167 = scmp.ne.s32.totalorder %s153, %s154
      %p168 = scmp.eq.s32.totalorder %s17, 2
      %p169 = por %p167, %p168
      %p171 = scmp.ne.s32.totalorder %s154, %s170
      %p172 = scmp.eq.s32.totalorder %s17, 0
      %p173 = por %p171, %p172
      %s174 = ssub.s32 %s18, %s37
      %s175 = ssub.s32 %s19, %s33
      %s176 = sor.u32 %s174, %s175
      %p177 = scmp.eq.s32.totalorder %s176, 0
      %s179 = sadd.s32 %s178, 1
      %s180 = scalar_select %p177, %s178, %s179
      %p183 = pneg %p177
      %p184 = scmp.eq.s32.totalorder %s11, 2
      %p185 = por %p183, %p184
      %p186 = scmp.ne.s32.totalorder %s178, %s181
      %p187 = scmp.eq.s32.totalorder %s11, 0
      %p188 = por %p186, %p187
      %p189 = scmp.ne.s32.totalorder %s178, %s181
      %p190 = scmp.eq.s32.totalorder %s16, 2
      %p191 = por %p189, %p190
      %p192 = scmp.ne.s32.totalorder %s181, %s182
      %p193 = scmp.eq.s32.totalorder %s16, 0
      %p194 = por %p192, %p193
      %p195 = scmp.ne.s32.totalorder %s181, %s182
      %p196 = scmp.eq.s32.totalorder %s17, 2
      %p197 = por %p195, %p196
      %p199 = scmp.ne.s32.totalorder %s182, %s198
      %p200 = scmp.eq.s32.totalorder %s17, 0
      %p201 = por %p199, %p200
      %p202 = scmp.le.s32.totalorder 1, %s11
      %p203 = scmp.lt.s32.totalorder %s11, 4
      %p204 = pnand %p202, %p203
      %p205 = pneg %p204
      // Predicated region
      $region9: #{resnet_trunk_forward.16} parent=5 // pred_check
        _
      $region10: #{resnet_trunk_forward.16} parent=5 // pred_check_branch
        %207 = sbr.rel (%p204) target = $region12
      $region11: #{resnet_trunk_forward.16} parent=5 // pred_region
        %s208 = ssub.s32 %s11, 1
        // Predicated region
        $region13: #{resnet_trunk_forward.16} parent=11 // pred_check
          %p209 = pneg %p112
        $region14: #{resnet_trunk_forward.16} parent=11 // pred_check_branch
          %211 = sbr.rel (%p209) target = $region16
        $region15: #{resnet_trunk_forward.16} parent=11 // pred_region
          %p212 = scmp.lt.s32.totalorder %s22, 0
          %s213 = scalar_select %p212, %s22, 0
          %s214 = scalar_lea.vmem %s2, %s213
        $region16: #{resnet_trunk_forward.16} parent=11 // pred_fallthru
          _
        // Predicated region
        $region17: #{resnet_trunk_forward.16} parent=11 // pred_check
          %p215 = pneg %p138
        $region18: #{resnet_trunk_forward.16} parent=11 // pred_check_branch
          %217 = sbr.rel (%p215) target = $region20
        $region19: #{resnet_trunk_forward.16} parent=11 // pred_region
          %p218 = scmp.lt.s32.totalorder %s22, 0
          %s219 = scalar_select %p218, %s22, 0
          %s220 = scalar_lea.vmem %s3, %s219
        $region20: #{resnet_trunk_forward.16} parent=11 // pred_fallthru
          _
        // Predicated region
        $region21: #{resnet_trunk_forward.16} parent=11 // pred_check
          %p221 = pneg %p166
        $region22: #{resnet_trunk_forward.16} parent=11 // pred_check_branch
          %223 = sbr.rel (%p221) target = $region24
        $region23: #{resnet_trunk_forward.16} parent=11 // pred_region
          %s224 = smul.u32 4, %s21
          %p225 = scmp.lt.s32.totalorder %s224, 3
          %s226 = scalar_select %p225, %s224, 3
          %p227 = scmp.lt.s32.totalorder %s22, 0
          %s228 = scalar_select %p227, %s22, 0
          %s229 = sadd.s32 %s228, %s226
          %s230 = smul.addr %s229, 8
          %s231 = scalar_lea.vmem %s4, %s230
          %s232 = smul.u32 4, %s21
        $region24: #{resnet_trunk_forward.16} parent=11 // pred_fallthru
          _
      $region12: #{resnet_trunk_forward.16} parent=5 // pred_fallthru
        _
      %p233 = scmp.lt.s32.totalorder %s11, 3
      // Predicated region
      $region25: #{resnet_trunk_forward.16} parent=5 // pred_check
        %p234 = pneg %p233
      $region26: #{resnet_trunk_forward.16} parent=5 // pred_check_branch
        %236 = sbr.rel (%p234) target = $region28
      $region27: #{resnet_trunk_forward.16} parent=5 // pred_region
        // Predicated region
        $region29: #{resnet_trunk_forward.16} parent=27 // pred_check
          %p237 = pneg %p52
        $region30: #{resnet_trunk_forward.16} parent=27 // pred_check_branch
          %239 = sbr.rel (%p237) target = $region32
        $region31: #{resnet_trunk_forward.16} parent=27 // pred_region
          %s240 = sand.u32 %s42, 1
          %s241 = sand.u32 %s42, 1
          %s242 = smul.addr %s241, 32
          %s243 = scalar_lea.vmem [#allocation3], %s242
          %s244 = smul.u32 4, %s18
          %s245 = smul.u32 2, %s20
          %s246 = smul.addr %s244, 6
          %s247 = sadd.s32 %s245, %s246
          %s248 = smul.addr %s247, 4
          %s249 = scalar_lea.vmem %s0, %s248
          // Predicated region
          $region33: #{resnet_trunk_forward.16} parent=31 // pred_check
            _
          $region34: #{resnet_trunk_forward.16} parent=31 // pred_check_branch
            %251 = sbr.rel (0) target = $region36
          $region35: #{resnet_trunk_forward.16} parent=31 // pred_region
            // Predicated region
            $region37: #{resnet_trunk_forward.16} parent=35 // pred_check
              _
            $region38: #{resnet_trunk_forward.16} parent=35 // pred_check_branch
              %253 = sbr.rel (0) target = $region40
            $region39: #{resnet_trunk_forward.16} parent=35 // pred_region
              // Predicated region
              $region52: #{resnet_trunk_forward.16} parent=39 // pred_check
                _
              $region53: #{resnet_trunk_forward.16} parent=39 // pred_check_branch
                %275 = sbr.rel (0) target = $region55
              $region54: #{resnet_trunk_forward.16} parent=39 // pred_region
                loop: start=0, step=1, limit=1
                $region56: #{resnet_trunk_forward.16} parent=54 // loop_pre_header
                  _
                $region57: #{resnet_trunk_forward.16} parent=54 // loop_header
                  %s277 = sphi 0, %s281
                  %p278 = scmp.ge.s32.totalorder %s277, 1
                  %s282 = sphi %s249, %s249
                  %s283 = sphi %s243, %s243
                $region58: #{resnet_trunk_forward.16} parent=54 // loop_header_branch
                  %280 = sbr.rel (%p278) target = $region62
                $region59: #{resnet_trunk_forward.16} parent=54 // loop_body
                  %v284 = vld [vmem:[%s282] sm:$0xff]
                  %285 = vst [vmem:[%s283] sm:$0xff] %v284
                  %v286 = vld [vmem:[%s282 + $0x18] sm:$0xff]
                  %287 = vst [vmem:[%s283 + $0x8] sm:$0xff] %v286
                  %v288 = vld [vmem:[%s282 + $0x30] sm:$0xff]
                  %289 = vst [vmem:[%s283 + $0x10] sm:$0xff] %v288
                  %v290 = vld [vmem:[%s282 + $0x48] sm:$0xff]
                  %291 = vst [vmem:[%s283 + $0x18] sm:$0xff] %v290
                $region60: #{resnet_trunk_forward.16} parent=54 // loop_footer
                  %s281 = sadd.s32 1, %s277
                $region61: #{resnet_trunk_forward.16} parent=54 // loop_footer_branch
                  %276 = sbr.rel target = $region57
                $region62: #{resnet_trunk_forward.16} parent=54 // loop_exit
                  _
              $region55: #{resnet_trunk_forward.16} parent=39 // pred_fallthru
                _
              // Predicated region
              $region63: #{resnet_trunk_forward.16} parent=39 // pred_check
                _
              $region64: #{resnet_trunk_forward.16} parent=39 // pred_check_branch
                %293 = sbr.rel target = $region66
              $region65: #{resnet_trunk_forward.16} parent=39 // pred_region
                _
              $region66: #{resnet_trunk_forward.16} parent=39 // pred_fallthru
                _
            $region40: #{resnet_trunk_forward.16} parent=35 // pred_fallthru
              _
            // Predicated region
            $region41: #{resnet_trunk_forward.16} parent=35 // pred_check
              _
            $region42: #{resnet_trunk_forward.16} parent=35 // pred_check_branch
              %255 = sbr.rel target = $region44
            $region43: #{resnet_trunk_forward.16} parent=35 // pred_region
              %s257 = ssub.s32 256, 1
              loop: start=0, step=1, limit=1
              $region45: #{resnet_trunk_forward.16} parent=43 // loop_pre_header
                _
              $region46: #{resnet_trunk_forward.16} parent=43 // loop_header
                %s259 = sphi 0, %s263
                %p260 = scmp.ge.s32.totalorder %s259, 1
                %s264 = sphi %s249, %s249
                %s265 = sphi %s243, %s243
              $region47: #{resnet_trunk_forward.16} parent=43 // loop_header_branch
                %262 = sbr.rel (%p260) target = $region51
              $region48: #{resnet_trunk_forward.16} parent=43 // loop_body
                %v266 = vld [vmem:[%s264] sm:%s257]
                %267 = vst [vmem:[%s265] sm:%s257] %v266
                %v268 = vld [vmem:[%s264 + $0x18] sm:%s257]
                %269 = vst [vmem:[%s265 + $0x8] sm:%s257] %v268
                %v270 = vld [vmem:[%s264 + $0x30] sm:%s257]
                %271 = vst [vmem:[%s265 + $0x10] sm:%s257] %v270
                %v272 = vld [vmem:[%s264 + $0x48] sm:%s257]
                %273 = vst [vmem:[%s265 + $0x18] sm:%s257] %v272
              $region49: #{resnet_trunk_forward.16} parent=43 // loop_footer
                %s263 = sadd.s32 1, %s259
              $region50: #{resnet_trunk_forward.16} parent=43 // loop_footer_branch
                %258 = sbr.rel target = $region46
              $region51: #{resnet_trunk_forward.16} parent=43 // loop_exit
                _
            $region44: #{resnet_trunk_forward.16} parent=35 // pred_fallthru
              _
          $region36: #{resnet_trunk_forward.16} parent=31 // pred_fallthru
            _
          %294 = vnop
        $region32: #{resnet_trunk_forward.16} parent=27 // pred_fallthru
          _
        // Predicated region
        $region67: #{resnet_trunk_forward.16} parent=27 // pred_check
          %p295 = pneg %p80
        $region68: #{resnet_trunk_forward.16} parent=27 // pred_check_branch
          %297 = sbr.rel (%p295) target = $region70
        $region69: #{resnet_trunk_forward.16} parent=27 // pred_region
          %s298 = smul.u32 32, %s20
          %p299 = scmp.lt.s32.totalorder %s298, 95
          %s300 = scalar_select %p299, %s298, 95
          %p301 = scmp.lt.s32.totalorder %s19, 0
          %s302 = scalar_select %p301, %s19, 0
          %s303 = sadd.s32 %s302, %s300
          %s304 = smul.addr %s303, 4
          %s305 = scalar_lea.vmem %s1, %s304
          %s306 = smul.u32 32, %s20
        $region70: #{resnet_trunk_forward.16} parent=27 // pred_fallthru
          _
      $region28: #{resnet_trunk_forward.16} parent=5 // pred_fallthru
        _
      %p307 = scmp.le.s32.totalorder 1, %s11
      %p308 = scmp.lt.s32.totalorder %s11, 4
      %p309 = pnand %p307, %p308
      %p310 = pneg %p309
      // Predicated region
      $region71: #{resnet_trunk_forward.16} parent=5 // pred_check
        _
      $region72: #{resnet_trunk_forward.16} parent=5 // pred_check_branch
        %312 = sbr.rel (%p309) target = $region74
      $region73: #{resnet_trunk_forward.16} parent=5 // pred_region
        %s313 = ssub.s32 %s11, 1
        %s314 = sand.u32 %s45, 1
        %s315 = sand.u32 %s45, 1
        %s316 = smul.addr %s315, 32
        %s317 = scalar_lea.vmem [#allocation3], %s316
        // Predicated region
        $region75: #{resnet_trunk_forward.16} parent=73 // pred_check
          %p318 = pneg %p58
        $region76: #{resnet_trunk_forward.16} parent=73 // pred_check_branch
          %320 = sbr.rel (%p318) target = $region78
        $region77: #{resnet_trunk_forward.16} parent=73 // pred_region
          _
        $region78: #{resnet_trunk_forward.16} parent=73 // pred_fallthru
          _
        %s321 = sand.u32 %s45, 1
        %s322 = sand.u32 %s45, 1
        %s323 = smul.addr %s322, 32
        %s324 = scalar_lea.vmem [#allocation3], %s323
        %p325 = pneg %p58
        %p326 = pneg %p55
        %s327 = smul.u32 32, %s23
        %p328 = scmp.lt.s32.totalorder %s327, 95
        %s329 = scalar_select %p328, %s327, 95
        %p330 = scmp.lt.s32.totalorder %s22, 0
        %s331 = scalar_select %p330, %s22, 0
        %s332 = sadd.s32 %s331, %s329
        %s333 = smul.addr %s332, 4
        %s334 = scalar_lea.vmem %s1, %s333
        %p335 = pneg %p86
        %p336 = pneg %p83
        %p337 = scmp.lt.s32.totalorder %s22, 0
        %s338 = scalar_select %p337, %s22, 0
        %s339 = scalar_lea.vmem %s2, %s338
        %p340 = pneg %p112
        %p341 = pneg %p109
        %p342 = scmp.lt.s32.totalorder %s22, 0
        %s343 = scalar_select %p342, %s22, 0
        %s344 = scalar_lea.vmem %s3, %s343
        %p345 = pneg %p138
        %p346 = pneg %p135
        %s347 = smul.u32 4, %s21
        %p348 = scmp.lt.s32.totalorder %s347, 3
        %s349 = scalar_select %p348, %s347, 3
        %p350 = scmp.lt.s32.totalorder %s22, 0
        %s351 = scalar_select %p350, %s22, 0
        %s352 = sadd.s32 %s351, %s349
        %s353 = smul.addr %s352, 8
        %s354 = scalar_lea.vmem %s4, %s353
        %p355 = pneg %p166
        %p356 = pneg %p163
        %p357 = pneg %p194
        %p358 = pneg %p191
        %s359 = smul.u32 4, %s21
        %p360 = scmp.lt.s32.totalorder %s359, 3
        %s361 = scalar_select %p360, %s359, 3
        %p362 = scmp.lt.s32.totalorder %s22, 0
        %s363 = scalar_select %p362, %s22, 0
        %s364 = sadd.s32 %s363, %s361
        %s365 = smul.addr %s364, 8
        %s366 = scalar_lea.vmem %s5, %s365
        %s367 = smul.u32 4, %s21
        %s368 = smul.u32 2, %s23
        %s369 = smul.u32 32, %s23
        %p370 = scmp.lt.s32.totalorder %s369, 95
        %s371 = scalar_select %p370, %s369, 95
        %p372 = scmp.lt.s32.totalorder %s22, 0
        %s373 = scalar_select %p372, %s22, 0
        %s374 = sadd.s32 %s373, %s371
        %s375 = smul.addr %s374, 4
        %s376 = scalar_lea.vmem %s1, %s375
        %s377 = smul.u32 32, %s23
        %p378 = scmp.lt.s32.totalorder %s22, 0
        %s379 = scalar_select %p378, %s22, 0
        %s380 = scalar_lea.vmem %s2, %s379
        %p381 = scmp.lt.s32.totalorder %s22, 0
        %s382 = scalar_select %p381, %s22, 0
        %s383 = scalar_lea.vmem %s3, %s382
        %s384 = smul.u32 4, %s21
        %p385 = scmp.lt.s32.totalorder %s384, 3
        %s386 = scalar_select %p385, %s384, 3
        %p387 = scmp.lt.s32.totalorder %s22, 0
        %s388 = scalar_select %p387, %s22, 0
        %s389 = sadd.s32 %s388, %s386
        %s390 = smul.addr %s389, 8
        %s391 = scalar_lea.vmem %s4, %s390
        %s392 = smul.u32 4, %s21
        %s393 = smul.u32 4, %s21
        %p394 = scmp.lt.s32.totalorder %s393, 3
        %s395 = scalar_select %p394, %s393, 3
        %p396 = scmp.lt.s32.totalorder %s22, 0
        %s397 = scalar_select %p396, %s22, 0
        %s398 = sadd.s32 %s397, %s395
        %s399 = smul.addr %s398, 8
        %s400 = scalar_lea.vmem %s5, %s399
        %s401 = smul.u32 4, %s21
        %p403 = scmp.eq.s32.totalorder %s23, 0
        // Predicated region
        $region79: #{resnet_trunk_forward.16} parent=73 // pred_check
          %p404 = pneg %p403
        $region80: #{resnet_trunk_forward.16} parent=73 // pred_check_branch
          %406 = sbr.rel (%p404) target = $region82
        $region81: #{resnet_trunk_forward.16} parent=73 // pred_region
          %407 = vst [vmem:[#allocation2] sm:$0xff] 0.0
          %408 = vst [vmem:[#allocation2 + $0x8] sm:$0xff] 0.0
          %409 = vst [vmem:[#allocation2 + $0x10] sm:$0xff] 0.0
          %410 = vst [vmem:[#allocation2 + $0x18] sm:$0xff] 0.0
        $region82: #{resnet_trunk_forward.16} parent=73 // pred_fallthru
          _
        %v411 = vld [vmem:[#allocation2] sm:$0xff]
        %v412 = vld [vmem:[#allocation2 + $0x8] sm:$0xff]
        %v413 = vld [vmem:[#allocation2 + $0x10] sm:$0xff]
        %v414 = vld [vmem:[#allocation2 + $0x18] sm:$0xff]
        %v415 = vld [vmem:[%s317] sm:$0xff]
        %v416 = vld [vmem:[%s317 + $0x8] sm:$0xff]
        %v417 = vld [vmem:[%s317 + $0x10] sm:$0xff]
        %v418 = vld [vmem:[%s317 + $0x18] sm:$0xff]
        %v419 = vld [vmem:[%s376] sm:$0xf]
        %v420 = vld [vmem:[%s376 + $0x4] sm:$0xf]
        %v421 = vld [vmem:[%s376 + $0x8] sm:$0xf]
        %v422 = vld [vmem:[%s376 + $0xc] sm:$0xf]
        %v423 = vld [vmem:[%s376 + $0x10] sm:$0xf]
        %v424 = vld [vmem:[%s376 + $0x14] sm:$0xf]
        %v425 = vld [vmem:[%s376 + $0x18] sm:$0xf]
        %v426 = vld [vmem:[%s376 + $0x1c] sm:$0xf]
        %v427 = vld [vmem:[%s376 + $0x20] sm:$0xf]
        %v428 = vld [vmem:[%s376 + $0x24] sm:$0xf]
        %v429 = vld [vmem:[%s376 + $0x28] sm:$0xf]
        %v430 = vld [vmem:[%s376 + $0x2c] sm:$0xf]
        %v431 = vld [vmem:[%s376 + $0x30] sm:$0xf]
        %v432 = vld [vmem:[%s376 + $0x34] sm:$0xf]
        %v433 = vld [vmem:[%s376 + $0x38] sm:$0xf]
        %v434 = vld [vmem:[%s376 + $0x3c] sm:$0xf]
        %v435 = vld [vmem:[%s376 + $0x40] sm:$0xf]
        %v436 = vld [vmem:[%s376 + $0x44] sm:$0xf]
        %v437 = vld [vmem:[%s376 + $0x48] sm:$0xf]
        %v438 = vld [vmem:[%s376 + $0x4c] sm:$0xf]
        %v439 = vld [vmem:[%s376 + $0x50] sm:$0xf]
        %v440 = vld [vmem:[%s376 + $0x54] sm:$0xf]
        %v441 = vld [vmem:[%s376 + $0x58] sm:$0xf]
        %v442 = vld [vmem:[%s376 + $0x5c] sm:$0xf]
        %v443 = vld [vmem:[%s376 + $0x60] sm:$0xf]
        %v444 = vld [vmem:[%s376 + $0x64] sm:$0xf]
        %v445 = vld [vmem:[%s376 + $0x68] sm:$0xf]
        %v446 = vld [vmem:[%s376 + $0x6c] sm:$0xf]
        %v447 = vld [vmem:[%s376 + $0x70] sm:$0xf]
        %v448 = vld [vmem:[%s376 + $0x74] sm:$0xf]
        %v449 = vld [vmem:[%s376 + $0x78] sm:$0xf]
        %v450 = vld [vmem:[%s376 + $0x7c] sm:$0xf]
        %v455 = vunpack.c.l.b16 %v415
        %v456 = vunpack.c.h.b16 %v415
        %v457 = vunpack.c.l.b16 %v416
        %v458 = vunpack.c.h.b16 %v416
        %v459 = vunpack.c.l.b16 %v417
        %v460 = vunpack.c.h.b16 %v417
        %v461 = vunpack.c.l.b16 %v418
        %v462 = vunpack.c.h.b16 %v418
        %v463 = vpack.c.b16 %v457, %v455
        %v464 = vpack.c.b16 %v458, %v456
        %v465 = vpack.c.b16 %v461, %v459
        %v466 = vpack.c.b16 %v462, %v460
        %v503 = vunpack.c.l.b16 %v419
        %v504 = vunpack.c.l.b16 %v420
        %v505 = vunpack.c.l.b16 %v421
        %v506 = vunpack.c.l.b16 %v422
        %v507 = vunpack.c.l.b16 %v423
        %v508 = vunpack.c.l.b16 %v424
        %v509 = vunpack.c.l.b16 %v425
        %v510 = vunpack.c.l.b16 %v426
        %v511 = vunpack.c.l.b16 %v427
        %v512 = vunpack.c.l.b16 %v428
        %v513 = vunpack.c.l.b16 %v429
        %v514 = vunpack.c.l.b16 %v430
        %v515 = vunpack.c.l.b16 %v431
        %v516 = vunpack.c.l.b16 %v432
        %v517 = vunpack.c.l.b16 %v433
        %v518 = vunpack.c.l.b16 %v434
        %v519 = vunpack.c.l.b16 %v435
        %v520 = vunpack.c.l.b16 %v436
        %v521 = vunpack.c.l.b16 %v437
        %v522 = vunpack.c.l.b16 %v438
        %v523 = vunpack.c.l.b16 %v439
        %v524 = vunpack.c.l.b16 %v440
        %v525 = vunpack.c.l.b16 %v441
        %v526 = vunpack.c.l.b16 %v442
        %v527 = vunpack.c.l.b16 %v443
        %v528 = vunpack.c.l.b16 %v444
        %v529 = vunpack.c.l.b16 %v445
        %v530 = vunpack.c.l.b16 %v446
        %v531 = vunpack.c.l.b16 %v447
        %v532 = vunpack.c.l.b16 %v448
        %v533 = vunpack.c.l.b16 %v449
        %v534 = vunpack.c.l.b16 %v450
        %v535 = vpack.c.b16 %v504, %v503
        %v536 = vpack.c.b16 %v506, %v505
        %v537 = vpack.c.b16 %v508, %v507
        %v538 = vpack.c.b16 %v510, %v509
        %v539 = vpack.c.b16 %v512, %v511
        %v540 = vpack.c.b16 %v514, %v513
        %v541 = vpack.c.b16 %v516, %v515
        %v542 = vpack.c.b16 %v518, %v517
        %v543 = vpack.c.b16 %v520, %v519
        %v544 = vpack.c.b16 %v522, %v521
        %v545 = vpack.c.b16 %v524, %v523
        %v546 = vpack.c.b16 %v526, %v525
        %v547 = vpack.c.b16 %v528, %v527
        %v548 = vpack.c.b16 %v530, %v529
        %v549 = vpack.c.b16 %v532, %v531
        %v550 = vpack.c.b16 %v534, %v533
        %567 = vmatprep.subr.bf16.mxu0 0
        %568 = vmatpush1.bf16.msra.mxu0 %v542
        %569 = vmatprep.subr.bf16.mxu0 0
        %570 = vmatpush1.bf16.msra.mxu0 %v541
        %571 = vmatprep.subr.bf16.mxu0 0
        %572 = vmatpush1.bf16.msra.mxu0 %v540
        %573 = vmatprep.subr.bf16.mxu0 0
        %574 = vmatpush1.bf16.msra.mxu0 %v539
        %575 = vmatprep.subr.bf16.mxu0 0
        %576 = vmatpush1.bf16.msra.mxu0 %v538
        %577 = vmatprep.subr.bf16.mxu0 0
        %578 = vmatpush1.bf16.msra.mxu0 %v537
        %579 = vmatprep.subr.bf16.mxu0 0
        %580 = vmatpush1.bf16.msra.mxu0 %v536
        %581 = vmatprep.subr.bf16.mxu0 0
        %582 = vmatpush1.bf16.msra.mxu0 %v535
        %583 = vmatprep.subr.bf16.mxu0 0
        %584 = vmatpush2.bf16.msra.mxu0 %v550
        %585 = vmatprep.subr.bf16.mxu0 0
        %586 = vmatpush2.bf16.msra.mxu0 %v549
        %587 = vmatprep.subr.bf16.mxu0 0
        %588 = vmatpush2.bf16.msra.mxu0 %v548
        %589 = vmatprep.subr.bf16.mxu0 0
        %590 = vmatpush2.bf16.msra.mxu0 %v547
        %591 = vmatprep.subr.bf16.mxu0 0
        %592 = vmatpush2.bf16.msra.mxu0 %v546
        %593 = vmatprep.subr.bf16.mxu0 0
        %594 = vmatpush2.bf16.msra.mxu0 %v545
        %595 = vmatprep.subr.bf16.mxu0 0
        %596 = vmatpush2.bf16.msra.mxu0 %v544
        %597 = vmatprep.subr.bf16.mxu0 0
        %598 = vmatpush2.bf16.msra.mxu0 %v543
        %599 = vmatprep.mubr.bf16.mxu0 %v464
        %600 = vmatmul.mubr.bf16.gmra.mxu0 %v463
        %v601 = vpop.f32.mrf.mxu0
        %v602 = vadd.f32 0.0, %v601
        %v603 = vpop.f32.mrf.mxu0
        %v604 = vpop.f32.mrf.mxu0
        %v605 = vadd.f32 0.0, %v604
        %v606 = vpop.f32.mrf.mxu0
        %607 = vmatprep.mubr.bf16.mxu0 %v466
        %608 = vmatmul.mubr.bf16.gmra.mxu0 %v465
        %v609 = vpop.f32.mrf.mxu0
        %v610 = vadd.f32 0.0, %v609
        %v611 = vpop.f32.mrf.mxu0
        %v612 = vpop.f32.mrf.mxu0
        %v613 = vadd.f32 0.0, %v612
        %v614 = vpop.f32.mrf.mxu0
        %615 = vdwg.mxu0
        %v616 = vadd.f32 %v411, %v602
        %v617 = vadd.f32 %v412, %v605
        %v618 = vadd.f32 %v413, %v610
        %v619 = vadd.f32 %v414, %v613
        %620 = vst [vmem:[#allocation2] sm:$0xff] %v616
        %621 = vst [vmem:[#allocation2 + $0x8] sm:$0xff] %v617
        %622 = vst [vmem:[#allocation2 + $0x10] sm:$0xff] %v618
        %623 = vst [vmem:[#allocation2 + $0x18] sm:$0xff] %v619
        %p624 = scmp.eq.s32.totalorder %s23, 2
        // Predicated region
        $region83: #{resnet_trunk_forward.16} parent=73 // pred_check
          %p625 = pneg %p624
        $region84: #{resnet_trunk_forward.16} parent=73 // pred_check_branch
          %627 = sbr.rel (%p625) target = $region86
        $region85: #{resnet_trunk_forward.16} parent=73 // pred_region
          %v628 = vld [vmem:[#allocation2] sm:$0xff]
          %v629 = vld [vmem:[#allocation2 + $0x8] sm:$0xff]
          %v630 = vld [vmem:[#allocation2 + $0x10] sm:$0xff]
          %v631 = vld [vmem:[#allocation2 + $0x18] sm:$0xff]
          %v632 = vld [vmem:[%s380] sm:$0x1]
          %v634 = vlaneseq
          %v635 = vshrl.u32 %v634, 7
          %v636 = vsub.s32 0, %v635
          %v637 = vrot.slane %v632, %v636
          %v639 = vmul.f32 %v628, %v637
          %v640 = vmul.f32 %v629, %v637
          %v641 = vmul.f32 %v630, %v637
          %v642 = vmul.f32 %v631, %v637
          %v643 = vld [vmem:[%s383] sm:$0x1]
          %v645 = vlaneseq
          %v646 = vshrl.u32 %v645, 7
          %v647 = vsub.s32 0, %v646
          %v648 = vrot.slane %v643, %v647
          %v650 = vadd.f32 %v639, %v648
          %v651 = vadd.f32 %v640, %v648
          %v652 = vadd.f32 %v641, %v648
          %v653 = vadd.f32 %v642, %v648
          %v654 = vld [vmem:[%s391] sm:$0xff]
          %v655 = vld [vmem:[%s391 + $0x8] sm:$0xff]
          %v656 = vld [vmem:[%s391 + $0x10] sm:$0xff]
          %v657 = vld [vmem:[%s391 + $0x18] sm:$0xff]
          %v658 = vadd.f32 %v650, %v654
          %v659 = vadd.f32 %v651, %v655
          %v660 = vadd.f32 %v652, %v656
          %v661 = vadd.f32 %v653, %v657
          %v662 = vmax.f32 %v658, 0.0
          %v663 = vmax.f32 %v659, 0.0
          %v664 = vmax.f32 %v660, 0.0
          %v665 = vmax.f32 %v661, 0.0
          %666 = vst [vmem:[%s400] sm:$0xff] %v662
          %667 = vst [vmem:[%s400 + $0x8] sm:$0xff] %v663
          %668 = vst [vmem:[%s400 + $0x10] sm:$0xff] %v664
          %669 = vst [vmem:[%s400 + $0x18] sm:$0xff] %v665
        $region86: #{resnet_trunk_forward.16} parent=73 // pred_fallthru
          _
        %s670 = smul.u32 4, %s21
        %p671 = scmp.lt.s32.totalorder %s670, 3
        %s672 = scalar_select %p671, %s670, 3
        %p673 = scmp.lt.s32.totalorder %s22, 0
        %s674 = scalar_select %p673, %s22, 0
        %s675 = sadd.s32 %s674, %s672
        %s676 = smul.addr %s675, 8
        %s677 = scalar_lea.vmem %s5, %s676
        // Predicated region
        $region87: #{resnet_trunk_forward.16} parent=73 // pred_check
          %p678 = pneg %p191
        $region88: #{resnet_trunk_forward.16} parent=73 // pred_check_branch
          %680 = sbr.rel (%p678) target = $region90
        $region89: #{resnet_trunk_forward.16} parent=73 // pred_region
          %s681 = smul.u32 4, %s21
        $region90: #{resnet_trunk_forward.16} parent=73 // pred_fallthru
          _
        // Predicated region
        $region91: #{resnet_trunk_forward.16} parent=73 // pred_check
          %p682 = pneg %p191
        $region92: #{resnet_trunk_forward.16} parent=73 // pred_check_branch
          %684 = sbr.rel (%p682) target = $region94
        $region93: #{resnet_trunk_forward.16} parent=73 // pred_region
          %s685 = smul.u32 4, %s21
          %p686 = scmp.lt.s32.totalorder %s685, 3
          %s687 = scalar_select %p686, %s685, 3
          %p688 = scmp.lt.s32.totalorder %s22, 0
          %s689 = scalar_select %p688, %s22, 0
          %s690 = sadd.s32 %s689, %s687
          %s691 = smul.addr %s690, 8
          %s692 = scalar_lea.vmem %s5, %s691
        $region94: #{resnet_trunk_forward.16} parent=73 // pred_fallthru
          _
      $region74: #{resnet_trunk_forward.16} parent=5 // pred_fallthru
        _
      %p693 = scmp.le.s32.totalorder 2, %s11
      // Predicated region
      $region95: #{resnet_trunk_forward.16} parent=5 // pred_check
        %p694 = pneg %p693
      $region96: #{resnet_trunk_forward.16} parent=5 // pred_check_branch
        %696 = sbr.rel (%p694) target = $region98
      $region97: #{resnet_trunk_forward.16} parent=5 // pred_region
        %s697 = ssub.s32 %s11, 2
      $region98: #{resnet_trunk_forward.16} parent=5 // pred_fallthru
        _
    $region6: #{resnet_trunk_forward.16} parent=1 // loop_footer
      %s15 = sadd.s32 1, %s11
    $region7: #{resnet_trunk_forward.16} parent=1 // loop_footer_branch
      %10 = sbr.rel target = $region3
    $region8: #{resnet_trunk_forward.16} parent=1 // loop_exit
      _

// kernel: resnet_trunk_forward.18
$region0: #{resnet_trunk_forward.18}
  #allocation0 [shape = 'u32[]', space=smem, size = 0x4, offset = 0x4, fixed_abs, tag = 'smem constant byte address 0x4 - core index']
  #allocation1 [shape = 'u32[144,128]{1,0:T(1,128)}', space=vmem, size = 0x12000, scoped, tag = 'internal scratch']
  #allocation2 [shape = 'f32[16,128]{1,0:T(8,128)}', space=vmem, size = 0x2000, scoped, tag = 'scratch operand']
  %s0 = inlined_call_operand.vmem [shape: bf16[16,768], index: 0, kind: input, shape index: {}]
  %s1 = inlined_call_operand.vmem [shape: bf16[768,128], index: 1, kind: input, shape index: {}]
  %s2 = inlined_call_operand.vmem [shape: f32[1,128], index: 2, kind: input, shape index: {}]
  %s3 = inlined_call_operand.vmem [shape: f32[1,128], index: 3, kind: input, shape index: {}]
  %s4 = inlined_call_operand.vmem [shape: f32[16,128], index: 4, kind: output, shape index: {}]
  %s5 = sld [smem:[#allocation0]]
  $region95: #{resnet_trunk_forward.18} parent=0
    _
  %s7 = ssub.s32 1, %s5
  %s8 = scalar_select 0, %s7, %s5
  $region1: #{resnet_trunk_forward.18} parent=0
    #allocation3 [shape = 'u8[16384]{0}', space=vmem, size = 0x4000, scoped, tag = 'input window, operand 0']
    loop: start=0, step=1, limit=5
    $region2: #{resnet_trunk_forward.18} parent=1 // loop_pre_header
      _
    $region3: #{resnet_trunk_forward.18} parent=1 // loop_header
      %s10 = sphi 0, %s14
      %p11 = scmp.ge.s32.totalorder %s10, 5
      %s17 = sphi 0, %s36
      %s18 = sphi 0, %s32
      %s19 = sphi 0, %s28
      %s20 = sphi 0, %s17
      %s21 = sphi 0, %s18
      %s22 = sphi 0, %s19
      %s23 = sphi 0, %s20
      %s24 = sphi 0, %s21
      %s25 = sphi 0, %s22
      %s41 = sphi 0, %s43
      %s44 = sphi 0, %s41
      %s45 = sphi 0, %s44
      %s61 = sphi 0, %s45
      %s69 = sphi 0, %s71
      %s72 = sphi 0, %s69
      %s73 = sphi 0, %s72
      %s89 = sphi 0, %s73
      %s95 = sphi 0, %s97
      %s98 = sphi 0, %s95
      %s99 = sphi 0, %s98
      %s115 = sphi 0, %s99
      %s121 = sphi 0, %s123
      %s124 = sphi 0, %s121
      %s125 = sphi 0, %s124
      %s141 = sphi 0, %s125
      %s149 = sphi 0, %s151
      %s152 = sphi 0, %s149
      %s153 = sphi 0, %s152
      %s169 = sphi 0, %s153
    $region4: #{resnet_trunk_forward.18} parent=1 // loop_header_branch
      %13 = sbr.rel (%p11) target = $region8
    $region5: #{resnet_trunk_forward.18} parent=1 // loop_body
      %s15 = ssub.s32 %s10, 1
      %s16 = ssub.s32 %s10, 2
      %s26 = sadd.s32 1, %s19
      %p27 = scmp.ge.s32.totalorder %s26, 3
      %s28 = scalar_select %p27, 0, %s26
      %s29 = sadd.s32 1, %s18
      %s30 = scalar_select %p27, %s29, %s18
      %p31 = scmp.ge.s32.totalorder %s30, 1
      %s32 = scalar_select %p31, 0, %s30
      %s33 = sadd.s32 1, %s17
      %s34 = scalar_select %p31, %s33, %s17
      %p35 = scmp.ge.s32.totalorder %s34, 1
      %s36 = scalar_select %p35, 0, %s34
      %s37 = ssub.s32 %s17, %s36
      %s38 = ssub.s32 %s19, %s28
      %s39 = sor.u32 %s37, %s38
      %p40 = scmp.eq.s32.totalorder %s39, 0
      %s42 = sadd.s32 %s41, 1
      %s43 = scalar_select %p40, %s41, %s42
      %p46 = pneg %p40
      %p47 = scmp.eq.s32.totalorder %s10, 2
      %p48 = por %p46, %p47
      %p49 = scmp.ne.s32.totalorder %s41, %s44
      %p50 = scmp.eq.s32.totalorder %s10, 0
      %p51 = por %p49, %p50
      %p52 = scmp.ne.s32.totalorder %s41, %s44
      %p53 = scmp.eq.s32.totalorder %s15, 2
      %p54 = por %p52, %p53
      %p55 = scmp.ne.s32.totalorder %s44, %s45
      %p56 = scmp.eq.s32.totalorder %s15, 0
      %p57 = por %p55, %p56
      %p58 = scmp.ne.s32.totalorder %s44, %s45
      %p59 = scmp.eq.s32.totalorder %s16, 2
      %p60 = por %p58, %p59
      %p62 = scmp.ne.s32.totalorder %s45, %s61
      %p63 = scmp.eq.s32.totalorder %s16, 0
      %p64 = por %p62, %p63
      %s65 = ssub.s32 %s19, %s28
      %s66 = ssub.s32 %s18, %s32
      %s67 = sor.u32 %s65, %s66
      %p68 = scmp.eq.s32.totalorder %s67, 0
      %s70 = sadd.s32 %s69, 1
      %s71 = scalar_select %p68, %s69, %s70
      %p74 = pneg %p68
      %p75 = scmp.eq.s32.totalorder %s10, 2
      %p76 = por %p74, %p75
      %p77 = scmp.ne.s32.totalorder %s69, %s72
      %p78 = scmp.eq.s32.totalorder %s10, 0
      %p79 = por %p77, %p78
      %p80 = scmp.ne.s32.totalorder %s69, %s72
      %p81 = scmp.eq.s32.totalorder %s15, 2
      %p82 = por %p80, %p81
      %p83 = scmp.ne.s32.totalorder %s72, %s73
      %p84 = scmp.eq.s32.totalorder %s15, 0
      %p85 = por %p83, %p84
      %p86 = scmp.ne.s32.totalorder %s72, %s73
      %p87 = scmp.eq.s32.totalorder %s16, 2
      %p88 = por %p86, %p87
      %p90 = scmp.ne.s32.totalorder %s73, %s89
      %p91 = scmp.eq.s32.totalorder %s16, 0
      %p92 = por %p90, %p91
      %s93 = ssub.s32 %s18, %s32
      %p94 = scmp.eq.s32.totalorder %s93, 0
      %s96 = sadd.s32 %s95, 1
      %s97 = scalar_select %p94, %s95, %s96
      %p100 = pneg %p94
      %p101 = scmp.eq.s32.totalorder %s10, 2
      %p102 = por %p100, %p101
      %p103 = scmp.ne.s32.totalorder %s95, %s98
      %p104 = scmp.eq.s32.totalorder %s10, 0
      %p105 = por %p103, %p104
      %p106 = scmp.ne.s32.totalorder %s95, %s98
      %p107 = scmp.eq.s32.totalorder %s15, 2
      %p108 = por %p106, %p107
      %p109 = scmp.ne.s32.totalorder %s98, %s99
      %p110 = scmp.eq.s32.totalorder %s15, 0
      %p111 = por %p109, %p110
      %p112 = scmp.ne.s32.totalorder %s98, %s99
      %p113 = scmp.eq.s32.totalorder %s16, 2
      %p114 = por %p112, %p113
      %p116 = scmp.ne.s32.totalorder %s99, %s115
      %p117 = scmp.eq.s32.totalorder %s16, 0
      %p118 = por %p116, %p117
      %s119 = ssub.s32 %s18, %s32
      %p120 = scmp.eq.s32.totalorder %s119, 0
      %s122 = sadd.s32 %s121, 1
      %s123 = scalar_select %p120, %s121, %s122
      %p126 = pneg %p120
      %p127 = scmp.eq.s32.totalorder %s10, 2
      %p128 = por %p126, %p127
      %p129 = scmp.ne.s32.totalorder %s121, %s124
      %p130 = scmp.eq.s32.totalorder %s10, 0
      %p131 = por %p129, %p130
      %p132 = scmp.ne.s32.totalorder %s121, %s124
      %p133 = scmp.eq.s32.totalorder %s15, 2
      %p134 = por %p132, %p133
      %p135 = scmp.ne.s32.totalorder %s124, %s125
      %p136 = scmp.eq.s32.totalorder %s15, 0
      %p137 = por %p135, %p136
      %p138 = scmp.ne.s32.totalorder %s124, %s125
      %p139 = scmp.eq.s32.totalorder %s16, 2
      %p140 = por %p138, %p139
      %p142 = scmp.ne.s32.totalorder %s125, %s141
      %p143 = scmp.eq.s32.totalorder %s16, 0
      %p144 = por %p142, %p143
      %s145 = ssub.s32 %s17, %s36
      %s146 = ssub.s32 %s18, %s32
      %s147 = sor.u32 %s145, %s146
      %p148 = scmp.eq.s32.totalorder %s147, 0
      %s150 = sadd.s32 %s149, 1
      %s151 = scalar_select %p148, %s149, %s150
      %p154 = pneg %p148
      %p155 = scmp.eq.s32.totalorder %s10, 2
      %p156 = por %p154, %p155
      %p157 = scmp.ne.s32.totalorder %s149, %s152
      %p158 = scmp.eq.s32.totalorder %s10, 0
      %p159 = por %p157, %p158
      %p160 = scmp.ne.s32.totalorder %s149, %s152
      %p161 = scmp.eq.s32.totalorder %s15, 2
      %p162 = por %p160, %p161
      %p163 = scmp.ne.s32.totalorder %s152, %s153
      %p164 = scmp.eq.s32.totalorder %s15, 0
      %p165 = por %p163, %p164
      %p166 = scmp.ne.s32.totalorder %s152, %s153
      %p167 = scmp.eq.s32.totalorder %s16, 2
      %p168 = por %p166, %p167
      %p170 = scmp.ne.s32.totalorder %s153, %s169
      %p171 = scmp.eq.s32.totalorder %s16, 0
      %p172 = por %p170, %p171
      %p173 = scmp.le.s32.totalorder 1, %s10
      %p174 = scmp.lt.s32.totalorder %s10, 4
      %p175 = pnand %p173, %p174
      %p176 = pneg %p175
      // Predicated region
      $region9: #{resnet_trunk_forward.18} parent=5 // pred_check
        _
      $region10: #{resnet_trunk_forward.18} parent=5 // pred_check_branch
        %178 = sbr.rel (%p175) target = $region12
      $region11: #{resnet_trunk_forward.18} parent=5 // pred_region
        %s179 = ssub.s32 %s10, 1
        // Predicated region
        $region13: #{resnet_trunk_forward.18} parent=11 // pred_check
          %p180 = pneg %p111
        $region14: #{resnet_trunk_forward.18} parent=11 // pred_check_branch
          %182 = sbr.rel (%p180) target = $region16
        $region15: #{resnet_trunk_forward.18} parent=11 // pred_region
          %p183 = scmp.lt.s32.totalorder %s21, 0
          %s184 = scalar_select %p183, %s21, 0
          %s185 = scalar_lea.vmem %s2, %s184
        $region16: #{resnet_trunk_forward.18} parent=11 // pred_fallthru
          _
        // Predicated region
        $region17: #{resnet_trunk_forward.18} parent=11 // pred_check
          %p186 = pneg %p137
        $region18: #{resnet_trunk_forward.18} parent=11 // pred_check_branch
          %188 = sbr.rel (%p186) target = $region20
        $region19: #{resnet_trunk_forward.18} parent=11 // pred_region
          %p189 = scmp.lt.s32.totalorder %s21, 0
          %s190 = scalar_select %p189, %s21, 0
          %s191 = scalar_lea.vmem %s3, %s190
        $region20: #{resnet_trunk_forward.18} parent=11 // pred_fallthru
          _
      $region12: #{resnet_trunk_forward.18} parent=5 // pred_fallthru
        _
      %p192 = scmp.lt.s32.totalorder %s10, 3
      // Predicated region
      $region21: #{resnet_trunk_forward.18} parent=5 // pred_check
        %p193 = pneg %p192
      $region22: #{resnet_trunk_forward.18} parent=5 // pred_check_branch
        %195 = sbr.rel (%p193) target = $region24
      $region23: #{resnet_trunk_forward.18} parent=5 // pred_region
        // Predicated region
        $region25: #{resnet_trunk_forward.18} parent=23 // pred_check
          %p196 = pneg %p51
        $region26: #{resnet_trunk_forward.18} parent=23 // pred_check_branch
          %198 = sbr.rel (%p196) target = $region28
        $region27: #{resnet_trunk_forward.18} parent=23 // pred_region
          %s199 = sand.u32 %s41, 1
          %s200 = sand.u32 %s41, 1
          %s201 = smul.addr %s200, 16
          %s202 = scalar_lea.vmem [#allocation3], %s201
          %s203 = smul.u32 2, %s17
          %s204 = smul.u32 2, %s19
          %s205 = smul.addr %s203, 6
          %s206 = sadd.s32 %s204, %s205
          %s207 = smul.addr %s206, 4
          %s208 = scalar_lea.vmem %s0, %s207
          // Predicated region
          $region29: #{resnet_trunk_forward.18} parent=27 // pred_check
            _
          $region30: #{resnet_trunk_forward.18} parent=27 // pred_check_branch
            %210 = sbr.rel (0) target = $region32
          $region31: #{resnet_trunk_forward.18} parent=27 // pred_region
            // Predicated region
            $region33: #{resnet_trunk_forward.18} parent=31 // pred_check
              _
            $region34: #{resnet_trunk_forward.18} parent=31 // pred_check_branch
              %212 = sbr.rel (0) target = $region36
            $region35: #{resnet_trunk_forward.18} parent=31 // pred_region
              // Predicated region
              $region48: #{resnet_trunk_forward.18} parent=35 // pred_check
                _
              $region49: #{resnet_trunk_forward.18} parent=35 // pred_check_branch
                %230 = sbr.rel (0) target = $region51
              $region50: #{resnet_trunk_forward.18} parent=35 // pred_region
                loop: start=0, step=1, limit=1
                $region52: #{resnet_trunk_forward.18} parent=50 // loop_pre_header
                  _
                $region53: #{resnet_trunk_forward.18} parent=50 // loop_header
                  %s232 = sphi 0, %s236
                  %p233 = scmp.ge.s32.totalorder %s232, 1
                  %s237 = sphi %s208, %s208
                  %s238 = sphi %s202, %s202
                $region54: #{resnet_trunk_forward.18} parent=50 // loop_header_branch
                  %235 = sbr.rel (%p233) target = $region58
                $region55: #{resnet_trunk_forward.18} parent=50 // loop_body
                  %v239 = vld [vmem:[%s237] sm:$0xff]
                  %240 = vst [vmem:[%s238] sm:$0xff] %v239
                  %v241 = vld [vmem:[%s237 + $0x18] sm:$0xff]
                  %242 = vst [vmem:[%s238 + $0x8] sm:$0xff] %v241
                $region56: #{resnet_trunk_forward.18} parent=50 // loop_footer
                  %s236 = sadd.s32 1, %s232
                $region57: #{resnet_trunk_forward.18} parent=50 // loop_footer_branch
                  %231 = sbr.rel target = $region53
                $region58: #{resnet_trunk_forward.18} parent=50 // loop_exit
                  _
              $region51: #{resnet_trunk_forward.18} parent=35 // pred_fallthru
                _
              // Predicated region
              $region59: #{resnet_trunk_forward.18} parent=35 // pred_check
                _
              $region60: #{resnet_trunk_forward.18} parent=35 // pred_check_branch
                %244 = sbr.rel target = $region62
              $region61: #{resnet_trunk_forward.18} parent=35 // pred_region
                _
              $region62: #{resnet_trunk_forward.18} parent=35 // pred_fallthru
                _
            $region36: #{resnet_trunk_forward.18} parent=31 // pred_fallthru
              _
            // Predicated region
            $region37: #{resnet_trunk_forward.18} parent=31 // pred_check
              _
            $region38: #{resnet_trunk_forward.18} parent=31 // pred_check_branch
              %214 = sbr.rel target = $region40
            $region39: #{resnet_trunk_forward.18} parent=31 // pred_region
              %s216 = ssub.s32 256, 1
              loop: start=0, step=1, limit=1
              $region41: #{resnet_trunk_forward.18} parent=39 // loop_pre_header
                _
              $region42: #{resnet_trunk_forward.18} parent=39 // loop_header
                %s218 = sphi 0, %s222
                %p219 = scmp.ge.s32.totalorder %s218, 1
                %s223 = sphi %s208, %s208
                %s224 = sphi %s202, %s202
              $region43: #{resnet_trunk_forward.18} parent=39 // loop_header_branch
                %221 = sbr.rel (%p219) target = $region47
              $region44: #{resnet_trunk_forward.18} parent=39 // loop_body
                %v225 = vld [vmem:[%s223] sm:%s216]
                %226 = vst [vmem:[%s224] sm:%s216] %v225
                %v227 = vld [vmem:[%s223 + $0x18] sm:%s216]
                %228 = vst [vmem:[%s224 + $0x8] sm:%s216] %v227
              $region45: #{resnet_trunk_forward.18} parent=39 // loop_footer
                %s222 = sadd.s32 1, %s218
              $region46: #{resnet_trunk_forward.18} parent=39 // loop_footer_branch
                %217 = sbr.rel target = $region42
              $region47: #{resnet_trunk_forward.18} parent=39 // loop_exit
                _
            $region40: #{resnet_trunk_forward.18} parent=31 // pred_fallthru
              _
          $region32: #{resnet_trunk_forward.18} parent=27 // pred_fallthru
            _
          %245 = vnop
        $region28: #{resnet_trunk_forward.18} parent=23 // pred_fallthru
          _
        // Predicated region
        $region63: #{resnet_trunk_forward.18} parent=23 // pred_check
          %p246 = pneg %p79
        $region64: #{resnet_trunk_forward.18} parent=23 // pred_check_branch
          %248 = sbr.rel (%p246) target = $region66
        $region65: #{resnet_trunk_forward.18} parent=23 // pred_region
          %s249 = smul.u32 32, %s19
          %p250 = scmp.lt.s32.totalorder %s249, 95
          %s251 = scalar_select %p250, %s249, 95
          %p252 = scmp.lt.s32.totalorder %s18, 0
          %s253 = scalar_select %p252, %s18, 0
          %s254 = sadd.s32 %s253, %s251
          %s255 = smul.addr %s254, 4
          %s256 = scalar_lea.vmem %s1, %s255
          %s257 = smul.u32 32, %s19
        $region66: #{resnet_trunk_forward.18} parent=23 // pred_fallthru
          _
      $region24: #{resnet_trunk_forward.18} parent=5 // pred_fallthru
        _
      %p258 = scmp.le.s32.totalorder 1, %s10
      %p259 = scmp.lt.s32.totalorder %s10, 4
      %p260 = pnand %p258, %p259
      %p261 = pneg %p260
      // Predicated region
      $region67: #{resnet_trunk_forward.18} parent=5 // pred_check
        _
      $region68: #{resnet_trunk_forward.18} parent=5 // pred_check_branch
        %263 = sbr.rel (%p260) target = $region70
      $region69: #{resnet_trunk_forward.18} parent=5 // pred_region
        %s264 = ssub.s32 %s10, 1
        %s265 = sand.u32 %s44, 1
        %s266 = sand.u32 %s44, 1
        %s267 = smul.addr %s266, 16
        %s268 = scalar_lea.vmem [#allocation3], %s267
        // Predicated region
        $region71: #{resnet_trunk_forward.18} parent=69 // pred_check
          %p269 = pneg %p57
        $region72: #{resnet_trunk_forward.18} parent=69 // pred_check_branch
          %271 = sbr.rel (%p269) target = $region74
        $region73: #{resnet_trunk_forward.18} parent=69 // pred_region
          _
        $region74: #{resnet_trunk_forward.18} parent=69 // pred_fallthru
          _
        %s272 = sand.u32 %s44, 1
        %s273 = sand.u32 %s44, 1
        %s274 = smul.addr %s273, 16
        %s275 = scalar_lea.vmem [#allocation3], %s274
        %p276 = pneg %p57
        %p277 = pneg %p54
        %s278 = smul.u32 32, %s22
        %p279 = scmp.lt.s32.totalorder %s278, 95
        %s280 = scalar_select %p279, %s278, 95
        %p281 = scmp.lt.s32.totalorder %s21, 0
        %s282 = scalar_select %p281, %s21, 0
        %s283 = sadd.s32 %s282, %s280
        %s284 = smul.addr %s283, 4
        %s285 = scalar_lea.vmem %s1, %s284
        %p286 = pneg %p85
        %p287 = pneg %p82
        %p288 = scmp.lt.s32.totalorder %s21, 0
        %s289 = scalar_select %p288, %s21, 0
        %s290 = scalar_lea.vmem %s2, %s289
        %p291 = pneg %p111
        %p292 = pneg %p108
        %p293 = scmp.lt.s32.totalorder %s21, 0
        %s294 = scalar_select %p293, %s21, 0
        %s295 = scalar_lea.vmem %s3, %s294
        %p296 = pneg %p137
        %p297 = pneg %p134
        %p298 = pneg %p165
        %p299 = pneg %p162
        %s300 = smul.u32 2, %s20
        %p301 = scmp.lt.s32.totalorder %s300, 1
        %s302 = scalar_select %p301, %s300, 1
        %p303 = scmp.lt.s32.totalorder %s21, 0
        %s304 = scalar_select %p303, %s21, 0
        %s305 = sadd.s32 %s304, %s302
        %s306 = smul.addr %s305, 8
        %s307 = scalar_lea.vmem %s4, %s306
        %s308 = smul.u32 2, %s20
        %s309 = smul.u32 2, %s22
        %s310 = smul.u32 32, %s22
        %p311 = scmp.lt.s32.totalorder %s310, 95
        %s312 = scalar_select %p311, %s310, 95
        %p313 = scmp.lt.s32.totalorder %s21, 0
        %s314 = scalar_select %p313, %s21, 0
        %s315 = sadd.s32 %s314, %s312
        %s316 = smul.addr %s315, 4
        %s317 = scalar_lea.vmem %s1, %s316
        %s318 = smul.u32 32, %s22
        %p319 = scmp.lt.s32.totalorder %s21, 0
        %s320 = scalar_select %p319, %s21, 0
        %s321 = scalar_lea.vmem %s2, %s320
        %p322 = scmp.lt.s32.totalorder %s21, 0
        %s323 = scalar_select %p322, %s21, 0
        %s324 = scalar_lea.vmem %s3, %s323
        %s325 = smul.u32 2, %s20
        %p326 = scmp.lt.s32.totalorder %s325, 1
        %s327 = scalar_select %p326, %s325, 1
        %p328 = scmp.lt.s32.totalorder %s21, 0
        %s329 = scalar_select %p328, %s21, 0
        %s330 = sadd.s32 %s329, %s327
        %s331 = smul.addr %s330, 8
        %s332 = scalar_lea.vmem %s4, %s331
        %s333 = smul.u32 2, %s20
        %p335 = scmp.eq.s32.totalorder %s22, 0
        // Predicated region
        $region75: #{resnet_trunk_forward.18} parent=69 // pred_check
          %p336 = pneg %p335
        $region76: #{resnet_trunk_forward.18} parent=69 // pred_check_branch
          %338 = sbr.rel (%p336) target = $region78
        $region77: #{resnet_trunk_forward.18} parent=69 // pred_region
          %339 = vst [vmem:[#allocation2] sm:$0xff] 0.0
          %340 = vst [vmem:[#allocation2 + $0x8] sm:$0xff] 0.0
        $region78: #{resnet_trunk_forward.18} parent=69 // pred_fallthru
          _
        %v341 = vld [vmem:[#allocation2] sm:$0xff]
        %v342 = vld [vmem:[#allocation2 + $0x8] sm:$0xff]
        %v343 = vld [vmem:[%s268] sm:$0xff]
        %v344 = vld [vmem:[%s268 + $0x8] sm:$0xff]
        %v345 = vld [vmem:[%s317] sm:$0xf]
        %v346 = vld [vmem:[%s317 + $0x4] sm:$0xf]
        %v347 = vld [vmem:[%s317 + $0x8] sm:$0xf]
        %v348 = vld [vmem:[%s317 + $0xc] sm:$0xf]
        %v349 = vld [vmem:[%s317 + $0x10] sm:$0xf]
        %v350 = vld [vmem:[%s317 + $0x14] sm:$0xf]
        %v351 = vld [vmem:[%s317 + $0x18] sm:$0xf]
        %v352 = vld [vmem:[%s317 + $0x1c] sm:$0xf]
        %v353 = vld [vmem:[%s317 + $0x20] sm:$0xf]
        %v354 = vld [vmem:[%s317 + $0x24] sm:$0xf]
        %v355 = vld [vmem:[%s317 + $0x28] sm:$0xf]
        %v356 = vld [vmem:[%s317 + $0x2c] sm:$0xf]
        %v357 = vld [vmem:[%s317 + $0x30] sm:$0xf]
        %v358 = vld [vmem:[%s317 + $0x34] sm:$0xf]
        %v359 = vld [vmem:[%s317 + $0x38] sm:$0xf]
        %v360 = vld [vmem:[%s317 + $0x3c] sm:$0xf]
        %v361 = vld [vmem:[%s317 + $0x40] sm:$0xf]
        %v362 = vld [vmem:[%s317 + $0x44] sm:$0xf]
        %v363 = vld [vmem:[%s317 + $0x48] sm:$0xf]
        %v364 = vld [vmem:[%s317 + $0x4c] sm:$0xf]
        %v365 = vld [vmem:[%s317 + $0x50] sm:$0xf]
        %v366 = vld [vmem:[%s317 + $0x54] sm:$0xf]
        %v367 = vld [vmem:[%s317 + $0x58] sm:$0xf]
        %v368 = vld [vmem:[%s317 + $0x5c] sm:$0xf]
        %v369 = vld [vmem:[%s317 + $0x60] sm:$0xf]
        %v370 = vld [vmem:[%s317 + $0x64] sm:$0xf]
        %v371 = vld [vmem:[%s317 + $0x68] sm:$0xf]
        %v372 = vld [vmem:[%s317 + $0x6c] sm:$0xf]
        %v373 = vld [vmem:[%s317 + $0x70] sm:$0xf]
        %v374 = vld [vmem:[%s317 + $0x74] sm:$0xf]
        %v375 = vld [vmem:[%s317 + $0x78] sm:$0xf]
        %v376 = vld [vmem:[%s317 + $0x7c] sm:$0xf]
        %v379 = vunpack.c.l.b16 %v343
        %v380 = vunpack.c.h.b16 %v343
        %v381 = vunpack.c.l.b16 %v344
        %v382 = vunpack.c.h.b16 %v344
        %v383 = vpack.c.b16 %v381, %v379
        %v384 = vpack.c.b16 %v382, %v380
        %v419 = vunpack.c.l.b16 %v345
        %v420 = vunpack.c.l.b16 %v346
        %v421 = vunpack.c.l.b16 %v347
        %v422 = vunpack.c.l.b16 %v348
        %v423 = vunpack.c.l.b16 %v349
        %v424 = vunpack.c.l.b16 %v350
        %v425 = vunpack.c.l.b16 %v351
        %v426 = vunpack.c.l.b16 %v352
        %v427 = vunpack.c.l.b16 %v353
        %v428 = vunpack.c.l.b16 %v354
        %v429 = vunpack.c.l.b16 %v355
        %v430 = vunpack.c.l.b16 %v356
        %v431 = vunpack.c.l.b16 %v357
        %v432 = vunpack.c.l.b16 %v358
        %v433 = vunpack.c.l.b16 %v359
        %v434 = vunpack.c.l.b16 %v360
        %v435 = vunpack.c.l.b16 %v361
        %v436 = vunpack.c.l.b16 %v362
        %v437 = vunpack.c.l.b16 %v363
        %v438 = vunpack.c.l.b16 %v364
        %v439 = vunpack.c.l.b16 %v365
        %v440 = vunpack.c.l.b16 %v366
        %v441 = vunpack.c.l.b16 %v367
        %v442 = vunpack.c.l.b16 %v368
        %v443 = vunpack.c.l.b16 %v369
        %v444 = vunpack.c.l.b16 %v370
        %v445 = vunpack.c.l.b16 %v371
        %v446 = vunpack.c.l.b16 %v372
        %v447 = vunpack.c.l.b16 %v373
        %v448 = vunpack.c.l.b16 %v374
        %v449 = vunpack.c.l.b16 %v375
        %v450 = vunpack.c.l.b16 %v376
        %v451 = vpack.c.b16 %v420, %v419
        %v452 = vpack.c.b16 %v422, %v421
        %v453 = vpack.c.b16 %v424, %v423
        %v454 = vpack.c.b16 %v426, %v425
        %v455 = vpack.c.b16 %v428, %v427
        %v456 = vpack.c.b16 %v430, %v429
        %v457 = vpack.c.b16 %v432, %v431
        %v458 = vpack.c.b16 %v434, %v433
        %v459 = vpack.c.b16 %v436, %v435
        %v460 = vpack.c.b16 %v438, %v437
        %v461 = vpack.c.b16 %v440, %v439
        %v462 = vpack.c.b16 %v442, %v441
        %v463 = vpack.c.b16 %v444, %v443
        %v464 = vpack.c.b16 %v446, %v445
        %v465 = vpack.c.b16 %v448, %v447
        %v466 = vpack.c.b16 %v450, %v449
        %483 = vmatprep.subr.bf16.mxu0 0
        %484 = vmatpush1.bf16.msra.mxu0 %v458
        %485 = vmatprep.subr.bf16.mxu0 0
        %486 = vmatpush1.bf16.msra.mxu0 %v457
        %487 = vmatprep.subr.bf16.mxu0 0
        %488 = vmatpush1.bf16.msra.mxu0 %v456
        %489 = vmatprep.subr.bf16.mxu0 0
        %490 = vmatpush1.bf16.msra.mxu0 %v455
        %491 = vmatprep.subr.bf16.mxu0 0
        %492 = vmatpush1.bf16.msra.mxu0 %v454
        %493 = vmatprep.subr.bf16.mxu0 0
        %494 = vmatpush1.bf16.msra.mxu0 %v453
        %495 = vmatprep.subr.bf16.mxu0 0
        %496 = vmatpush1.bf16.msra.mxu0 %v452
        %497 = vmatprep.subr.bf16.mxu0 0
        %498 = vmatpush1.bf16.msra.mxu0 %v451
        %499 = vmatprep.subr.bf16.mxu0 0
        %500 = vmatpush2.bf16.msra.mxu0 %v466
        %501 = vmatprep.subr.bf16.mxu0 0
        %502 = vmatpush2.bf16.msra.mxu0 %v465
        %503 = vmatprep.subr.bf16.mxu0 0
        %504 = vmatpush2.bf16.msra.mxu0 %v464
        %505 = vmatprep.subr.bf16.mxu0 0
        %506 = vmatpush2.bf16.msra.mxu0 %v463
        %507 = vmatprep.subr.bf16.mxu0 0
        %508 = vmatpush2.bf16.msra.mxu0 %v462
        %509 = vmatprep.subr.bf16.mxu0 0
        %510 = vmatpush2.bf16.msra.mxu0 %v461
        %511 = vmatprep.subr.bf16.mxu0 0
        %512 = vmatpush2.bf16.msra.mxu0 %v460
        %513 = vmatprep.subr.bf16.mxu0 0
        %514 = vmatpush2.bf16.msra.mxu0 %v459
        %515 = vmatprep.mubr.bf16.mxu0 %v384
        %516 = vmatmul.mubr.bf16.gmra.mxu0 %v383
        %v517 = vpop.f32.mrf.mxu0
        %v518 = vadd.f32 0.0, %v517
        %v519 = vpop.f32.mrf.mxu0
        %v520 = vpop.f32.mrf.mxu0
        %v521 = vadd.f32 0.0, %v520
        %v522 = vpop.f32.mrf.mxu0
        %523 = vdwg.mxu0
        %v524 = vadd.f32 %v341, %v518
        %v525 = vadd.f32 %v342, %v521
        %526 = vst [vmem:[#allocation2] sm:$0xff] %v524
        %527 = vst [vmem:[#allocation2 + $0x8] sm:$0xff] %v525
        %p528 = scmp.eq.s32.totalorder %s22, 2
        // Predicated region
        $region79: #{resnet_trunk_forward.18} parent=69 // pred_check
          %p529 = pneg %p528
        $region80: #{resnet_trunk_forward.18} parent=69 // pred_check_branch
          %531 = sbr.rel (%p529) target = $region82
        $region81: #{resnet_trunk_forward.18} parent=69 // pred_region
          %v532 = vld [vmem:[#allocation2] sm:$0xff]
          %v533 = vld [vmem:[#allocation2 + $0x8] sm:$0xff]
          %v534 = vld [vmem:[%s321] sm:$0x1]
          %v536 = vlaneseq
          %v537 = vshrl.u32 %v536, 7
          %v538 = vsub.s32 0, %v537
          %v539 = vrot.slane %v534, %v538
          %v541 = vmul.f32 %v532, %v539
          %v542 = vmul.f32 %v533, %v539
          %v543 = vld [vmem:[%s324] sm:$0x1]
          %v545 = vlaneseq
          %v546 = vshrl.u32 %v545, 7
          %v547 = vsub.s32 0, %v546
          %v548 = vrot.slane %v543, %v547
          %v550 = vadd.f32 %v541, %v548
          %v551 = vadd.f32 %v542, %v548
          %v552 = vmax.f32 %v550, 0.0
          %v553 = vmax.f32 %v551, 0.0
          %554 = vst [vmem:[%s332] sm:$0xff] %v552
          %555 = vst [vmem:[%s332 + $0x8] sm:$0xff] %v553
        $region82: #{resnet_trunk_forward.18} parent=69 // pred_fallthru
          _
        %s556 = smul.u32 2, %s20
        %p557 = scmp.lt.s32.totalorder %s556, 1
        %s558 = scalar_select %p557, %s556, 1
        %p559 = scmp.lt.s32.totalorder %s21, 0
        %s560 = scalar_select %p559, %s21, 0
        %s561 = sadd.s32 %s560, %s558
        %s562 = smul.addr %s561, 8
        %s563 = scalar_lea.vmem %s4, %s562
        // Predicated region
        $region83: #{resnet_trunk_forward.18} parent=69 // pred_check
          %p564 = pneg %p162
        $region84: #{resnet_trunk_forward.18} parent=69 // pred_check_branch
          %566 = sbr.rel (%p564) target = $region86
        $region85: #{resnet_trunk_forward.18} parent=69 // pred_region
          %s567 = smul.u32 2, %s20
        $region86: #{resnet_trunk_forward.18} parent=69 // pred_fallthru
          _
        // Predicated region
        $region87: #{resnet_trunk_forward.18} parent=69 // pred_check
          %p568 = pneg %p162
        $region88: #{resnet_trunk_forward.18} parent=69 // pred_check_branch
          %570 = sbr.rel (%p568) target = $region90
        $region89: #{resnet_trunk_forward.18} parent=69 // pred_region
          %s571 = smul.u32 2, %s20
          %p572 = scmp.lt.s32.totalorder %s571, 1
          %s573 = scalar_select %p572, %s571, 1
          %p574 = scmp.lt.s32.totalorder %s21, 0
          %s575 = scalar_select %p574, %s21, 0
          %s576 = sadd.s32 %s575, %s573
          %s577 = smul.addr %s576, 8
          %s578 = scalar_lea.vmem %s4, %s577
        $region90: #{resnet_trunk_forward.18} parent=69 // pred_fallthru
          _
      $region70: #{resnet_trunk_forward.18} parent=5 // pred_fallthru
        _
      %p579 = scmp.le.s32.totalorder 2, %s10
      // Predicated region
      $region91: #{resnet_trunk_forward.18} parent=5 // pred_check
        %p580 = pneg %p579
      $region92: #{resnet_trunk_forward.18} parent=5 // pred_check_branch
        %582 = sbr.rel (%p580) target = $region94
      $region93: #{resnet_trunk_forward.18} parent=5 // pred_region
        %s583 = ssub.s32 %s10, 2
      $region94: #{resnet_trunk_forward.18} parent=5 // pred_fallthru
        _
    $region6: #{resnet_trunk_forward.18} parent=1 // loop_footer
      %s14 = sadd.s32 1, %s10
    $region7: #{resnet_trunk_forward.18} parent=1 // loop_footer_branch
      %9 = sbr.rel target = $region3
    $region8: #{resnet_trunk_forward.18} parent=1 // loop_exit
      _

// kernel: resnet_trunk_forward.17
$region0: #{resnet_trunk_forward.17}
  #allocation0 [shape = 'u32[]', space=smem, size = 0x4, offset = 0x4, fixed_abs, tag = 'smem constant byte address 0x4 - core index']
  #allocation1 [shape = 'u32[144,128]{1,0:T(1,128)}', space=vmem, size = 0x12000, scoped, tag = 'internal scratch']
  #allocation2 [shape = 'f32[16,128]{1,0:T(8,128)}', space=vmem, size = 0x2000, scoped, tag = 'scratch operand']
  %s0 = inlined_call_operand.vmem [shape: bf16[16,128], index: 0, kind: input, shape index: {}]
  %s1 = inlined_call_operand.vmem [shape: bf16[128,128], index: 1, kind: input, shape index: {}]
  %s2 = inlined_call_operand.vmem [shape: f32[1,128], index: 2, kind: input, shape index: {}]
  %s3 = inlined_call_operand.vmem [shape: f32[1,128], index: 3, kind: input, shape index: {}]
  %s4 = inlined_call_operand.vmem [shape: f32[16,128], index: 4, kind: output, shape index: {}]
  %s5 = sld [smem:[#allocation0]]
  $region34: #{resnet_trunk_forward.17} parent=0
    _
  %s7 = ssub.s32 1, %s5
  %s8 = scalar_select 0, %s7, %s5
  // Predicated region
  $region2: #{resnet_trunk_forward.17} parent=0 // pred_check
    _
  $region3: #{resnet_trunk_forward.17} parent=0 // pred_check_branch
    %10 = sbr.rel (0) target = $region5
  $region4: #{resnet_trunk_forward.17} parent=0 // pred_region
    _
  $region5: #{resnet_trunk_forward.17} parent=0 // pred_fallthru
    _
  // Predicated region
  $region6: #{resnet_trunk_forward.17} parent=0 // pred_check
    _
  $region7: #{resnet_trunk_forward.17} parent=0 // pred_check_branch
    %12 = sbr.rel (0) target = $region9
  $region8: #{resnet_trunk_forward.17} parent=0 // pred_region
    _
  $region9: #{resnet_trunk_forward.17} parent=0 // pred_fallthru
    _
  // Predicated region
  $region10: #{resnet_trunk_forward.17} parent=0 // pred_check
    _
  $region11: #{resnet_trunk_forward.17} parent=0 // pred_check_branch
    %14 = sbr.rel (0) target = $region13
  $region12: #{resnet_trunk_forward.17} parent=0 // pred_region
    _
  $region13: #{resnet_trunk_forward.17} parent=0 // pred_fallthru
    _
  // Predicated region
  $region14: #{resnet_trunk_forward.17} parent=0 // pred_check
    _
  $region15: #{resnet_trunk_forward.17} parent=0 // pred_check_branch
    %16 = sbr.rel (0) target = $region17
  $region16: #{resnet_trunk_forward.17} parent=0 // pred_region
    _
  $region17: #{resnet_trunk_forward.17} parent=0 // pred_fallthru
    _
  %p18 = scmp.eq.s32.totalorder 0, 0
  // Predicated region
  $region18: #{resnet_trunk_forward.17} parent=0 // pred_check
    %p19 = pneg %p18
  $region19: #{resnet_trunk_forward.17} parent=0 // pred_check_branch
    %21 = sbr.rel (%p19) target = $region21
  $region20: #{resnet_trunk_forward.17} parent=0 // pred_region
    %22 = vst [vmem:[#allocation2] sm:$0xff] 0.0
    %23 = vst [vmem:[#allocation2 + $0x8] sm:$0xff] 0.0
  $region21: #{resnet_trunk_forward.17} parent=0 // pred_fallthru
    _
  %v24 = vld [vmem:[#allocation2] sm:$0xff]
  %v25 = vld [vmem:[#allocation2 + $0x8] sm:$0xff]
  %v26 = vld [vmem:[%s0] sm:$0xf]
  %v27 = vld [vmem:[%s0 + $0x4] sm:$0xf]
  %v28 = vld [vmem:[%s1] sm:$0xf]
  %v29 = vld [vmem:[%s1 + $0x4] sm:$0xf]
  %v30 = vld [vmem:[%s1 + $0x8] sm:$0xf]
  %v31 = vld [vmem:[%s1 + $0xc] sm:$0xf]
  %v32 = vld [vmem:[%s1 + $0x10] sm:$0xf]
  %v33 = vld [vmem:[%s1 + $0x14] sm:$0xf]
  %v34 = vld [vmem:[%s1 + $0x18] sm:$0xf]
  %v35 = vld [vmem:[%s1 + $0x1c] sm:$0xf]
  %v36 = vld [vmem:[%s1 + $0x20] sm:$0xf]
  %v37 = vld [vmem:[%s1 + $0x24] sm:$0xf]
  %v38 = vld [vmem:[%s1 + $0x28] sm:$0xf]
  %v39 = vld [vmem:[%s1 + $0x2c] sm:$0xf]
  %v40 = vld [vmem:[%s1 + $0x30] sm:$0xf]
  %v41 = vld [vmem:[%s1 + $0x34] sm:$0xf]
  %v42 = vld [vmem:[%s1 + $0x38] sm:$0xf]
  %v43 = vld [vmem:[%s1 + $0x3c] sm:$0xf]
  %v46 = vunpack.c.l.b16 %v26
  %v47 = vunpack.c.l.b16 %v27
  %v48 = vpack.c.b16 %v47, %v46
  %v66 = vunpack.c.l.b16 %v28
  %v67 = vunpack.c.l.b16 %v29
  %v68 = vunpack.c.l.b16 %v30
  %v69 = vunpack.c.l.b16 %v31
  %v70 = vunpack.c.l.b16 %v32
  %v71 = vunpack.c.l.b16 %v33
  %v72 = vunpack.c.l.b16 %v34
  %v73 = vunpack.c.l.b16 %v35
  %v74 = vunpack.c.l.b16 %v36
  %v75 = vunpack.c.l.b16 %v37
  %v76 = vunpack.c.l.b16 %v38
  %v77 = vunpack.c.l.b16 %v39
  %v78 = vunpack.c.l.b16 %v40
  %v79 = vunpack.c.l.b16 %v41
  %v80 = vunpack.c.l.b16 %v42
  %v81 = vunpack.c.l.b16 %v43
  %v82 = vpack.c.b16 %v67, %v66
  %v83 = vpack.c.b16 %v69, %v68
  %v84 = vpack.c.b16 %v71, %v70
  %v85 = vpack.c.b16 %v73, %v72
  %v86 = vpack.c.b16 %v75, %v74
  %v87 = vpack.c.b16 %v77, %v76
  %v88 = vpack.c.b16 %v79, %v78
  %v89 = vpack.c.b16 %v81, %v80
  %98 = vmatprep.subr.bf16.mxu0 0
  %99 = vmatpush1.bf16.msra.mxu0 %v89
  %100 = vmatprep.subr.bf16.mxu0 0
  %101 = vmatpush1.bf16.msra.mxu0 %v88
  %102 = vmatprep.subr.bf16.mxu0 0
  %103 = vmatpush1.bf16.msra.mxu0 %v87
  %104 = vmatprep.subr.bf16.mxu0 0
  %105 = vmatpush1.bf16.msra.mxu0 %v86
  %106 = vmatprep.subr.bf16.mxu0 0
  %107 = vmatpush1.bf16.msra.mxu0 %v85
  %108 = vmatprep.subr.bf16.mxu0 0
  %109 = vmatpush1.bf16.msra.mxu0 %v84
  %110 = vmatprep.subr.bf16.mxu0 0
  %111 = vmatpush1.bf16.msra.mxu0 %v83
  %112 = vmatprep.subr.bf16.mxu0 0
  %113 = vmatpush1.bf16.msra.mxu0 %v82
  %114 = vmatprep.subr.bf16.mxu0 0
  %115 = vmatpush2.bf16.msra.mxu0 0
  %116 = vmatprep.subr.bf16.mxu0 0
  %117 = vmatpush2.bf16.msra.mxu0 0
  %118 = vmatprep.subr.bf16.mxu0 0
  %119 = vmatpush2.bf16.msra.mxu0 0
  %120 = vmatprep.subr.bf16.mxu0 0
  %121 = vmatpush2.bf16.msra.mxu0 0
  %122 = vmatprep.subr.bf16.mxu0 0
  %123 = vmatpush2.bf16.msra.mxu0 0
  %124 = vmatprep.subr.bf16.mxu0 0
  %125 = vmatpush2.bf16.msra.mxu0 0
  %126 = vmatprep.subr.bf16.mxu0 0
  %127 = vmatpush2.bf16.msra.mxu0 0
  %128 = vmatprep.subr.bf16.mxu0 0
  %129 = vmatpush2.bf16.msra.mxu0 0
  %130 = vmatprep.mubr.bf16.mxu0 0
  %131 = vmatmul.mubr.bf16.gmra.mxu0 %v48
  %v132 = vpop.f32.mrf.mxu0
  %v133 = vadd.f32 0.0, %v132
  %v134 = vpop.f32.mrf.mxu0
  %v135 = vpop.f32.mrf.mxu0
  %v136 = vadd.f32 0.0, %v135
  %v137 = vpop.f32.mrf.mxu0
  %138 = vdwg.mxu0
  %v139 = vadd.f32 %v24, %v133
  %v140 = vadd.f32 %v25, %v136
  %141 = vst [vmem:[#allocation2] sm:$0xff] %v139
  %142 = vst [vmem:[#allocation2 + $0x8] sm:$0xff] %v140
  // Predicated region
  $region22: #{resnet_trunk_forward.17} parent=0 // pred_check
    %p143 = pneg %p18
  $region23: #{resnet_trunk_forward.17} parent=0 // pred_check_branch
    %145 = sbr.rel (%p143) target = $region25
  $region24: #{resnet_trunk_forward.17} parent=0 // pred_region
    %v146 = vld [vmem:[#allocation2] sm:$0xff]
    %v147 = vld [vmem:[#allocation2 + $0x8] sm:$0xff]
    %v148 = vld [vmem:[%s2] sm:$0x1]
    %v150 = vlaneseq
    %v151 = vshrl.u32 %v150, 7
    %v152 = vsub.s32 0, %v151
    %v153 = vrot.slane %v148, %v152
    %v155 = vmul.f32 %v146, %v153
    %v156 = vmul.f32 %v147, %v153
    %v157 = vld [vmem:[%s3] sm:$0x1]
    %v159 = vlaneseq
    %v160 = vshrl.u32 %v159, 7
    %v161 = vsub.s32 0, %v160
    %v162 = vrot.slane %v157, %v161
    %v164 = vadd.f32 %v155, %v162
    %v165 = vadd.f32 %v156, %v162
    %166 = vst [vmem:[%s4] sm:$0xff] %v164
    %167 = vst [vmem:[%s4 + $0x8] sm:$0xff] %v165
  $region25: #{resnet_trunk_forward.17} parent=0 // pred_fallthru
    _
  // Predicated region
  $region26: #{resnet_trunk_forward.17} parent=0 // pred_check
    _
  $region27: #{resnet_trunk_forward.17} parent=0 // pred_check_branch
    %169 = sbr.rel (0) target = $region29
  $region28: #{resnet_trunk_forward.17} parent=0 // pred_region
    _
  $region29: #{resnet_trunk_forward.17} parent=0 // pred_fallthru
    _
  // Predicated region
  $region30: #{resnet_trunk_forward.17} parent=0 // pred_check
    _
  $region31: #{resnet_trunk_forward.17} parent=0 // pred_check_branch
    %171 = sbr.rel (0) target = $region33
  $region32: #{resnet_trunk_forward.17} parent=0 // pred_region
    _
  $region33: #{resnet_trunk_forward.17} parent=0 // pred_fallthru
    _

// kernel: resnet_trunk_forward.19
$region0: #{resnet_trunk_forward.19}
  #allocation0 [shape = 'u32[]', space=smem, size = 0x4, offset = 0x4, fixed_abs, tag = 'smem constant byte address 0x4 - core index']
  #allocation1 [shape = 'u32[144,128]{1,0:T(1,128)}', space=vmem, size = 0x12000, scoped, tag = 'internal scratch']
  #allocation2 [shape = 'f32[16,128]{1,0:T(8,128)}', space=vmem, size = 0x2000, scoped, tag = 'scratch operand']
  %s0 = inlined_call_operand.vmem [shape: bf16[16,1280], index: 0, kind: input, shape index: {}]
  %s1 = inlined_call_operand.vmem [shape: bf16[1280,128], index: 1, kind: input, shape index: {}]
  %s2 = inlined_call_operand.vmem [shape: f32[1,128], index: 2, kind: input, shape index: {}]
  %s3 = inlined_call_operand.vmem [shape: f32[1,128], index: 3, kind: input, shape index: {}]
  %s4 = inlined_call_operand.vmem [shape: f32[16,128], index: 4, kind: input, shape index: {}]
  %s5 = inlined_call_operand.vmem [shape: f32[16,128], index: 5, kind: output, shape index: {}]
  %s6 = sld [smem:[#allocation0]]
  $region99: #{resnet_trunk_forward.19} parent=0
    _
  %s8 = ssub.s32 1, %s6
  %s9 = scalar_select 0, %s8, %s6
  $region1: #{resnet_trunk_forward.19} parent=0
    #allocation3 [shape = 'u8[16384]{0}', space=vmem, size = 0x4000, scoped, tag = 'input window, operand 0']
    loop: start=0, step=1, limit=7
    $region2: #{resnet_trunk_forward.19} parent=1 // loop_pre_header
      _
    $region3: #{resnet_trunk_forward.19} parent=1 // loop_header
      %s11 = sphi 0, %s15
      %p12 = scmp.ge.s32.totalorder %s11, 7
      %s18 = sphi 0, %s37
      %s19 = sphi 0, %s33
      %s20 = sphi 0, %s29
      %s21 = sphi 0, %s18
      %s22 = sphi 0, %s19
      %s23 = sphi 0, %s20
      %s24 = sphi 0, %s21
      %s25 = sphi 0, %s22
      %s26 = sphi 0, %s23
      %s42 = sphi 0, %s44
      %s45 = sphi 0, %s42
      %s46 = sphi 0, %s45
      %s62 = sphi 0, %s46
      %s70 = sphi 0, %s72
      %s73 = sphi 0, %s70
      %s74 = sphi 0, %s73
      %s90 = sphi 0, %s74
      %s96 = sphi 0, %s98
      %s99 = sphi 0, %s96
      %s100 = sphi 0, %s99
      %s116 = sphi 0, %s100
      %s122 = sphi 0, %s124
      %s125 = sphi 0, %s122
      %s126 = sphi 0, %s125
      %s142 = sphi 0, %s126
      %s150 = sphi 0, %s152
      %s153 = sphi 0, %s150
      %s154 = sphi 0, %s153
      %s170 = sphi 0, %s154
      %s178 = sphi 0, %s180
      %s181 = sphi 0, %s178
      %s182 = sphi 0, %s181
      %s198 = sphi 0, %s182
    $region4: #{resnet_trunk_forward.19} parent=1 // loop_header_branch
      %14 = sbr.rel (%p12) target = $region8
    $region5: #{resnet_trunk_forward.19} parent=1 // loop_body
      %s16 = ssub.s32 %s11, 1
      %s17 = ssub.s32 %s11, 2
      %s27 = sadd.s32 1, %s20
      %p28 = scmp.ge.s32.totalorder %s27, 5
      %s29 = scalar_select %p28, 0, %s27
      %s30 = sadd.s32 1, %s19
      %s31 = scalar_select %p28, %s30, %s19
      %p32 = scmp.ge.s32.totalorder %s31, 1
      %s33 = scalar_select %p32, 0, %s31
      %s34 = sadd.s32 1, %s18
      %s35 = scalar_select %p32, %s34, %s18
      %p36 = scmp.ge.s32.totalorder %s35, 1
      %s37 = scalar_select %p36, 0, %s35
      %s38 = ssub.s32 %s18, %s37
      %s39 = ssub.s32 %s20, %s29
      %s40 = sor.u32 %s38, %s39
      %p41 = scmp.eq.s32.totalorder %s40, 0
      %s43 = sadd.s32 %s42, 1
      %s44 = scalar_select %p41, %s42, %s43
      %p47 = pneg %p41
      %p48 = scmp.eq.s32.totalorder %s11, 4
      %p49 = por %p47, %p48
      %p50 = scmp.ne.s32.totalorder %s42, %s45
      %p51 = scmp.eq.s32.totalorder %s11, 0
      %p52 = por %p50, %p51
      %p53 = scmp.ne.s32.totalorder %s42, %s45
      %p54 = scmp.eq.s32.totalorder %s16, 4
      %p55 = por %p53, %p54
      %p56 = scmp.ne.s32.totalorder %s45, %s46
      %p57 = scmp.eq.s32.totalorder %s16, 0
      %p58 = por %p56, %p57
      %p59 = scmp.ne.s32.totalorder %s45, %s46
      %p60 = scmp.eq.s32.totalorder %s17, 4
      %p61 = por %p59, %p60
      %p63 = scmp.ne.s32.totalorder %s46, %s62
      %p64 = scmp.eq.s32.totalorder %s17, 0
      %p65 = por %p63, %p64
      %s66 = ssub.s32 %s20, %s29
      %s67 = ssub.s32 %s19, %s33
      %s68 = sor.u32 %s66, %s67
      %p69 = scmp.eq.s32.totalorder %s68, 0
      %s71 = sadd.s32 %s70, 1
      %s72 = scalar_select %p69, %s70, %s71
      %p75 = pneg %p69
      %p76 = scmp.eq.s32.totalorder %s11, 4
      %p77 = por %p75, %p76
      %p78 = scmp.ne.s32.totalorder %s70, %s73
      %p79 = scmp.eq.s32.totalorder %s11, 0
      %p80 = por %p78, %p79
      %p81 = scmp.ne.s32.totalorder %s70, %s73
      %p82 = scmp.eq.s32.totalorder %s16, 4
      %p83 = por %p81, %p82
      %p84 = scmp.ne.s32.totalorder %s73, %s74
      %p85 = scmp.eq.s32.totalorder %s16, 0
      %p86 = por %p84, %p85
      %p87 = scmp.ne.s32.totalorder %s73, %s74
      %p88 = scmp.eq.s32.totalorder %s17, 4
      %p89 = por %p87, %p88
      %p91 = scmp.ne.s32.totalorder %s74, %s90
      %p92 = scmp.eq.s32.totalorder %s17, 0
      %p93 = por %p91, %p92
      %s94 = ssub.s32 %s19, %s33
      %p95 = scmp.eq.s32.totalorder %s94, 0
      %s97 = sadd.s32 %s96, 1
      %s98 = scalar_select %p95, %s96, %s97
      %p101 = pneg %p95
      %p102 = scmp.eq.s32.totalorder %s11, 4
      %p103 = por %p101, %p102
      %p104 = scmp.ne.s32.totalorder %s96, %s99
      %p105 = scmp.eq.s32.totalorder %s11, 0
      %p106 = por %p104, %p105
      %p107 = scmp.ne.s32.totalorder %s96, %s99
      %p108 = scmp.eq.s32.totalorder %s16, 4
      %p109 = por %p107, %p108
      %p110 = scmp.ne.s32.totalorder %s99, %s100
      %p111 = scmp.eq.s32.totalorder %s16, 0
      %p112 = por %p110, %p111
      %p113 = scmp.ne.s32.totalorder %s99, %s100
      %p114 = scmp.eq.s32.totalorder %s17, 4
      %p115 = por %p113, %p114
      %p117 = scmp.ne.s32.totalorder %s100, %s116
      %p118 = scmp.eq.s32.totalorder %s17, 0
      %p119 = por %p117, %p118
      %s120 = ssub.s32 %s19, %s33
      %p121 = scmp.eq.s32.totalorder %s120, 0
      %s123 = sadd.s32 %s122, 1
      %s124 = scalar_select %p121, %s122, %s123
      %p127 = pneg %p121
      %p128 = scmp.eq.s32.totalorder %s11, 4
      %p129 = por %p127, %p128
      %p130 = scmp.ne.s32.totalorder %s122, %s125
      %p131 = scmp.eq.s32.totalorder %s11, 0
      %p132 = por %p130, %p131
      %p133 = scmp.ne.s32.totalorder %s122, %s125
      %p134 = scmp.eq.s32.totalorder %s16, 4
      %p135 = por %p133, %p134
      %p136 = scmp.ne.s32.totalorder %s125, %s126
      %p137 = scmp.eq.s32.totalorder %s16, 0
      %p138 = por %p136, %p137
      %p139 = scmp.ne.s32.totalorder %s125, %s126
      %p140 = scmp.eq.s32.totalorder %s17, 4
      %p141 = por %p139, %p140
      %p143 = scmp.ne.s32.totalorder %s126, %s142
      %p144 = scmp.eq.s32.totalorder %s17, 0
      %p145 = por %p143, %p144
      %s146 = ssub.s32 %s18, %s37
      %s147 = ssub.s32 %s19, %s33
      %s148 = sor.u32 %s146, %s147
      %p149 = scmp.eq.s32.totalorder %s148, 0
      %s151 = sadd.s32 %s150, 1
      %s152 = scalar_select %p149, %s150, %s151
      %p155 = pneg %p149
      %p156 = scmp.eq.s32.totalorder %s11, 4
      %p157 = por %p155, %p156
      %p158 = scmp.ne.s32.totalorder %s150, %s153
      %p159 = scmp.eq.s32.totalorder %s11, 0
      %p160 = por %p158, %p159
      %p161 = scmp.ne.s32.totalorder %s150, %s153
      %p162 = scmp.eq.s32.totalorder %s16, 4
      %p163 = por %p161, %p162
      %p164 = scmp.ne.s32.totalorder %s153, %s154
      %p165 = scmp.eq.s32.totalorder %s16, 0
      %p166 = por %p164, %p165
      %p167 = scmp.ne.s32.totalorder %s153, %s154
      %p168 = scmp.eq.s32.totalorder %s17, 4
      %p169 = por %p167, %p168
      %p171 = scmp.ne.s32.totalorder %s154, %s170
      %p172 = scmp.eq.s32.totalorder %s17, 0
      %p173 = por %p171, %p172
      %s174 = ssub.s32 %s18, %s37
      %s175 = ssub.s32 %s19, %s33
      %s176 = sor.u32 %s174, %s175
      %p177 = scmp.eq.s32.totalorder %s176, 0
      %s179 = sadd.s32 %s178, 1
      %s180 = scalar_select %p177, %s178, %s179
      %p183 = pneg %p177
      %p184 = scmp.eq.s32.totalorder %s11, 4
      %p185 = por %p183, %p184
      %p186 = scmp.ne.s32.totalorder %s178, %s181
      %p187 = scmp.eq.s32.totalorder %s11, 0
      %p188 = por %p186, %p187
      %p189 = scmp.ne.s32.totalorder %s178, %s181
      %p190 = scmp.eq.s32.totalorder %s16, 4
      %p191 = por %p189, %p190
      %p192 = scmp.ne.s32.totalorder %s181, %s182
      %p193 = scmp.eq.s32.totalorder %s16, 0
      %p194 = por %p192, %p193
      %p195 = scmp.ne.s32.totalorder %s181, %s182
      %p196 = scmp.eq.s32.totalorder %s17, 4
      %p197 = por %p195, %p196
      %p199 = scmp.ne.s32.totalorder %s182, %s198
      %p200 = scmp.eq.s32.totalorder %s17, 0
      %p201 = por %p199, %p200
      %p202 = scmp.le.s32.totalorder 1, %s11
      %p203 = scmp.lt.s32.totalorder %s11, 6
      %p204 = pnand %p202, %p203
      %p205 = pneg %p204
      // Predicated region
      $region9: #{resnet_trunk_forward.19} parent=5 // pred_check
        _
      $region10: #{resnet_trunk_forward.19} parent=5 // pred_check_branch
        %207 = sbr.rel (%p204) target = $region12
      $region11: #{resnet_trunk_forward.19} parent=5 // pred_region
        %s208 = ssub.s32 %s11, 1
        // Predicated region
        $region13: #{resnet_trunk_forward.19} parent=11 // pred_check
          %p209 = pneg %p112
        $region14: #{resnet_trunk_forward.19} parent=11 // pred_check_branch
          %211 = sbr.rel (%p209) target = $region16
        $region15: #{resnet_trunk_forward.19} parent=11 // pred_region
          %p212 = scmp.lt.s32.totalorder %s22, 0
          %s213 = scalar_select %p212, %s22, 0
          %s214 = scalar_lea.vmem %s2, %s213
        $region16: #{resnet_trunk_forward.19} parent=11 // pred_fallthru
          _
        // Predicated region
        $region17: #{resnet_trunk_forward.19} parent=11 // pred_check
          %p215 = pneg %p138
        $region18: #{resnet_trunk_forward.19} parent=11 // pred_check_branch
          %217 = sbr.rel (%p215) target = $region20
        $region19: #{resnet_trunk_forward.19} parent=11 // pred_region
          %p218 = scmp.lt.s32.totalorder %s22, 0
          %s219 = scalar_select %p218, %s22, 0
          %s220 = scalar_lea.vmem %s3, %s219
        $region20: #{resnet_trunk_forward.19} parent=11 // pred_fallthru
          _
        // Predicated region
        $region21: #{resnet_trunk_forward.19} parent=11 // pred_check
          %p221 = pneg %p166
        $region22: #{resnet_trunk_forward.19} parent=11 // pred_check_branch
          %223 = sbr.rel (%p221) target = $region24
        $region23: #{resnet_trunk_forward.19} parent=11 // pred_region
          %s224 = smul.u32 2, %s21
          %p225 = scmp.lt.s32.totalorder %s224, 1
          %s226 = scalar_select %p225, %s224, 1
          %p227 = scmp.lt.s32.totalorder %s22, 0
          %s228 = scalar_select %p227, %s22, 0
          %s229 = sadd.s32 %s228, %s226
          %s230 = smul.addr %s229, 8
          %s231 = scalar_lea.vmem %s4, %s230
          %s232 = smul.u32 2, %s21
        $region24: #{resnet_trunk_forward.19} parent=11 // pred_fallthru
          _
      $region12: #{resnet_trunk_forward.19} parent=5 // pred_fallthru
        _
      %p233 = scmp.lt.s32.totalorder %s11, 5
      // Predicated region
      $region25: #{resnet_trunk_forward.19} parent=5 // pred_check
        %p234 = pneg %p233
      $region26: #{resnet_trunk_forward.19} parent=5 // pred_check_branch
        %236 = sbr.rel (%p234) target = $region28
      $region27: #{resnet_trunk_forward.19} parent=5 // pred_region
        // Predicated region
        $region29: #{resnet_trunk_forward.19} parent=27 // pred_check
          %p237 = pneg %p52
        $region30: #{resnet_trunk_forward.19} parent=27 // pred_check_branch
          %239 = sbr.rel (%p237) target = $region32
        $region31: #{resnet_trunk_forward.19} parent=27 // pred_region
          %s240 = sand.u32 %s42, 1
          %s241 = sand.u32 %s42, 1
          %s242 = smul.addr %s241, 16
          %s243 = scalar_lea.vmem [#allocation3], %s242
          %s244 = smul.u32 2, %s18
          %s245 = smul.u32 2, %s20
          %s246 = smul.addr %s244, 10
          %s247 = sadd.s32 %s245, %s246
          %s248 = smul.addr %s247, 4
          %s249 = scalar_lea.vmem %s0, %s248
          // Predicated region
          $region33: #{resnet_trunk_forward.19} parent=31 // pred_check
            _
          $region34: #{resnet_trunk_forward.19} parent=31 // pred_check_branch
            %251 = sbr.rel (0) target = $region36
          $region35: #{resnet_trunk_forward.19} parent=31 // pred_region
            // Predicated region
            $region37: #{resnet_trunk_forward.19} parent=35 // pred_check
              _
            $region38: #{resnet_trunk_forward.19} parent=35 // pred_check_branch
              %253 = sbr.rel (0) target = $region40
            $region39: #{resnet_trunk_forward.19} parent=35 // pred_region
              // Predicated region
              $region52: #{resnet_trunk_forward.19} parent=39 // pred_check
                _
              $region53: #{resnet_trunk_forward.19} parent=39 // pred_check_branch
                %271 = sbr.rel (0) target = $region55
              $region54: #{resnet_trunk_forward.19} parent=39 // pred_region
                loop: start=0, step=1, limit=1
                $region56: #{resnet_trunk_forward.19} parent=54 // loop_pre_header
                  _
                $region57: #{resnet_trunk_forward.19} parent=54 // loop_header
                  %s273 = sphi 0, %s277
                  %p274 = scmp.ge.s32.totalorder %s273, 1
                  %s278 = sphi %s249, %s249
                  %s279 = sphi %s243, %s243
                $region58: #{resnet_trunk_forward.19} parent=54 // loop_header_branch
                  %276 = sbr.rel (%p274) target = $region62
                $region59: #{resnet_trunk_forward.19} parent=54 // loop_body
                  %v280 = vld [vmem:[%s278] sm:$0xff]
                  %281 = vst [vmem:[%s279] sm:$0xff] %v280
                  %v282 = vld [vmem:[%s278 + $0x28] sm:$0xff]
                  %283 = vst [vmem:[%s279 + $0x8] sm:$0xff] %v282
                $region60: #{resnet_trunk_forward.19} parent=54 // loop_footer
                  %s277 = sadd.s32 1, %s273
                $region61: #{resnet_trunk_forward.19} parent=54 // loop_footer_branch
                  %272 = sbr.rel target = $region57
                $region62: #{resnet_trunk_forward.19} parent=54 // loop_exit
                  _
              $region55: #{resnet_trunk_forward.19} parent=39 // pred_fallthru
                _
              // Predicated region
              $region63: #{resnet_trunk_forward.19} parent=39 // pred_check
                _
              $region64: #{resnet_trunk_forward.19} parent=39 // pred_check_branch
                %285 = sbr.rel target = $region66
              $region65: #{resnet_trunk_forward.19} parent=39 // pred_region
                _
              $region66: #{resnet_trunk_forward.19} parent=39 // pred_fallthru
                _
            $region40: #{resnet_trunk_forward.19} parent=35 // pred_fallthru
              _
            // Predicated region
            $region41: #{resnet_trunk_forward.19} parent=35 // pred_check
              _
            $region42: #{resnet_trunk_forward.19} parent=35 // pred_check_branch
              %255 = sbr.rel target = $region44
            $region43: #{resnet_trunk_forward.19} parent=35 // pred_region
              %s257 = ssub.s32 256, 1
              loop: start=0, step=1, limit=1
              $region45: #{resnet_trunk_forward.19} parent=43 // loop_pre_header
                _
              $region46: #{resnet_trunk_forward.19} parent=43 // loop_header
                %s259 = sphi 0, %s263
                %p260 = scmp.ge.s32.totalorder %s259, 1
                %s264 = sphi %s249, %s249
                %s265 = sphi %s243, %s243
              $region47: #{resnet_trunk_forward.19} parent=43 // loop_header_branch
                %262 = sbr.rel (%p260) target = $region51
              $region48: #{resnet_trunk_forward.19} parent=43 // loop_body
                %v266 = vld [vmem:[%s264] sm:%s257]
                %267 = vst [vmem:[%s265] sm:%s257] %v266
                %v268 = vld [vmem:[%s264 + $0x28] sm:%s257]
                %269 = vst [vmem:[%s265 + $0x8] sm:%s257] %v268
              $region49: #{resnet_trunk_forward.19} parent=43 // loop_footer
                %s263 = sadd.s32 1, %s259
              $region50: #{resnet_trunk_forward.19} parent=43 // loop_footer_branch
                %258 = sbr.rel target = $region46
              $region51: #{resnet_trunk_forward.19} parent=43 // loop_exit
                _
            $region44: #{resnet_trunk_forward.19} parent=35 // pred_fallthru
              _
          $region36: #{resnet_trunk_forward.19} parent=31 // pred_fallthru
            _
          %286 = vnop
        $region32: #{resnet_trunk_forward.19} parent=27 // pred_fallthru
          _
        // Predicated region
        $region67: #{resnet_trunk_forward.19} parent=27 // pred_check
          %p287 = pneg %p80
        $region68: #{resnet_trunk_forward.19} parent=27 // pred_check_branch
          %289 = sbr.rel (%p287) target = $region70
        $region69: #{resnet_trunk_forward.19} parent=27 // pred_region
          %s290 = smul.u32 32, %s20
          %p291 = scmp.lt.s32.totalorder %s290, 159
          %s292 = scalar_select %p291, %s290, 159
          %p293 = scmp.lt.s32.totalorder %s19, 0
          %s294 = scalar_select %p293, %s19, 0
          %s295 = sadd.s32 %s294, %s292
          %s296 = smul.addr %s295, 4
          %s297 = scalar_lea.vmem %s1, %s296
          %s298 = smul.u32 32, %s20
        $region70: #{resnet_trunk_forward.19} parent=27 // pred_fallthru
          _
      $region28: #{resnet_trunk_forward.19} parent=5 // pred_fallthru
        _
      %p299 = scmp.le.s32.totalorder 1, %s11
      %p300 = scmp.lt.s32.totalorder %s11, 6
      %p301 = pnand %p299, %p300
      %p302 = pneg %p301
      // Predicated region
      $region71: #{resnet_trunk_forward.19} parent=5 // pred_check
        _
      $region72: #{resnet_trunk_forward.19} parent=5 // pred_check_branch
        %304 = sbr.rel (%p301) target = $region74
      $region73: #{resnet_trunk_forward.19} parent=5 // pred_region
        %s305 = ssub.s32 %s11, 1
        %s306 = sand.u32 %s45, 1
        %s307 = sand.u32 %s45, 1
        %s308 = smul.addr %s307, 16
        %s309 = scalar_lea.vmem [#allocation3], %s308
        // Predicated region
        $region75: #{resnet_trunk_forward.19} parent=73 // pred_check
          %p310 = pneg %p58
        $region76: #{resnet_trunk_forward.19} parent=73 // pred_check_branch
          %312 = sbr.rel (%p310) target = $region78
        $region77: #{resnet_trunk_forward.19} parent=73 // pred_region
          _
        $region78: #{resnet_trunk_forward.19} parent=73 // pred_fallthru
          _
        %s313 = sand.u32 %s45, 1
        %s314 = sand.u32 %s45, 1
        %s315 = smul.addr %s314, 16
        %s316 = scalar_lea.vmem [#allocation3], %s315
        %p317 = pneg %p58
        %p318 = pneg %p55
        %s319 = smul.u32 32, %s23
        %p320 = scmp.lt.s32.totalorder %s319, 159
        %s321 = scalar_select %p320, %s319, 159
        %p322 = scmp.lt.s32.totalorder %s22, 0
        %s323 = scalar_select %p322, %s22, 0
        %s324 = sadd.s32 %s323, %s321
        %s325 = smul.addr %s324, 4
        %s326 = scalar_lea.vmem %s1, %s325
        %p327 = pneg %p86
        %p328 = pneg %p83
        %p329 = scmp.lt.s32.totalorder %s22, 0
        %s330 = scalar_select %p329, %s22, 0
        %s331 = scalar_lea.vmem %s2, %s330
        %p332 = pneg %p112
        %p333 = pneg %p109
        %p334 = scmp.lt.s32.totalorder %s22, 0
        %s335 = scalar_select %p334, %s22, 0
        %s336 = scalar_lea.vmem %s3, %s335
        %p337 = pneg %p138
        %p338 = pneg %p135
        %s339 = smul.u32 2, %s21
        %p340 = scmp.lt.s32.totalorder %s339, 1
        %s341 = scalar_select %p340, %s339, 1
        %p342 = scmp.lt.s32.totalorder %s22, 0
        %s343 = scalar_select %p342, %s22, 0
        %s344 = sadd.s32 %s343, %s341
        %s345 = smul.addr %s344, 8
        %s346 = scalar_lea.vmem %s4, %s345
        %p347 = pneg %p166
        %p348 = pneg %p163
        %p349 = pneg %p194
        %p350 = pneg %p191
        %s351 = smul.u32 2, %s21
        %p352 = scmp.lt.s32.totalorder %s351, 1
        %s353 = scalar_select %p352, %s351, 1
        %p354 = scmp.lt.s32.totalorder %s22, 0
        %s355 = scalar_select %p354, %s22, 0
        %s356 = sadd.s32 %s355, %s353
        %s357 = smul.addr %s356, 8
        %s358 = scalar_lea.vmem %s5, %s357
        %s359 = smul.u32 2, %s21
        %s360 = smul.u32 2, %s23
        %s361 = smul.u32 32, %s23
        %p362 = scmp.lt.s32.totalorder %s361, 159
        %s363 = scalar_select %p362, %s361, 159
        %p364 = scmp.lt.s32.totalorder %s22, 0
        %s365 = scalar_select %p364, %s22, 0
        %s366 = sadd.s32 %s365, %s363
        %s367 = smul.addr %s366, 4
        %s368 = scalar_lea.vmem %s1, %s367
        %s369 = smul.u32 32, %s23
        %p370 = scmp.lt.s32.totalorder %s22, 0
        %s371 = scalar_select %p370, %s22, 0
        %s372 = scalar_lea.vmem %s2, %s371
        %p373 = scmp.lt.s32.totalorder %s22, 0
        %s374 = scalar_select %p373, %s22, 0
        %s375 = scalar_lea.vmem %s3, %s374
        %s376 = smul.u32 2, %s21
        %p377 = scmp.lt.s32.totalorder %s376, 1
        %s378 = scalar_select %p377, %s376, 1
        %p379 = scmp.lt.s32.totalorder %s22, 0
        %s380 = scalar_select %p379, %s22, 0
        %s381 = sadd.s32 %s380, %s378
        %s382 = smul.addr %s381, 8
        %s383 = scalar_lea.vmem %s4, %s382
        %s384 = smul.u32 2, %s21
        %s385 = smul.u32 2, %s21
        %p386 = scmp.lt.s32.totalorder %s385, 1
        %s387 = scalar_select %p386, %s385, 1
        %p388 = scmp.lt.s32.totalorder %s22, 0
        %s389 = scalar_select %p388, %s22, 0
        %s390 = sadd.s32 %s389, %s387
        %s391 = smul.addr %s390, 8
        %s392 = scalar_lea.vmem %s5, %s391
        %s393 = smul.u32 2, %s21
        %p395 = scmp.eq.s32.totalorder %s23, 0
        // Predicated region
        $region79: #{resnet_trunk_forward.19} parent=73 // pred_check
          %p396 = pneg %p395
        $region80: #{resnet_trunk_forward.19} parent=73 // pred_check_branch
          %398 = sbr.rel (%p396) target = $region82
        $region81: #{resnet_trunk_forward.19} parent=73 // pred_region
          %399 = vst [vmem:[#allocation2] sm:$0xff] 0.0
          %400 = vst [vmem:[#allocation2 + $0x8] sm:$0xff] 0.0
        $region82: #{resnet_trunk_forward.19} parent=73 // pred_fallthru
          _
        %v401 = vld [vmem:[#allocation2] sm:$0xff]
        %v402 = vld [vmem:[#allocation2 + $0x8] sm:$0xff]
        %v403 = vld [vmem:[%s309] sm:$0xff]
        %v404 = vld [vmem:[%s309 + $0x8] sm:$0xff]
        %v405 = vld [vmem:[%s368] sm:$0xf]
        %v406 = vld [vmem:[%s368 + $0x4] sm:$0xf]
        %v407 = vld [vmem:[%s368 + $0x8] sm:$0xf]
        %v408 = vld [vmem:[%s368 + $0xc] sm:$0xf]
        %v409 = vld [vmem:[%s368 + $0x10] sm:$0xf]
        %v410 = vld [vmem:[%s368 + $0x14] sm:$0xf]
        %v411 = vld [vmem:[%s368 + $0x18] sm:$0xf]
        %v412 = vld [vmem:[%s368 + $0x1c] sm:$0xf]
        %v413 = vld [vmem:[%s368 + $0x20] sm:$0xf]
        %v414 = vld [vmem:[%s368 + $0x24] sm:$0xf]
        %v415 = vld [vmem:[%s368 + $0x28] sm:$0xf]
        %v416 = vld [vmem:[%s368 + $0x2c] sm:$0xf]
        %v417 = vld [vmem:[%s368 + $0x30] sm:$0xf]
        %v418 = vld [vmem:[%s368 + $0x34] sm:$0xf]
        %v419 = vld [vmem:[%s368 + $0x38] sm:$0xf]
        %v420 = vld [vmem:[%s368 + $0x3c] sm:$0xf]
        %v421 = vld [vmem:[%s368 + $0x40] sm:$0xf]
        %v422 = vld [vmem:[%s368 + $0x44] sm:$0xf]
        %v423 = vld [vmem:[%s368 + $0x48] sm:$0xf]
        %v424 = vld [vmem:[%s368 + $0x4c] sm:$0xf]
        %v425 = vld [vmem:[%s368 + $0x50] sm:$0xf]
        %v426 = vld [vmem:[%s368 + $0x54] sm:$0xf]
        %v427 = vld [vmem:[%s368 + $0x58] sm:$0xf]
        %v428 = vld [vmem:[%s368 + $0x5c] sm:$0xf]
        %v429 = vld [vmem:[%s368 + $0x60] sm:$0xf]
        %v430 = vld [vmem:[%s368 + $0x64] sm:$0xf]
        %v431 = vld [vmem:[%s368 + $0x68] sm:$0xf]
        %v432 = vld [vmem:[%s368 + $0x6c] sm:$0xf]
        %v433 = vld [vmem:[%s368 + $0x70] sm:$0xf]
        %v434 = vld [vmem:[%s368 + $0x74] sm:$0xf]
        %v435 = vld [vmem:[%s368 + $0x78] sm:$0xf]
        %v436 = vld [vmem:[%s368 + $0x7c] sm:$0xf]
        %v439 = vunpack.c.l.b16 %v403
        %v440 = vunpack.c.h.b16 %v403
        %v441 = vunpack.c.l.b16 %v404
        %v442 = vunpack.c.h.b16 %v404
        %v443 = vpack.c.b16 %v441, %v439
        %v444 = vpack.c.b16 %v442, %v440
        %v479 = vunpack.c.l.b16 %v405
        %v480 = vunpack.c.l.b16 %v406
        %v481 = vunpack.c.l.b16 %v407
        %v482 = vunpack.c.l.b16 %v408
        %v483 = vunpack.c.l.b16 %v409
        %v484 = vunpack.c.l.b16 %v410
        %v485 = vunpack.c.l.b16 %v411
        %v486 = vunpack.c.l.b16 %v412
        %v487 = vunpack.c.l.b16 %v413
        %v488 = vunpack.c.l.b16 %v414
        %v489 = vunpack.c.l.b16 %v415
        %v490 = vunpack.c.l.b16 %v416
        %v491 = vunpack.c.l.b16 %v417
        %v492 = vunpack.c.l.b16 %v418
        %v493 = vunpack.c.l.b16 %v419
        %v494 = vunpack.c.l.b16 %v420
        %v495 = vunpack.c.l.b16 %v421
        %v496 = vunpack.c.l.b16 %v422
        %v497 = vunpack.c.l.b16 %v423
        %v498 = vunpack.c.l.b16 %v424
        %v499 = vunpack.c.l.b16 %v425
        %v500 = vunpack.c.l.b16 %v426
        %v501 = vunpack.c.l.b16 %v427
        %v502 = vunpack.c.l.b16 %v428
        %v503 = vunpack.c.l.b16 %v429
        %v504 = vunpack.c.l.b16 %v430
        %v505 = vunpack.c.l.b16 %v431
        %v506 = vunpack.c.l.b16 %v432
        %v507 = vunpack.c.l.b16 %v433
        %v508 = vunpack.c.l.b16 %v434
        %v509 = vunpack.c.l.b16 %v435
        %v510 = vunpack.c.l.b16 %v436
        %v511 = vpack.c.b16 %v480, %v479
        %v512 = vpack.c.b16 %v482, %v481
        %v513 = vpack.c.b16 %v484, %v483
        %v514 = vpack.c.b16 %v486, %v485
        %v515 = vpack.c.b16 %v488, %v487
        %v516 = vpack.c.b16 %v490, %v489
        %v517 = vpack.c.b16 %v492, %v491
        %v518 = vpack.c.b16 %v494, %v493
        %v519 = vpack.c.b16 %v496, %v495
        %v520 = vpack.c.b16 %v498, %v497
        %v521 = vpack.c.b16 %v500, %v499
        %v522 = vpack.c.b16 %v502, %v501
        %v523 = vpack.c.b16 %v504, %v503
        %v524 = vpack.c.b16 %v506, %v505
        %v525 = vpack.c.b16 %v508, %v507
        %v526 = vpack.c.b16 %v510, %v509
        %543 = vmatprep.subr.bf16.mxu0 0
        %544 = vmatpush1.bf16.msra.mxu0 %v518
        %545 = vmatprep.subr.bf16.mxu0 0
        %546 = vmatpush1.bf16.msra.mxu0 %v517
        %547 = vmatprep.subr.bf16.mxu0 0
        %548 = vmatpush1.bf16.msra.mxu0 %v516
        %549 = vmatprep.subr.bf16.mxu0 0
        %550 = vmatpush1.bf16.msra.mxu0 %v515
        %551 = vmatprep.subr.bf16.mxu0 0
        %552 = vmatpush1.bf16.msra.mxu0 %v514
        %553 = vmatprep.subr.bf16.mxu0 0
        %554 = vmatpush1.bf16.msra.mxu0 %v513
        %555 = vmatprep.subr.bf16.mxu0 0
        %556 = vmatpush1.bf16.msra.mxu0 %v512
        %557 = vmatprep.subr.bf16.mxu0 0
        %558 = vmatpush1.bf16.msra.mxu0 %v511
        %559 = vmatprep.subr.bf16.mxu0 0
        %560 = vmatpush2.bf16.msra.mxu0 %v526
        %561 = vmatprep.subr.bf16.mxu0 0
        %562 = vmatpush2.bf16.msra.mxu0 %v525
        %563 = vmatprep.subr.bf16.mxu0 0
        %564 = vmatpush2.bf16.msra.mxu0 %v524
        %565 = vmatprep.subr.bf16.mxu0 0
        %566 = vmatpush2.bf16.msra.mxu0 %v523
        %567 = vmatprep.subr.bf16.mxu0 0
        %568 = vmatpush2.bf16.msra.mxu0 %v522
        %569 = vmatprep.subr.bf16.mxu0 0
        %570 = vmatpush2.bf16.msra.mxu0 %v521
        %571 = vmatprep.subr.bf16.mxu0 0
        %572 = vmatpush2.bf16.msra.mxu0 %v520
        %573 = vmatprep.subr.bf16.mxu0 0
        %574 = vmatpush2.bf16.msra.mxu0 %v519
        %575 = vmatprep.mubr.bf16.mxu0 %v444
        %576 = vmatmul.mubr.bf16.gmra.mxu0 %v443
        %v577 = vpop.f32.mrf.mxu0
        %v578 = vadd.f32 0.0, %v577
        %v579 = vpop.f32.mrf.mxu0
        %v580 = vpop.f32.mrf.mxu0
        %v581 = vadd.f32 0.0, %v580
        %v582 = vpop.f32.mrf.mxu0
        %583 = vdwg.mxu0
        %v584 = vadd.f32 %v401, %v578
        %v585 = vadd.f32 %v402, %v581
        %586 = vst [vmem:[#allocation2] sm:$0xff] %v584
        %587 = vst [vmem:[#allocation2 + $0x8] sm:$0xff] %v585
        %p588 = scmp.eq.s32.totalorder %s23, 4
        // Predicated region
        $region83: #{resnet_trunk_forward.19} parent=73 // pred_check
          %p589 = pneg %p588
        $region84: #{resnet_trunk_forward.19} parent=73 // pred_check_branch
          %591 = sbr.rel (%p589) target = $region86
        $region85: #{resnet_trunk_forward.19} parent=73 // pred_region
          %v592 = vld [vmem:[#allocation2] sm:$0xff]
          %v593 = vld [vmem:[#allocation2 + $0x8] sm:$0xff]
          %v594 = vld [vmem:[%s372] sm:$0x1]
          %v596 = vlaneseq
          %v597 = vshrl.u32 %v596, 7
          %v598 = vsub.s32 0, %v597
          %v599 = vrot.slane %v594, %v598
          %v601 = vmul.f32 %v592, %v599
          %v602 = vmul.f32 %v593, %v599
          %v603 = vld [vmem:[%s375] sm:$0x1]
          %v605 = vlaneseq
          %v606 = vshrl.u32 %v605, 7
          %v607 = vsub.s32 0, %v606
          %v608 = vrot.slane %v603, %v607
          %v610 = vadd.f32 %v601, %v608
          %v611 = vadd.f32 %v602, %v608
          %v612 = vld [vmem:[%s383] sm:$0xff]
          %v613 = vld [vmem:[%s383 + $0x8] sm:$0xff]
          %v614 = vadd.f32 %v610, %v612
          %v615 = vadd.f32 %v611, %v613
          %v616 = vmax.f32 %v614, 0.0
          %v617 = vmax.f32 %v615, 0.0
          %618 = vst [vmem:[%s392] sm:$0xff] %v616
          %619 = vst [vmem:[%s392 + $0x8] sm:$0xff] %v617
        $region86: #{resnet_trunk_forward.19} parent=73 // pred_fallthru
          _
        %s620 = smul.u32 2, %s21
        %p621 = scmp.lt.s32.totalorder %s620, 1
        %s622 = scalar_select %p621, %s620, 1
        %p623 = scmp.lt.s32.totalorder %s22, 0
        %s624 = scalar_select %p623, %s22, 0
        %s625 = sadd.s32 %s624, %s622
        %s626 = smul.addr %s625, 8
        %s627 = scalar_lea.vmem %s5, %s626
        // Predicated region
        $region87: #{resnet_trunk_forward.19} parent=73 // pred_check
          %p628 = pneg %p191
        $region88: #{resnet_trunk_forward.19} parent=73 // pred_check_branch
          %630 = sbr.rel (%p628) target = $region90
        $region89: #{resnet_trunk_forward.19} parent=73 // pred_region
          %s631 = smul.u32 2, %s21
        $region90: #{resnet_trunk_forward.19} parent=73 // pred_fallthru
          _
        // Predicated region
        $region91: #{resnet_trunk_forward.19} parent=73 // pred_check
          %p632 = pneg %p191
        $region92: #{resnet_trunk_forward.19} parent=73 // pred_check_branch
          %634 = sbr.rel (%p632) target = $region94
        $region93: #{resnet_trunk_forward.19} parent=73 // pred_region
          %s635 = smul.u32 2, %s21
          %p636 = scmp.lt.s32.totalorder %s635, 1
          %s637 = scalar_select %p636, %s635, 1
          %p638 = scmp.lt.s32.totalorder %s22, 0
          %s639 = scalar_select %p638, %s22, 0
          %s640 = sadd.s32 %s639, %s637
          %s641 = smul.addr %s640, 8
          %s642 = scalar_lea.vmem %s5, %s641
        $region94: #{resnet_trunk_forward.19} parent=73 // pred_fallthru
          _
      $region74: #{resnet_trunk_forward.19} parent=5 // pred_fallthru
        _
      %p643 = scmp.le.s32.totalorder 2, %s11
      // Predicated region
      $region95: #{resnet_trunk_forward.19} parent=5 // pred_check
        %p644 = pneg %p643
      $region96: #{resnet_trunk_forward.19} parent=5 // pred_check_branch
        %646 = sbr.rel (%p644) target = $region98
      $region97: #{resnet_trunk_forward.19} parent=5 // pred_region
        %s647 = ssub.s32 %s11, 2
      $region98: #{resnet_trunk_forward.19} parent=5 // pred_fallthru
        _
    $region6: #{resnet_trunk_forward.19} parent=1 // loop_footer
      %s15 = sadd.s32 1, %s11
    $region7: #{resnet_trunk_forward.19} parent=1 // loop_footer_branch
      %10 = sbr.rel target = $region3
    $region8: #{resnet_trunk_forward.19} parent=1 // loop_exit
      _

// kernel: resnet_trunk_forward.21
$region0: #{resnet_trunk_forward.21}
  #allocation0 [shape = 'u32[]', space=smem, size = 0x4, offset = 0x4, fixed_abs, tag = 'smem constant byte address 0x4 - core index']
  #allocation1 [shape = 'u32[144,128]{1,0:T(1,128)}', space=vmem, size = 0x12000, scoped, tag = 'internal scratch']
  #allocation2 [shape = 'f32[16,256]{1,0:T(8,128)}', space=vmem, size = 0x4000, scoped, tag = 'scratch operand']
  %s0 = inlined_call_operand.vmem [shape: bf16[16,1280], index: 0, kind: input, shape index: {}]
  %s1 = inlined_call_operand.vmem [shape: bf16[1280,256], index: 1, kind: input, shape index: {}]
  %s2 = inlined_call_operand.vmem [shape: f32[1,256], index: 2, kind: input, shape index: {}]
  %s3 = inlined_call_operand.vmem [shape: f32[1,256], index: 3, kind: input, shape index: {}]
  %s4 = inlined_call_operand.vmem [shape: f32[16,256], index: 4, kind: output, shape index: {}]
  %s5 = sld [smem:[#allocation0]]
  $region95: #{resnet_trunk_forward.21} parent=0
    _
  %s7 = ssub.s32 1, %s5
  %s8 = scalar_select 0, %s7, %s5
  $region1: #{resnet_trunk_forward.21} parent=0
    #allocation3 [shape = 'u8[16384]{0}', space=vmem, size = 0x4000, scoped, tag = 'input window, operand 0']
    loop: start=0, step=1, limit=7
    $region2: #{resnet_trunk_forward.21} parent=1 // loop_pre_header
      _
    $region3: #{resnet_trunk_forward.21} parent=1 // loop_header
      %s10 = sphi 0, %s14
      %p11 = scmp.ge.s32.totalorder %s10, 7
      %s17 = sphi 0, %s36
      %s18 = sphi 0, %s32
      %s19 = sphi 0, %s28
      %s20 = sphi 0, %s17
      %s21 = sphi 0, %s18
      %s22 = sphi 0, %s19
      %s23 = sphi 0, %s20
      %s24 = sphi 0, %s21
      %s25 = sphi 0, %s22
      %s41 = sphi 0, %s43
      %s44 = sphi 0, %s41
      %s45 = sphi 0, %s44
      %s61 = sphi 0, %s45
      %s69 = sphi 0, %s71
      %s72 = sphi 0, %s69
      %s73 = sphi 0, %s72
      %s89 = sphi 0, %s73
      %s95 = sphi 0, %s97
      %s98 = sphi 0, %s95
      %s99 = sphi 0, %s98
      %s115 = sphi 0, %s99
      %s121 = sphi 0, %s123
      %s124 = sphi 0, %s121
      %s125 = sphi 0, %s124
      %s141 = sphi 0, %s125
      %s149 = sphi 0, %s151
      %s152 = sphi 0, %s149
      %s153 = sphi 0, %s152
      %s169 = sphi 0, %s153
    $region4: #{resnet_trunk_forward.21} parent=1 // loop_header_branch
      %13 = sbr.rel (%p11) target = $region8
    $region5: #{resnet_trunk_forward.21} parent=1 // loop_body
      %s15 = ssub.s32 %s10, 1
      %s16 = ssub.s32 %s10, 2
      %s26 = sadd.s32 1, %s19
      %p27 = scmp.ge.s32.totalorder %s26, 5
      %s28 = scalar_select %p27, 0, %s26
      %s29 = sadd.s32 1, %s18
      %s30 = scalar_select %p27, %s29, %s18
      %p31 = scmp.ge.s32.totalorder %s30, 1
      %s32 = scalar_select %p31, 0, %s30
      %s33 = sadd.s32 1, %s17
      %s34 = scalar_select %p31, %s33, %s17
      %p35 = scmp.ge.s32.totalorder %s34, 1
      %s36 = scalar_select %p35, 0, %s34
      %s37 = ssub.s32 %s17, %s36
      %s38 = ssub.s32 %s19, %s28
      %s39 = sor.u32 %s37, %s38
      %p40 = scmp.eq.s32.totalorder %s39, 0
      %s42 = sadd.s32 %s41, 1
      %s43 = scalar_select %p40, %s41, %s42
      %p46 = pneg %p40
      %p47 = scmp.eq.s32.totalorder %s10, 4
      %p48 = por %p46, %p47
      %p49 = scmp.ne.s32.totalorder %s41, %s44
      %p50 = scmp.eq.s32.totalorder %s10, 0
      %p51 = por %p49, %p50
      %p52 = scmp.ne.s32.totalorder %s41, %s44
      %p53 = scmp.eq.s32.totalorder %s15, 4
      %p54 = por %p52, %p53
      %p55 = scmp.ne.s32.totalorder %s44, %s45
      %p56 = scmp.eq.s32.totalorder %s15, 0
      %p57 = por %p55, %p56
      %p58 = scmp.ne.s32.totalorder %s44, %s45
      %p59 = scmp.eq.s32.totalorder %s16, 4
      %p60 = por %p58, %p59
      %p62 = scmp.ne.s32.totalorder %s45, %s61
      %p63 = scmp.eq.s32.totalorder %s16, 0
      %p64 = por %p62, %p63
      %s65 = ssub.s32 %s19, %s28
      %s66 = ssub.s32 %s18, %s32
      %s67 = sor.u32 %s65, %s66
      %p68 = scmp.eq.s32.totalorder %s67, 0
      %s70 = sadd.s32 %s69, 1
      %s71 = scalar_select %p68, %s69, %s70
      %p74 = pneg %p68
      %p75 = scmp.eq.s32.totalorder %s10, 4
      %p76 = por %p74, %p75
      %p77 = scmp.ne.s32.totalorder %s69, %s72
      %p78 = scmp.eq.s32.totalorder %s10, 0
      %p79 = por %p77, %p78
      %p80 = scmp.ne.s32.totalorder %s69, %s72
      %p81 = scmp.eq.s32.totalorder %s15, 4
      %p82 = por %p80, %p81
      %p83 = scmp.ne.s32.totalorder %s72, %s73
      %p84 = scmp.eq.s32.totalorder %s15, 0
      %p85 = por %p83, %p84
      %p86 = scmp.ne.s32.totalorder %s72, %s73
      %p87 = scmp.eq.s32.totalorder %s16, 4
      %p88 = por %p86, %p87
      %p90 = scmp.ne.s32.totalorder %s73, %s89
      %p91 = scmp.eq.s32.totalorder %s16, 0
      %p92 = por %p90, %p91
      %s93 = ssub.s32 %s18, %s32
      %p94 = scmp.eq.s32.totalorder %s93, 0
      %s96 = sadd.s32 %s95, 1
      %s97 = scalar_select %p94, %s95, %s96
      %p100 = pneg %p94
      %p101 = scmp.eq.s32.totalorder %s10, 4
      %p102 = por %p100, %p101
      %p103 = scmp.ne.s32.totalorder %s95, %s98
      %p104 = scmp.eq.s32.totalorder %s10, 0
      %p105 = por %p103, %p104
      %p106 = scmp.ne.s32.totalorder %s95, %s98
      %p107 = scmp.eq.s32.totalorder %s15, 4
      %p108 = por %p106, %p107
      %p109 = scmp.ne.s32.totalorder %s98, %s99
      %p110 = scmp.eq.s32.totalorder %s15, 0
      %p111 = por %p109, %p110
      %p112 = scmp.ne.s32.totalorder %s98, %s99
      %p113 = scmp.eq.s32.totalorder %s16, 4
      %p114 = por %p112, %p113
      %p116 = scmp.ne.s32.totalorder %s99, %s115
      %p117 = scmp.eq.s32.totalorder %s16, 0
      %p118 = por %p116, %p117
      %s119 = ssub.s32 %s18, %s32
      %p120 = scmp.eq.s32.totalorder %s119, 0
      %s122 = sadd.s32 %s121, 1
      %s123 = scalar_select %p120, %s121, %s122
      %p126 = pneg %p120
      %p127 = scmp.eq.s32.totalorder %s10, 4
      %p128 = por %p126, %p127
      %p129 = scmp.ne.s32.totalorder %s121, %s124
      %p130 = scmp.eq.s32.totalorder %s10, 0
      %p131 = por %p129, %p130
      %p132 = scmp.ne.s32.totalorder %s121, %s124
      %p133 = scmp.eq.s32.totalorder %s15, 4
      %p134 = por %p132, %p133
      %p135 = scmp.ne.s32.totalorder %s124, %s125
      %p136 = scmp.eq.s32.totalorder %s15, 0
      %p137 = por %p135, %p136
      %p138 = scmp.ne.s32.totalorder %s124, %s125
      %p139 = scmp.eq.s32.totalorder %s16, 4
      %p140 = por %p138, %p139
      %p142 = scmp.ne.s32.totalorder %s125, %s141
      %p143 = scmp.eq.s32.totalorder %s16, 0
      %p144 = por %p142, %p143
      %s145 = ssub.s32 %s17, %s36
      %s146 = ssub.s32 %s18, %s32
      %s147 = sor.u32 %s145, %s146
      %p148 = scmp.eq.s32.totalorder %s147, 0
      %s150 = sadd.s32 %s149, 1
      %s151 = scalar_select %p148, %s149, %s150
      %p154 = pneg %p148
      %p155 = scmp.eq.s32.totalorder %s10, 4
      %p156 = por %p154, %p155
      %p157 = scmp.ne.s32.totalorder %s149, %s152
      %p158 = scmp.eq.s32.totalorder %s10, 0
      %p159 = por %p157, %p158
      %p160 = scmp.ne.s32.totalorder %s149, %s152
      %p161 = scmp.eq.s32.totalorder %s15, 4
      %p162 = por %p160, %p161
      %p163 = scmp.ne.s32.totalorder %s152, %s153
      %p164 = scmp.eq.s32.totalorder %s15, 0
      %p165 = por %p163, %p164
      %p166 = scmp.ne.s32.totalorder %s152, %s153
      %p167 = scmp.eq.s32.totalorder %s16, 4
      %p168 = por %p166, %p167
      %p170 = scmp.ne.s32.totalorder %s153, %s169
      %p171 = scmp.eq.s32.totalorder %s16, 0
      %p172 = por %p170, %p171
      %p173 = scmp.le.s32.totalorder 1, %s10
      %p174 = scmp.lt.s32.totalorder %s10, 6
      %p175 = pnand %p173, %p174
      %p176 = pneg %p175
      // Predicated region
      $region9: #{resnet_trunk_forward.21} parent=5 // pred_check
        _
      $region10: #{resnet_trunk_forward.21} parent=5 // pred_check_branch
        %178 = sbr.rel (%p175) target = $region12
      $region11: #{resnet_trunk_forward.21} parent=5 // pred_region
        %s179 = ssub.s32 %s10, 1
        // Predicated region
        $region13: #{resnet_trunk_forward.21} parent=11 // pred_check
          %p180 = pneg %p111
        $region14: #{resnet_trunk_forward.21} parent=11 // pred_check_branch
          %182 = sbr.rel (%p180) target = $region16
        $region15: #{resnet_trunk_forward.21} parent=11 // pred_region
          %s183 = smul.u32 2, %s21
          %p184 = scmp.lt.s32.totalorder %s183, 1
          %s185 = scalar_select %p184, %s183, 1
          %s186 = scalar_lea.vmem %s2, %s185
          %s187 = smul.u32 2, %s21
        $region16: #{resnet_trunk_forward.21} parent=11 // pred_fallthru
          _
        // Predicated region
        $region17: #{resnet_trunk_forward.21} parent=11 // pred_check
          %p188 = pneg %p137
        $region18: #{resnet_trunk_forward.21} parent=11 // pred_check_branch
          %190 = sbr.rel (%p188) target = $region20
        $region19: #{resnet_trunk_forward.21} parent=11 // pred_region
          %s191 = smul.u32 2, %s21
          %p192 = scmp.lt.s32.totalorder %s191, 1
          %s193 = scalar_select %p192, %s191, 1
          %s194 = scalar_lea.vmem %s3, %s193
          %s195 = smul.u32 2, %s21
        $region20: #{resnet_trunk_forward.21} parent=11 // pred_fallthru
          _
      $region12: #{resnet_trunk_forward.21} parent=5 // pred_fallthru
        _
      %p196 = scmp.lt.s32.totalorder %s10, 5
      // Predicated region
      $region21: #{resnet_trunk_forward.21} parent=5 // pred_check
        %p197 = pneg %p196
      $region22: #{resnet_trunk_forward.21} parent=5 // pred_check_branch
        %199 = sbr.rel (%p197) target = $region24
      $region23: #{resnet_trunk_forward.21} parent=5 // pred_region
        // Predicated region
        $region25: #{resnet_trunk_forward.21} parent=23 // pred_check
          %p200 = pneg %p51
        $region26: #{resnet_trunk_forward.21} parent=23 // pred_check_branch
          %202 = sbr.rel (%p200) target = $region28
        $region27: #{resnet_trunk_forward.21} parent=23 // pred_region
          %s203 = sand.u32 %s41, 1
          %s204 = sand.u32 %s41, 1
          %s205 = smul.addr %s204, 16
          %s206 = scalar_lea.vmem [#allocation3], %s205
          %s207 = smul.u32 2, %s17
          %s208 = smul.u32 2, %s19
          %s209 = smul.addr %s207, 10
          %s210 = sadd.s32 %s208, %s209
          %s211 = smul.addr %s210, 4
          %s212 = scalar_lea.vmem %s0, %s211
          // Predicated region
          $region29: #{resnet_trunk_forward.21} parent=27 // pred_check
            _
          $region30: #{resnet_trunk_forward.21} parent=27 // pred_check_branch
            %214 = sbr.rel (0) target = $region32
          $region31: #{resnet_trunk_forward.21} parent=27 // pred_region
            // Predicated region
            $region33: #{resnet_trunk_forward.21} parent=31 // pred_check
              _
            $region34: #{resnet_trunk_forward.21} parent=31 // pred_check_branch
              %216 = sbr.rel (0) target = $region36
            $region35: #{resnet_trunk_forward.21} parent=31 // pred_region
              // Predicated region
              $region48: #{resnet_trunk_forward.21} parent=35 // pred_check
                _
              $region49: #{resnet_trunk_forward.21} parent=35 // pred_check_branch
                %234 = sbr.rel (0) target = $region51
              $region50: #{resnet_trunk_forward.21} parent=35 // pred_region
                loop: start=0, step=1, limit=1
                $region52: #{resnet_trunk_forward.21} parent=50 // loop_pre_header
                  _
                $region53: #{resnet_trunk_forward.21} parent=50 // loop_header
                  %s236 = sphi 0, %s240
                  %p237 = scmp.ge.s32.totalorder %s236, 1
                  %s241 = sphi %s212, %s212
                  %s242 = sphi %s206, %s206
                $region54: #{resnet_trunk_forward.21} parent=50 // loop_header_branch
                  %239 = sbr.rel (%p237) target = $region58
                $region55: #{resnet_trunk_forward.21} parent=50 // loop_body
                  %v243 = vld [vmem:[%s241] sm:$0xff]
                  %244 = vst [vmem:[%s242] sm:$0xff] %v243
                  %v245 = vld [vmem:[%s241 + $0x28] sm:$0xff]
                  %246 = vst [vmem:[%s242 + $0x8] sm:$0xff] %v245
                $region56: #{resnet_trunk_forward.21} parent=50 // loop_footer
                  %s240 = sadd.s32 1, %s236
                $region57: #{resnet_trunk_forward.21} parent=50 // loop_footer_branch
                  %235 = sbr.rel target = $region53
                $region58: #{resnet_trunk_forward.21} parent=50 // loop_exit
                  _
              $region51: #{resnet_trunk_forward.21} parent=35 // pred_fallthru
                _
              // Predicated region
              $region59: #{resnet_trunk_forward.21} parent=35 // pred_check
                _
              $region60: #{resnet_trunk_forward.21} parent=35 // pred_check_branch
                %248 = sbr.rel target = $region62
              $region61: #{resnet_trunk_forward.21} parent=35 // pred_region
                _
              $region62: #{resnet_trunk_forward.21} parent=35 // pred_fallthru
                _
            $region36: #{resnet_trunk_forward.21} parent=31 // pred_fallthru
              _
            // Predicated region
            $region37: #{resnet_trunk_forward.21} parent=31 // pred_check
              _
            $region38: #{resnet_trunk_forward.21} parent=31 // pred_check_branch
              %218 = sbr.rel target = $region40
            $region39: #{resnet_trunk_forward.21} parent=31 // pred_region
              %s220 = ssub.s32 256, 1
              loop: start=0, step=1, limit=1
              $region41: #{resnet_trunk_forward.21} parent=39 // loop_pre_header
                _
              $region42: #{resnet_trunk_forward.21} parent=39 // loop_header
                %s222 = sphi 0, %s226
                %p223 = scmp.ge.s32.totalorder %s222, 1
                %s227 = sphi %s212, %s212
                %s228 = sphi %s206, %s206
              $region43: #{resnet_trunk_forward.21} parent=39 // loop_header_branch
                %225 = sbr.rel (%p223) target = $region47
              $region44: #{resnet_trunk_forward.21} parent=39 // loop_body
                %v229 = vld [vmem:[%s227] sm:%s220]
                %230 = vst [vmem:[%s228] sm:%s220] %v229
                %v231 = vld [vmem:[%s227 + $0x28] sm:%s220]
                %232 = vst [vmem:[%s228 + $0x8] sm:%s220] %v231
              $region45: #{resnet_trunk_forward.21} parent=39 // loop_footer
                %s226 = sadd.s32 1, %s222
              $region46: #{resnet_trunk_forward.21} parent=39 // loop_footer_branch
                %221 = sbr.rel target = $region42
              $region47: #{resnet_trunk_forward.21} parent=39 // loop_exit
                _
            $region40: #{resnet_trunk_forward.21} parent=31 // pred_fallthru
              _
          $region32: #{resnet_trunk_forward.21} parent=27 // pred_fallthru
            _
          %249 = vnop
        $region28: #{resnet_trunk_forward.21} parent=23 // pred_fallthru
          _
        // Predicated region
        $region63: #{resnet_trunk_forward.21} parent=23 // pred_check
          %p250 = pneg %p79
        $region64: #{resnet_trunk_forward.21} parent=23 // pred_check_branch
          %252 = sbr.rel (%p250) target = $region66
        $region65: #{resnet_trunk_forward.21} parent=23 // pred_region
          %s253 = smul.u32 32, %s19
          %s254 = smul.u32 2, %s18
          %p255 = scmp.lt.s32.totalorder %s253, 159
          %s256 = scalar_select %p255, %s253, 159
          %p257 = scmp.lt.s32.totalorder %s254, 1
          %s258 = scalar_select %p257, %s254, 1
          %s259 = smul.addr %s256, 2
          %s260 = sadd.s32 %s258, %s259
          %s261 = smul.addr %s260, 4
          %s262 = scalar_lea.vmem %s1, %s261
          %s263 = smul.u32 32, %s19
          %s264 = smul.u32 2, %s18
        $region66: #{resnet_trunk_forward.21} parent=23 // pred_fallthru
          _
      $region24: #{resnet_trunk_forward.21} parent=5 // pred_fallthru
        _
      %p265 = scmp.le.s32.totalorder 1, %s10
      %p266 = scmp.lt.s32.totalorder %s10, 6
      %p267 = pnand %p265, %p266
      %p268 = pneg %p267
      // Predicated region
      $region67: #{resnet_trunk_forward.21} parent=5 // pred_check
        _
      $region68: #{resnet_trunk_forward.21} parent=5 // pred_check_branch
        %270 = sbr.rel (%p267) target = $region70
      $region69: #{resnet_trunk_forward.21} parent=5 // pred_region
        %s271 = ssub.s32 %s10, 1
        %s272 = sand.u32 %s44, 1
        %s273 = sand.u32 %s44, 1
        %s274 = smul.addr %s273, 16
        %s275 = scalar_lea.vmem [#allocation3], %s274
        // Predicated region
        $region71: #{resnet_trunk_forward.21} parent=69 // pred_check
          %p276 = pneg %p57
        $region72: #{resnet_trunk_forward.21} parent=69 // pred_check_branch
          %278 = sbr.rel (%p276) target = $region74
        $region73: #{resnet_trunk_forward.21} parent=69 // pred_region
          _
        $region74: #{resnet_trunk_forward.21} parent=69 // pred_fallthru
          _
        %s279 = sand.u32 %s44, 1
        %s280 = sand.u32 %s44, 1
        %s281 = smul.addr %s280, 16
        %s282 = scalar_lea.vmem [#allocation3], %s281
        %p283 = pneg %p57
        %p284 = pneg %p54
        %s285 = smul.u32 32, %s22
        %s286 = smul.u32 2, %s21
        %p287 = scmp.lt.s32.totalorder %s285, 159
        %s288 = scalar_select %p287, %s285, 159
        %p289 = scmp.lt.s32.totalorder %s286, 1
        %s290 = scalar_select %p289, %s286, 1
        %s291 = smul.addr %s288, 2
        %s292 = sadd.s32 %s290, %s291
        %s293 = smul.addr %s292, 4
        %s294 = scalar_lea.vmem %s1, %s293
        %p295 = pneg %p85
        %p296 = pneg %p82
        %s297 = smul.u32 2, %s21
        %p298 = scmp.lt.s32.totalorder %s297, 1
        %s299 = scalar_select %p298, %s297, 1
        %s300 = scalar_lea.vmem %s2, %s299
        %p301 = pneg %p111
        %p302 = pneg %p108
        %s303 = smul.u32 2, %s21
        %p304 = scmp.lt.s32.totalorder %s303, 1
        %s305 = scalar_select %p304, %s303, 1
        %s306 = scalar_lea.vmem %s3, %s305
        %p307 = pneg %p137
        %p308 = pneg %p134
        %p309 = pneg %p165
        %p310 = pneg %p162
        %s311 = smul.u32 2, %s20
        %s312 = smul.u32 2, %s21
        %p313 = scmp.lt.s32.totalorder %s311, 1
        %s314 = scalar_select %p313, %s311, 1
        %p315 = scmp.lt.s32.totalorder %s312, 1
        %s316 = scalar_select %p315, %s312, 1
        %s317 = smul.addr %s314, 2
        %s318 = sadd.s32 %s316, %s317
        %s319 = smul.addr %s318, 8
        %s320 = scalar_lea.vmem %s4, %s319
        %s321 = smul.u32 2, %s20
        %s322 = smul.u32 2, %s22
        %s323 = smul.u32 32, %s22
        %s324 = smul.u32 2, %s21
        %p325 = scmp.lt.s32.totalorder %s323, 159
        %s326 = scalar_select %p325, %s323, 159
        %p327 = scmp.lt.s32.totalorder %s324, 1
        %s328 = scalar_select %p327, %s324, 1
        %s329 = smul.addr %s326, 2
        %s330 = sadd.s32 %s328, %s329
        %s331 = smul.addr %s330, 4
        %s332 = scalar_lea.vmem %s1, %s331
        %s333 = smul.u32 32, %s22
        %s334 = smul.u32 2, %s21
        %s335 = smul.u32 2, %s21
        %p336 = scmp.lt.s32.totalorder %s335, 1
        %s337 = scalar_select %p336, %s335, 1
        %s338 = scalar_lea.vmem %s2, %s337
        %s339 = smul.u32 2, %s21
        %s340 = smul.u32 2, %s21
        %p341 = scmp.lt.s32.totalorder %s340, 1
        %s342 = scalar_select %p341, %s340, 1
        %s343 = scalar_lea.vmem %s3, %s342
        %s344 = smul.u32 2, %s21
        %s345 = smul.u32 2, %s20
        %s346 = smul.u32 2, %s21
        %p347 = scmp.lt.s32.totalorder %s345, 1
        %s348 = scalar_select %p347, %s345, 1
        %p349 = scmp.lt.s32.totalorder %s346, 1
        %s350 = scalar_select %p349, %s346, 1
        %s351 = smul.addr %s348, 2
        %s352 = sadd.s32 %s350, %s351
        %s353 = smul.addr %s352, 8
        %s354 = scalar_lea.vmem %s4, %s353
        %s355 = smul.u32 2, %s20
        %s356 = smul.u32 2, %s21
        %p357 = scmp.eq.s32.totalorder %s22, 0
        // Predicated region
        $region75: #{resnet_trunk_forward.21} parent=69 // pred_check
          %p358 = pneg %p357
        $region76: #{resnet_trunk_forward.21} parent=69 // pred_check_branch
          %360 = sbr.rel (%p358) target = $region78
        $region77: #{resnet_trunk_forward.21} parent=69 // pred_region
          %361 = vst [vmem:[#allocation2] sm:$0xff] 0.0
          %362 = vst [vmem:[#allocation2 + $0x8] sm:$0xff] 0.0
          %363 = vst [vmem:[#allocation2 + $0x10] sm:$0xff] 0.0
          %364 = vst [vmem:[#allocation2 + $0x18] sm:$0xff] 0.0
        $region78: #{resnet_trunk_forward.21} parent=69 // pred_fallthru
          _
        %v365 = vld [vmem:[#allocation2] sm:$0xff]
        %v366 = vld [vmem:[#allocation2 + $0x8] sm:$0xff]
        %v367 = vld [vmem:[#allocation2 + $0x10] sm:$0xff]
        %v368 = vld [vmem:[#allocation2 + $0x18] sm:$0xff]
        %v369 = vld [vmem:[%s275] sm:$0xff]
        %v370 = vld [vmem:[%s275 + $0x8] sm:$0xff]
        %v371 = vld [vmem:[%s332] sm:$0xff]
        %v372 = vld [vmem:[%s332 + $0x8] sm:$0xff]
        %v373 = vld [vmem:[%s332 + $0x10] sm:$0xff]
        %v374 = vld [vmem:[%s332 + $0x18] sm:$0xff]
        %v375 = vld [vmem:[%s332 + $0x20] sm:$0xff]
        %v376 = vld [vmem:[%s332 + $0x28] sm:$0xff]
        %v377 = vld [vmem:[%s332 + $0x30] sm:$0xff]
        %v378 = vld [vmem:[%s332 + $0x38] sm:$0xff]
        %v379 = vld [vmem:[%s332 + $0x40] sm:$0xff]
        %v380 = vld [vmem:[%s332 + $0x48] sm:$0xff]
        %v381 = vld [vmem:[%s332 + $0x50] sm:$0xff]
        %v382 = vld [vmem:[%s332 + $0x58] sm:$0xff]
        %v383 = vld [vmem:[%s332 + $0x60] sm:$0xff]
        %v384 = vld [vmem:[%s332 + $0x68] sm:$0xff]
        %v385 = vld [vmem:[%s332 + $0x70] sm:$0xff]
        %v386 = vld [vmem:[%s332 + $0x78] sm:$0xff]
        %v387 = vld [vmem:[%s332 + $0x80] sm:$0xff]
        %v388 = vld [vmem:[%s332 + $0x88] sm:$0xff]
        %v389 = vld [vmem:[%s332 + $0x90] sm:$0xff]
        %v390 = vld [vmem:[%s332 + $0x98] sm:$0xff]
        %v391 = vld [vmem:[%s332 + $0xa0] sm:$0xff]
        %v392 = vld [vmem:[%s332 + $0xa8] sm:$0xff]
        %v393 = vld [vmem:[%s332 + $0xb0] sm:$0xff]
        %v394 = vld [vmem:[%s332 + $0xb8] sm:$0xff]
        %v395 = vld [vmem:[%s332 + $0xc0] sm:$0xff]
        %v396 = vld [vmem:[%s332 + $0xc8] sm:$0xff]
        %v397 = vld [vmem:[%s332 + $0xd0] sm:$0xff]
        %v398 = vld [vmem:[%s332 + $0xd8] sm:$0xff]
        %v399 = vld [vmem:[%s332 + $0xe0] sm:$0xff]
        %v400 = vld [vmem:[%s332 + $0xe8] sm:$0xff]
        %v401 = vld [vmem:[%s332 + $0xf0] sm:$0xff]
        %v402 = vld [vmem:[%s332 + $0xf8] sm:$0xff]
        %v405 = vunpack.c.l.b16 %v369
        %v406 = vunpack.c.h.b16 %v369
        %v407 = vunpack.c.l.b16 %v370
        %v408 = vunpack.c.h.b16 %v370
        %v409 = vpack.c.b16 %v407, %v405
        %v410 = vpack.c.b16 %v408, %v406
        %v445 = vunpack.c.l.b16 %v371
        %v446 = vunpack.c.h.b16 %v371
        %v447 = vunpack.c.l.b16 %v372
        %v448 = vunpack.c.h.b16 %v372
        %v449 = vunpack.c.l.b16 %v373
        %v450 = vunpack.c.h.b16 %v373
        %v451 = vunpack.c.l.b16 %v374
        %v452 = vunpack.c.h.b16 %v374
        %v453 = vunpack.c.l.b16 %v375
        %v454 = vunpack.c.h.b16 %v375
        %v455 = vunpack.c.l.b16 %v376
        %v456 = vunpack.c.h.b16 %v376
        %v457 = vunpack.c.l.b16 %v377
        %v458 = vunpack.c.h.b16 %v377
        %v459 = vunpack.c.l.b16 %v378
        %v460 = vunpack.c.h.b16 %v378
        %v461 = vunpack.c.l.b16 %v379
        %v462 = vunpack.c.h.b16 %v379
        %v463 = vunpack.c.l.b16 %v380
        %v464 = vunpack.c.h.b16 %v380
        %v465 = vunpack.c.l.b16 %v381
        %v466 = vunpack.c.h.b16 %v381
        %v467 = vunpack.c.l.b16 %v382
        %v468 = vunpack.c.h.b16 %v382
        %v469 = vunpack.c.l.b16 %v383
        %v470 = vunpack.c.h.b16 %v383
        %v471 = vunpack.c.l.b16 %v384
        %v472 = vunpack.c.h.b16 %v384
        %v473 = vunpack.c.l.b16 %v385
        %v474 = vunpack.c.h.b16 %v385
        %v475 = vunpack.c.l.b16 %v386
        %v476 = vunpack.c.h.b16 %v386
        %v477 = vunpack.c.l.b16 %v387
        %v478 = vunpack.c.h.b16 %v387
        %v479 = vunpack.c.l.b16 %v388
        %v480 = vunpack.c.h.b16 %v388
        %v481 = vunpack.c.l.b16 %v389
        %v482 = vunpack.c.h.b16 %v389
        %v483 = vunpack.c.l.b16 %v390
        %v484 = vunpack.c.h.b16 %v390
        %v485 = vunpack.c.l.b16 %v391
        %v486 = vunpack.c.h.b16 %v391
        %v487 = vunpack.c.l.b16 %v392
        %v488 = vunpack.c.h.b16 %v392
        %v489 = vunpack.c.l.b16 %v393
        %v490 = vunpack.c.h.b16 %v393
        %v491 = vunpack.c.l.b16 %v394
        %v492 = vunpack.c.h.b16 %v394
        %v493 = vunpack.c.l.b16 %v395
        %v494 = vunpack.c.h.b16 %v395
        %v495 = vunpack.c.l.b16 %v396
        %v496 = vunpack.c.h.b16 %v396
        %v497 = vunpack.c.l.b16 %v397
        %v498 = vunpack.c.h.b16 %v397
        %v499 = vunpack.c.l.b16 %v398
        %v500 = vunpack.c.h.b16 %v398
        %v501 = vunpack.c.l.b16 %v399
        %v502 = vunpack.c.h.b16 %v399
        %v503 = vunpack.c.l.b16 %v400
        %v504 = vunpack.c.h.b16 %v400
        %v505 = vunpack.c.l.b16 %v401
        %v506 = vunpack.c.h.b16 %v401
        %v507 = vunpack.c.l.b16 %v402
        %v508 = vunpack.c.h.b16 %v402
        %v509 = vpack.c.b16 %v447, %v445
        %v510 = vpack.c.b16 %v448, %v446
        %v511 = vpack.c.b16 %v451, %v449
        %v512 = vpack.c.b16 %v452, %v450
        %v513 = vpack.c.b16 %v455, %v453
        %v514 = vpack.c.b16 %v456, %v454
        %v515 = vpack.c.b16 %v459, %v457
        %v516 = vpack.c.b16 %v460, %v458
        %v517 = vpack.c.b16 %v463, %v461
        %v518 = vpack.c.b16 %v464, %v462
        %v519 = vpack.c.b16 %v467, %v465
        %v520 = vpack.c.b16 %v468, %v466
        %v521 = vpack.c.b16 %v471, %v469
        %v522 = vpack.c.b16 %v472, %v470
        %v523 = vpack.c.b16 %v475, %v473
        %v524 = vpack.c.b16 %v476, %v474
        %v525 = vpack.c.b16 %v479, %v477
        %v526 = vpack.c.b16 %v480, %v478
        %v527 = vpack.c.b16 %v483, %v481
        %v528 = vpack.c.b16 %v484, %v482
        %v529 = vpack.c.b16 %v487, %v485
        %v530 = vpack.c.b16 %v488, %v486
        %v531 = vpack.c.b16 %v491, %v489
        %v532 = vpack.c.b16 %v492, %v490
        %v533 = vpack.c.b16 %v495, %v493
        %v534 = vpack.c.b16 %v496, %v494
        %v535 = vpack.c.b16 %v499, %v497
        %v536 = vpack.c.b16 %v500, %v498
        %v537 = vpack.c.b16 %v503, %v501
        %v538 = vpack.c.b16 %v504, %v502
        %v539 = vpack.c.b16 %v507, %v505
        %v540 = vpack.c.b16 %v508, %v506
        %573 = vmatprep.subr.bf16.mxu0 %v524
        %574 = vmatpush1.bf16.msra.mxu0 %v523
        %575 = vmatprep.subr.bf16.mxu0 %v522
        %576 = vmatpush1.bf16.msra.mxu0 %v521
        %577 = vmatprep.subr.bf16.mxu0 %v520
        %578 = vmatpush1.bf16.msra.mxu0 %v519
        %579 = vmatprep.subr.bf16.mxu0 %v518
        %580 = vmatpush1.bf16.msra.mxu0 %v517
        %581 = vmatprep.subr.bf16.mxu0 %v516
        %582 = vmatpush1.bf16.msra.mxu0 %v515
        %583 = vmatprep.subr.bf16.mxu0 %v514
        %584 = vmatpush1.bf16.msra.mxu0 %v513
        %585 = vmatprep.subr.bf16.mxu0 %v512
        %586 = vmatpush1.bf16.msra.mxu0 %v511
        %587 = vmatprep.subr.bf16.mxu0 %v510
        %588 = vmatpush1.bf16.msra.mxu0 %v509
        %589 = vmatprep.subr.bf16.mxu0 %v540
        %590 = vmatpush2.bf16.msra.mxu0 %v539
        %591 = vmatprep.subr.bf16.mxu0 %v538
        %592 = vmatpush2.bf16.msra.mxu0 %v537
        %593 = vmatprep.subr.bf16.mxu0 %v536
        %594 = vmatpush2.bf16.msra.mxu0 %v535
        %595 = vmatprep.subr.bf16.mxu0 %v534
        %596 = vmatpush2.bf16.msra.mxu0 %v533
        %597 = vmatprep.subr.bf16.mxu0 %v532
        %598 = vmatpush2.bf16.msra.mxu0 %v531
        %599 = vmatprep.subr.bf16.mxu0 %v530
        %600 = vmatpush2.bf16.msra.mxu0 %v529
        %601 = vmatprep.subr.bf16.mxu0 %v528
        %602 = vmatpush2.bf16.msra.mxu0 %v527
        %603 = vmatprep.subr.bf16.mxu0 %v526
        %604 = vmatpush2.bf16.msra.mxu0 %v525
        %605 = vmatprep.mubr.bf16.mxu0 %v410
        %606 = vmatmul.mubr.bf16.gmra.mxu0 %v409
        %v607 = vpop.f32.mrf.mxu0
        %v608 = vadd.f32 0.0, %v607
        %v609 = vpop.f32.mrf.mxu0
        %v610 = vadd.f32 0.0, %v609
        %v611 = vpop.f32.mrf.mxu0
        %v612 = vadd.f32 0.0, %v611
        %v613 = vpop.f32.mrf.mxu0
        %v614 = vadd.f32 0.0, %v613
        %615 = vdwg.mxu0
        %v616 = vadd.f32 %v365, %v608
        %v617 = vadd.f32 %v366, %v610
        %v618 = vadd.f32 %v367, %v612
        %v619 = vadd.f32 %v368, %v614
        %620 = vst [vmem:[#allocation2] sm:$0xff] %v616
        %621 = vst [vmem:[#allocation2 + $0x8] sm:$0xff] %v617
        %622 = vst [vmem:[#allocation2 + $0x10] sm:$0xff] %v618
        %623 = vst [vmem:[#allocation2 + $0x18] sm:$0xff] %v619
        %p624 = scmp.eq.s32.totalorder %s22, 4
        // Predicated region
        $region79: #{resnet_trunk_forward.21} parent=69 // pred_check
          %p625 = pneg %p624
        $region80: #{resnet_trunk_forward.21} parent=69 // pred_check_branch
          %627 = sbr.rel (%p625) target = $region82
        $region81: #{resnet_trunk_forward.21} parent=69 // pred_region
          %v628 = vld [vmem:[#allocation2] sm:$0xff]
          %v629 = vld [vmem:[#allocation2 + $0x8] sm:$0xff]
          %v630 = vld [vmem:[#allocation2 + $0x10] sm:$0xff]
          %v631 = vld [vmem:[#allocation2 + $0x18] sm:$0xff]
          %v632 = vld [vmem:[%s338] sm:$0x3]
          %v634 = vlaneseq
          %v635 = vshrl.u32 %v634, 7
          %v636 = vsub.s32 0, %v635
          %v637 = vrot.slane %v632, %v636
          %v638 = vlaneseq
          %v639 = vshrl.u32 %v638, 7
          %v640 = vsub.s32 1, %v639
          %v641 = vrot.slane %v632, %v640
          %v644 = vmul.f32 %v628, %v637
          %v645 = vmul.f32 %v629, %v641
          %v646 = vmul.f32 %v630, %v637
          %v647 = vmul.f32 %v631, %v641
          %v648 = vld [vmem:[%s343] sm:$0x3]
          %v650 = vlaneseq
          %v651 = vshrl.u32 %v650, 7
          %v652 = vsub.s32 0, %v651
          %v653 = vrot.slane %v648, %v652
          %v654 = vlaneseq
          %v655 = vshrl.u32 %v654, 7
          %v656 = vsub.s32 1, %v655
          %v657 = vrot.slane %v648, %v656
          %v660 = vadd.f32 %v644, %v653
          %v661 = vadd.f32 %v645, %v657
          %v662 = vadd.f32 %v646, %v653
          %v663 = vadd.f32 %v647, %v657
          %v664 = vmax.f32 %v660, 0.0
          %v665 = vmax.f32 %v661, 0.0
          %v666 = vmax.f32 %v662, 0.0
          %v667 = vmax.f32 %v663, 0.0
          %668 = vst [vmem:[%s354] sm:$0xff] %v664
          %669 = vst [vmem:[%s354 + $0x8] sm:$0xff] %v665
          %670 = vst [vmem:[%s354 + $0x10] sm:$0xff] %v666
          %671 = vst [vmem:[%s354 + $0x18] sm:$0xff] %v667
        $region82: #{resnet_trunk_forward.21} parent=69 // pred_fallthru
          _
        %s672 = smul.u32 2, %s20
        %s673 = smul.u32 2, %s21
        %p674 = scmp.lt.s32.totalorder %s672, 1
        %s675 = scalar_select %p674, %s672, 1
        %p676 = scmp.lt.s32.totalorder %s673, 1
        %s677 = scalar_select %p676, %s673, 1
        %s678 = smul.addr %s675, 2
        %s679 = sadd.s32 %s677, %s678
        %s680 = smul.addr %s679, 8
        %s681 = scalar_lea.vmem %s4, %s680
        // Predicated region
        $region83: #{resnet_trunk_forward.21} parent=69 // pred_check
          %p682 = pneg %p162
        $region84: #{resnet_trunk_forward.21} parent=69 // pred_check_branch
          %684 = sbr.rel (%p682) target = $region86
        $region85: #{resnet_trunk_forward.21} parent=69 // pred_region
          %s685 = smul.u32 2, %s20
          %s686 = smul.u32 2, %s21
        $region86: #{resnet_trunk_forward.21} parent=69 // pred_fallthru
          _
        // Predicated region
        $region87: #{resnet_trunk_forward.21} parent=69 // pred_check
          %p687 = pneg %p162
        $region88: #{resnet_trunk_forward.21} parent=69 // pred_check_branch
          %689 = sbr.rel (%p687) target = $region90
        $region89: #{resnet_trunk_forward.21} parent=69 // pred_region
          %s690 = smul.u32 2, %s20
          %s691 = smul.u32 2, %s21
          %p692 = scmp.lt.s32.totalorder %s690, 1
          %s693 = scalar_select %p692, %s690, 1
          %p694 = scmp.lt.s32.totalorder %s691, 1
          %s695 = scalar_select %p694, %s691, 1
          %s696 = smul.addr %s693, 2
          %s697 = sadd.s32 %s695, %s696
          %s698 = smul.addr %s697, 8
          %s699 = scalar_lea.vmem %s4, %s698
        $region90: #{resnet_trunk_forward.21} parent=69 // pred_fallthru
          _
      $region70: #{resnet_trunk_forward.21} parent=5 // pred_fallthru
        _
      %p700 = scmp.le.s32.totalorder 2, %s10
      // Predicated region
      $region91: #{resnet_trunk_forward.21} parent=5 // pred_check
        %p701 = pneg %p700
      $region92: #{resnet_trunk_forward.21} parent=5 // pred_check_branch
        %703 = sbr.rel (%p701) target = $region94
      $region93: #{resnet_trunk_forward.21} parent=5 // pred_region
        %s704 = ssub.s32 %s10, 2
      $region94: #{resnet_trunk_forward.21} parent=5 // pred_fallthru
        _
    $region6: #{resnet_trunk_forward.21} parent=1 // loop_footer
      %s14 = sadd.s32 1, %s10
    $region7: #{resnet_trunk_forward.21} parent=1 // loop_footer_branch
      %9 = sbr.rel target = $region3
    $region8: #{resnet_trunk_forward.21} parent=1 // loop_exit
      _

// kernel: resnet_trunk_forward.20
$region0: #{resnet_trunk_forward.20}
  #allocation0 [shape = 'u32[]', space=smem, size = 0x4, offset = 0x4, fixed_abs, tag = 'smem constant byte address 0x4 - core index']
  #allocation1 [shape = 'u32[144,128]{1,0:T(1,128)}', space=vmem, size = 0x12000, scoped, tag = 'internal scratch']
  #allocation2 [shape = 'f32[16,256]{1,0:T(8,128)}', space=vmem, size = 0x4000, scoped, tag = 'scratch operand']
  %s0 = inlined_call_operand.vmem [shape: bf16[16,128], index: 0, kind: input, shape index: {}]
  %s1 = inlined_call_operand.vmem [shape: bf16[128,256], index: 1, kind: input, shape index: {}]
  %s2 = inlined_call_operand.vmem [shape: f32[1,256], index: 2, kind: input, shape index: {}]
  %s3 = inlined_call_operand.vmem [shape: f32[1,256], index: 3, kind: input, shape index: {}]
  %s4 = inlined_call_operand.vmem [shape: f32[16,256], index: 4, kind: output, shape index: {}]
  %s5 = sld [smem:[#allocation0]]
  $region34: #{resnet_trunk_forward.20} parent=0
    _
  %s7 = ssub.s32 1, %s5
  %s8 = scalar_select 0, %s7, %s5
  // Predicated region
  $region2: #{resnet_trunk_forward.20} parent=0 // pred_check
    _
  $region3: #{resnet_trunk_forward.20} parent=0 // pred_check_branch
    %10 = sbr.rel (0) target = $region5
  $region4: #{resnet_trunk_forward.20} parent=0 // pred_region
    _
  $region5: #{resnet_trunk_forward.20} parent=0 // pred_fallthru
    _
  // Predicated region
  $region6: #{resnet_trunk_forward.20} parent=0 // pred_check
    _
  $region7: #{resnet_trunk_forward.20} parent=0 // pred_check_branch
    %12 = sbr.rel (0) target = $region9
  $region8: #{resnet_trunk_forward.20} parent=0 // pred_region
    _
  $region9: #{resnet_trunk_forward.20} parent=0 // pred_fallthru
    _
  // Predicated region
  $region10: #{resnet_trunk_forward.20} parent=0 // pred_check
    _
  $region11: #{resnet_trunk_forward.20} parent=0 // pred_check_branch
    %14 = sbr.rel (0) target = $region13
  $region12: #{resnet_trunk_forward.20} parent=0 // pred_region
    _
  $region13: #{resnet_trunk_forward.20} parent=0 // pred_fallthru
    _
  // Predicated region
  $region14: #{resnet_trunk_forward.20} parent=0 // pred_check
    _
  $region15: #{resnet_trunk_forward.20} parent=0 // pred_check_branch
    %16 = sbr.rel (0) target = $region17
  $region16: #{resnet_trunk_forward.20} parent=0 // pred_region
    _
  $region17: #{resnet_trunk_forward.20} parent=0 // pred_fallthru
    _
  %p18 = scmp.eq.s32.totalorder 0, 0
  // Predicated region
  $region18: #{resnet_trunk_forward.20} parent=0 // pred_check
    %p19 = pneg %p18
  $region19: #{resnet_trunk_forward.20} parent=0 // pred_check_branch
    %21 = sbr.rel (%p19) target = $region21
  $region20: #{resnet_trunk_forward.20} parent=0 // pred_region
    %22 = vst [vmem:[#allocation2] sm:$0xff] 0.0
    %23 = vst [vmem:[#allocation2 + $0x8] sm:$0xff] 0.0
    %24 = vst [vmem:[#allocation2 + $0x10] sm:$0xff] 0.0
    %25 = vst [vmem:[#allocation2 + $0x18] sm:$0xff] 0.0
  $region21: #{resnet_trunk_forward.20} parent=0 // pred_fallthru
    _
  %v26 = vld [vmem:[#allocation2] sm:$0xff]
  %v27 = vld [vmem:[#allocation2 + $0x8] sm:$0xff]
  %v28 = vld [vmem:[#allocation2 + $0x10] sm:$0xff]
  %v29 = vld [vmem:[#allocation2 + $0x18] sm:$0xff]
  %v30 = vld [vmem:[%s0] sm:$0xf]
  %v31 = vld [vmem:[%s0 + $0x4] sm:$0xf]
  %v32 = vld [vmem:[%s1] sm:$0xff]
  %v33 = vld [vmem:[%s1 + $0x8] sm:$0xff]
  %v34 = vld [vmem:[%s1 + $0x10] sm:$0xff]
  %v35 = vld [vmem:[%s1 + $0x18] sm:$0xff]
  %v36 = vld [vmem:[%s1 + $0x20] sm:$0xff]
  %v37 = vld [vmem:[%s1 + $0x28] sm:$0xff]
  %v38 = vld [vmem:[%s1 + $0x30] sm:$0xff]
  %v39 = vld [vmem:[%s1 + $0x38] sm:$0xff]
  %v40 = vld [vmem:[%s1 + $0x40] sm:$0xff]
  %v41 = vld [vmem:[%s1 + $0x48] sm:$0xff]
  %v42 = vld [vmem:[%s1 + $0x50] sm:$0xff]
  %v43 = vld [vmem:[%s1 + $0x58] sm:$0xff]
  %v44 = vld [vmem:[%s1 + $0x60] sm:$0xff]
  %v45 = vld [vmem:[%s1 + $0x68] sm:$0xff]
  %v46 = vld [vmem:[%s1 + $0x70] sm:$0xff]
  %v47 = vld [vmem:[%s1 + $0x78] sm:$0xff]
  %v50 = vunpack.c.l.b16 %v30
  %v51 = vunpack.c.l.b16 %v31
  %v52 = vpack.c.b16 %v51, %v50
  %v70 = vunpack.c.l.b16 %v32
  %v71 = vunpack.c.h.b16 %v32
  %v72 = vunpack.c.l.b16 %v33
  %v73 = vunpack.c.h.b16 %v33
  %v74 = vunpack.c.l.b16 %v34
  %v75 = vunpack.c.h.b16 %v34
  %v76 = vunpack.c.l.b16 %v35
  %v77 = vunpack.c.h.b16 %v35
  %v78 = vunpack.c.l.b16 %v36
  %v79 = vunpack.c.h.b16 %v36
  %v80 = vunpack.c.l.b16 %v37
  %v81 = vunpack.c.h.b16 %v37
  %v82 = vunpack.c.l.b16 %v38
  %v83 = vunpack.c.h.b16 %v38
  %v84 = vunpack.c.l.b16 %v39
  %v85 = vunpack.c.h.b16 %v39
  %v86 = vunpack.c.l.b16 %v40
  %v87 = vunpack.c.h.b16 %v40
  %v88 = vunpack.c.l.b16 %v41
  %v89 = vunpack.c.h.b16 %v41
  %v90 = vunpack.c.l.b16 %v42
  %v91 = vunpack.c.h.b16 %v42
  %v92 = vunpack.c.l.b16 %v43
  %v93 = vunpack.c.h.b16 %v43
  %v94 = vunpack.c.l.b16 %v44
  %v95 = vunpack.c.h.b16 %v44
  %v96 = vunpack.c.l.b16 %v45
  %v97 = vunpack.c.h.b16 %v45
  %v98 = vunpack.c.l.b16 %v46
  %v99 = vunpack.c.h.b16 %v46
  %v100 = vunpack.c.l.b16 %v47
  %v101 = vunpack.c.h.b16 %v47
  %v102 = vpack.c.b16 %v72, %v70
  %v103 = vpack.c.b16 %v73, %v71
  %v104 = vpack.c.b16 %v76, %v74
  %v105 = vpack.c.b16 %v77, %v75
  %v106 = vpack.c.b16 %v80, %v78
  %v107 = vpack.c.b16 %v81, %v79
  %v108 = vpack.c.b16 %v84, %v82
  %v109 = vpack.c.b16 %v85, %v83
  %v110 = vpack.c.b16 %v88, %v86
  %v111 = vpack.c.b16 %v89, %v87
  %v112 = vpack.c.b16 %v92, %v90
  %v113 = vpack.c.b16 %v93, %v91
  %v114 = vpack.c.b16 %v96, %v94
  %v115 = vpack.c.b16 %v97, %v95
  %v116 = vpack.c.b16 %v100, %v98
  %v117 = vpack.c.b16 %v101, %v99
  %134 = vmatprep.subr.bf16.mxu0 %v117
  %135 = vmatpush1.bf16.msra.mxu0 %v116
  %136 = vmatprep.subr.bf16.mxu0 %v115
  %137 = vmatpush1.bf16.msra.mxu0 %v114
  %138 = vmatprep.subr.bf16.mxu0 %v113
  %139 = vmatpush1.bf16.msra.mxu0 %v112
  %140 = vmatprep.subr.bf16.mxu0 %v111
  %141 = vmatpush1.bf16.msra.mxu0 %v110
  %142 = vmatprep.subr.bf16.mxu0 %v109
  %143 = vmatpush1.bf16.msra.mxu0 %v108
  %144 = vmatprep.subr.bf16.mxu0 %v107
  %145 = vmatpush1.bf16.msra.mxu0 %v106
  %146 = vmatprep.subr.bf16.mxu0 %v105
  %147 = vmatpush1.bf16.msra.mxu0 %v104
  %148 = vmatprep.subr.bf16.mxu0 %v103
  %149 = vmatpush1.bf16.msra.mxu0 %v102
  %150 = vmatprep.subr.bf16.mxu0 0
  %151 = vmatpush2.bf16.msra.mxu0 0
  %152 = vmatprep.subr.bf16.mxu0 0
  %153 = vmatpush2.bf16.msra.mxu0 0
  %154 = vmatprep.subr.bf16.mxu0 0
  %155 = vmatpush2.bf16.msra.mxu0 0
  %156 = vmatprep.subr.bf16.mxu0 0
  %157 = vmatpush2.bf16.msra.mxu0 0
  %158 = vmatprep.subr.bf16.mxu0 0
  %159 = vmatpush2.bf16.msra.mxu0 0
  %160 = vmatprep.subr.bf16.mxu0 0
  %161 = vmatpush2.bf16.msra.mxu0 0
  %162 = vmatprep.subr.bf16.mxu0 0
  %163 = vmatpush2.bf16.msra.mxu0 0
  %164 = vmatprep.subr.bf16.mxu0 0
  %165 = vmatpush2.bf16.msra.mxu0 0
  %166 = vmatprep.mubr.bf16.mxu0 0
  %167 = vmatmul.mubr.bf16.gmra.mxu0 %v52
  %v168 = vpop.f32.mrf.mxu0
  %v169 = vadd.f32 0.0, %v168
  %v170 = vpop.f32.mrf.mxu0
  %v171 = vadd.f32 0.0, %v170
  %v172 = vpop.f32.mrf.mxu0
  %v173 = vadd.f32 0.0, %v172
  %v174 = vpop.f32.mrf.mxu0
  %v175 = vadd.f32 0.0, %v174
  %176 = vdwg.mxu0
  %v177 = vadd.f32 %v26, %v169
  %v178 = vadd.f32 %v27, %v171
  %v179 = vadd.f32 %v28, %v173
  %v180 = vadd.f32 %v29, %v175
  %181 = vst [vmem:[#allocation2] sm:$0xff] %v177
  %182 = vst [vmem:[#allocation2 + $0x8] sm:$0xff] %v178
  %183 = vst [vmem:[#allocation2 + $0x10] sm:$0xff] %v179
  %184 = vst [vmem:[#allocation2 + $0x18] sm:$0xff] %v180
  // Predicated region
  $region22: #{resnet_trunk_forward.20} parent=0 // pred_check
    %p185 = pneg %p18
  $region23: #{resnet_trunk_forward.20} parent=0 // pred_check_branch
    %187 = sbr.rel (%p185) target = $region25
  $region24: #{resnet_trunk_forward.20} parent=0 // pred_region
    %v188 = vld [vmem:[#allocation2] sm:$0xff]
    %v189 = vld [vmem:[#allocation2 + $0x8] sm:$0xff]
    %v190 = vld [vmem:[#allocation2 + $0x10] sm:$0xff]
    %v191 = vld [vmem:[#allocation2 + $0x18] sm:$0xff]
    %v192 = vld [vmem:[%s2] sm:$0x3]
    %v194 = vlaneseq
    %v195 = vshrl.u32 %v194, 7
    %v196 = vsub.s32 0, %v195
    %v197 = vrot.slane %v192, %v196
    %v198 = vlaneseq
    %v199 = vshrl.u32 %v198, 7
    %v200 = vsub.s32 1, %v199
    %v201 = vrot.slane %v192, %v200
    %v204 = vmul.f32 %v188, %v197
    %v205 = vmul.f32 %v189, %v201
    %v206 = vmul.f32 %v190, %v197
    %v207 = vmul.f32 %v191, %v201
    %v208 = vld [vmem:[%s3] sm:$0x3]
    %v210 = vlaneseq
    %v211 = vshrl.u32 %v210, 7
    %v212 = vsub.s32 0, %v211
    %v213 = vrot.slane %v208, %v212
    %v214 = vlaneseq
    %v215 = vshrl.u32 %v214, 7
    %v216 = vsub.s32 1, %v215
    %v217 = vrot.slane %v208, %v216
    %v220 = vadd.f32 %v204, %v213
    %v221 = vadd.f32 %v205, %v217
    %v222 = vadd.f32 %v206, %v213
    %v223 = vadd.f32 %v207, %v217
    %224 = vst [vmem:[%s4] sm:$0xff] %v220
    %225 = vst [vmem:[%s4 + $0x8] sm:$0xff] %v221
    %226 = vst [vmem:[%s4 + $0x10] sm:$0xff] %v222
    %227 = vst [vmem:[%s4 + $0x18] sm:$0xff] %v223
  $region25: #{resnet_trunk_forward.20} parent=0 // pred_fallthru
    _
  // Predicated region
  $region26: #{resnet_trunk_forward.20} parent=0 // pred_check
    _
  $region27: #{resnet_trunk_forward.20} parent=0 // pred_check_branch
    %229 = sbr.rel (0) target = $region29
  $region28: #{resnet_trunk_forward.20} parent=0 // pred_region
    _
  $region29: #{resnet_trunk_forward.20} parent=0 // pred_fallthru
    _
  // Predicated region
  $region30: #{resnet_trunk_forward.20} parent=0 // pred_check
    _
  $region31: #{resnet_trunk_forward.20} parent=0 // pred_check_branch
    %231 = sbr.rel (0) target = $region33
  $region32: #{resnet_trunk_forward.20} parent=0 // pred_region
    _
  $region33: #{resnet_trunk_forward.20} parent=0 // pred_fallthru
    _

// kernel: resnet_trunk_forward.22
$region0: #{resnet_trunk_forward.22}
  #allocation0 [shape = 'u32[]', space=smem, size = 0x4, offset = 0x4, fixed_abs, tag = 'smem constant byte address 0x4 - core index']
  #allocation1 [shape = 'u32[144,128]{1,0:T(1,128)}', space=vmem, size = 0x12000, scoped, tag = 'internal scratch']
  #allocation2 [shape = 'f32[16,256]{1,0:T(8,128)}', space=vmem, size = 0x4000, scoped, tag = 'scratch operand']
  %s0 = inlined_call_operand.vmem [shape: bf16[16,2304], index: 0, kind: input, shape index: {}]
  %s1 = inlined_call_operand.vmem [shape: bf16[2304,256], index: 1, kind: input, shape index: {}]
  %s2 = inlined_call_operand.vmem [shape: f32[1,256], index: 2, kind: input, shape index: {}]
  %s3 = inlined_call_operand.vmem [shape: f32[1,256], index: 3, kind: input, shape index: {}]
  %s4 = inlined_call_operand.vmem [shape: f32[16,256], index: 4, kind: input, shape index: {}]
  %s5 = inlined_call_operand.vmem [shape: f32[16,256], index: 5, kind: output, shape index: {}]
  %s6 = sld [smem:[#allocation0]]
  $region99: #{resnet_trunk_forward.22} parent=0
    _
  %s8 = ssub.s32 1, %s6
  %s9 = scalar_select 0, %s8, %s6
  $region1: #{resnet_trunk_forward.22} parent=0
    #allocation3 [shape = 'u8[16384]{0}', space=vmem, size = 0x4000, scoped, tag = 'input window, operand 0']
    loop: start=0, step=1, limit=11
    $region2: #{resnet_trunk_forward.22} parent=1 // loop_pre_header
      _
    $region3: #{resnet_trunk_forward.22} parent=1 // loop_header
      %s11 = sphi 0, %s15
      %p12 = scmp.ge.s32.totalorder %s11, 11
      %s18 = sphi 0, %s37
      %s19 = sphi 0, %s33
      %s20 = sphi 0, %s29
      %s21 = sphi 0, %s18
      %s22 = sphi 0, %s19
      %s23 = sphi 0, %s20
      %s24 = sphi 0, %s21
      %s25 = sphi 0, %s22
      %s26 = sphi 0, %s23
      %s42 = sphi 0, %s44
      %s45 = sphi 0, %s42
      %s46 = sphi 0, %s45
      %s62 = sphi 0, %s46
      %s70 = sphi 0, %s72
      %s73 = sphi 0, %s70
      %s74 = sphi 0, %s73
      %s90 = sphi 0, %s74
      %s96 = sphi 0, %s98
      %s99 = sphi 0, %s96
      %s100 = sphi 0, %s99
      %s116 = sphi 0, %s100
      %s122 = sphi 0, %s124
      %s125 = sphi 0, %s122
      %s126 = sphi 0, %s125
      %s142 = sphi 0, %s126
      %s150 = sphi 0, %s152
      %s153 = sphi 0, %s150
      %s154 = sphi 0, %s153
      %s170 = sphi 0, %s154
      %s178 = sphi 0, %s180
      %s181 = sphi 0, %s178
      %s182 = sphi 0, %s181
      %s198 = sphi 0, %s182
    $region4: #{resnet_trunk_forward.22} parent=1 // loop_header_branch
      %14 = sbr.rel (%p12) target = $region8
    $region5: #{resnet_trunk_forward.22} parent=1 // loop_body
      %s16 = ssub.s32 %s11, 1
      %s17 = ssub.s32 %s11, 2
      %s27 = sadd.s32 1, %s20
      %p28 = scmp.ge.s32.totalorder %s27, 9
      %s29 = scalar_select %p28, 0, %s27
      %s30 = sadd.s32 1, %s19
      %s31 = scalar_select %p28, %s30, %s19
      %p32 = scmp.ge.s32.totalorder %s31, 1
      %s33 = scalar_select %p32, 0, %s31
      %s34 = sadd.s32 1, %s18
      %s35 = scalar_select %p32, %s34, %s18
      %p36 = scmp.ge.s32.totalorder %s35, 1
      %s37 = scalar_select %p36, 0, %s35
      %s38 = ssub.s32 %s18, %s37
      %s39 = ssub.s32 %s20, %s29
      %s40 = sor.u32 %s38, %s39
      %p41 = scmp.eq.s32.totalorder %s40, 0
      %s43 = sadd.s32 %s42, 1
      %s44 = scalar_select %p41, %s42, %s43
      %p47 = pneg %p41
      %p48 = scmp.eq.s32.totalorder %s11, 8
      %p49 = por %p47, %p48
      %p50 = scmp.ne.s32.totalorder %s42, %s45
      %p51 = scmp.eq.s32.totalorder %s11, 0
      %p52 = por %p50, %p51
      %p53 = scmp.ne.s32.totalorder %s42, %s45
      %p54 = scmp.eq.s32.totalorder %s16, 8
      %p55 = por %p53, %p54
      %p56 = scmp.ne.s32.totalorder %s45, %s46
      %p57 = scmp.eq.s32.totalorder %s16, 0
      %p58 = por %p56, %p57
      %p59 = scmp.ne.s32.totalorder %s45, %s46
      %p60 = scmp.eq.s32.totalorder %s17, 8
      %p61 = por %p59, %p60
      %p63 = scmp.ne.s32.totalorder %s46, %s62
      %p64 = scmp.eq.s32.totalorder %s17, 0
      %p65 = por %p63, %p64
      %s66 = ssub.s32 %s20, %s29
      %s67 = ssub.s32 %s19, %s33
      %s68 = sor.u32 %s66, %s67
      %p69 = scmp.eq.s32.totalorder %s68, 0
      %s71 = sadd.s32 %s70, 1
      %s72 = scalar_select %p69, %s70, %s71
      %p75 = pneg %p69
      %p76 = scmp.eq.s32.totalorder %s11, 8
      %p77 = por %p75, %p76
      %p78 = scmp.ne.s32.totalorder %s70, %s73
      %p79 = scmp.eq.s32.totalorder %s11, 0
      %p80 = por %p78, %p79
      %p81 = scmp.ne.s32.totalorder %s70, %s73
      %p82 = scmp.eq.s32.totalorder %s16, 8
      %p83 = por %p81, %p82
      %p84 = scmp.ne.s32.totalorder %s73, %s74
      %p85 = scmp.eq.s32.totalorder %s16, 0
      %p86 = por %p84, %p85
      %p87 = scmp.ne.s32.totalorder %s73, %s74
      %p88 = scmp.eq.s32.totalorder %s17, 8
      %p89 = por %p87, %p88
      %p91 = scmp.ne.s32.totalorder %s74, %s90
      %p92 = scmp.eq.s32.totalorder %s17, 0
      %p93 = por %p91, %p92
      %s94 = ssub.s32 %s19, %s33
      %p95 = scmp.eq.s32.totalorder %s94, 0
      %s97 = sadd.s32 %s96, 1
      %s98 = scalar_select %p95, %s96, %s97
      %p101 = pneg %p95
      %p102 = scmp.eq.s32.totalorder %s11, 8
      %p103 = por %p101, %p102
      %p104 = scmp.ne.s32.totalorder %s96, %s99
      %p105 = scmp.eq.s32.totalorder %s11, 0
      %p106 = por %p104, %p105
      %p107 = scmp.ne.s32.totalorder %s96, %s99
      %p108 = scmp.eq.s32.totalorder %s16, 8
      %p109 = por %p107, %p108
      %p110 = scmp.ne.s32.totalorder %s99, %s100
      %p111 = scmp.eq.s32.totalorder %s16, 0
      %p112 = por %p110, %p111
      %p113 = scmp.ne.s32.totalorder %s99, %s100
      %p114 = scmp.eq.s32.totalorder %s17, 8
      %p115 = por %p113, %p114
      %p117 = scmp.ne.s32.totalorder %s100, %s116
      %p118 = scmp.eq.s32.totalorder %s17, 0
      %p119 = por %p117, %p118
      %s120 = ssub.s32 %s19, %s33
      %p121 = scmp.eq.s32.totalorder %s120, 0
      %s123 = sadd.s32 %s122, 1
      %s124 = scalar_select %p121, %s122, %s123
      %p127 = pneg %p121
      %p128 = scmp.eq.s32.totalorder %s11, 8
      %p129 = por %p127, %p128
      %p130 = scmp.ne.s32.totalorder %s122, %s125
      %p131 = scmp.eq.s32.totalorder %s11, 0
      %p132 = por %p130, %p131
      %p133 = scmp.ne.s32.totalorder %s122, %s125
      %p134 = scmp.eq.s32.totalorder %s16, 8
      %p135 = por %p133, %p134
      %p136 = scmp.ne.s32.totalorder %s125, %s126
      %p137 = scmp.eq.s32.totalorder %s16, 0
      %p138 = por %p136, %p137
      %p139 = scmp.ne.s32.totalorder %s125, %s126
      %p140 = scmp.eq.s32.totalorder %s17, 8
      %p141 = por %p139, %p140
      %p143 = scmp.ne.s32.totalorder %s126, %s142
      %p144 = scmp.eq.s32.totalorder %s17, 0
      %p145 = por %p143, %p144
      %s146 = ssub.s32 %s18, %s37
      %s147 = ssub.s32 %s19, %s33
      %s148 = sor.u32 %s146, %s147
      %p149 = scmp.eq.s32.totalorder %s148, 0
      %s151 = sadd.s32 %s150, 1
      %s152 = scalar_select %p149, %s150, %s151
      %p155 = pneg %p149
      %p156 = scmp.eq.s32.totalorder %s11, 8
      %p157 = por %p155, %p156
      %p158 = scmp.ne.s32.totalorder %s150, %s153
      %p159 = scmp.eq.s32.totalorder %s11, 0
      %p160 = por %p158, %p159
      %p161 = scmp.ne.s32.totalorder %s150, %s153
      %p162 = scmp.eq.s32.totalorder %s16, 8
      %p163 = por %p161, %p162
      %p164 = scmp.ne.s32.totalorder %s153, %s154
      %p165 = scmp.eq.s32.totalorder %s16, 0
      %p166 = por %p164, %p165
      %p167 = scmp.ne.s32.totalorder %s153, %s154
      %p168 = scmp.eq.s32.totalorder %s17, 8
      %p169 = por %p167, %p168
      %p171 = scmp.ne.s32.totalorder %s154, %s170
      %p172 = scmp.eq.s32.totalorder %s17, 0
      %p173 = por %p171, %p172
      %s174 = ssub.s32 %s18, %s37
      %s175 = ssub.s32 %s19, %s33
      %s176 = sor.u32 %s174, %s175
      %p177 = scmp.eq.s32.totalorder %s176, 0
      %s179 = sadd.s32 %s178, 1
      %s180 = scalar_select %p177, %s178, %s179
      %p183 = pneg %p177
      %p184 = scmp.eq.s32.totalorder %s11, 8
      %p185 = por %p183, %p184
      %p186 = scmp.ne.s32.totalorder %s178, %s181
      %p187 = scmp.eq.s32.totalorder %s11, 0
      %p188 = por %p186, %p187
      %p189 = scmp.ne.s32.totalorder %s178, %s181
      %p190 = scmp.eq.s32.totalorder %s16, 8
      %p191 = por %p189, %p190
      %p192 = scmp.ne.s32.totalorder %s181, %s182
      %p193 = scmp.eq.s32.totalorder %s16, 0
      %p194 = por %p192, %p193
      %p195 = scmp.ne.s32.totalorder %s181, %s182
      %p196 = scmp.eq.s32.totalorder %s17, 8
      %p197 = por %p195, %p196
      %p199 = scmp.ne.s32.totalorder %s182, %s198
      %p200 = scmp.eq.s32.totalorder %s17, 0
      %p201 = por %p199, %p200
      %p202 = scmp.le.s32.totalorder 1, %s11
      %p203 = scmp.lt.s32.totalorder %s11, 10
      %p204 = pnand %p202, %p203
      %p205 = pneg %p204
      // Predicated region
      $region9: #{resnet_trunk_forward.22} parent=5 // pred_check
        _
      $region10: #{resnet_trunk_forward.22} parent=5 // pred_check_branch
        %207 = sbr.rel (%p204) target = $region12
      $region11: #{resnet_trunk_forward.22} parent=5 // pred_region
        %s208 = ssub.s32 %s11, 1
        // Predicated region
        $region13: #{resnet_trunk_forward.22} parent=11 // pred_check
          %p209 = pneg %p112
        $region14: #{resnet_trunk_forward.22} parent=11 // pred_check_branch
          %211 = sbr.rel (%p209) target = $region16
        $region15: #{resnet_trunk_forward.22} parent=11 // pred_region
          %s212 = smul.u32 2, %s22
          %p213 = scmp.lt.s32.totalorder %s212, 1
          %s214 = scalar_select %p213, %s212, 1
          %s215 = scalar_lea.vmem %s2, %s214
          %s216 = smul.u32 2, %s22
        $region16: #{resnet_trunk_forward.22} parent=11 // pred_fallthru
          _
        // Predicated region
        $region17: #{resnet_trunk_forward.22} parent=11 // pred_check
          %p217 = pneg %p138
        $region18: #{resnet_trunk_forward.22} parent=11 // pred_check_branch
          %219 = sbr.rel (%p217) target = $region20
        $region19: #{resnet_trunk_forward.22} parent=11 // pred_region
          %s220 = smul.u32 2, %s22
          %p221 = scmp.lt.s32.totalorder %s220, 1
          %s222 = scalar_select %p221, %s220, 1
          %s223 = scalar_lea.vmem %s3, %s222
          %s224 = smul.u32 2, %s22
        $region20: #{resnet_trunk_forward.22} parent=11 // pred_fallthru
          _
        // Predicated region
        $region21: #{resnet_trunk_forward.22} parent=11 // pred_check
          %p225 = pneg %p166
        $region22: #{resnet_trunk_forward.22} parent=11 // pred_check_branch
          %227 = sbr.rel (%p225) target = $region24
        $region23: #{resnet_trunk_forward.22} parent=11 // pred_region
          %s228 = smul.u32 2, %s21
          %s229 = smul.u32 2, %s22
          %p230 = scmp.lt.s32.totalorder %s228, 1
          %s231 = scalar_select %p230, %s228, 1
          %p232 = scmp.lt.s32.totalorder %s229, 1
          %s233 = scalar_select %p232, %s229, 1
          %s234 = smul.addr %s231, 2
          %s235 = sadd.s32 %s233, %s234
          %s236 = smul.addr %s235, 8
          %s237 = scalar_lea.vmem %s4, %s236
          %s238 = smul.u32 2, %s21
          %s239 = smul.u32 2, %s22
        $region24: #{resnet_trunk_forward.22} parent=11 // pred_fallthru
          _
      $region12: #{resnet_trunk_forward.22} parent=5 // pred_fallthru
        _
      %p240 = scmp.lt.s32.totalorder %s11, 9
      // Predicated region
      $region25: #{resnet_trunk_forward.22} parent=5 // pred_check
        %p241 = pneg %p240
      $region26: #{resnet_trunk_forward.22} parent=5 // pred_check_branch
        %243 = sbr.rel (%p241) target = $region28
      $region27: #{resnet_trunk_forward.22} parent=5 // pred_region
        // Predicated region
        $region29: #{resnet_trunk_forward.22} parent=27 // pred_check
          %p244 = pneg %p52
        $region30: #{resnet_trunk_forward.22} parent=27 // pred_check_branch
          %246 = sbr.rel (%p244) target = $region32
        $region31: #{resnet_trunk_forward.22} parent=27 // pred_region
          %s247 = sand.u32 %s42, 1
          %s248 = sand.u32 %s42, 1
          %s249 = smul.addr %s248, 16
          %s250 = scalar_lea.vmem [#allocation3], %s249
          %s251 = smul.u32 2, %s18
          %s252 = smul.u32 2, %s20
          %s253 = smul.addr %s251, 18
          %s254 = sadd.s32 %s252, %s253
          %s255 = smul.addr %s254, 4
          %s256 = scalar_lea.vmem %s0, %s255
          // Predicated region
          $region33: #{resnet_trunk_forward.22} parent=31 // pred_check
            _
          $region34: #{resnet_trunk_forward.22} parent=31 // pred_check_branch
            %258 = sbr.rel (0) target = $region36
          $region35: #{resnet_trunk_forward.22} parent=31 // pred_region
            // Predicated region
            $region37: #{resnet_trunk_forward.22} parent=35 // pred_check
              _
            $region38: #{resnet_trunk_forward.22} parent=35 // pred_check_branch
              %260 = sbr.rel (0) target = $region40
            $region39: #{resnet_trunk_forward.22} parent=35 // pred_region
              // Predicated region
              $region52: #{resnet_trunk_forward.22} parent=39 // pred_check
                _
              $region53: #{resnet_trunk_forward.22} parent=39 // pred_check_branch
                %278 = sbr.rel (0) target = $region55
              $region54: #{resnet_trunk_forward.22} parent=39 // pred_region
                loop: start=0, step=1, limit=1
                $region56: #{resnet_trunk_forward.22} parent=54 // loop_pre_header
                  _
                $region57: #{resnet_trunk_forward.22} parent=54 // loop_header
                  %s280 = sphi 0, %s284
                  %p281 = scmp.ge.s32.totalorder %s280, 1
                  %s285 = sphi %s256, %s256
                  %s286 = sphi %s250, %s250
                $region58: #{resnet_trunk_forward.22} parent=54 // loop_header_branch
                  %283 = sbr.rel (%p281) target = $region62
                $region59: #{resnet_trunk_forward.22} parent=54 // loop_body
                  %v287 = vld [vmem:[%s285] sm:$0xff]
                  %288 = vst [vmem:[%s286] sm:$0xff] %v287
                  %v289 = vld [vmem:[%s285 + $0x48] sm:$0xff]
                  %290 = vst [vmem:[%s286 + $0x8] sm:$0xff] %v289
                $region60: #{resnet_trunk_forward.22} parent=54 // loop_footer
                  %s284 = sadd.s32 1, %s280
                $region61: #{resnet_trunk_forward.22} parent=54 // loop_footer_branch
                  %279 = sbr.rel target = $region57
                $region62: #{resnet_trunk_forward.22} parent=54 // loop_exit
                  _
              $region55: #{resnet_trunk_forward.22} parent=39 // pred_fallthru
                _
              // Predicated region
              $region63: #{resnet_trunk_forward.22} parent=39 // pred_check
                _
              $region64: #{resnet_trunk_forward.22} parent=39 // pred_check_branch
                %292 = sbr.rel target = $region66
              $region65: #{resnet_trunk_forward.22} parent=39 // pred_region
                _
              $region66: #{resnet_trunk_forward.22} parent=39 // pred_fallthru
                _
            $region40: #{resnet_trunk_forward.22} parent=35 // pred_fallthru
              _
            // Predicated region
            $region41: #{resnet_trunk_forward.22} parent=35 // pred_check
              _
            $region42: #{resnet_trunk_forward.22} parent=35 // pred_check_branch
              %262 = sbr.rel target = $region44
            $region43: #{resnet_trunk_forward.22} parent=35 // pred_region
              %s264 = ssub.s32 256, 1
              loop: start=0, step=1, limit=1
              $region45: #{resnet_trunk_forward.22} parent=43 // loop_pre_header
                _
              $region46: #{resnet_trunk_forward.22} parent=43 // loop_header
                %s266 = sphi 0, %s270
                %p267 = scmp.ge.s32.totalorder %s266, 1
                %s271 = sphi %s256, %s256
                %s272 = sphi %s250, %s250
              $region47: #{resnet_trunk_forward.22} parent=43 // loop_header_branch
                %269 = sbr.rel (%p267) target = $region51
              $region48: #{resnet_trunk_forward.22} parent=43 // loop_body
                %v273 = vld [vmem:[%s271] sm:%s264]
                %274 = vst [vmem:[%s272] sm:%s264] %v273
                %v275 = vld [vmem:[%s271 + $0x48] sm:%s264]
                %276 = vst [vmem:[%s272 + $0x8] sm:%s264] %v275
              $region49: #{resnet_trunk_forward.22} parent=43 // loop_footer
                %s270 = sadd.s32 1, %s266
              $region50: #{resnet_trunk_forward.22} parent=43 // loop_footer_branch
                %265 = sbr.rel target = $region46
              $region51: #{resnet_trunk_forward.22} parent=43 // loop_exit
                _
            $region44: #{resnet_trunk_forward.22} parent=35 // pred_fallthru
              _
          $region36: #{resnet_trunk_forward.22} parent=31 // pred_fallthru
            _
          %293 = vnop
        $region32: #{resnet_trunk_forward.22} parent=27 // pred_fallthru
          _
        // Predicated region
        $region67: #{resnet_trunk_forward.22} parent=27 // pred_check
          %p294 = pneg %p80
        $region68: #{resnet_trunk_forward.22} parent=27 // pred_check_branch
          %296 = sbr.rel (%p294) target = $region70
        $region69: #{resnet_trunk_forward.22} parent=27 // pred_region
          %s297 = smul.u32 32, %s20
          %s298 = smul.u32 2, %s19
          %p299 = scmp.lt.s32.totalorder %s297, 287
          %s300 = scalar_select %p299, %s297, 287
          %p301 = scmp.lt.s32.totalorder %s298, 1
          %s302 = scalar_select %p301, %s298, 1
          %s303 = smul.addr %s300, 2
          %s304 = sadd.s32 %s302, %s303
          %s305 = smul.addr %s304, 4
          %s306 = scalar_lea.vmem %s1, %s305
          %s307 = smul.u32 32, %s20
          %s308 = smul.u32 2, %s19
        $region70: #{resnet_trunk_forward.22} parent=27 // pred_fallthru
          _
      $region28: #{resnet_trunk_forward.22} parent=5 // pred_fallthru
        _
      %p309 = scmp.le.s32.totalorder 1, %s11
      %p310 = scmp.lt.s32.totalorder %s11, 10
      %p311 = pnand %p309, %p310
      %p312 = pneg %p311
      // Predicated region
      $region71: #{resnet_trunk_forward.22} parent=5 // pred_check
        _
      $region72: #{resnet_trunk_forward.22} parent=5 // pred_check_branch
        %314 = sbr.rel (%p311) target = $region74
      $region73: #{resnet_trunk_forward.22} parent=5 // pred_region
        %s315 = ssub.s32 %s11, 1
        %s316 = sand.u32 %s45, 1
        %s317 = sand.u32 %s45, 1
        %s318 = smul.addr %s317, 16
        %s319 = scalar_lea.vmem [#allocation3], %s318
        // Predicated region
        $region75: #{resnet_trunk_forward.22} parent=73 // pred_check
          %p320 = pneg %p58
        $region76: #{resnet_trunk_forward.22} parent=73 // pred_check_branch
          %322 = sbr.rel (%p320) target = $region78
        $region77: #{resnet_trunk_forward.22} parent=73 // pred_region
          _
        $region78: #{resnet_trunk_forward.22} parent=73 // pred_fallthru
          _
        %s323 = sand.u32 %s45, 1
        %s324 = sand.u32 %s45, 1
        %s325 = smul.addr %s324, 16
        %s326 = scalar_lea.vmem [#allocation3], %s325
        %p327 = pneg %p58
        %p328 = pneg %p55
        %s329 = smul.u32 32, %s23
        %s330 = smul.u32 2, %s22
        %p331 = scmp.lt.s32.totalorder %s329, 287
        %s332 = scalar_select %p331, %s329, 287
        %p333 = scmp.lt.s32.totalorder %s330, 1
        %s334 = scalar_select %p333, %s330, 1
        %s335 = smul.addr %s332, 2
        %s336 = sadd.s32 %s334, %s335
        %s337 = smul.addr %s336, 4
        %s338 = scalar_lea.vmem %s1, %s337
        %p339 = pneg %p86
        %p340 = pneg %p83
        %s341 = smul.u32 2, %s22
        %p342 = scmp.lt.s32.totalorder %s341, 1
        %s343 = scalar_select %p342, %s341, 1
        %s344 = scalar_lea.vmem %s2, %s343
        %p345 = pneg %p112
        %p346 = pneg %p109
        %s347 = smul.u32 2, %s22
        %p348 = scmp.lt.s32.totalorder %s347, 1
        %s349 = scalar_select %p348, %s347, 1
        %s350 = scalar_lea.vmem %s3, %s349
        %p351 = pneg %p138
        %p352 = pneg %p135
        %s353 = smul.u32 2, %s21
        %s354 = smul.u32 2, %s22
        %p355 = scmp.lt.s32.totalorder %s353, 1
        %s356 = scalar_select %p355, %s353, 1
        %p357 = scmp.lt.s32.totalorder %s354, 1
        %s358 = scalar_select %p357, %s354, 1
        %s359 = smul.addr %s356, 2
        %s360 = sadd.s32 %s358, %s359
        %s361 = smul.addr %s360, 8
        %s362 = scalar_lea.vmem %s4, %s361
        %p363 = pneg %p166
        %p364 = pneg %p163
        %p365 = pneg %p194
        %p366 = pneg %p191
        %s367 = smul.u32 2, %s21
        %s368 = smul.u32 2, %s22
        %p369 = scmp.lt.s32.totalorder %s367, 1
        %s370 = scalar_select %p369, %s367, 1
        %p371 = scmp.lt.s32.totalorder %s368, 1
        %s372 = scalar_select %p371, %s368, 1
        %s373 = smul.addr %s370, 2
        %s374 = sadd.s32 %s372, %s373
        %s375 = smul.addr %s374, 8
        %s376 = scalar_lea.vmem %s5, %s375
        %s377 = smul.u32 2, %s21
        %s378 = smul.u32 2, %s23
        %s379 = smul.u32 32, %s23
        %s380 = smul.u32 2, %s22
        %p381 = scmp.lt.s32.totalorder %s379, 287
        %s382 = scalar_select %p381, %s379, 287
        %p383 = scmp.lt.s32.totalorder %s380, 1
        %s384 = scalar_select %p383, %s380, 1
        %s385 = smul.addr %s382, 2
        %s386 = sadd.s32 %s384, %s385
        %s387 = smul.addr %s386, 4
        %s388 = scalar_lea.vmem %s1, %s387
        %s389 = smul.u32 32, %s23
        %s390 = smul.u32 2, %s22
        %s391 = smul.u32 2, %s22
        %p392 = scmp.lt.s32.totalorder %s391, 1
        %s393 = scalar_select %p392, %s391, 1
        %s394 = scalar_lea.vmem %s2, %s393
        %s395 = smul.u32 2, %s22
        %s396 = smul.u32 2, %s22
        %p397 = scmp.lt.s32.totalorder %s396, 1
        %s398 = scalar_select %p397, %s396, 1
        %s399 = scalar_lea.vmem %s3, %s398
        %s400 = smul.u32 2, %s22
        %s401 = smul.u32 2, %s21
        %s402 = smul.u32 2, %s22
        %p403 = scmp.lt.s32.totalorder %s401, 1
        %s404 = scalar_select %p403, %s401, 1
        %p405 = scmp.lt.s32.totalorder %s402, 1
        %s406 = scalar_select %p405, %s402, 1
        %s407 = smul.addr %s404, 2
        %s408 = sadd.s32 %s406, %s407
        %s409 = smul.addr %s408, 8
        %s410 = scalar_lea.vmem %s4, %s409
        %s411 = smul.u32 2, %s21
        %s412 = smul.u32 2, %s22
        %s413 = smul.u32 2, %s21
        %s414 = smul.u32 2, %s22
        %p415 = scmp.lt.s32.totalorder %s413, 1
        %s416 = scalar_select %p415, %s413, 1
        %p417 = scmp.lt.s32.totalorder %s414, 1
        %s418 = scalar_select %p417, %s414, 1
        %s419 = smul.addr %s416, 2
        %s420 = sadd.s32 %s418, %s419
        %s421 = smul.addr %s420, 8
        %s422 = scalar_lea.vmem %s5, %s421
        %s423 = smul.u32 2, %s21
        %s424 = smul.u32 2, %s22
        %p425 = scmp.eq.s32.totalorder %s23, 0
        // Predicated region
        $region79: #{resnet_trunk_forward.22} parent=73 // pred_check
          %p426 = pneg %p425
        $region80: #{resnet_trunk_forward.22} parent=73 // pred_check_branch
          %428 = sbr.rel (%p426) target = $region82
        $region81: #{resnet_trunk_forward.22} parent=73 // pred_region
          %429 = vst [vmem:[#allocation2] sm:$0xff] 0.0
          %430 = vst [vmem:[#allocation2 + $0x8] sm:$0xff] 0.0
          %431 = vst [vmem:[#allocation2 + $0x10] sm:$0xff] 0.0
          %432 = vst [vmem:[#allocation2 + $0x18] sm:$0xff] 0.0
        $region82: #{resnet_trunk_forward.22} parent=73 // pred_fallthru
          _
        %v433 = vld [vmem:[#allocation2] sm:$0xff]
        %v434 = vld [vmem:[#allocation2 + $0x8] sm:$0xff]
        %v435 = vld [vmem:[#allocation2 + $0x10] sm:$0xff]
        %v436 = vld [vmem:[#allocation2 + $0x18] sm:$0xff]
        %v437 = vld [vmem:[%s319] sm:$0xff]
        %v438 = vld [vmem:[%s319 + $0x8] sm:$0xff]
        %v439 = vld [vmem:[%s388] sm:$0xff]
        %v440 = vld [vmem:[%s388 + $0x8] sm:$0xff]
        %v441 = vld [vmem:[%s388 + $0x10] sm:$0xff]
        %v442 = vld [vmem:[%s388 + $0x18] sm:$0xff]
        %v443 = vld [vmem:[%s388 + $0x20] sm:$0xff]
        %v444 = vld [vmem:[%s388 + $0x28] sm:$0xff]
        %v445 = vld [vmem:[%s388 + $0x30] sm:$0xff]
        %v446 = vld [vmem:[%s388 + $0x38] sm:$0xff]
        %v447 = vld [vmem:[%s388 + $0x40] sm:$0xff]
        %v448 = vld [vmem:[%s388 + $0x48] sm:$0xff]
        %v449 = vld [vmem:[%s388 + $0x50] sm:$0xff]
        %v450 = vld [vmem:[%s388 + $0x58] sm:$0xff]
        %v451 = vld [vmem:[%s388 + $0x60] sm:$0xff]
        %v452 = vld [vmem:[%s388 + $0x68] sm:$0xff]
        %v453 = vld [vmem:[%s388 + $0x70] sm:$0xff]
        %v454 = vld [vmem:[%s388 + $0x78] sm:$0xff]
        %v455 = vld [vmem:[%s388 + $0x80] sm:$0xff]
        %v456 = vld [vmem:[%s388 + $0x88] sm:$0xff]
        %v457 = vld [vmem:[%s388 + $0x90] sm:$0xff]
        %v458 = vld [vmem:[%s388 + $0x98] sm:$0xff]
        %v459 = vld [vmem:[%s388 + $0xa0] sm:$0xff]
        %v460 = vld [vmem:[%s388 + $0xa8] sm:$0xff]
        %v461 = vld [vmem:[%s388 + $0xb0] sm:$0xff]
        %v462 = vld [vmem:[%s388 + $0xb8] sm:$0xff]
        %v463 = vld [vmem:[%s388 + $0xc0] sm:$0xff]
        %v464 = vld [vmem:[%s388 + $0xc8] sm:$0xff]
        %v465 = vld [vmem:[%s388 + $0xd0] sm:$0xff]
        %v466 = vld [vmem:[%s388 + $0xd8] sm:$0xff]
        %v467 = vld [vmem:[%s388 + $0xe0] sm:$0xff]
        %v468 = vld [vmem:[%s388 + $0xe8] sm:$0xff]
        %v469 = vld [vmem:[%s388 + $0xf0] sm:$0xff]
        %v470 = vld [vmem:[%s388 + $0xf8] sm:$0xff]
        %v473 = vunpack.c.l.b16 %v437
        %v474 = vunpack.c.h.b16 %v437
        %v475 = vunpack.c.l.b16 %v438
        %v476 = vunpack.c.h.b16 %v438
        %v477 = vpack.c.b16 %v475, %v473
        %v478 = vpack.c.b16 %v476, %v474
        %v513 = vunpack.c.l.b16 %v439
        %v514 = vunpack.c.h.b16 %v439
        %v515 = vunpack.c.l.b16 %v440
        %v516 = vunpack.c.h.b16 %v440
        %v517 = vunpack.c.l.b16 %v441
        %v518 = vunpack.c.h.b16 %v441
        %v519 = vunpack.c.l.b16 %v442
        %v520 = vunpack.c.h.b16 %v442
        %v521 = vunpack.c.l.b16 %v443
        %v522 = vunpack.c.h.b16 %v443
        %v523 = vunpack.c.l.b16 %v444
        %v524 = vunpack.c.h.b16 %v444
        %v525 = vunpack.c.l.b16 %v445
        %v526 = vunpack.c.h.b16 %v445
        %v527 = vunpack.c.l.b16 %v446
        %v528 = vunpack.c.h.b16 %v446
        %v529 = vunpack.c.l.b16 %v447
        %v530 = vunpack.c.h.b16 %v447
        %v531 = vunpack.c.l.b16 %v448
        %v532 = vunpack.c.h.b16 %v448
        %v533 = vunpack.c.l.b16 %v449
        %v534 = vunpack.c.h.b16 %v449
        %v535 = vunpack.c.l.b16 %v450
        %v536 = vunpack.c.h.b16 %v450
        %v537 = vunpack.c.l.b16 %v451
        %v538 = vunpack.c.h.b16 %v451
        %v539 = vunpack.c.l.b16 %v452
        %v540 = vunpack.c.h.b16 %v452
        %v541 = vunpack.c.l.b16 %v453
        %v542 = vunpack.c.h.b16 %v453
        %v543 = vunpack.c.l.b16 %v454
        %v544 = vunpack.c.h.b16 %v454
        %v545 = vunpack.c.l.b16 %v455
        %v546 = vunpack.c.h.b16 %v455
        %v547 = vunpack.c.l.b16 %v456
        %v548 = vunpack.c.h.b16 %v456
        %v549 = vunpack.c.l.b16 %v457
        %v550 = vunpack.c.h.b16 %v457
        %v551 = vunpack.c.l.b16 %v458
        %v552 = vunpack.c.h.b16 %v458
        %v553 = vunpack.c.l.b16 %v459
        %v554 = vunpack.c.h.b16 %v459
        %v555 = vunpack.c.l.b16 %v460
        %v556 = vunpack.c.h.b16 %v460
        %v557 = vunpack.c.l.b16 %v461
        %v558 = vunpack.c.h.b16 %v461
        %v559 = vunpack.c.l.b16 %v462
        %v560 = vunpack.c.h.b16 %v462
        %v561 = vunpack.c.l.b16 %v463
        %v562 = vunpack.c.h.b16 %v463
        %v563 = vunpack.c.l.b16 %v464
        %v564 = vunpack.c.h.b16 %v464
        %v565 = vunpack.c.l.b16 %v465
        %v566 = vunpack.c.h.b16 %v465
        %v567 = vunpack.c.l.b16 %v466
        %v568 = vunpack.c.h.b16 %v466
        %v569 = vunpack.c.l.b16 %v467
        %v570 = vunpack.c.h.b16 %v467
        %v571 = vunpack.c.l.b16 %v468
        %v572 = vunpack.c.h.b16 %v468
        %v573 = vunpack.c.l.b16 %v469
        %v574 = vunpack.c.h.b16 %v469
        %v575 = vunpack.c.l.b16 %v470
        %v576 = vunpack.c.h.b16 %v470
        %v577 = vpack.c.b16 %v515, %v513
        %v578 = vpack.c.b16 %v516, %v514
        %v579 = vpack.c.b16 %v519, %v517
        %v580 = vpack.c.b16 %v520, %v518
        %v581 = vpack.c.b16 %v523, %v521
        %v582 = vpack.c.b16 %v524, %v522
        %v583 = vpack.c.b16 %v527, %v525
        %v584 = vpack.c.b16 %v528, %v526
        %v585 = vpack.c.b16 %v531, %v529
        %v586 = vpack.c.b16 %v532, %v530
        %v587 = vpack.c.b16 %v535, %v533
        %v588 = vpack.c.b16 %v536, %v534
        %v589 = vpack.c.b16 %v539, %v537
        %v590 = vpack.c.b16 %v540, %v538
        %v591 = vpack.c.b16 %v543, %v541
        %v592 = vpack.c.b16 %v544, %v542
        %v593 = vpack.c.b16 %v547, %v545
        %v594 = vpack.c.b16 %v548, %v546
        %v595 = vpack.c.b16 %v551, %v549
        %v596 = vpack.c.b16 %v552, %v550
        %v597 = vpack.c.b16 %v555, %v553
        %v598 = vpack.c.b16 %v556, %v554
        %v599 = vpack.c.b16 %v559, %v557
        %v600 = vpack.c.b16 %v560, %v558
        %v601 = vpack.c.b16 %v563, %v561
        %v602 = vpack.c.b16 %v564, %v562
        %v603 = vpack.c.b16 %v567, %v565
        %v604 = vpack.c.b16 %v568, %v566
        %v605 = vpack.c.b16 %v571, %v569
        %v606 = vpack.c.b16 %v572, %v570
        %v607 = vpack.c.b16 %v575, %v573
        %v608 = vpack.c.b16 %v576, %v574
        %641 = vmatprep.subr.bf16.mxu0 %v592
        %642 = vmatpush1.bf16.msra.mxu0 %v591
        %643 = vmatprep.subr.bf16.mxu0 %v590
        %644 = vmatpush1.bf16.msra.mxu0 %v589
        %645 = vmatprep.subr.bf16.mxu0 %v588
        %646 = vmatpush1.bf16.msra.mxu0 %v587
        %647 = vmatprep.subr.bf16.mxu0 %v586
        %648 = vmatpush1.bf16.msra.mxu0 %v585
        %649 = vmatprep.subr.bf16.mxu0 %v584
        %650 = vmatpush1.bf16.msra.mxu0 %v583
        %651 = vmatprep.subr.bf16.mxu0 %v582
        %652 = vmatpush1.bf16.msra.mxu0 %v581
        %653 = vmatprep.subr.bf16.mxu0 %v580
        %654 = vmatpush1.bf16.msra.mxu0 %v579
        %655 = vmatprep.subr.bf16.mxu0 %v578
        %656 = vmatpush1.bf16.msra.mxu0 %v577
        %657 = vmatprep.subr.bf16.mxu0 %v608
        %658 = vmatpush2.bf16.msra.mxu0 %v607
        %659 = vmatprep.subr.bf16.mxu0 %v606
        %660 = vmatpush2.bf16.msra.mxu0 %v605
        %661 = vmatprep.subr.bf16.mxu0 %v604
        %662 = vmatpush2.bf16.msra.mxu0 %v603
        %663 = vmatprep.subr.bf16.mxu0 %v602
        %664 = vmatpush2.bf16.msra.mxu0 %v601
        %665 = vmatprep.subr.bf16.mxu0 %v600
        %666 = vmatpush2.bf16.msra.mxu0 %v599
        %667 = vmatprep.subr.bf16.mxu0 %v598
        %668 = vmatpush2.bf16.msra.mxu0 %v597
        %669 = vmatprep.subr.bf16.mxu0 %v596
        %670 = vmatpush2.bf16.msra.mxu0 %v595
        %671 = vmatprep.subr.bf16.mxu0 %v594
        %672 = vmatpush2.bf16.msra.mxu0 %v593
        %673 = vmatprep.mubr.bf16.mxu0 %v478
        %674 = vmatmul.mubr.bf16.gmra.mxu0 %v477
        %v675 = vpop.f32.mrf.mxu0
        %v676 = vadd.f32 0.0, %v675
        %v677 = vpop.f32.mrf.mxu0
        %v678 = vadd.f32 0.0, %v677
        %v679 = vpop.f32.mrf.mxu0
        %v680 = vadd.f32 0.0, %v679
        %v681 = vpop.f32.mrf.mxu0
        %v682 = vadd.f32 0.0, %v681
        %683 = vdwg.mxu0
        %v684 = vadd.f32 %v433, %v676
        %v685 = vadd.f32 %v434, %v678
        %v686 = vadd.f32 %v435, %v680
        %v687 = vadd.f32 %v436, %v682
        %688 = vst [vmem:[#allocation2] sm:$0xff] %v684
        %689 = vst [vmem:[#allocation2 + $0x8] sm:$0xff] %v685
        %690 = vst [vmem:[#allocation2 + $0x10] sm:$0xff] %v686
        %691 = vst [vmem:[#allocation2 + $0x18] sm:$0xff] %v687
        %p692 = scmp.eq.s32.totalorder %s23, 8
        // Predicated region
        $region83: #{resnet_trunk_forward.22} parent=73 // pred_check
          %p693 = pneg %p692
        $region84: #{resnet_trunk_forward.22} parent=73 // pred_check_branch
          %695 = sbr.rel (%p693) target = $region86
        $region85: #{resnet_trunk_forward.22} parent=73 // pred_region
          %v696 = vld [vmem:[#allocation2] sm:$0xff]
          %v697 = vld [vmem:[#allocation2 + $0x8] sm:$0xff]
          %v698 = vld [vmem:[#allocation2 + $0x10] sm:$0xff]
          %v699 = vld [vmem:[#allocation2 + $0x18] sm:$0xff]
          %v700 = vld [vmem:[%s394] sm:$0x3]
          %v702 = vlaneseq
          %v703 = vshrl.u32 %v702, 7
          %v704 = vsub.s32 0, %v703
          %v705 = vrot.slane %v700, %v704
          %v706 = vlaneseq
          %v707 = vshrl.u32 %v706, 7
          %v708 = vsub.s32 1, %v707
          %v709 = vrot.slane %v700, %v708
          %v712 = vmul.f32 %v696, %v705
          %v713 = vmul.f32 %v697, %v709
          %v714 = vmul.f32 %v698, %v705
          %v715 = vmul.f32 %v699, %v709
          %v716 = vld [vmem:[%s399] sm:$0x3]
          %v718 = vlaneseq
          %v719 = vshrl.u32 %v718, 7
          %v720 = vsub.s32 0, %v719
          %v721 = vrot.slane %v716, %v720
          %v722 = vlaneseq
          %v723 = vshrl.u32 %v722, 7
          %v724 = vsub.s32 1, %v723
          %v725 = vrot.slane %v716, %v724
          %v728 = vadd.f32 %v712, %v721
          %v729 = vadd.f32 %v713, %v725
          %v730 = vadd.f32 %v714, %v721
          %v731 = vadd.f32 %v715, %v725
          %v732 = vld [vmem:[%s410] sm:$0xff]
          %v733 = vld [vmem:[%s410 + $0x8] sm:$0xff]
          %v734 = vld [vmem:[%s410 + $0x10] sm:$0xff]
          %v735 = vld [vmem:[%s410 + $0x18] sm:$0xff]
          %v736 = vadd.f32 %v728, %v732
          %v737 = vadd.f32 %v729, %v733
          %v738 = vadd.f32 %v730, %v734
          %v739 = vadd.f32 %v731, %v735
          %v740 = vmax.f32 %v736, 0.0
          %v741 = vmax.f32 %v737, 0.0
          %v742 = vmax.f32 %v738, 0.0
          %v743 = vmax.f32 %v739, 0.0
          %744 = vst [vmem:[%s422] sm:$0xff] %v740
          %745 = vst [vmem:[%s422 + $0x8] sm:$0xff] %v741
          %746 = vst [vmem:[%s422 + $0x10] sm:$0xff] %v742
          %747 = vst [vmem:[%s422 + $0x18] sm:$0xff] %v743
        $region86: #{resnet_trunk_forward.22} parent=73 // pred_fallthru
          _
        %s748 = smul.u32 2, %s21
        %s749 = smul.u32 2, %s22
        %p750 = scmp.lt.s32.totalorder %s748, 1
        %s751 = scalar_select %p750, %s748, 1
        %p752 = scmp.lt.s32.totalorder %s749, 1
        %s753 = scalar_select %p752, %s749, 1
        %s754 = smul.addr %s751, 2
        %s755 = sadd.s32 %s753, %s754
        %s756 = smul.addr %s755, 8
        %s757 = scalar_lea.vmem %s5, %s756
        // Predicated region
        $region87: #{resnet_trunk_forward.22} parent=73 // pred_check
          %p758 = pneg %p191
        $region88: #{resnet_trunk_forward.22} parent=73 // pred_check_branch
          %760 = sbr.rel (%p758) target = $region90
        $region89: #{resnet_trunk_forward.22} parent=73 // pred_region
          %s761 = smul.u32 2, %s21
          %s762 = smul.u32 2, %s22
        $region90: #{resnet_trunk_forward.22} parent=73 // pred_fallthru
          _
        // Predicated region
        $region91: #{resnet_trunk_forward.22} parent=73 // pred_check
          %p763 = pneg %p191
        $region92: #{resnet_trunk_forward.22} parent=73 // pred_check_branch
          %765 = sbr.rel (%p763) target = $region94
        $region93: #{resnet_trunk_forward.22} parent=73 // pred_region
          %s766 = smul.u32 2, %s21
          %s767 = smul.u32 2, %s22
          %p768 = scmp.lt.s32.totalorder %s766, 1
          %s769 = scalar_select %p768, %s766, 1
          %p770 = scmp.lt.s32.totalorder %s767, 1
          %s771 = scalar_select %p770, %s767, 1
          %s772 = smul.addr %s769, 2
          %s773 = sadd.s32 %s771, %s772
          %s774 = smul.addr %s773, 8
          %s775 = scalar_lea.vmem %s5, %s774
        $region94: #{resnet_trunk_forward.22} parent=73 // pred_fallthru
          _
      $region74: #{resnet_trunk_forward.22} parent=5 // pred_fallthru
        _
      %p776 = scmp.le.s32.totalorder 2, %s11
      // Predicated region
      $region95: #{resnet_trunk_forward.22} parent=5 // pred_check
        %p777 = pneg %p776
      $region96: #{resnet_trunk_forward.22} parent=5 // pred_check_branch
        %779 = sbr.rel (%p777) target = $region98
      $region97: #{resnet_trunk_forward.22} parent=5 // pred_region
        %s780 = ssub.s32 %s11, 2
      $region98: #{resnet_trunk_forward.22} parent=5 // pred_fallthru
        _
    $region6: #{resnet_trunk_forward.22} parent=1 // loop_footer
      %s15 = sadd.s32 1, %s11
    $region7: #{resnet_trunk_forward.22} parent=1 // loop_footer_branch
      %10 = sbr.rel target = $region3
    $region8: #{resnet_trunk_forward.22} parent=1 // loop_exit
      _

// kernel: resnet_trunk_forward.24
$region0: #{resnet_trunk_forward.24}
  #allocation0 [shape = 'u32[]', space=smem, size = 0x4, offset = 0x4, fixed_abs, tag = 'smem constant byte address 0x4 - core index']
  #allocation1 [shape = 'u32[144,128]{1,0:T(1,128)}', space=vmem, size = 0x12000, scoped, tag = 'internal scratch']
  #allocation2 [shape = 'f32[16,256]{1,0:T(8,128)}', space=vmem, size = 0x4000, scoped, tag = 'scratch operand']
  %s0 = inlined_call_operand.vmem [shape: bf16[16,2304], index: 0, kind: input, shape index: {}]
  %s1 = inlined_call_operand.vmem [shape: bf16[2304,512], index: 1, kind: input, shape index: {}]
  %s2 = inlined_call_operand.vmem [shape: f32[1,512], index: 2, kind: input, shape index: {}]
  %s3 = inlined_call_operand.vmem [shape: f32[1,512], index: 3, kind: input, shape index: {}]
  %s4 = inlined_call_operand.vmem [shape: f32[16,512], index: 4, kind: output, shape index: {}]
  %s5 = sld [smem:[#allocation0]]
  $region152: #{resnet_trunk_forward.24} parent=0
    _
  %s7 = ssub.s32 1, %s5
  %s8 = scalar_select 0, %s7, %s5
  $region1: #{resnet_trunk_forward.24} parent=0
    #allocation3 [shape = 'u8[16384]{0}', space=vmem, size = 0x4000, scoped, tag = 'input window, operand 0']
    #allocation4 [shape = 'u8[262144]{0}', space=vmem, size = 0x40000, scoped, tag = 'input window, operand 1']
    #allocation5 [shape = 'u8[32768]{0}', space=vmem, size = 0x8000, scoped, tag = 'output window, operand 0']
    loop: start=0, step=1, limit=20
    $region2: #{resnet_trunk_forward.24} parent=1 // loop_pre_header
      _
    $region3: #{resnet_trunk_forward.24} parent=1 // loop_header
      %s10 = sphi 0, %s14
      %p11 = scmp.ge.s32.totalorder %s10, 20
      %s17 = sphi 0, %s36
      %s18 = sphi 0, %s32
      %s19 = sphi 0, %s28
      %s20 = sphi 0, %s17
      %s21 = sphi 0, %s18
      %s22 = sphi 0, %s19
      %s23 = sphi 0, %s20
      %s24 = sphi 0, %s21
      %s25 = sphi 0, %s22
      %s41 = sphi 0, %s43
      %s44 = sphi 0, %s41
      %s45 = sphi 0, %s44
      %s61 = sphi 0, %s45
      %s69 = sphi 0, %s71
      %s72 = sphi 0, %s69
      %s73 = sphi 0, %s72
      %s89 = sphi 0, %s73
      %s95 = sphi 0, %s97
      %s98 = sphi 0, %s95
      %s99 = sphi 0, %s98
      %s115 = sphi 0, %s99
      %s121 = sphi 0, %s123
      %s124 = sphi 0, %s121
      %s125 = sphi 0, %s124
      %s141 = sphi 0, %s125
      %s149 = sphi 0, %s151
      %s152 = sphi 0, %s149
      %s153 = sphi 0, %s152
      %s169 = sphi 0, %s153
    $region4: #{resnet_trunk_forward.24} parent=1 // loop_header_branch
      %13 = sbr.rel (%p11) target = $region8
    $region5: #{resnet_trunk_forward.24} parent=1 // loop_body
      %s15 = ssub.s32 %s10, 1
      %s16 = ssub.s32 %s10, 2
      %s26 = sadd.s32 1, %s19
      %p27 = scmp.ge.s32.totalorder %s26, 9
      %s28 = scalar_select %p27, 0, %s26
      %s29 = sadd.s32 1, %s18
      %s30 = scalar_select %p27, %s29, %s18
      %p31 = scmp.ge.s32.totalorder %s30, 2
      %s32 = scalar_select %p31, 0, %s30
      %s33 = sadd.s32 1, %s17
      %s34 = scalar_select %p31, %s33, %s17
      %p35 = scmp.ge.s32.totalorder %s34, 1
      %s36 = scalar_select %p35, 0, %s34
      %s37 = ssub.s32 %s17, %s36
      %s38 = ssub.s32 %s19, %s28
      %s39 = sor.u32 %s37, %s38
      %p40 = scmp.eq.s32.totalorder %s39, 0
      %s42 = sadd.s32 %s41, 1
      %s43 = scalar_select %p40, %s41, %s42
      %p46 = pneg %p40
      %p47 = scmp.eq.s32.totalorder %s10, 17
      %p48 = por %p46, %p47
      %p49 = scmp.ne.s32.totalorder %s41, %s44
      %p50 = scmp.eq.s32.totalorder %s10, 0
      %p51 = por %p49, %p50
      %p52 = scmp.ne.s32.totalorder %s41, %s44
      %p53 = scmp.eq.s32.totalorder %s15, 17
      %p54 = por %p52, %p53
      %p55 = scmp.ne.s32.totalorder %s44, %s45
      %p56 = scmp.eq.s32.totalorder %s15, 0
      %p57 = por %p55, %p56
      %p58 = scmp.ne.s32.totalorder %s44, %s45
      %p59 = scmp.eq.s32.totalorder %s16, 17
      %p60 = por %p58, %p59
      %p62 = scmp.ne.s32.totalorder %s45, %s61
      %p63 = scmp.eq.s32.totalorder %s16, 0
      %p64 = por %p62, %p63
      %s65 = ssub.s32 %s19, %s28
      %s66 = ssub.s32 %s18, %s32
      %s67 = sor.u32 %s65, %s66
      %p68 = scmp.eq.s32.totalorder %s67, 0
      %s70 = sadd.s32 %s69, 1
      %s71 = scalar_select %p68, %s69, %s70
      %p74 = pneg %p68
      %p75 = scmp.eq.s32.totalorder %s10, 17
      %p76 = por %p74, %p75
      %p77 = scmp.ne.s32.totalorder %s69, %s72
      %p78 = scmp.eq.s32.totalorder %s10, 0
      %p79 = por %p77, %p78
      %p80 = scmp.ne.s32.totalorder %s69, %s72
      %p81 = scmp.eq.s32.totalorder %s15, 17
      %p82 = por %p80, %p81
      %p83 = scmp.ne.s32.totalorder %s72, %s73
      %p84 = scmp.eq.s32.totalorder %s15, 0
      %p85 = por %p83, %p84
      %p86 = scmp.ne.s32.totalorder %s72, %s73
      %p87 = scmp.eq.s32.totalorder %s16, 17
      %p88 = por %p86, %p87
      %p90 = scmp.ne.s32.totalorder %s73, %s89
      %p91 = scmp.eq.s32.totalorder %s16, 0
      %p92 = por %p90, %p91
      %s93 = ssub.s32 %s18, %s32
      %p94 = scmp.eq.s32.totalorder %s93, 0
      %s96 = sadd.s32 %s95, 1
      %s97 = scalar_select %p94, %s95, %s96
      %p100 = pneg %p94
      %p101 = scmp.eq.s32.totalorder %s10, 17
      %p102 = por %p100, %p101
      %p103 = scmp.ne.s32.totalorder %s95, %s98
      %p104 = scmp.eq.s32.totalorder %s10, 0
      %p105 = por %p103, %p104
      %p106 = scmp.ne.s32.totalorder %s95, %s98
      %p107 = scmp.eq.s32.totalorder %s15, 17
      %p108 = por %p106, %p107
      %p109 = scmp.ne.s32.totalorder %s98, %s99
      %p110 = scmp.eq.s32.totalorder %s15, 0
      %p111 = por %p109, %p110
      %p112 = scmp.ne.s32.totalorder %s98, %s99
      %p113 = scmp.eq.s32.totalorder %s16, 17
      %p114 = por %p112, %p113
      %p116 = scmp.ne.s32.totalorder %s99, %s115
      %p117 = scmp.eq.s32.totalorder %s16, 0
      %p118 = por %p116, %p117
      %s119 = ssub.s32 %s18, %s32
      %p120 = scmp.eq.s32.totalorder %s119, 0
      %s122 = sadd.s32 %s121, 1
      %s123 = scalar_select %p120, %s121, %s122
      %p126 = pneg %p120
      %p127 = scmp.eq.s32.totalorder %s10, 17
      %p128 = por %p126, %p127
      %p129 = scmp.ne.s32.totalorder %s121, %s124
      %p130 = scmp.eq.s32.totalorder %s10, 0
      %p131 = por %p129, %p130
      %p132 = scmp.ne.s32.totalorder %s121, %s124
      %p133 = scmp.eq.s32.totalorder %s15, 17
      %p134 = por %p132, %p133
      %p135 = scmp.ne.s32.totalorder %s124, %s125
      %p136 = scmp.eq.s32.totalorder %s15, 0
      %p137 = por %p135, %p136
      %p138 = scmp.ne.s32.totalorder %s124, %s125
      %p139 = scmp.eq.s32.totalorder %s16, 17
      %p140 = por %p138, %p139
      %p142 = scmp.ne.s32.totalorder %s125, %s141
      %p143 = scmp.eq.s32.totalorder %s16, 0
      %p144 = por %p142, %p143
      %s145 = ssub.s32 %s17, %s36
      %s146 = ssub.s32 %s18, %s32
      %s147 = sor.u32 %s145, %s146
      %p148 = scmp.eq.s32.totalorder %s147, 0
      %s150 = sadd.s32 %s149, 1
      %s151 = scalar_select %p148, %s149, %s150
      %p154 = pneg %p148
      %p155 = scmp.eq.s32.totalorder %s10, 17
      %p156 = por %p154, %p155
      %p157 = scmp.ne.s32.totalorder %s149, %s152
      %p158 = scmp.eq.s32.totalorder %s10, 0
      %p159 = por %p157, %p158
      %p160 = scmp.ne.s32.totalorder %s149, %s152
      %p161 = scmp.eq.s32.totalorder %s15, 17
      %p162 = por %p160, %p161
      %p163 = scmp.ne.s32.totalorder %s152, %s153
      %p164 = scmp.eq.s32.totalorder %s15, 0
      %p165 = por %p163, %p164
      %p166 = scmp.ne.s32.totalorder %s152, %s153
      %p167 = scmp.eq.s32.totalorder %s16, 17
      %p168 = por %p166, %p167
      %p170 = scmp.ne.s32.totalorder %s153, %s169
      %p171 = scmp.eq.s32.totalorder %s16, 0
      %p172 = por %p170, %p171
      %p173 = scmp.le.s32.totalorder 1, %s10
      %p174 = scmp.lt.s32.totalorder %s10, 19
      %p175 = pnand %p173, %p174
      %p176 = pneg %p175
      // Predicated region
      $region9: #{resnet_trunk_forward.24} parent=5 // pred_check
        _
      $region10: #{resnet_trunk_forward.24} parent=5 // pred_check_branch
        %178 = sbr.rel (%p175) target = $region12
      $region11: #{resnet_trunk_forward.24} parent=5 // pred_region
        %s179 = ssub.s32 %s10, 1
      $region12: #{resnet_trunk_forward.24} parent=5 // pred_fallthru
        _
      %p180 = scmp.lt.s32.totalorder %s10, 18
      // Predicated region
      $region13: #{resnet_trunk_forward.24} parent=5 // pred_check
        %p181 = pneg %p180
      $region14: #{resnet_trunk_forward.24} parent=5 // pred_check_branch
        %183 = sbr.rel (%p181) target = $region16
      $region15: #{resnet_trunk_forward.24} parent=5 // pred_region
        // Predicated region
        $region17: #{resnet_trunk_forward.24} parent=15 // pred_check
          %p184 = pneg %p51
        $region18: #{resnet_trunk_forward.24} parent=15 // pred_check_branch
          %186 = sbr.rel (%p184) target = $region20
        $region19: #{resnet_trunk_forward.24} parent=15 // pred_region
          %s187 = sand.u32 %s41, 1
          %s188 = sand.u32 %s41, 1
          %s189 = smul.addr %s188, 16
          %s190 = scalar_lea.vmem [#allocation3], %s189
          %s191 = smul.u32 2, %s17
          %s192 = smul.u32 2, %s19
          %s193 = smul.addr %s191, 18
          %s194 = sadd.s32 %s192, %s193
          %s195 = smul.addr %s194, 4
          %s196 = scalar_lea.vmem %s0, %s195
          // Predicated region
          $region21: #{resnet_trunk_forward.24} parent=19 // pred_check
            _
          $region22: #{resnet_trunk_forward.24} parent=19 // pred_check_branch
            %198 = sbr.rel (0) target = $region24
          $region23: #{resnet_trunk_forward.24} parent=19 // pred_region
            // Predicated region
            $region25: #{resnet_trunk_forward.24} parent=23 // pred_check
              _
            $region26: #{resnet_trunk_forward.24} parent=23 // pred_check_branch
              %200 = sbr.rel (0) target = $region28
            $region27: #{resnet_trunk_forward.24} parent=23 // pred_region
              // Predicated region
              $region40: #{resnet_trunk_forward.24} parent=27 // pred_check
                _
              $region41: #{resnet_trunk_forward.24} parent=27 // pred_check_branch
                %218 = sbr.rel (0) target = $region43
              $region42: #{resnet_trunk_forward.24} parent=27 // pred_region
                loop: start=0, step=1, limit=1
                $region44: #{resnet_trunk_forward.24} parent=42 // loop_pre_header
                  _
                $region45: #{resnet_trunk_forward.24} parent=42 // loop_header
                  %s220 = sphi 0, %s224
                  %p221 = scmp.ge.s32.totalorder %s220, 1
                  %s225 = sphi %s196, %s196
                  %s226 = sphi %s190, %s190
                $region46: #{resnet_trunk_forward.24} parent=42 // loop_header_branch
                  %223 = sbr.rel (%p221) target = $region50
                $region47: #{resnet_trunk_forward.24} parent=42 // loop_body
                  %v227 = vld [vmem:[%s225] sm:$0xff]
                  %228 = vst [vmem:[%s226] sm:$0xff] %v227
                  %v229 = vld [vmem:[%s225 + $0x48] sm:$0xff]
                  %230 = vst [vmem:[%s226 + $0x8] sm:$0xff] %v229
                $region48: #{resnet_trunk_forward.24} parent=42 // loop_footer
                  %s224 = sadd.s32 1, %s220
                $region49: #{resnet_trunk_forward.24} parent=42 // loop_footer_branch
                  %219 = sbr.rel target = $region45
                $region50: #{resnet_trunk_forward.24} parent=42 // loop_exit
                  _
              $region43: #{resnet_trunk_forward.24} parent=27 // pred_fallthru
                _
              // Predicated region
              $region51: #{resnet_trunk_forward.24} parent=27 // pred_check
                _
              $region52: #{resnet_trunk_forward.24} parent=27 // pred_check_branch
                %232 = sbr.rel target = $region54
              $region53: #{resnet_trunk_forward.24} parent=27 // pred_region
                _
              $region54: #{resnet_trunk_forward.24} parent=27 // pred_fallthru
                _
            $region28: #{resnet_trunk_forward.24} parent=23 // pred_fallthru
              _
            // Predicated region
            $region29: #{resnet_trunk_forward.24} parent=23 // pred_check
              _
            $region30: #{resnet_trunk_forward.24} parent=23 // pred_check_branch
              %202 = sbr.rel target = $region32
            $region31: #{resnet_trunk_forward.24} parent=23 // pred_region
              %s204 = ssub.s32 256, 1
              loop: start=0, step=1, limit=1
              $region33: #{resnet_trunk_forward.24} parent=31 // loop_pre_header
                _
              $region34: #{resnet_trunk_forward.24} parent=31 // loop_header
                %s206 = sphi 0, %s210
                %p207 = scmp.ge.s32.totalorder %s206, 1
                %s211 = sphi %s196, %s196
                %s212 = sphi %s190, %s190
              $region35: #{resnet_trunk_forward.24} parent=31 // loop_header_branch
                %209 = sbr.rel (%p207) target = $region39
              $region36: #{resnet_trunk_forward.24} parent=31 // loop_body
                %v213 = vld [vmem:[%s211] sm:%s204]
                %214 = vst [vmem:[%s212] sm:%s204] %v213
                %v215 = vld [vmem:[%s211 + $0x48] sm:%s204]
                %216 = vst [vmem:[%s212 + $0x8] sm:%s204] %v215
              $region37: #{resnet_trunk_forward.24} parent=31 // loop_footer
                %s210 = sadd.s32 1, %s206
              $region38: #{resnet_trunk_forward.24} parent=31 // loop_footer_branch
                %205 = sbr.rel target = $region34
              $region39: #{resnet_trunk_forward.24} parent=31 // loop_exit
                _
            $region32: #{resnet_trunk_forward.24} parent=23 // pred_fallthru
              _
          $region24: #{resnet_trunk_forward.24} parent=19 // pred_fallthru
            _
          %233 = vnop
        $region20: #{resnet_trunk_forward.24} parent=15 // pred_fallthru
          _
        // Predicated region
        $region55: #{resnet_trunk_forward.24} parent=15 // pred_check
          %p234 = pneg %p79
        $region56: #{resnet_trunk_forward.24} parent=15 // pred_check_branch
          %236 = sbr.rel (%p234) target = $region58
        $region57: #{resnet_trunk_forward.24} parent=15 // pred_region
          %s237 = sand.u32 %s69, 1
          %s238 = sand.u32 %s69, 1
          %s239 = smul.addr %s238, 256
          %s240 = scalar_lea.vmem [#allocation4], %s239
          %s241 = smul.u32 32, %s19
          %s242 = smul.u32 2, %s18
          %s243 = smul.addr %s241, 4
          %s244 = sadd.s32 %s242, %s243
          %s245 = smul.addr %s244, 4
          %s246 = scalar_lea.vmem %s1, %s245
          // Predicated region
          $region59: #{resnet_trunk_forward.24} parent=57 // pred_check
            _
          $region60: #{resnet_trunk_forward.24} parent=57 // pred_check_branch
            %248 = sbr.rel (0) target = $region62
          $region61: #{resnet_trunk_forward.24} parent=57 // pred_region
            // Predicated region
            $region63: #{resnet_trunk_forward.24} parent=61 // pred_check
              _
            $region64: #{resnet_trunk_forward.24} parent=61 // pred_check_branch
              %250 = sbr.rel (0) target = $region66
            $region65: #{resnet_trunk_forward.24} parent=61 // pred_region
              // Predicated region
              $region78: #{resnet_trunk_forward.24} parent=65 // pred_check
                _
              $region79: #{resnet_trunk_forward.24} parent=65 // pred_check_branch
                %328 = sbr.rel (0) target = $region81
              $region80: #{resnet_trunk_forward.24} parent=65 // pred_region
                loop: start=0, step=1, limit=1
                $region82: #{resnet_trunk_forward.24} parent=80 // loop_pre_header
                  _
                $region83: #{resnet_trunk_forward.24} parent=80 // loop_header
                  %s330 = sphi 0, %s334
                  %p331 = scmp.ge.s32.totalorder %s330, 1
                  %s335 = sphi %s246, %s246
                  %s336 = sphi %s240, %s240
                $region84: #{resnet_trunk_forward.24} parent=80 // loop_header_branch
                  %333 = sbr.rel (%p331) target = $region88
                $region85: #{resnet_trunk_forward.24} parent=80 // loop_body
                  %v337 = vld [vmem:[%s335] sm:$0xff]
                  %338 = vst [vmem:[%s336] sm:$0xff] %v337
                  %v339 = vld [vmem:[%s335 + $0x10] sm:$0xff]
                  %340 = vst [vmem:[%s336 + $0x8] sm:$0xff] %v339
                  %v341 = vld [vmem:[%s335 + $0x20] sm:$0xff]
                  %342 = vst [vmem:[%s336 + $0x10] sm:$0xff] %v341
                  %v343 = vld [vmem:[%s335 + $0x30] sm:$0xff]
                  %344 = vst [vmem:[%s336 + $0x18] sm:$0xff] %v343
                  %v345 = vld [vmem:[%s335 + $0x40] sm:$0xff]
                  %346 = vst [vmem:[%s336 + $0x20] sm:$0xff] %v345
                  %v347 = vld [vmem:[%s335 + $0x50] sm:$0xff]
                  %348 = vst [vmem:[%s336 + $0x28] sm:$0xff] %v347
                  %v349 = vld [vmem:[%s335 + $0x60] sm:$0xff]
                  %350 = vst [vmem:[%s336 + $0x30] sm:$0xff] %v349
                  %v351 = vld [vmem:[%s335 + $0x70] sm:$0xff]
                  %352 = vst [vmem:[%s336 + $0x38] sm:$0xff] %v351
                  %v353 = vld [vmem:[%s335 + $0x80] sm:$0xff]
                  %354 = vst [vmem:[%s336 + $0x40] sm:$0xff] %v353
                  %v355 = vld [vmem:[%s335 + $0x90] sm:$0xff]
                  %356 = vst [vmem:[%s336 + $0x48] sm:$0xff] %v355
                  %v357 = vld [vmem:[%s335 + $0xa0] sm:$0xff]
                  %358 = vst [vmem:[%s336 + $0x50] sm:$0xff] %v357
                  %v359 = vld [vmem:[%s335 + $0xb0] sm:$0xff]
                  %360 = vst [vmem:[%s336 + $0x58] sm:$0xff] %v359
                  %v361 = vld [vmem:[%s335 + $0xc0] sm:$0xff]
                  %362 = vst [vmem:[%s336 + $0x60] sm:$0xff] %v361
                  %v363 = vld [vmem:[%s335 + $0xd0] sm:$0xff]
                  %364 = vst [vmem:[%s336 + $0x68] sm:$0xff] %v363
                  %v365 = vld [vmem:[%s335 + $0xe0] sm:$0xff]
                  %366 = vst [vmem:[%s336 + $0x70] sm:$0xff] %v365
                  %v367 = vld [vmem:[%s335 + $0xf0] sm:$0xff]
                  %368 = vst [vmem:[%s336 + $0x78] sm:$0xff] %v367
                  %v369 = vld [vmem:[%s335 + $0x100] sm:$0xff]
                  %370 = vst [vmem:[%s336 + $0x80] sm:$0xff] %v369
                  %v371 = vld [vmem:[%s335 + $0x110] sm:$0xff]
                  %372 = vst [vmem:[%s336 + $0x88] sm:$0xff] %v371
                  %v373 = vld [vmem:[%s335 + $0x120] sm:$0xff]
                  %374 = vst [vmem:[%s336 + $0x90] sm:$0xff] %v373
                  %v375 = vld [vmem:[%s335 + $0x130] sm:$0xff]
                  %376 = vst [vmem:[%s336 + $0x98] sm:$0xff] %v375
                  %v377 = vld [vmem:[%s335 + $0x140] sm:$0xff]
                  %378 = vst [vmem:[%s336 + $0xa0] sm:$0xff] %v377
                  %v379 = vld [vmem:[%s335 + $0x150] sm:$0xff]
                  %380 = vst [vmem:[%s336 + $0xa8] sm:$0xff] %v379
                  %v381 = vld [vmem:[%s335 + $0x160] sm:$0xff]
                  %382 = vst [vmem:[%s336 + $0xb0] sm:$0xff] %v381
                  %v383 = vld [vmem:[%s335 + $0x170] sm:$0xff]
                  %384 = vst [vmem:[%s336 + $0xb8] sm:$0xff] %v383
                  %v385 = vld [vmem:[%s335 + $0x180] sm:$0xff]
                  %386 = vst [vmem:[%s336 + $0xc0] sm:$0xff] %v385
                  %v387 = vld [vmem:[%s335 + $0x190] sm:$0xff]
                  %388 = vst [vmem:[%s336 + $0xc8] sm:$0xff] %v387
                  %v389 = vld [vmem:[%s335 + $0x1a0] sm:$0xff]
                  %390 = vst [vmem:[%s336 + $0xd0] sm:$0xff] %v389
                  %v391 = vld [vmem:[%s335 + $0x1b0] sm:$0xff]
                  %392 = vst [vmem:[%s336 + $0xd8] sm:$0xff] %v391
                  %v393 = vld [vmem:[%s335 + $0x1c0] sm:$0xff]
                  %394 = vst [vmem:[%s336 + $0xe0] sm:$0xff] %v393
                  %v395 = vld [vmem:[%s335 + $0x1d0] sm:$0xff]
                  %396 = vst [vmem:[%s336 + $0xe8] sm:$0xff] %v395
                  %v397 = vld [vmem:[%s335 + $0x1e0] sm:$0xff]
                  %398 = vst [vmem:[%s336 + $0xf0] sm:$0xff] %v397
                  %v399 = vld [vmem:[%s335 + $0x1f0] sm:$0xff]
                  %400 = vst [vmem:[%s336 + $0xf8] sm:$0xff] %v399
                $region86: #{resnet_trunk_forward.24} parent=80 // loop_footer
                  %s334 = sadd.s32 1, %s330
                $region87: #{resnet_trunk_forward.24} parent=80 // loop_footer_branch
                  %329 = sbr.rel target = $region83
                $region88: #{resnet_trunk_forward.24} parent=80 // loop_exit
                  _
              $region81: #{resnet_trunk_forward.24} parent=65 // pred_fallthru
                _
              // Predicated region
              $region89: #{resnet_trunk_forward.24} parent=65 // pred_check
                _
              $region90: #{resnet_trunk_forward.24} parent=65 // pred_check_branch
                %402 = sbr.rel target = $region92
              $region91: #{resnet_trunk_forward.24} parent=65 // pred_region
                _
              $region92: #{resnet_trunk_forward.24} parent=65 // pred_fallthru
                _
            $region66: #{resnet_trunk_forward.24} parent=61 // pred_fallthru
              _
            // Predicated region
            $region67: #{resnet_trunk_forward.24} parent=61 // pred_check
              _
            $region68: #{resnet_trunk_forward.24} parent=61 // pred_check_branch
              %252 = sbr.rel target = $region70
            $region69: #{resnet_trunk_forward.24} parent=61 // pred_region
              %s254 = ssub.s32 256, 1
              loop: start=0, step=1, limit=1
              $region71: #{resnet_trunk_forward.24} parent=69 // loop_pre_header
                _
              $region72: #{resnet_trunk_forward.24} parent=69 // loop_header
                %s256 = sphi 0, %s260
                %p257 = scmp.ge.s32.totalorder %s256, 1
                %s261 = sphi %s246, %s246
                %s262 = sphi %s240, %s240
              $region73: #{resnet_trunk_forward.24} parent=69 // loop_header_branch
                %259 = sbr.rel (%p257) target = $region77
              $region74: #{resnet_trunk_forward.24} parent=69 // loop_body
                %v263 = vld [vmem:[%s261] sm:%s254]
                %264 = vst [vmem:[%s262] sm:%s254] %v263
                %v265 = vld [vmem:[%s261 + $0x10] sm:%s254]
                %266 = vst [vmem:[%s262 + $0x8] sm:%s254] %v265
                %v267 = vld [vmem:[%s261 + $0x20] sm:%s254]
                %268 = vst [vmem:[%s262 + $0x10] sm:%s254] %v267
                %v269 = vld [vmem:[%s261 + $0x30] sm:%s254]
                %270 = vst [vmem:[%s262 + $0x18] sm:%s254] %v269
                %v271 = vld [vmem:[%s261 + $0x40] sm:%s254]
                %272 = vst [vmem:[%s262 + $0x20] sm:%s254] %v271
                %v273 = vld [vmem:[%s261 + $0x50] sm:%s254]
                %274 = vst [vmem:[%s262 + $0x28] sm:%s254] %v273
                %v275 = vld [vmem:[%s261 + $0x60] sm:%s254]
                %276 = vst [vmem:[%s262 + $0x30] sm:%s254] %v275
                %v277 = vld [vmem:[%s261 + $0x70] sm:%s254]
                %278 = vst [vmem:[%s262 + $0x38] sm:%s254] %v277
                %v279 = vld [vmem:[%s261 + $0x80] sm:%s254]
                %280 = vst [vmem:[%s262 + $0x40] sm:%s254] %v279
                %v281 = vld [vmem:[%s261 + $0x90] sm:%s254]
                %282 = vst [vmem:[%s262 + $0x48] sm:%s254] %v281
                %v283 = vld [vmem:[%s261 + $0xa0] sm:%s254]
                %284 = vst [vmem:[%s262 + $0x50] sm:%s254] %v283
                %v285 = vld [vmem:[%s261 + $0xb0] sm:%s254]
                %286 = vst [vmem:[%s262 + $0x58] sm:%s254] %v285
                %v287 = vld [vmem:[%s261 + $0xc0] sm:%s254]
                %288 = vst [vmem:[%s262 + $0x60] sm:%s254] %v287
                %v289 = vld [vmem:[%s261 + $0xd0] sm:%s254]
                %290 = vst [vmem:[%s262 + $0x68] sm:%s254] %v289
                %v291 = vld [vmem:[%s261 + $0xe0] sm:%s254]
                %292 = vst [vmem:[%s262 + $0x70] sm:%s254] %v291
                %v293 = vld [vmem:[%s261 + $0xf0] sm:%s254]
                %294 = vst [vmem:[%s262 + $0x78] sm:%s254] %v293
                %v295 = vld [vmem:[%s261 + $0x100] sm:%s254]
                %296 = vst [vmem:[%s262 + $0x80] sm:%s254] %v295
                %v297 = vld [vmem:[%s261 + $0x110] sm:%s254]
                %298 = vst [vmem:[%s262 + $0x88] sm:%s254] %v297
                %v299 = vld [vmem:[%s261 + $0x120] sm:%s254]
                %300 = vst [vmem:[%s262 + $0x90] sm:%s254] %v299
                %v301 = vld [vmem:[%s261 + $0x130] sm:%s254]
                %302 = vst [vmem:[%s262 + $0x98] sm:%s254] %v301
                %v303 = vld [vmem:[%s261 + $0x140] sm:%s254]
                %304 = vst [vmem:[%s262 + $0xa0] sm:%s254] %v303
                %v305 = vld [vmem:[%s261 + $0x150] sm:%s254]
                %306 = vst [vmem:[%s262 + $0xa8] sm:%s254] %v305
                %v307 = vld [vmem:[%s261 + $0x160] sm:%s254]
                %308 = vst [vmem:[%s262 + $0xb0] sm:%s254] %v307
                %v309 = vld [vmem:[%s261 + $0x170] sm:%s254]
                %310 = vst [vmem:[%s262 + $0xb8] sm:%s254] %v309
                %v311 = vld [vmem:[%s261 + $0x180] sm:%s254]
                %312 = vst [vmem:[%s262 + $0xc0] sm:%s254] %v311
                %v313 = vld [vmem:[%s261 + $0x190] sm:%s254]
                %314 = vst [vmem:[%s262 + $0xc8] sm:%s254] %v313
                %v315 = vld [vmem:[%s261 + $0x1a0] sm:%s254]
                %316 = vst [vmem:[%s262 + $0xd0] sm:%s254] %v315
                %v317 = vld [vmem:[%s261 + $0x1b0] sm:%s254]
                %318 = vst [vmem:[%s262 + $0xd8] sm:%s254] %v317
                %v319 = vld [vmem:[%s261 + $0x1c0] sm:%s254]
                %320 = vst [vmem:[%s262 + $0xe0] sm:%s254] %v319
                %v321 = vld [vmem:[%s261 + $0x1d0] sm:%s254]
                %322 = vst [vmem:[%s262 + $0xe8] sm:%s254] %v321
                %v323 = vld [vmem:[%s261 + $0x1e0] sm:%s254]
                %324 = vst [vmem:[%s262 + $0xf0] sm:%s254] %v323
                %v325 = vld [vmem:[%s261 + $0x1f0] sm:%s254]
                %326 = vst [vmem:[%s262 + $0xf8] sm:%s254] %v325
              $region75: #{resnet_trunk_forward.24} parent=69 // loop_footer
                %s260 = sadd.s32 1, %s256
              $region76: #{resnet_trunk_forward.24} parent=69 // loop_footer_branch
                %255 = sbr.rel target = $region72
              $region77: #{resnet_trunk_forward.24} parent=69 // loop_exit
                _
            $region70: #{resnet_trunk_forward.24} parent=61 // pred_fallthru
              _
          $region62: #{resnet_trunk_forward.24} parent=57 // pred_fallthru
            _
          %403 = vnop
        $region58: #{resnet_trunk_forward.24} parent=15 // pred_fallthru
          _
        // Predicated region
        $region93: #{resnet_trunk_forward.24} parent=15 // pred_check
          %p404 = pneg %p105
        $region94: #{resnet_trunk_forward.24} parent=15 // pred_check_branch
          %406 = sbr.rel (%p404) target = $region96
        $region95: #{resnet_trunk_forward.24} parent=15 // pred_region
          %s407 = smul.u32 2, %s18
          %p408 = scmp.lt.s32.totalorder %s407, 3
          %s409 = scalar_select %p408, %s407, 3
          %s410 = scalar_lea.vmem %s2, %s409
          %s411 = smul.u32 2, %s18
        $region96: #{resnet_trunk_forward.24} parent=15 // pred_fallthru
          _
        // Predicated region
        $region97: #{resnet_trunk_forward.24} parent=15 // pred_check
          %p412 = pneg %p131
        $region98: #{resnet_trunk_forward.24} parent=15 // pred_check_branch
          %414 = sbr.rel (%p412) target = $region100
        $region99: #{resnet_trunk_forward.24} parent=15 // pred_region
          %s415 = smul.u32 2, %s18
          %p416 = scmp.lt.s32.totalorder %s415, 3
          %s417 = scalar_select %p416, %s415, 3
          %s418 = scalar_lea.vmem %s3, %s417
          %s419 = smul.u32 2, %s18
        $region100: #{resnet_trunk_forward.24} parent=15 // pred_fallthru
          _
      $region16: #{resnet_trunk_forward.24} parent=5 // pred_fallthru
        _
      %p420 = scmp.le.s32.totalorder 1, %s10
      %p421 = scmp.lt.s32.totalorder %s10, 19
      %p422 = pnand %p420, %p421
      %p423 = pneg %p422
      // Predicated region
      $region101: #{resnet_trunk_forward.24} parent=5 // pred_check
        _
      $region102: #{resnet_trunk_forward.24} parent=5 // pred_check_branch
        %425 = sbr.rel (%p422) target = $region104
      $region103: #{resnet_trunk_forward.24} parent=5 // pred_region
        %s426 = ssub.s32 %s10, 1
        %s427 = sand.u32 %s44, 1
        %s428 = sand.u32 %s44, 1
        %s429 = smul.addr %s428, 16
        %s430 = scalar_lea.vmem [#allocation3], %s429
        // Predicated region
        $region105: #{resnet_trunk_forward.24} parent=103 // pred_check
          %p431 = pneg %p57
        $region106: #{resnet_trunk_forward.24} parent=103 // pred_check_branch
          %433 = sbr.rel (%p431) target = $region108
        $region107: #{resnet_trunk_forward.24} parent=103 // pred_region
          _
        $region108: #{resnet_trunk_forward.24} parent=103 // pred_fallthru
          _
        %s434 = sand.u32 %s72, 1
        %s435 = sand.u32 %s72, 1
        %s436 = smul.addr %s435, 256
        %s437 = scalar_lea.vmem [#allocation4], %s436
        // Predicated region
        $region109: #{resnet_trunk_forward.24} parent=103 // pred_check
          %p438 = pneg %p85
        $region110: #{resnet_trunk_forward.24} parent=103 // pred_check_branch
          %440 = sbr.rel (%p438) target = $region112
        $region111: #{resnet_trunk_forward.24} parent=103 // pred_region
          _
        $region112: #{resnet_trunk_forward.24} parent=103 // pred_fallthru
          _
        %s441 = sand.u32 %s44, 1
        %s442 = sand.u32 %s44, 1
        %s443 = smul.addr %s442, 16
        %s444 = scalar_lea.vmem [#allocation3], %s443
        %p445 = pneg %p57
        %p446 = pneg %p54
        %s447 = sand.u32 %s72, 1
        %s448 = sand.u32 %s72, 1
        %s449 = smul.addr %s448, 256
        %s450 = scalar_lea.vmem [#allocation4], %s449
        %p451 = pneg %p85
        %p452 = pneg %p82
        %s453 = smul.u32 2, %s21
        %p454 = scmp.lt.s32.totalorder %s453, 3
        %s455 = scalar_select %p454, %s453, 3
        %s456 = scalar_lea.vmem %s2, %s455
        %p457 = pneg %p111
        %p458 = pneg %p108
        %s459 = smul.u32 2, %s21
        %p460 = scmp.lt.s32.totalorder %s459, 3
        %s461 = scalar_select %p460, %s459, 3
        %s462 = scalar_lea.vmem %s3, %s461
        %p463 = pneg %p137
        %p464 = pneg %p134
        %p465 = pneg %p165
        %p466 = pneg %p162
        %s467 = sand.u32 %s152, 1
        %s468 = sand.u32 %s152, 1
        %s469 = smul.addr %s468, 32
        %s470 = scalar_lea.vmem [#allocation5], %s469
        %s471 = smul.u32 2, %s20
        %s472 = smul.u32 2, %s22
        %s473 = smul.u32 32, %s22
        %s474 = smul.u32 2, %s21
        %s475 = smul.u32 2, %s21
        %p476 = scmp.lt.s32.totalorder %s475, 3
        %s477 = scalar_select %p476, %s475, 3
        %s478 = scalar_lea.vmem %s2, %s477
        %s479 = smul.u32 2, %s21
        %s480 = smul.u32 2, %s21
        %p481 = scmp.lt.s32.totalorder %s480, 3
        %s482 = scalar_select %p481, %s480, 3
        %s483 = scalar_lea.vmem %s3, %s482
        %s484 = smul.u32 2, %s21
        %s485 = smul.u32 2, %s20
        %s486 = smul.u32 2, %s21
        %p487 = scmp.eq.s32.totalorder %s22, 0
        // Predicated region
        $region113: #{resnet_trunk_forward.24} parent=103 // pred_check
          %p488 = pneg %p487
        $region114: #{resnet_trunk_forward.24} parent=103 // pred_check_branch
          %490 = sbr.rel (%p488) target = $region116
        $region115: #{resnet_trunk_forward.24} parent=103 // pred_region
          %491 = vst [vmem:[#allocation2] sm:$0xff] 0.0
          %492 = vst [vmem:[#allocation2 + $0x8] sm:$0xff] 0.0
          %493 = vst [vmem:[#allocation2 + $0x10] sm:$0xff] 0.0
          %494 = vst [vmem:[#allocation2 + $0x18] sm:$0xff] 0.0
        $region116: #{resnet_trunk_forward.24} parent=103 // pred_fallthru
          _
        %v495 = vld [vmem:[#allocation2] sm:$0xff]
        %v496 = vld [vmem:[#allocation2 + $0x8] sm:$0xff]
        %v497 = vld [vmem:[#allocation2 + $0x10] sm:$0xff]
        %v498 = vld [vmem:[#allocation2 + $0x18] sm:$0xff]
        %v499 = vld [vmem:[%s430] sm:$0xff]
        %v500 = vld [vmem:[%s430 + $0x8] sm:$0xff]
        %v501 = vld [vmem:[%s437] sm:$0xff]
        %v502 = vld [vmem:[%s437 + $0x8] sm:$0xff]
        %v503 = vld [vmem:[%s437 + $0x10] sm:$0xff]
        %v504 = vld [vmem:[%s437 + $0x18] sm:$0xff]
        %v505 = vld [vmem:[%s437 + $0x20] sm:$0xff]
        %v506 = vld [vmem:[%s437 + $0x28] sm:$0xff]
        %v507 = vld [vmem:[%s437 + $0x30] sm:$0xff]
        %v508 = vld [vmem:[%s437 + $0x38] sm:$0xff]
        %v509 = vld [vmem:[%s437 + $0x40] sm:$0xff]
        %v510 = vld [vmem:[%s437 + $0x48] sm:$0xff]
        %v511 = vld [vmem:[%s437 + $0x50] sm:$0xff]
        %v512 = vld [vmem:[%s437 + $0x58] sm:$0xff]
        %v513 = vld [vmem:[%s437 + $0x60] sm:$0xff]
        %v514 = vld [vmem:[%s437 + $0x68] sm:$0xff]
        %v515 = vld [vmem:[%s437 + $0x70] sm:$0xff]
        %v516 = vld [vmem:[%s437 + $0x78] sm:$0xff]
        %v517 = vld [vmem:[%s437 + $0x80] sm:$0xff]
        %v518 = vld [vmem:[%s437 + $0x88] sm:$0xff]
        %v519 = vld [vmem:[%s437 + $0x90] sm:$0xff]
        %v520 = vld [vmem:[%s437 + $0x98] sm:$0xff]
        %v521 = vld [vmem:[%s437 + $0xa0] sm:$0xff]
        %v522 = vld [vmem:[%s437 + $0xa8] sm:$0xff]
        %v523 = vld [vmem:[%s437 + $0xb0] sm:$0xff]
        %v524 = vld [vmem:[%s437 + $0xb8] sm:$0xff]
        %v525 = vld [vmem:[%s437 + $0xc0] sm:$0xff]
        %v526 = vld [vmem:[%s437 + $0xc8] sm:$0xff]
        %v527 = vld [vmem:[%s437 + $0xd0] sm:$0xff]
        %v528 = vld [vmem:[%s437 + $0xd8] sm:$0xff]
        %v529 = vld [vmem:[%s437 + $0xe0] sm:$0xff]
        %v530 = vld [vmem:[%s437 + $0xe8] sm:$0xff]
        %v531 = vld [vmem:[%s437 + $0xf0] sm:$0xff]
        %v532 = vld [vmem:[%s437 + $0xf8] sm:$0xff]
        %v535 = vunpack.c.l.b16 %v499
        %v536 = vunpack.c.h.b16 %v499
        %v537 = vunpack.c.l.b16 %v500
        %v538 = vunpack.c.h.b16 %v500
        %v539 = vpack.c.b16 %v537, %v535
        %v540 = vpack.c.b16 %v538, %v536
        %v575 = vunpack.c.l.b16 %v501
        %v576 = vunpack.c.h.b16 %v501
        %v577 = vunpack.c.l.b16 %v502
        %v578 = vunpack.c.h.b16 %v502
        %v579 = vunpack.c.l.b16 %v503
        %v580 = vunpack.c.h.b16 %v503
        %v581 = vunpack.c.l.b16 %v504
        %v582 = vunpack.c.h.b16 %v504
        %v583 = vunpack.c.l.b16 %v505
        %v584 = vunpack.c.h.b16 %v505
        %v585 = vunpack.c.l.b16 %v506
        %v586 = vunpack.c.h.b16 %v506
        %v587 = vunpack.c.l.b16 %v507
        %v588 = vunpack.c.h.b16 %v507
        %v589 = vunpack.c.l.b16 %v508
        %v590 = vunpack.c.h.b16 %v508
        %v591 = vunpack.c.l.b16 %v509
        %v592 = vunpack.c.h.b16 %v509
        %v593 = vunpack.c.l.b16 %v510
        %v594 = vunpack.c.h.b16 %v510
        %v595 = vunpack.c.l.b16 %v511
        %v596 = vunpack.c.h.b16 %v511
        %v597 = vunpack.c.l.b16 %v512
        %v598 = vunpack.c.h.b16 %v512
        %v599 = vunpack.c.l.b16 %v513
        %v600 = vunpack.c.h.b16 %v513
        %v601 = vunpack.c.l.b16 %v514
        %v602 = vunpack.c.h.b16 %v514
        %v603 = vunpack.c.l.b16 %v515
        %v604 = vunpack.c.h.b16 %v515
        %v605 = vunpack.c.l.b16 %v516
        %v606 = vunpack.c.h.b16 %v516
        %v607 = vunpack.c.l.b16 %v517
        %v608 = vunpack.c.h.b16 %v517
        %v609 = vunpack.c.l.b16 %v518
        %v610 = vunpack.c.h.b16 %v518
        %v611 = vunpack.c.l.b16 %v519
        %v612 = vunpack.c.h.b16 %v519
        %v613 = vunpack.c.l.b16 %v520
        %v614 = vunpack.c.h.b16 %v520
        %v615 = vunpack.c.l.b16 %v521
        %v616 = vunpack.c.h.b16 %v521
        %v617 = vunpack.c.l.b16 %v522
        %v618 = vunpack.c.h.b16 %v522
        %v619 = vunpack.c.l.b16 %v523
        %v620 = vunpack.c.h.b16 %v523
        %v621 = vunpack.c.l.b16 %v524
        %v622 = vunpack.c.h.b16 %v524
        %v623 = vunpack.c.l.b16 %v525
        %v624 = vunpack.c.h.b16 %v525
        %v625 = vunpack.c.l.b16 %v526
        %v626 = vunpack.c.h.b16 %v526
        %v627 = vunpack.c.l.b16 %v527
        %v628 = vunpack.c.h.b16 %v527
        %v629 = vunpack.c.l.b16 %v528
        %v630 = vunpack.c.h.b16 %v528
        %v631 = vunpack.c.l.b16 %v529
        %v632 = vunpack.c.h.b16 %v529
        %v633 = vunpack.c.l.b16 %v530
        %v634 = vunpack.c.h.b16 %v530
        %v635 = vunpack.c.l.b16 %v531
        %v636 = vunpack.c.h.b16 %v531
        %v637 = vunpack.c.l.b16 %v532
        %v638 = vunpack.c.h.b16 %v532
        %v639 = vpack.c.b16 %v577, %v575
        %v640 = vpack.c.b16 %v578, %v576
        %v641 = vpack.c.b16 %v581, %v579
        %v642 = vpack.c.b16 %v582, %v580
        %v643 = vpack.c.b16 %v585, %v583
        %v644 = vpack.c.b16 %v586, %v584
        %v645 = vpack.c.b16 %v589, %v587
        %v646 = vpack.c.b16 %v590, %v588
        %v647 = vpack.c.b16 %v593, %v591
        %v648 = vpack.c.b16 %v594, %v592
        %v649 = vpack.c.b16 %v597, %v595
        %v650 = vpack.c.b16 %v598, %v596
        %v651 = vpack.c.b16 %v601, %v599
        %v652 = vpack.c.b16 %v602, %v600
        %v653 = vpack.c.b16 %v605, %v603
        %v654 = vpack.c.b16 %v606, %v604
        %v655 = vpack.c.b16 %v609, %v607
        %v656 = vpack.c.b16 %v610, %v608
        %v657 = vpack.c.b16 %v613, %v611
        %v658 = vpack.c.b16 %v614, %v612
        %v659 = vpack.c.b16 %v617, %v615
        %v660 = vpack.c.b16 %v618, %v616
        %v661 = vpack.c.b16 %v621, %v619
        %v662 = vpack.c.b16 %v622, %v620
        %v663 = vpack.c.b16 %v625, %v623
        %v664 = vpack.c.b16 %v626, %v624
        %v665 = vpack.c.b16 %v629, %v627
        %v666 = vpack.c.b16 %v630, %v628
        %v667 = vpack.c.b16 %v633, %v631
        %v668 = vpack.c.b16 %v634, %v632
        %v669 = vpack.c.b16 %v637, %v635
        %v670 = vpack.c.b16 %v638, %v636
        %703 = vmatprep.subr.bf16.mxu0 %v654
        %704 = vmatpush1.bf16.msra.mxu0 %v653
        %705 = vmatprep.subr.bf16.mxu0 %v652
        %706 = vmatpush1.bf16.msra.mxu0 %v651
        %707 = vmatprep.subr.bf16.mxu0 %v650
        %708 = vmatpush1.bf16.msra.mxu0 %v649
        %709 = vmatprep.subr.bf16.mxu0 %v648
        %710 = vmatpush1.bf16.msra.mxu0 %v647
        %711 = vmatprep.subr.bf16.mxu0 %v646
        %712 = vmatpush1.bf16.msra.mxu0 %v645
        %713 = vmatprep.subr.bf16.mxu0 %v644
        %714 = vmatpush1.bf16.msra.mxu0 %v643
        %715 = vmatprep.subr.bf16.mxu0 %v642
        %716 = vmatpush1.bf16.msra.mxu0 %v641
        %717 = vmatprep.subr.bf16.mxu0 %v640
        %718 = vmatpush1.bf16.msra.mxu0 %v639
        %719 = vmatprep.subr.bf16.mxu0 %v670
        %720 = vmatpush2.bf16.msra.mxu0 %v669
        %721 = vmatprep.subr.bf16.mxu0 %v668
        %722 = vmatpush2.bf16.msra.mxu0 %v667
        %723 = vmatprep.subr.bf16.mxu0 %v666
        %724 = vmatpush2.bf16.msra.mxu0 %v665
        %725 = vmatprep.subr.bf16.mxu0 %v664
        %726 = vmatpush2.bf16.msra.mxu0 %v663
        %727 = vmatprep.subr.bf16.mxu0 %v662
        %728 = vmatpush2.bf16.msra.mxu0 %v661
        %729 = vmatprep.subr.bf16.mxu0 %v660
        %730 = vmatpush2.bf16.msra.mxu0 %v659
        %731 = vmatprep.subr.bf16.mxu0 %v658
        %732 = vmatpush2.bf16.msra.mxu0 %v657
        %733 = vmatprep.subr.bf16.mxu0 %v656
        %734 = vmatpush2.bf16.msra.mxu0 %v655
        %735 = vmatprep.mubr.bf16.mxu0 %v540
        %736 = vmatmul.mubr.bf16.gmra.mxu0 %v539
        %v737 = vpop.f32.mrf.mxu0
        %v738 = vadd.f32 0.0, %v737
        %v739 = vpop.f32.mrf.mxu0
        %v740 = vadd.f32 0.0, %v739
        %v741 = vpop.f32.mrf.mxu0
        %v742 = vadd.f32 0.0, %v741
        %v743 = vpop.f32.mrf.mxu0
        %v744 = vadd.f32 0.0, %v743
        %745 = vdwg.mxu0
        %v746 = vadd.f32 %v495, %v738
        %v747 = vadd.f32 %v496, %v740
        %v748 = vadd.f32 %v497, %v742
        %v749 = vadd.f32 %v498, %v744
        %750 = vst [vmem:[#allocation2] sm:$0xff] %v746
        %751 = vst [vmem:[#allocation2 + $0x8] sm:$0xff] %v747
        %752 = vst [vmem:[#allocation2 + $0x10] sm:$0xff] %v748
        %753 = vst [vmem:[#allocation2 + $0x18] sm:$0xff] %v749
        %p754 = scmp.eq.s32.totalorder %s22, 8
        // Predicated region
        $region117: #{resnet_trunk_forward.24} parent=103 // pred_check
          %p755 = pneg %p754
        $region118: #{resnet_trunk_forward.24} parent=103 // pred_check_branch
          %757 = sbr.rel (%p755) target = $region120
        $region119: #{resnet_trunk_forward.24} parent=103 // pred_region
          %v758 = vld [vmem:[#allocation2] sm:$0xff]
          %v759 = vld [vmem:[#allocation2 + $0x8] sm:$0xff]
          %v760 = vld [vmem:[#allocation2 + $0x10] sm:$0xff]
          %v761 = vld [vmem:[#allocation2 + $0x18] sm:$0xff]
          %v762 = vld [vmem:[%s478] sm:$0x3]
          %v764 = vlaneseq
          %v765 = vshrl.u32 %v764, 7
          %v766 = vsub.s32 0, %v765
          %v767 = vrot.slane %v762, %v766
          %v768 = vlaneseq
          %v769 = vshrl.u32 %v768, 7
          %v770 = vsub.s32 1, %v769
          %v771 = vrot.slane %v762, %v770
          %v774 = vmul.f32 %v758, %v767
          %v775 = vmul.f32 %v759, %v771
          %v776 = vmul.f32 %v760, %v767
          %v777 = vmul.f32 %v761, %v771
          %v778 = vld [vmem:[%s483] sm:$0x3]
          %v780 = vlaneseq
          %v781 = vshrl.u32 %v780, 7
          %v782 = vsub.s32 0, %v781
          %v783 = vrot.slane %v778, %v782
          %v784 = vlaneseq
          %v785 = vshrl.u32 %v784, 7
          %v786 = vsub.s32 1, %v785
          %v787 = vrot.slane %v778, %v786
          %v790 = vadd.f32 %v774, %v783
          %v791 = vadd.f32 %v775, %v787
          %v792 = vadd.f32 %v776, %v783
          %v793 = vadd.f32 %v777, %v787
          %v794 = vmax.f32 %v790, 0.0
          %v795 = vmax.f32 %v791, 0.0
          %v796 = vmax.f32 %v792, 0.0
          %v797 = vmax.f32 %v793, 0.0
          %798 = vst [vmem:[%s470] sm:$0xff] %v794
          %799 = vst [vmem:[%s470 + $0x8] sm:$0xff] %v795
          %800 = vst [vmem:[%s470 + $0x10] sm:$0xff] %v796
          %801 = vst [vmem:[%s470 + $0x18] sm:$0xff] %v797
        $region120: #{resnet_trunk_forward.24} parent=103 // pred_fallthru
          _
        %s802 = sand.u32 %s152, 1
        %s803 = sand.u32 %s152, 1
        %s804 = smul.addr %s803, 32
        %s805 = scalar_lea.vmem [#allocation5], %s804
        // Predicated region
        $region121: #{resnet_trunk_forward.24} parent=103 // pred_check
          %p806 = pneg %p162
        $region122: #{resnet_trunk_forward.24} parent=103 // pred_check_branch
          %808 = sbr.rel (%p806) target = $region124
        $region123: #{resnet_trunk_forward.24} parent=103 // pred_region
          %s809 = smul.u32 2, %s20
          %s810 = smul.u32 2, %s21
          %s811 = smul.addr %s809, 4
          %s812 = sadd.s32 %s810, %s811
          %s813 = smul.addr %s812, 8
          %s814 = scalar_lea.vmem %s4, %s813
          // Predicated region
          $region125: #{resnet_trunk_forward.24} parent=123 // pred_check
            _
          $region126: #{resnet_trunk_forward.24} parent=123 // pred_check_branch
            %816 = sbr.rel (0) target = $region128
          $region127: #{resnet_trunk_forward.24} parent=123 // pred_region
            // Predicated region
            $region129: #{resnet_trunk_forward.24} parent=127 // pred_check
              _
            $region130: #{resnet_trunk_forward.24} parent=127 // pred_check_branch
              %818 = sbr.rel (0) target = $region132
            $region131: #{resnet_trunk_forward.24} parent=127 // pred_region
              loop: start=0, step=1, limit=1
              $region133: #{resnet_trunk_forward.24} parent=131 // loop_pre_header
                _
              $region134: #{resnet_trunk_forward.24} parent=131 // loop_header
                %s820 = sphi 0, %s824
                %p821 = scmp.ge.s32.totalorder %s820, 1
                %s825 = sphi %s805, %s805
                %s826 = sphi %s814, %s814
              $region135: #{resnet_trunk_forward.24} parent=131 // loop_header_branch
                %823 = sbr.rel (%p821) target = $region139
              $region136: #{resnet_trunk_forward.24} parent=131 // loop_body
                %v827 = vld [vmem:[%s825] sm:$0xff]
                %828 = vst [vmem:[%s826] sm:$0xff] %v827
                %v829 = vld [vmem:[%s825 + $0x8] sm:$0xff]
                %830 = vst [vmem:[%s826 + $0x8] sm:$0xff] %v829
                %v831 = vld [vmem:[%s825 + $0x10] sm:$0xff]
                %832 = vst [vmem:[%s826 + $0x20] sm:$0xff] %v831
                %v833 = vld [vmem:[%s825 + $0x18] sm:$0xff]
                %834 = vst [vmem:[%s826 + $0x28] sm:$0xff] %v833
              $region137: #{resnet_trunk_forward.24} parent=131 // loop_footer
                %s824 = sadd.s32 1, %s820
              $region138: #{resnet_trunk_forward.24} parent=131 // loop_footer_branch
                %819 = sbr.rel target = $region134
              $region139: #{resnet_trunk_forward.24} parent=131 // loop_exit
                _
            $region132: #{resnet_trunk_forward.24} parent=127 // pred_fallthru
              _
            // Predicated region
            $region140: #{resnet_trunk_forward.24} parent=127 // pred_check
              _
            $region141: #{resnet_trunk_forward.24} parent=127 // pred_check_branch
              %836 = sbr.rel target = $region143
            $region142: #{resnet_trunk_forward.24} parent=127 // pred_region
              _
            $region143: #{resnet_trunk_forward.24} parent=127 // pred_fallthru
              _
          $region128: #{resnet_trunk_forward.24} parent=123 // pred_fallthru
            _
          %837 = vnop
        $region124: #{resnet_trunk_forward.24} parent=103 // pred_fallthru
          _
      $region104: #{resnet_trunk_forward.24} parent=5 // pred_fallthru
        _
      %p838 = scmp.le.s32.totalorder 2, %s10
      // Predicated region
      $region144: #{resnet_trunk_forward.24} parent=5 // pred_check
        %p839 = pneg %p838
      $region145: #{resnet_trunk_forward.24} parent=5 // pred_check_branch
        %841 = sbr.rel (%p839) target = $region147
      $region146: #{resnet_trunk_forward.24} parent=5 // pred_region
        %s842 = ssub.s32 %s10, 2
        // Predicated region
        $region148: #{resnet_trunk_forward.24} parent=146 // pred_check
          %p843 = pneg %p168
        $region149: #{resnet_trunk_forward.24} parent=146 // pred_check_branch
          %845 = sbr.rel (%p843) target = $region151
        $region150: #{resnet_trunk_forward.24} parent=146 // pred_region
          %s846 = sand.u32 %s153, 1
          %s847 = sand.u32 %s153, 1
          %s848 = smul.addr %s847, 32
          %s849 = scalar_lea.vmem [#allocation5], %s848
        $region151: #{resnet_trunk_forward.24} parent=146 // pred_fallthru
          _
      $region147: #{resnet_trunk_forward.24} parent=5 // pred_fallthru
        _
    $region6: #{resnet_trunk_forward.24} parent=1 // loop_footer
      %s14 = sadd.s32 1, %s10
    $region7: #{resnet_trunk_forward.24} parent=1 // loop_footer_branch
      %9 = sbr.rel target = $region3
    $region8: #{resnet_trunk_forward.24} parent=1 // loop_exit
      _

// kernel: resnet_trunk_forward.23
$region0: #{resnet_trunk_forward.23}
  #allocation0 [shape = 'u32[]', space=smem, size = 0x4, offset = 0x4, fixed_abs, tag = 'smem constant byte address 0x4 - core index']
  #allocation1 [shape = 'u32[144,128]{1,0:T(1,128)}', space=vmem, size = 0x12000, scoped, tag = 'internal scratch']
  #allocation2 [shape = 'f32[16,256]{1,0:T(8,128)}', space=vmem, size = 0x4000, scoped, tag = 'scratch operand']
  %s0 = inlined_call_operand.vmem [shape: bf16[16,256], index: 0, kind: input, shape index: {}]
  %s1 = inlined_call_operand.vmem [shape: bf16[256,512], index: 1, kind: input, shape index: {}]
  %s2 = inlined_call_operand.vmem [shape: f32[1,512], index: 2, kind: input, shape index: {}]
  %s3 = inlined_call_operand.vmem [shape: f32[1,512], index: 3, kind: input, shape index: {}]
  %s4 = inlined_call_operand.vmem [shape: f32[16,512], index: 4, kind: output, shape index: {}]
  %s5 = sld [smem:[#allocation0]]
  $region114: #{resnet_trunk_forward.23} parent=0
    _
  %s7 = ssub.s32 1, %s5
  %s8 = scalar_select 0, %s7, %s5
  $region1: #{resnet_trunk_forward.23} parent=0
    #allocation3 [shape = 'u8[262144]{0}', space=vmem, size = 0x40000, scoped, tag = 'input window, operand 1']
    #allocation4 [shape = 'u8[32768]{0}', space=vmem, size = 0x8000, scoped, tag = 'output window, operand 0']
    loop: start=0, step=1, limit=4
    $region2: #{resnet_trunk_forward.23} parent=1 // loop_pre_header
      _
    $region3: #{resnet_trunk_forward.23} parent=1 // loop_header
      %s10 = sphi 0, %s14
      %p11 = scmp.ge.s32.totalorder %s10, 4
      %s17 = sphi 0, %s36
      %s18 = sphi 0, %s32
      %s19 = sphi 0, %s28
      %s20 = sphi 0, %s17
      %s21 = sphi 0, %s18
      %s22 = sphi 0, %s19
      %s23 = sphi 0, %s20
      %s24 = sphi 0, %s21
      %s25 = sphi 0, %s22
      %s41 = sphi 0, %s43
      %s44 = sphi 0, %s41
      %s45 = sphi 0, %s44
      %s61 = sphi 0, %s45
      %s69 = sphi 0, %s71
      %s72 = sphi 0, %s69
      %s73 = sphi 0, %s72
      %s89 = sphi 0, %s73
      %s95 = sphi 0, %s97
      %s98 = sphi 0, %s95
      %s99 = sphi 0, %s98
      %s115 = sphi 0, %s99
      %s121 = sphi 0, %s123
      %s124 = sphi 0, %s121
      %s125 = sphi 0, %s124
      %s141 = sphi 0, %s125
      %s149 = sphi 0, %s151
      %s152 = sphi 0, %s149
      %s153 = sphi 0, %s152
      %s169 = sphi 0, %s153
    $region4: #{resnet_trunk_forward.23} parent=1 // loop_header_branch
      %13 = sbr.rel (%p11) target = $region8
    $region5: #{resnet_trunk_forward.23} parent=1 // loop_body
      %s15 = ssub.s32 %s10, 1
      %s16 = ssub.s32 %s10, 2
      %s26 = sadd.s32 1, %s19
      %p27 = scmp.ge.s32.totalorder %s26, 1
      %s28 = scalar_select %p27, 0, %s26
      %s29 = sadd.s32 1, %s18
      %s30 = scalar_select %p27, %s29, %s18
      %p31 = scmp.ge.s32.totalorder %s30, 2
      %s32 = scalar_select %p31, 0, %s30
      %s33 = sadd.s32 1, %s17
      %s34 = scalar_select %p31, %s33, %s17
      %p35 = scmp.ge.s32.totalorder %s34, 1
      %s36 = scalar_select %p35, 0, %s34
      %s37 = ssub.s32 %s17, %s36
      %s38 = ssub.s32 %s19, %s28
      %s39 = sor.u32 %s37, %s38
      %p40 = scmp.eq.s32.totalorder %s39, 0
      %s42 = sadd.s32 %s41, 1
      %s43 = scalar_select %p40, %s41, %s42
      %p46 = pneg %p40
      %p47 = scmp.eq.s32.totalorder %s10, 1
      %p48 = por %p46, %p47
      %p49 = scmp.ne.s32.totalorder %s41, %s44
      %p50 = scmp.eq.s32.totalorder %s10, 0
      %p51 = por %p49, %p50
      %p52 = scmp.ne.s32.totalorder %s41, %s44
      %p53 = scmp.eq.s32.totalorder %s15, 1
      %p54 = por %p52, %p53
      %p55 = scmp.ne.s32.totalorder %s44, %s45
      %p56 = scmp.eq.s32.totalorder %s15, 0
      %p57 = por %p55, %p56
      %p58 = scmp.ne.s32.totalorder %s44, %s45
      %p59 = scmp.eq.s32.totalorder %s16, 1
      %p60 = por %p58, %p59
      %p62 = scmp.ne.s32.totalorder %s45, %s61
      %p63 = scmp.eq.s32.totalorder %s16, 0
      %p64 = por %p62, %p63
      %s65 = ssub.s32 %s19, %s28
      %s66 = ssub.s32 %s18, %s32
      %s67 = sor.u32 %s65, %s66
      %p68 = scmp.eq.s32.totalorder %s67, 0
      %s70 = sadd.s32 %s69, 1
      %s71 = scalar_select %p68, %s69, %s70
      %p74 = pneg %p68
      %p75 = scmp.eq.s32.totalorder %s10, 1
      %p76 = por %p74, %p75
      %p77 = scmp.ne.s32.totalorder %s69, %s72
      %p78 = scmp.eq.s32.totalorder %s10, 0
      %p79 = por %p77, %p78
      %p80 = scmp.ne.s32.totalorder %s69, %s72
      %p81 = scmp.eq.s32.totalorder %s15, 1
      %p82 = por %p80, %p81
      %p83 = scmp.ne.s32.totalorder %s72, %s73
      %p84 = scmp.eq.s32.totalorder %s15, 0
      %p85 = por %p83, %p84
      %p86 = scmp.ne.s32.totalorder %s72, %s73
      %p87 = scmp.eq.s32.totalorder %s16, 1
      %p88 = por %p86, %p87
      %p90 = scmp.ne.s32.totalorder %s73, %s89
      %p91 = scmp.eq.s32.totalorder %s16, 0
      %p92 = por %p90, %p91
      %s93 = ssub.s32 %s18, %s32
      %p94 = scmp.eq.s32.totalorder %s93, 0
      %s96 = sadd.s32 %s95, 1
      %s97 = scalar_select %p94, %s95, %s96
      %p100 = pneg %p94
      %p101 = scmp.eq.s32.totalorder %s10, 1
      %p102 = por %p100, %p101
      %p103 = scmp.ne.s32.totalorder %s95, %s98
      %p104 = scmp.eq.s32.totalorder %s10, 0
      %p105 = por %p103, %p104
      %p106 = scmp.ne.s32.totalorder %s95, %s98
      %p107 = scmp.eq.s32.totalorder %s15, 1
      %p108 = por %p106, %p107
      %p109 = scmp.ne.s32.totalorder %s98, %s99
      %p110 = scmp.eq.s32.totalorder %s15, 0
      %p111 = por %p109, %p110
      %p112 = scmp.ne.s32.totalorder %s98, %s99
      %p113 = scmp.eq.s32.totalorder %s16, 1
      %p114 = por %p112, %p113
      %p116 = scmp.ne.s32.totalorder %s99, %s115
      %p117 = scmp.eq.s32.totalorder %s16, 0
      %p118 = por %p116, %p117
      %s119 = ssub.s32 %s18, %s32
      %p120 = scmp.eq.s32.totalorder %s119, 0
      %s122 = sadd.s32 %s121, 1
      %s123 = scalar_select %p120, %s121, %s122
      %p126 = pneg %p120
      %p127 = scmp.eq.s32.totalorder %s10, 1
      %p128 = por %p126, %p127
      %p129 = scmp.ne.s32.totalorder %s121, %s124
      %p130 = scmp.eq.s32.totalorder %s10, 0
      %p131 = por %p129, %p130
      %p132 = scmp.ne.s32.totalorder %s121, %s124
      %p133 = scmp.eq.s32.totalorder %s15, 1
      %p134 = por %p132, %p133
      %p135 = scmp.ne.s32.totalorder %s124, %s125
      %p136 = scmp.eq.s32.totalorder %s15, 0
      %p137 = por %p135, %p136
      %p138 = scmp.ne.s32.totalorder %s124, %s125
      %p139 = scmp.eq.s32.totalorder %s16, 1
      %p140 = por %p138, %p139
      %p142 = scmp.ne.s32.totalorder %s125, %s141
      %p143 = scmp.eq.s32.totalorder %s16, 0
      %p144 = por %p142, %p143
      %s145 = ssub.s32 %s17, %s36
      %s146 = ssub.s32 %s18, %s32
      %s147 = sor.u32 %s145, %s146
      %p148 = scmp.eq.s32.totalorder %s147, 0
      %s150 = sadd.s32 %s149, 1
      %s151 = scalar_select %p148, %s149, %s150
      %p154 = pneg %p148
      %p155 = scmp.eq.s32.totalorder %s10, 1
      %p156 = por %p154, %p155
      %p157 = scmp.ne.s32.totalorder %s149, %s152
      %p158 = scmp.eq.s32.totalorder %s10, 0
      %p159 = por %p157, %p158
      %p160 = scmp.ne.s32.totalorder %s149, %s152
      %p161 = scmp.eq.s32.totalorder %s15, 1
      %p162 = por %p160, %p161
      %p163 = scmp.ne.s32.totalorder %s152, %s153
      %p164 = scmp.eq.s32.totalorder %s15, 0
      %p165 = por %p163, %p164
      %p166 = scmp.ne.s32.totalorder %s152, %s153
      %p167 = scmp.eq.s32.totalorder %s16, 1
      %p168 = por %p166, %p167
      %p170 = scmp.ne.s32.totalorder %s153, %s169
      %p171 = scmp.eq.s32.totalorder %s16, 0
      %p172 = por %p170, %p171
      %p173 = scmp.le.s32.totalorder 1, %s10
      %p174 = scmp.lt.s32.totalorder %s10, 3
      %p175 = pnand %p173, %p174
      %p176 = pneg %p175
      // Predicated region
      $region9: #{resnet_trunk_forward.23} parent=5 // pred_check
        _
      $region10: #{resnet_trunk_forward.23} parent=5 // pred_check_branch
        %178 = sbr.rel (%p175) target = $region12
      $region11: #{resnet_trunk_forward.23} parent=5 // pred_region
        %s179 = ssub.s32 %s10, 1
        // Predicated region
        $region13: #{resnet_trunk_forward.23} parent=11 // pred_check
          %p180 = pneg %p57
        $region14: #{resnet_trunk_forward.23} parent=11 // pred_check_branch
          %182 = sbr.rel (%p180) target = $region16
        $region15: #{resnet_trunk_forward.23} parent=11 // pred_region
          %s183 = smul.u32 2, %s20
          %s184 = smul.u32 2, %s22
          %p185 = scmp.lt.s32.totalorder %s183, 1
          %s186 = scalar_select %p185, %s183, 1
          %p187 = scmp.lt.s32.totalorder %s184, 1
          %s188 = scalar_select %p187, %s184, 1
          %s189 = smul.addr %s186, 2
          %s190 = sadd.s32 %s188, %s189
          %s191 = smul.addr %s190, 4
          %s192 = scalar_lea.vmem %s0, %s191
          %s193 = smul.u32 2, %s20
          %s194 = smul.u32 2, %s22
        $region16: #{resnet_trunk_forward.23} parent=11 // pred_fallthru
          _
      $region12: #{resnet_trunk_forward.23} parent=5 // pred_fallthru
        _
      %p195 = scmp.lt.s32.totalorder %s10, 2
      // Predicated region
      $region17: #{resnet_trunk_forward.23} parent=5 // pred_check
        %p196 = pneg %p195
      $region18: #{resnet_trunk_forward.23} parent=5 // pred_check_branch
        %198 = sbr.rel (%p196) target = $region20
      $region19: #{resnet_trunk_forward.23} parent=5 // pred_region
        // Predicated region
        $region21: #{resnet_trunk_forward.23} parent=19 // pred_check
          %p199 = pneg %p79
        $region22: #{resnet_trunk_forward.23} parent=19 // pred_check_branch
          %201 = sbr.rel (%p199) target = $region24
        $region23: #{resnet_trunk_forward.23} parent=19 // pred_region
          %s202 = sand.u32 %s69, 1
          %s203 = sand.u32 %s69, 1
          %s204 = smul.addr %s203, 256
          %s205 = scalar_lea.vmem [#allocation3], %s204
          %s206 = smul.u32 32, %s19
          %s207 = smul.u32 2, %s18
          %s208 = smul.addr %s206, 4
          %s209 = sadd.s32 %s207, %s208
          %s210 = smul.addr %s209, 4
          %s211 = scalar_lea.vmem %s1, %s210
          // Predicated region
          $region25: #{resnet_trunk_forward.23} parent=23 // pred_check
            _
          $region26: #{resnet_trunk_forward.23} parent=23 // pred_check_branch
            %213 = sbr.rel (0) target = $region28
          $region27: #{resnet_trunk_forward.23} parent=23 // pred_region
            // Predicated region
            $region29: #{resnet_trunk_forward.23} parent=27 // pred_check
              _
            $region30: #{resnet_trunk_forward.23} parent=27 // pred_check_branch
              %215 = sbr.rel (0) target = $region32
            $region31: #{resnet_trunk_forward.23} parent=27 // pred_region
              // Predicated region
              $region44: #{resnet_trunk_forward.23} parent=31 // pred_check
                _
              $region45: #{resnet_trunk_forward.23} parent=31 // pred_check_branch
                %293 = sbr.rel (0) target = $region47
              $region46: #{resnet_trunk_forward.23} parent=31 // pred_region
                loop: start=0, step=1, limit=1
                $region48: #{resnet_trunk_forward.23} parent=46 // loop_pre_header
                  _
                $region49: #{resnet_trunk_forward.23} parent=46 // loop_header
                  %s295 = sphi 0, %s299
                  %p296 = scmp.ge.s32.totalorder %s295, 1
                  %s300 = sphi %s211, %s211
                  %s301 = sphi %s205, %s205
                $region50: #{resnet_trunk_forward.23} parent=46 // loop_header_branch
                  %298 = sbr.rel (%p296) target = $region54
                $region51: #{resnet_trunk_forward.23} parent=46 // loop_body
                  %v302 = vld [vmem:[%s300] sm:$0xff]
                  %303 = vst [vmem:[%s301] sm:$0xff] %v302
                  %v304 = vld [vmem:[%s300 + $0x10] sm:$0xff]
                  %305 = vst [vmem:[%s301 + $0x8] sm:$0xff] %v304
                  %v306 = vld [vmem:[%s300 + $0x20] sm:$0xff]
                  %307 = vst [vmem:[%s301 + $0x10] sm:$0xff] %v306
                  %v308 = vld [vmem:[%s300 + $0x30] sm:$0xff]
                  %309 = vst [vmem:[%s301 + $0x18] sm:$0xff] %v308
                  %v310 = vld [vmem:[%s300 + $0x40] sm:$0xff]
                  %311 = vst [vmem:[%s301 + $0x20] sm:$0xff] %v310
                  %v312 = vld [vmem:[%s300 + $0x50] sm:$0xff]
                  %313 = vst [vmem:[%s301 + $0x28] sm:$0xff] %v312
                  %v314 = vld [vmem:[%s300 + $0x60] sm:$0xff]
                  %315 = vst [vmem:[%s301 + $0x30] sm:$0xff] %v314
                  %v316 = vld [vmem:[%s300 + $0x70] sm:$0xff]
                  %317 = vst [vmem:[%s301 + $0x38] sm:$0xff] %v316
                  %v318 = vld [vmem:[%s300 + $0x80] sm:$0xff]
                  %319 = vst [vmem:[%s301 + $0x40] sm:$0xff] %v318
                  %v320 = vld [vmem:[%s300 + $0x90] sm:$0xff]
                  %321 = vst [vmem:[%s301 + $0x48] sm:$0xff] %v320
                  %v322 = vld [vmem:[%s300 + $0xa0] sm:$0xff]
                  %323 = vst [vmem:[%s301 + $0x50] sm:$0xff] %v322
                  %v324 = vld [vmem:[%s300 + $0xb0] sm:$0xff]
                  %325 = vst [vmem:[%s301 + $0x58] sm:$0xff] %v324
                  %v326 = vld [vmem:[%s300 + $0xc0] sm:$0xff]
                  %327 = vst [vmem:[%s301 + $0x60] sm:$0xff] %v326
                  %v328 = vld [vmem:[%s300 + $0xd0] sm:$0xff]
                  %329 = vst [vmem:[%s301 + $0x68] sm:$0xff] %v328
                  %v330 = vld [vmem:[%s300 + $0xe0] sm:$0xff]
                  %331 = vst [vmem:[%s301 + $0x70] sm:$0xff] %v330
                  %v332 = vld [vmem:[%s300 + $0xf0] sm:$0xff]
                  %333 = vst [vmem:[%s301 + $0x78] sm:$0xff] %v332
                  %v334 = vld [vmem:[%s300 + $0x100] sm:$0xff]
                  %335 = vst [vmem:[%s301 + $0x80] sm:$0xff] %v334
                  %v336 = vld [vmem:[%s300 + $0x110] sm:$0xff]
                  %337 = vst [vmem:[%s301 + $0x88] sm:$0xff] %v336
                  %v338 = vld [vmem:[%s300 + $0x120] sm:$0xff]
                  %339 = vst [vmem:[%s301 + $0x90] sm:$0xff] %v338
                  %v340 = vld [vmem:[%s300 + $0x130] sm:$0xff]
                  %341 = vst [vmem:[%s301 + $0x98] sm:$0xff] %v340
                  %v342 = vld [vmem:[%s300 + $0x140] sm:$0xff]
                  %343 = vst [vmem:[%s301 + $0xa0] sm:$0xff] %v342
                  %v344 = vld [vmem:[%s300 + $0x150] sm:$0xff]
                  %345 = vst [vmem:[%s301 + $0xa8] sm:$0xff] %v344
                  %v346 = vld [vmem:[%s300 + $0x160] sm:$0xff]
                  %347 = vst [vmem:[%s301 + $0xb0] sm:$0xff] %v346
                  %v348 = vld [vmem:[%s300 + $0x170] sm:$0xff]
                  %349 = vst [vmem:[%s301 + $0xb8] sm:$0xff] %v348
                  %v350 = vld [vmem:[%s300 + $0x180] sm:$0xff]
                  %351 = vst [vmem:[%s301 + $0xc0] sm:$0xff] %v350
                  %v352 = vld [vmem:[%s300 + $0x190] sm:$0xff]
                  %353 = vst [vmem:[%s301 + $0xc8] sm:$0xff] %v352
                  %v354 = vld [vmem:[%s300 + $0x1a0] sm:$0xff]
                  %355 = vst [vmem:[%s301 + $0xd0] sm:$0xff] %v354
                  %v356 = vld [vmem:[%s300 + $0x1b0] sm:$0xff]
                  %357 = vst [vmem:[%s301 + $0xd8] sm:$0xff] %v356
                  %v358 = vld [vmem:[%s300 + $0x1c0] sm:$0xff]
                  %359 = vst [vmem:[%s301 + $0xe0] sm:$0xff] %v358
                  %v360 = vld [vmem:[%s300 + $0x1d0] sm:$0xff]
                  %361 = vst [vmem:[%s301 + $0xe8] sm:$0xff] %v360
                  %v362 = vld [vmem:[%s300 + $0x1e0] sm:$0xff]
                  %363 = vst [vmem:[%s301 + $0xf0] sm:$0xff] %v362
                  %v364 = vld [vmem:[%s300 + $0x1f0] sm:$0xff]
                  %365 = vst [vmem:[%s301 + $0xf8] sm:$0xff] %v364
                $region52: #{resnet_trunk_forward.23} parent=46 // loop_footer
                  %s299 = sadd.s32 1, %s295
                $region53: #{resnet_trunk_forward.23} parent=46 // loop_footer_branch
                  %294 = sbr.rel target = $region49
                $region54: #{resnet_trunk_forward.23} parent=46 // loop_exit
                  _
              $region47: #{resnet_trunk_forward.23} parent=31 // pred_fallthru
                _
              // Predicated region
              $region55: #{resnet_trunk_forward.23} parent=31 // pred_check
                _
              $region56: #{resnet_trunk_forward.23} parent=31 // pred_check_branch
                %367 = sbr.rel target = $region58
              $region57: #{resnet_trunk_forward.23} parent=31 // pred_region
                _
              $region58: #{resnet_trunk_forward.23} parent=31 // pred_fallthru
                _
            $region32: #{resnet_trunk_forward.23} parent=27 // pred_fallthru
              _
            // Predicated region
            $region33: #{resnet_trunk_forward.23} parent=27 // pred_check
              _
            $region34: #{resnet_trunk_forward.23} parent=27 // pred_check_branch
              %217 = sbr.rel target = $region36
            $region35: #{resnet_trunk_forward.23} parent=27 // pred_region
              %s219 = ssub.s32 256, 1
              loop: start=0, step=1, limit=1
              $region37: #{resnet_trunk_forward.23} parent=35 // loop_pre_header
                _
              $region38: #{resnet_trunk_forward.23} parent=35 // loop_header
                %s221 = sphi 0, %s225
                %p222 = scmp.ge.s32.totalorder %s221, 1
                %s226 = sphi %s211, %s211
                %s227 = sphi %s205, %s205
              $region39: #{resnet_trunk_forward.23} parent=35 // loop_header_branch
                %224 = sbr.rel (%p222) target = $region43
              $region40: #{resnet_trunk_forward.23} parent=35 // loop_body
                %v228 = vld [vmem:[%s226] sm:%s219]
                %229 = vst [vmem:[%s227] sm:%s219] %v228
                %v230 = vld [vmem:[%s226 + $0x10] sm:%s219]
                %231 = vst [vmem:[%s227 + $0x8] sm:%s219] %v230
                %v232 = vld [vmem:[%s226 + $0x20] sm:%s219]
                %233 = vst [vmem:[%s227 + $0x10] sm:%s219] %v232
                %v234 = vld [vmem:[%s226 + $0x30] sm:%s219]
                %235 = vst [vmem:[%s227 + $0x18] sm:%s219] %v234
                %v236 = vld [vmem:[%s226 + $0x40] sm:%s219]
                %237 = vst [vmem:[%s227 + $0x20] sm:%s219] %v236
                %v238 = vld [vmem:[%s226 + $0x50] sm:%s219]
                %239 = vst [vmem:[%s227 + $0x28] sm:%s219] %v238
                %v240 = vld [vmem:[%s226 + $0x60] sm:%s219]
                %241 = vst [vmem:[%s227 + $0x30] sm:%s219] %v240
                %v242 = vld [vmem:[%s226 + $0x70] sm:%s219]
                %243 = vst [vmem:[%s227 + $0x38] sm:%s219] %v242
                %v244 = vld [vmem:[%s226 + $0x80] sm:%s219]
                %245 = vst [vmem:[%s227 + $0x40] sm:%s219] %v244
                %v246 = vld [vmem:[%s226 + $0x90] sm:%s219]
                %247 = vst [vmem:[%s227 + $0x48] sm:%s219] %v246
                %v248 = vld [vmem:[%s226 + $0xa0] sm:%s219]
                %249 = vst [vmem:[%s227 + $0x50] sm:%s219] %v248
                %v250 = vld [vmem:[%s226 + $0xb0] sm:%s219]
                %251 = vst [vmem:[%s227 + $0x58] sm:%s219] %v250
                %v252 = vld [vmem:[%s226 + $0xc0] sm:%s219]
                %253 = vst [vmem:[%s227 + $0x60] sm:%s219] %v252
                %v254 = vld [vmem:[%s226 + $0xd0] sm:%s219]
                %255 = vst [vmem:[%s227 + $0x68] sm:%s219] %v254
                %v256 = vld [vmem:[%s226 + $0xe0] sm:%s219]
                %257 = vst [vmem:[%s227 + $0x70] sm:%s219] %v256
                %v258 = vld [vmem:[%s226 + $0xf0] sm:%s219]
                %259 = vst [vmem:[%s227 + $0x78] sm:%s219] %v258
                %v260 = vld [vmem:[%s226 + $0x100] sm:%s219]
                %261 = vst [vmem:[%s227 + $0x80] sm:%s219] %v260
                %v262 = vld [vmem:[%s226 + $0x110] sm:%s219]
                %263 = vst [vmem:[%s227 + $0x88] sm:%s219] %v262
                %v264 = vld [vmem:[%s226 + $0x120] sm:%s219]
                %265 = vst [vmem:[%s227 + $0x90] sm:%s219] %v264
                %v266 = vld [vmem:[%s226 + $0x130] sm:%s219]
                %267 = vst [vmem:[%s227 + $0x98] sm:%s219] %v266
                %v268 = vld [vmem:[%s226 + $0x140] sm:%s219]
                %269 = vst [vmem:[%s227 + $0xa0] sm:%s219] %v268
                %v270 = vld [vmem:[%s226 + $0x150] sm:%s219]
                %271 = vst [vmem:[%s227 + $0xa8] sm:%s219] %v270
                %v272 = vld [vmem:[%s226 + $0x160] sm:%s219]
                %273 = vst [vmem:[%s227 + $0xb0] sm:%s219] %v272
                %v274 = vld [vmem:[%s226 + $0x170] sm:%s219]
                %275 = vst [vmem:[%s227 + $0xb8] sm:%s219] %v274
                %v276 = vld [vmem:[%s226 + $0x180] sm:%s219]
                %277 = vst [vmem:[%s227 + $0xc0] sm:%s219] %v276
                %v278 = vld [vmem:[%s226 + $0x190] sm:%s219]
                %279 = vst [vmem:[%s227 + $0xc8] sm:%s219] %v278
                %v280 = vld [vmem:[%s226 + $0x1a0] sm:%s219]
                %281 = vst [vmem:[%s227 + $0xd0] sm:%s219] %v280
                %v282 = vld [vmem:[%s226 + $0x1b0] sm:%s219]
                %283 = vst [vmem:[%s227 + $0xd8] sm:%s219] %v282
                %v284 = vld [vmem:[%s226 + $0x1c0] sm:%s219]
                %285 = vst [vmem:[%s227 + $0xe0] sm:%s219] %v284
                %v286 = vld [vmem:[%s226 + $0x1d0] sm:%s219]
                %287 = vst [vmem:[%s227 + $0xe8] sm:%s219] %v286
                %v288 = vld [vmem:[%s226 + $0x1e0] sm:%s219]
                %289 = vst [vmem:[%s227 + $0xf0] sm:%s219] %v288
                %v290 = vld [vmem:[%s226 + $0x1f0] sm:%s219]
                %291 = vst [vmem:[%s227 + $0xf8] sm:%s219] %v290
              $region41: #{resnet_trunk_forward.23} parent=35 // loop_footer
                %s225 = sadd.s32 1, %s221
              $region42: #{resnet_trunk_forward.23} parent=35 // loop_footer_branch
                %220 = sbr.rel target = $region38
              $region43: #{resnet_trunk_forward.23} parent=35 // loop_exit
                _
            $region36: #{resnet_trunk_forward.23} parent=27 // pred_fallthru
              _
          $region28: #{resnet_trunk_forward.23} parent=23 // pred_fallthru
            _
          %368 = vnop
        $region24: #{resnet_trunk_forward.23} parent=19 // pred_fallthru
          _
        // Predicated region
        $region59: #{resnet_trunk_forward.23} parent=19 // pred_check
          %p369 = pneg %p105
        $region60: #{resnet_trunk_forward.23} parent=19 // pred_check_branch
          %371 = sbr.rel (%p369) target = $region62
        $region61: #{resnet_trunk_forward.23} parent=19 // pred_region
          %s372 = smul.u32 2, %s18
          %p373 = scmp.lt.s32.totalorder %s372, 3
          %s374 = scalar_select %p373, %s372, 3
          %s375 = scalar_lea.vmem %s2, %s374
          %s376 = smul.u32 2, %s18
        $region62: #{resnet_trunk_forward.23} parent=19 // pred_fallthru
          _
        // Predicated region
        $region63: #{resnet_trunk_forward.23} parent=19 // pred_check
          %p377 = pneg %p131
        $region64: #{resnet_trunk_forward.23} parent=19 // pred_check_branch
          %379 = sbr.rel (%p377) target = $region66
        $region65: #{resnet_trunk_forward.23} parent=19 // pred_region
          %s380 = smul.u32 2, %s18
          %p381 = scmp.lt.s32.totalorder %s380, 3
          %s382 = scalar_select %p381, %s380, 3
          %s383 = scalar_lea.vmem %s3, %s382
          %s384 = smul.u32 2, %s18
        $region66: #{resnet_trunk_forward.23} parent=19 // pred_fallthru
          _
      $region20: #{resnet_trunk_forward.23} parent=5 // pred_fallthru
        _
      %p385 = scmp.le.s32.totalorder 1, %s10
      %p386 = scmp.lt.s32.totalorder %s10, 3
      %p387 = pnand %p385, %p386
      %p388 = pneg %p387
      // Predicated region
      $region67: #{resnet_trunk_forward.23} parent=5 // pred_check
        _
      $region68: #{resnet_trunk_forward.23} parent=5 // pred_check_branch
        %390 = sbr.rel (%p387) target = $region70
      $region69: #{resnet_trunk_forward.23} parent=5 // pred_region
        %s391 = ssub.s32 %s10, 1
        %s392 = sand.u32 %s72, 1
        %s393 = sand.u32 %s72, 1
        %s394 = smul.addr %s393, 256
        %s395 = scalar_lea.vmem [#allocation3], %s394
        // Predicated region
        $region71: #{resnet_trunk_forward.23} parent=69 // pred_check
          %p396 = pneg %p85
        $region72: #{resnet_trunk_forward.23} parent=69 // pred_check_branch
          %398 = sbr.rel (%p396) target = $region74
        $region73: #{resnet_trunk_forward.23} parent=69 // pred_region
          _
        $region74: #{resnet_trunk_forward.23} parent=69 // pred_fallthru
          _
        %s399 = smul.u32 2, %s20
        %s400 = smul.u32 2, %s22
        %p401 = scmp.lt.s32.totalorder %s399, 1
        %s402 = scalar_select %p401, %s399, 1
        %p403 = scmp.lt.s32.totalorder %s400, 1
        %s404 = scalar_select %p403, %s400, 1
        %s405 = smul.addr %s402, 2
        %s406 = sadd.s32 %s404, %s405
        %s407 = smul.addr %s406, 4
        %s408 = scalar_lea.vmem %s0, %s407
        %p409 = pneg %p57
        %p410 = pneg %p54
        %s411 = sand.u32 %s72, 1
        %s412 = sand.u32 %s72, 1
        %s413 = smul.addr %s412, 256
        %s414 = scalar_lea.vmem [#allocation3], %s413
        %p415 = pneg %p85
        %p416 = pneg %p82
        %s417 = smul.u32 2, %s21
        %p418 = scmp.lt.s32.totalorder %s417, 3
        %s419 = scalar_select %p418, %s417, 3
        %s420 = scalar_lea.vmem %s2, %s419
        %p421 = pneg %p111
        %p422 = pneg %p108
        %s423 = smul.u32 2, %s21
        %p424 = scmp.lt.s32.totalorder %s423, 3
        %s425 = scalar_select %p424, %s423, 3
        %s426 = scalar_lea.vmem %s3, %s425
        %p427 = pneg %p137
        %p428 = pneg %p134
        %p429 = pneg %p165
        %p430 = pneg %p162
        %s431 = sand.u32 %s152, 1
        %s432 = sand.u32 %s152, 1
        %s433 = smul.addr %s432, 32
        %s434 = scalar_lea.vmem [#allocation4], %s433
        %s435 = smul.u32 2, %s20
        %s436 = smul.u32 2, %s22
        %p437 = scmp.lt.s32.totalorder %s435, 1
        %s438 = scalar_select %p437, %s435, 1
        %p439 = scmp.lt.s32.totalorder %s436, 1
        %s440 = scalar_select %p439, %s436, 1
        %s441 = smul.addr %s438, 2
        %s442 = sadd.s32 %s440, %s441
        %s443 = smul.addr %s442, 4
        %s444 = scalar_lea.vmem %s0, %s443
        %s445 = smul.u32 2, %s20
        %s446 = smul.u32 2, %s22
        %s447 = smul.u32 32, %s22
        %s448 = smul.u32 2, %s21
        %s449 = smul.u32 2, %s21
        %p450 = scmp.lt.s32.totalorder %s449, 3
        %s451 = scalar_select %p450, %s449, 3
        %s452 = scalar_lea.vmem %s2, %s451
        %s453 = smul.u32 2, %s21
        %s454 = smul.u32 2, %s21
        %p455 = scmp.lt.s32.totalorder %s454, 3
        %s456 = scalar_select %p455, %s454, 3
        %s457 = scalar_lea.vmem %s3, %s456
        %s458 = smul.u32 2, %s21
        %s459 = smul.u32 2, %s20
        %s460 = smul.u32 2, %s21
        %p461 = scmp.eq.s32.totalorder %s22, 0
        // Predicated region
        $region75: #{resnet_trunk_forward.23} parent=69 // pred_check
          %p462 = pneg %p461
        $region76: #{resnet_trunk_forward.23} parent=69 // pred_check_branch
          %464 = sbr.rel (%p462) target = $region78
        $region77: #{resnet_trunk_forward.23} parent=69 // pred_region
          %465 = vst [vmem:[#allocation2] sm:$0xff] 0.0
          %466 = vst [vmem:[#allocation2 + $0x8] sm:$0xff] 0.0
          %467 = vst [vmem:[#allocation2 + $0x10] sm:$0xff] 0.0
          %468 = vst [vmem:[#allocation2 + $0x18] sm:$0xff] 0.0
        $region78: #{resnet_trunk_forward.23} parent=69 // pred_fallthru
          _
        %v469 = vld [vmem:[#allocation2] sm:$0xff]
        %v470 = vld [vmem:[#allocation2 + $0x8] sm:$0xff]
        %v471 = vld [vmem:[#allocation2 + $0x10] sm:$0xff]
        %v472 = vld [vmem:[#allocation2 + $0x18] sm:$0xff]
        %v473 = vld [vmem:[%s444] sm:$0xff]
        %v474 = vld [vmem:[%s444 + $0x8] sm:$0xff]
        %v475 = vld [vmem:[%s395] sm:$0xff]
        %v476 = vld [vmem:[%s395 + $0x8] sm:$0xff]
        %v477 = vld [vmem:[%s395 + $0x10] sm:$0xff]
        %v478 = vld [vmem:[%s395 + $0x18] sm:$0xff]
        %v479 = vld [vmem:[%s395 + $0x20] sm:$0xff]
        %v480 = vld [vmem:[%s395 + $0x28] sm:$0xff]
        %v481 = vld [vmem:[%s395 + $0x30] sm:$0xff]
        %v482 = vld [vmem:[%s395 + $0x38] sm:$0xff]
        %v483 = vld [vmem:[%s395 + $0x40] sm:$0xff]
        %v484 = vld [vmem:[%s395 + $0x48] sm:$0xff]
        %v485 = vld [vmem:[%s395 + $0x50] sm:$0xff]
        %v486 = vld [vmem:[%s395 + $0x58] sm:$0xff]
        %v487 = vld [vmem:[%s395 + $0x60] sm:$0xff]
        %v488 = vld [vmem:[%s395 + $0x68] sm:$0xff]
        %v489 = vld [vmem:[%s395 + $0x70] sm:$0xff]
        %v490 = vld [vmem:[%s395 + $0x78] sm:$0xff]
        %v491 = vld [vmem:[%s395 + $0x80] sm:$0xff]
        %v492 = vld [vmem:[%s395 + $0x88] sm:$0xff]
        %v493 = vld [vmem:[%s395 + $0x90] sm:$0xff]
        %v494 = vld [vmem:[%s395 + $0x98] sm:$0xff]
        %v495 = vld [vmem:[%s395 + $0xa0] sm:$0xff]
        %v496 = vld [vmem:[%s395 + $0xa8] sm:$0xff]
        %v497 = vld [vmem:[%s395 + $0xb0] sm:$0xff]
        %v498 = vld [vmem:[%s395 + $0xb8] sm:$0xff]
        %v499 = vld [vmem:[%s395 + $0xc0] sm:$0xff]
        %v500 = vld [vmem:[%s395 + $0xc8] sm:$0xff]
        %v501 = vld [vmem:[%s395 + $0xd0] sm:$0xff]
        %v502 = vld [vmem:[%s395 + $0xd8] sm:$0xff]
        %v503 = vld [vmem:[%s395 + $0xe0] sm:$0xff]
        %v504 = vld [vmem:[%s395 + $0xe8] sm:$0xff]
        %v505 = vld [vmem:[%s395 + $0xf0] sm:$0xff]
        %v506 = vld [vmem:[%s395 + $0xf8] sm:$0xff]
        %v509 = vunpack.c.l.b16 %v473
        %v510 = vunpack.c.h.b16 %v473
        %v511 = vunpack.c.l.b16 %v474
        %v512 = vunpack.c.h.b16 %v474
        %v513 = vpack.c.b16 %v511, %v509
        %v514 = vpack.c.b16 %v512, %v510
        %v549 = vunpack.c.l.b16 %v475
        %v550 = vunpack.c.h.b16 %v475
        %v551 = vunpack.c.l.b16 %v476
        %v552 = vunpack.c.h.b16 %v476
        %v553 = vunpack.c.l.b16 %v477
        %v554 = vunpack.c.h.b16 %v477
        %v555 = vunpack.c.l.b16 %v478
        %v556 = vunpack.c.h.b16 %v478
        %v557 = vunpack.c.l.b16 %v479
        %v558 = vunpack.c.h.b16 %v479
        %v559 = vunpack.c.l.b16 %v480
        %v560 = vunpack.c.h.b16 %v480
        %v561 = vunpack.c.l.b16 %v481
        %v562 = vunpack.c.h.b16 %v481
        %v563 = vunpack.c.l.b16 %v482
        %v564 = vunpack.c.h.b16 %v482
        %v565 = vunpack.c.l.b16 %v483
        %v566 = vunpack.c.h.b16 %v483
        %v567 = vunpack.c.l.b16 %v484
        %v568 = vunpack.c.h.b16 %v484
        %v569 = vunpack.c.l.b16 %v485
        %v570 = vunpack.c.h.b16 %v485
        %v571 = vunpack.c.l.b16 %v486
        %v572 = vunpack.c.h.b16 %v486
        %v573 = vunpack.c.l.b16 %v487
        %v574 = vunpack.c.h.b16 %v487
        %v575 = vunpack.c.l.b16 %v488
        %v576 = vunpack.c.h.b16 %v488
        %v577 = vunpack.c.l.b16 %v489
        %v578 = vunpack.c.h.b16 %v489
        %v579 = vunpack.c.l.b16 %v490
        %v580 = vunpack.c.h.b16 %v490
        %v581 = vunpack.c.l.b16 %v491
        %v582 = vunpack.c.h.b16 %v491
        %v583 = vunpack.c.l.b16 %v492
        %v584 = vunpack.c.h.b16 %v492
        %v585 = vunpack.c.l.b16 %v493
        %v586 = vunpack.c.h.b16 %v493
        %v587 = vunpack.c.l.b16 %v494
        %v588 = vunpack.c.h.b16 %v494
        %v589 = vunpack.c.l.b16 %v495
        %v590 = vunpack.c.h.b16 %v495
        %v591 = vunpack.c.l.b16 %v496
        %v592 = vunpack.c.h.b16 %v496
        %v593 = vunpack.c.l.b16 %v497
        %v594 = vunpack.c.h.b16 %v497
        %v595 = vunpack.c.l.b16 %v498
        %v596 = vunpack.c.h.b16 %v498
        %v597 = vunpack.c.l.b16 %v499
        %v598 = vunpack.c.h.b16 %v499
        %v599 = vunpack.c.l.b16 %v500
        %v600 = vunpack.c.h.b16 %v500
        %v601 = vunpack.c.l.b16 %v501
        %v602 = vunpack.c.h.b16 %v501
        %v603 = vunpack.c.l.b16 %v502
        %v604 = vunpack.c.h.b16 %v502
        %v605 = vunpack.c.l.b16 %v503
        %v606 = vunpack.c.h.b16 %v503
        %v607 = vunpack.c.l.b16 %v504
        %v608 = vunpack.c.h.b16 %v504
        %v609 = vunpack.c.l.b16 %v505
        %v610 = vunpack.c.h.b16 %v505
        %v611 = vunpack.c.l.b16 %v506
        %v612 = vunpack.c.h.b16 %v506
        %v613 = vpack.c.b16 %v551, %v549
        %v614 = vpack.c.b16 %v552, %v550
        %v615 = vpack.c.b16 %v555, %v553
        %v616 = vpack.c.b16 %v556, %v554
        %v617 = vpack.c.b16 %v559, %v557
        %v618 = vpack.c.b16 %v560, %v558
        %v619 = vpack.c.b16 %v563, %v561
        %v620 = vpack.c.b16 %v564, %v562
        %v621 = vpack.c.b16 %v567, %v565
        %v622 = vpack.c.b16 %v568, %v566
        %v623 = vpack.c.b16 %v571, %v569
        %v624 = vpack.c.b16 %v572, %v570
        %v625 = vpack.c.b16 %v575, %v573
        %v626 = vpack.c.b16 %v576, %v574
        %v627 = vpack.c.b16 %v579, %v577
        %v628 = vpack.c.b16 %v580, %v578
        %v629 = vpack.c.b16 %v583, %v581
        %v630 = vpack.c.b16 %v584, %v582
        %v631 = vpack.c.b16 %v587, %v585
        %v632 = vpack.c.b16 %v588, %v586
        %v633 = vpack.c.b16 %v591, %v589
        %v634 = vpack.c.b16 %v592, %v590
        %v635 = vpack.c.b16 %v595, %v593
        %v636 = vpack.c.b16 %v596, %v594
        %v637 = vpack.c.b16 %v599, %v597
        %v638 = vpack.c.b16 %v600, %v598
        %v639 = vpack.c.b16 %v603, %v601
        %v640 = vpack.c.b16 %v604, %v602
        %v641 = vpack.c.b16 %v607, %v605
        %v642 = vpack.c.b16 %v608, %v606
        %v643 = vpack.c.b16 %v611, %v609
        %v644 = vpack.c.b16 %v612, %v610
        %677 = vmatprep.subr.bf16.mxu0 %v628
        %678 = vmatpush1.bf16.msra.mxu0 %v627
        %679 = vmatprep.subr.bf16.mxu0 %v626
        %680 = vmatpush1.bf16.msra.mxu0 %v625
        %681 = vmatprep.subr.bf16.mxu0 %v624
        %682 = vmatpush1.bf16.msra.mxu0 %v623
        %683 = vmatprep.subr.bf16.mxu0 %v622
        %684 = vmatpush1.bf16.msra.mxu0 %v621
        %685 = vmatprep.subr.bf16.mxu0 %v620
        %686 = vmatpush1.bf16.msra.mxu0 %v619
        %687 = vmatprep.subr.bf16.mxu0 %v618
        %688 = vmatpush1.bf16.msra.mxu0 %v617
        %689 = vmatprep.subr.bf16.mxu0 %v616
        %690 = vmatpush1.bf16.msra.mxu0 %v615
        %691 = vmatprep.subr.bf16.mxu0 %v614
        %692 = vmatpush1.bf16.msra.mxu0 %v613
        %693 = vmatprep.subr.bf16.mxu0 %v644
        %694 = vmatpush2.bf16.msra.mxu0 %v643
        %695 = vmatprep.subr.bf16.mxu0 %v642
        %696 = vmatpush2.bf16.msra.mxu0 %v641
        %697 = vmatprep.subr.bf16.mxu0 %v640
        %698 = vmatpush2.bf16.msra.mxu0 %v639
        %699 = vmatprep.subr.bf16.mxu0 %v638
        %700 = vmatpush2.bf16.msra.mxu0 %v637
        %701 = vmatprep.subr.bf16.mxu0 %v636
        %702 = vmatpush2.bf16.msra.mxu0 %v635
        %703 = vmatprep.subr.bf16.mxu0 %v634
        %704 = vmatpush2.bf16.msra.mxu0 %v633
        %705 = vmatprep.subr.bf16.mxu0 %v632
        %706 = vmatpush2.bf16.msra.mxu0 %v631
        %707 = vmatprep.subr.bf16.mxu0 %v630
        %708 = vmatpush2.bf16.msra.mxu0 %v629
        %709 = vmatprep.mubr.bf16.mxu0 %v514
        %710 = vmatmul.mubr.bf16.gmra.mxu0 %v513
        %v711 = vpop.f32.mrf.mxu0
        %v712 = vadd.f32 0.0, %v711
        %v713 = vpop.f32.mrf.mxu0
        %v714 = vadd.f32 0.0, %v713
        %v715 = vpop.f32.mrf.mxu0
        %v716 = vadd.f32 0.0, %v715
        %v717 = vpop.f32.mrf.mxu0
        %v718 = vadd.f32 0.0, %v717
        %719 = vdwg.mxu0
        %v720 = vadd.f32 %v469, %v712
        %v721 = vadd.f32 %v470, %v714
        %v722 = vadd.f32 %v471, %v716
        %v723 = vadd.f32 %v472, %v718
        %724 = vst [vmem:[#allocation2] sm:$0xff] %v720
        %725 = vst [vmem:[#allocation2 + $0x8] sm:$0xff] %v721
        %726 = vst [vmem:[#allocation2 + $0x10] sm:$0xff] %v722
        %727 = vst [vmem:[#allocation2 + $0x18] sm:$0xff] %v723
        // Predicated region
        $region79: #{resnet_trunk_forward.23} parent=69 // pred_check
          %p728 = pneg %p461
        $region80: #{resnet_trunk_forward.23} parent=69 // pred_check_branch
          %730 = sbr.rel (%p728) target = $region82
        $region81: #{resnet_trunk_forward.23} parent=69 // pred_region
          %v731 = vld [vmem:[#allocation2] sm:$0xff]
          %v732 = vld [vmem:[#allocation2 + $0x8] sm:$0xff]
          %v733 = vld [vmem:[#allocation2 + $0x10] sm:$0xff]
          %v734 = vld [vmem:[#allocation2 + $0x18] sm:$0xff]
          %v735 = vld [vmem:[%s452] sm:$0x3]
          %v737 = vlaneseq
          %v738 = vshrl.u32 %v737, 7
          %v739 = vsub.s32 0, %v738
          %v740 = vrot.slane %v735, %v739
          %v741 = vlaneseq
          %v742 = vshrl.u32 %v741, 7
          %v743 = vsub.s32 1, %v742
          %v744 = vrot.slane %v735, %v743
          %v747 = vmul.f32 %v731, %v740
          %v748 = vmul.f32 %v732, %v744
          %v749 = vmul.f32 %v733, %v740
          %v750 = vmul.f32 %v734, %v744
          %v751 = vld [vmem:[%s457] sm:$0x3]
          %v753 = vlaneseq
          %v754 = vshrl.u32 %v753, 7
          %v755 = vsub.s32 0, %v754
          %v756 = vrot.slane %v751, %v755
          %v757 = vlaneseq
          %v758 = vshrl.u32 %v757, 7
          %v759 = vsub.s32 1, %v758
          %v760 = vrot.slane %v751, %v759
          %v763 = vadd.f32 %v747, %v756
          %v764 = vadd.f32 %v748, %v760
          %v765 = vadd.f32 %v749, %v756
          %v766 = vadd.f32 %v750, %v760
          %767 = vst [vmem:[%s434] sm:$0xff] %v763
          %768 = vst [vmem:[%s434 + $0x8] sm:$0xff] %v764
          %769 = vst [vmem:[%s434 + $0x10] sm:$0xff] %v765
          %770 = vst [vmem:[%s434 + $0x18] sm:$0xff] %v766
        $region82: #{resnet_trunk_forward.23} parent=69 // pred_fallthru
          _
        %s771 = sand.u32 %s152, 1
        %s772 = sand.u32 %s152, 1
        %s773 = smul.addr %s772, 32
        %s774 = scalar_lea.vmem [#allocation4], %s773
        // Predicated region
        $region83: #{resnet_trunk_forward.23} parent=69 // pred_check
          %p775 = pneg %p162
        $region84: #{resnet_trunk_forward.23} parent=69 // pred_check_branch
          %777 = sbr.rel (%p775) target = $region86
        $region85: #{resnet_trunk_forward.23} parent=69 // pred_region
          %s778 = smul.u32 2, %s20
          %s779 = smul.u32 2, %s21
          %s780 = smul.addr %s778, 4
          %s781 = sadd.s32 %s779, %s780
          %s782 = smul.addr %s781, 8
          %s783 = scalar_lea.vmem %s4, %s782
          // Predicated region
          $region87: #{resnet_trunk_forward.23} parent=85 // pred_check
            _
          $region88: #{resnet_trunk_forward.23} parent=85 // pred_check_branch
            %785 = sbr.rel (0) target = $region90
          $region89: #{resnet_trunk_forward.23} parent=85 // pred_region
            // Predicated region
            $region91: #{resnet_trunk_forward.23} parent=89 // pred_check
              _
            $region92: #{resnet_trunk_forward.23} parent=89 // pred_check_branch
              %787 = sbr.rel (0) target = $region94
            $region93: #{resnet_trunk_forward.23} parent=89 // pred_region
              loop: start=0, step=1, limit=1
              $region95: #{resnet_trunk_forward.23} parent=93 // loop_pre_header
                _
              $region96: #{resnet_trunk_forward.23} parent=93 // loop_header
                %s789 = sphi 0, %s793
                %p790 = scmp.ge.s32.totalorder %s789, 1
                %s794 = sphi %s774, %s774
                %s795 = sphi %s783, %s783
              $region97: #{resnet_trunk_forward.23} parent=93 // loop_header_branch
                %792 = sbr.rel (%p790) target = $region101
              $region98: #{resnet_trunk_forward.23} parent=93 // loop_body
                %v796 = vld [vmem:[%s794] sm:$0xff]
                %797 = vst [vmem:[%s795] sm:$0xff] %v796
                %v798 = vld [vmem:[%s794 + $0x8] sm:$0xff]
                %799 = vst [vmem:[%s795 + $0x8] sm:$0xff] %v798
                %v800 = vld [vmem:[%s794 + $0x10] sm:$0xff]
                %801 = vst [vmem:[%s795 + $0x20] sm:$0xff] %v800
                %v802 = vld [vmem:[%s794 + $0x18] sm:$0xff]
                %803 = vst [vmem:[%s795 + $0x28] sm:$0xff] %v802
              $region99: #{resnet_trunk_forward.23} parent=93 // loop_footer
                %s793 = sadd.s32 1, %s789
              $region100: #{resnet_trunk_forward.23} parent=93 // loop_footer_branch
                %788 = sbr.rel target = $region96
              $region101: #{resnet_trunk_forward.23} parent=93 // loop_exit
                _
            $region94: #{resnet_trunk_forward.23} parent=89 // pred_fallthru
              _
            // Predicated region
            $region102: #{resnet_trunk_forward.23} parent=89 // pred_check
              _
            $region103: #{resnet_trunk_forward.23} parent=89 // pred_check_branch
              %805 = sbr.rel target = $region105
            $region104: #{resnet_trunk_forward.23} parent=89 // pred_region
              _
            $region105: #{resnet_trunk_forward.23} parent=89 // pred_fallthru
              _
          $region90: #{resnet_trunk_forward.23} parent=85 // pred_fallthru
            _
          %806 = vnop
        $region86: #{resnet_trunk_forward.23} parent=69 // pred_fallthru
          _
      $region70: #{resnet_trunk_forward.23} parent=5 // pred_fallthru
        _
      %p807 = scmp.le.s32.totalorder 2, %s10
      // Predicated region
      $region106: #{resnet_trunk_forward.23} parent=5 // pred_check
        %p808 = pneg %p807
      $region107: #{resnet_trunk_forward.23} parent=5 // pred_check_branch
        %810 = sbr.rel (%p808) target = $region109
      $region108: #{resnet_trunk_forward.23} parent=5 // pred_region
        %s811 = ssub.s32 %s10, 2
        // Predicated region
        $region110: #{resnet_trunk_forward.23} parent=108 // pred_check
          %p812 = pneg %p168
        $region111: #{resnet_trunk_forward.23} parent=108 // pred_check_branch
          %814 = sbr.rel (%p812) target = $region113
        $region112: #{resnet_trunk_forward.23} parent=108 // pred_region
          %s815 = sand.u32 %s153, 1
          %s816 = sand.u32 %s153, 1
          %s817 = smul.addr %s816, 32
          %s818 = scalar_lea.vmem [#allocation4], %s817
        $region113: #{resnet_trunk_forward.23} parent=108 // pred_fallthru
          _
      $region109: #{resnet_trunk_forward.23} parent=5 // pred_fallthru
        _
    $region6: #{resnet_trunk_forward.23} parent=1 // loop_footer
      %s14 = sadd.s32 1, %s10
    $region7: #{resnet_trunk_forward.23} parent=1 // loop_footer_branch
      %9 = sbr.rel target = $region3
    $region8: #{resnet_trunk_forward.23} parent=1 // loop_exit
      _

// kernel: resnet_trunk_forward.25
$region0: #{resnet_trunk_forward.25}
  #allocation0 [shape = 'u32[]', space=smem, size = 0x4, offset = 0x4, fixed_abs, tag = 'smem constant byte address 0x4 - core index']
  #allocation1 [shape = 'u32[144,128]{1,0:T(1,128)}', space=vmem, size = 0x12000, scoped, tag = 'internal scratch']
  #allocation2 [shape = 'f32[16,256]{1,0:T(8,128)}', space=vmem, size = 0x4000, scoped, tag = 'scratch operand']
  %s0 = inlined_call_operand.vmem [shape: bf16[16,4608], index: 0, kind: input, shape index: {}]
  %s1 = inlined_call_operand.vmem [shape: bf16[4608,512], index: 1, kind: input, shape index: {}]
  %s2 = inlined_call_operand.vmem [shape: f32[1,512], index: 2, kind: input, shape index: {}]
  %s3 = inlined_call_operand.vmem [shape: f32[1,512], index: 3, kind: input, shape index: {}]
  %s4 = inlined_call_operand.vmem [shape: f32[16,512], index: 4, kind: input, shape index: {}]
  %s5 = inlined_call_operand.vmem [shape: f32[16,512], index: 5, kind: output, shape index: {}]
  %s6 = sld [smem:[#allocation0]]
  $region179: #{resnet_trunk_forward.25} parent=0
    _
  %s8 = ssub.s32 1, %s6
  %s9 = scalar_select 0, %s8, %s6
  $region1: #{resnet_trunk_forward.25} parent=0
    #allocation3 [shape = 'u8[16384]{0}', space=vmem, size = 0x4000, scoped, tag = 'input window, operand 0']
    #allocation4 [shape = 'u8[262144]{0}', space=vmem, size = 0x40000, scoped, tag = 'input window, operand 1']
    #allocation5 [shape = 'u8[32768]{0}', space=vmem, size = 0x8000, scoped, tag = 'input window, operand 4']
    #allocation6 [shape = 'u8[32768]{0}', space=vmem, size = 0x8000, scoped, tag = 'output window, operand 0']
    loop: start=0, step=1, limit=38
    $region2: #{resnet_trunk_forward.25} parent=1 // loop_pre_header
      _
    $region3: #{resnet_trunk_forward.25} parent=1 // loop_header
      %s11 = sphi 0, %s15
      %p12 = scmp.ge.s32.totalorder %s11, 38
      %s18 = sphi 0, %s37
      %s19 = sphi 0, %s33
      %s20 = sphi 0, %s29
      %s21 = sphi 0, %s18
      %s22 = sphi 0, %s19
      %s23 = sphi 0, %s20
      %s24 = sphi 0, %s21
      %s25 = sphi 0, %s22
      %s26 = sphi 0, %s23
      %s42 = sphi 0, %s44
      %s45 = sphi 0, %s42
      %s46 = sphi 0, %s45
      %s62 = sphi 0, %s46
      %s70 = sphi 0, %s72
      %s73 = sphi 0, %s70
      %s74 = sphi 0, %s73
      %s90 = sphi 0, %s74
      %s96 = sphi 0, %s98
      %s99 = sphi 0, %s96
      %s100 = sphi 0, %s99
      %s116 = sphi 0, %s100
      %s122 = sphi 0, %s124
      %s125 = sphi 0, %s122
      %s126 = sphi 0, %s125
      %s142 = sphi 0, %s126
      %s150 = sphi 0, %s152
      %s153 = sphi 0, %s150
      %s154 = sphi 0, %s153
      %s170 = sphi 0, %s154
      %s178 = sphi 0, %s180
      %s181 = sphi 0, %s178
      %s182 = sphi 0, %s181
      %s198 = sphi 0, %s182
    $region4: #{resnet_trunk_forward.25} parent=1 // loop_header_branch
      %14 = sbr.rel (%p12) target = $region8
    $region5: #{resnet_trunk_forward.25} parent=1 // loop_body
      %s16 = ssub.s32 %s11, 1
      %s17 = ssub.s32 %s11, 2
      %s27 = sadd.s32 1, %s20
      %p28 = scmp.ge.s32.totalorder %s27, 18
      %s29 = scalar_select %p28, 0, %s27
      %s30 = sadd.s32 1, %s19
      %s31 = scalar_select %p28, %s30, %s19
      %p32 = scmp.ge.s32.totalorder %s31, 2
      %s33 = scalar_select %p32, 0, %s31
      %s34 = sadd.s32 1, %s18
      %s35 = scalar_select %p32, %s34, %s18
      %p36 = scmp.ge.s32.totalorder %s35, 1
      %s37 = scalar_select %p36, 0, %s35
      %s38 = ssub.s32 %s18, %s37
      %s39 = ssub.s32 %s20, %s29
      %s40 = sor.u32 %s38, %s39
      %p41 = scmp.eq.s32.totalorder %s40, 0
      %s43 = sadd.s32 %s42, 1
      %s44 = scalar_select %p41, %s42, %s43
      %p47 = pneg %p41
      %p48 = scmp.eq.s32.totalorder %s11, 35
      %p49 = por %p47, %p48
      %p50 = scmp.ne.s32.totalorder %s42, %s45
      %p51 = scmp.eq.s32.totalorder %s11, 0
      %p52 = por %p50, %p51
      %p53 = scmp.ne.s32.totalorder %s42, %s45
      %p54 = scmp.eq.s32.totalorder %s16, 35
      %p55 = por %p53, %p54
      %p56 = scmp.ne.s32.totalorder %s45, %s46
      %p57 = scmp.eq.s32.totalorder %s16, 0
      %p58 = por %p56, %p57
      %p59 = scmp.ne.s32.totalorder %s45, %s46
      %p60 = scmp.eq.s32.totalorder %s17, 35
      %p61 = por %p59, %p60
      %p63 = scmp.ne.s32.totalorder %s46, %s62
      %p64 = scmp.eq.s32.totalorder %s17, 0
      %p65 = por %p63, %p64
      %s66 = ssub.s32 %s20, %s29
      %s67 = ssub.s32 %s19, %s33
      %s68 = sor.u32 %s66, %s67
      %p69 = scmp.eq.s32.totalorder %s68, 0
      %s71 = sadd.s32 %s70, 1
      %s72 = scalar_select %p69, %s70, %s71
      %p75 = pneg %p69
      %p76 = scmp.eq.s32.totalorder %s11, 35
      %p77 = por %p75, %p76
      %p78 = scmp.ne.s32.totalorder %s70, %s73
      %p79 = scmp.eq.s32.totalorder %s11, 0
      %p80 = por %p78, %p79
      %p81 = scmp.ne.s32.totalorder %s70, %s73
      %p82 = scmp.eq.s32.totalorder %s16, 35
      %p83 = por %p81, %p82
      %p84 = scmp.ne.s32.totalorder %s73, %s74
      %p85 = scmp.eq.s32.totalorder %s16, 0
      %p86 = por %p84, %p85
      %p87 = scmp.ne.s32.totalorder %s73, %s74
      %p88 = scmp.eq.s32.totalorder %s17, 35
      %p89 = por %p87, %p88
      %p91 = scmp.ne.s32.totalorder %s74, %s90
      %p92 = scmp.eq.s32.totalorder %s17, 0
      %p93 = por %p91, %p92
      %s94 = ssub.s32 %s19, %s33
      %p95 = scmp.eq.s32.totalorder %s94, 0
      %s97 = sadd.s32 %s96, 1
      %s98 = scalar_select %p95, %s96, %s97
      %p101 = pneg %p95
      %p102 = scmp.eq.s32.totalorder %s11, 35
      %p103 = por %p101, %p102
      %p104 = scmp.ne.s32.totalorder %s96, %s99
      %p105 = scmp.eq.s32.totalorder %s11, 0
      %p106 = por %p104, %p105
      %p107 = scmp.ne.s32.totalorder %s96, %s99
      %p108 = scmp.eq.s32.totalorder %s16, 35
      %p109 = por %p107, %p108
      %p110 = scmp.ne.s32.totalorder %s99, %s100
      %p111 = scmp.eq.s32.totalorder %s16, 0
      %p112 = por %p110, %p111
      %p113 = scmp.ne.s32.totalorder %s99, %s100
      %p114 = scmp.eq.s32.totalorder %s17, 35
      %p115 = por %p113, %p114
      %p117 = scmp.ne.s32.totalorder %s100, %s116
      %p118 = scmp.eq.s32.totalorder %s17, 0
      %p119 = por %p117, %p118
      %s120 = ssub.s32 %s19, %s33
      %p121 = scmp.eq.s32.totalorder %s120, 0
      %s123 = sadd.s32 %s122, 1
      %s124 = scalar_select %p121, %s122, %s123
      %p127 = pneg %p121
      %p128 = scmp.eq.s32.totalorder %s11, 35
      %p129 = por %p127, %p128
      %p130 = scmp.ne.s32.totalorder %s122, %s125
      %p131 = scmp.eq.s32.totalorder %s11, 0
      %p132 = por %p130, %p131
      %p133 = scmp.ne.s32.totalorder %s122, %s125
      %p134 = scmp.eq.s32.totalorder %s16, 35
      %p135 = por %p133, %p134
      %p136 = scmp.ne.s32.totalorder %s125, %s126
      %p137 = scmp.eq.s32.totalorder %s16, 0
      %p138 = por %p136, %p137
      %p139 = scmp.ne.s32.totalorder %s125, %s126
      %p140 = scmp.eq.s32.totalorder %s17, 35
      %p141 = por %p139, %p140
      %p143 = scmp.ne.s32.totalorder %s126, %s142
      %p144 = scmp.eq.s32.totalorder %s17, 0
      %p145 = por %p143, %p144
      %s146 = ssub.s32 %s18, %s37
      %s147 = ssub.s32 %s19, %s33
      %s148 = sor.u32 %s146, %s147
      %p149 = scmp.eq.s32.totalorder %s148, 0
      %s151 = sadd.s32 %s150, 1
      %s152 = scalar_select %p149, %s150, %s151
      %p155 = pneg %p149
      %p156 = scmp.eq.s32.totalorder %s11, 35
      %p157 = por %p155, %p156
      %p158 = scmp.ne.s32.totalorder %s150, %s153
      %p159 = scmp.eq.s32.totalorder %s11, 0
      %p160 = por %p158, %p159
      %p161 = scmp.ne.s32.totalorder %s150, %s153
      %p162 = scmp.eq.s32.totalorder %s16, 35
      %p163 = por %p161, %p162
      %p164 = scmp.ne.s32.totalorder %s153, %s154
      %p165 = scmp.eq.s32.totalorder %s16, 0
      %p166 = por %p164, %p165
      %p167 = scmp.ne.s32.totalorder %s153, %s154
      %p168 = scmp.eq.s32.totalorder %s17, 35
      %p169 = por %p167, %p168
      %p171 = scmp.ne.s32.totalorder %s154, %s170
      %p172 = scmp.eq.s32.totalorder %s17, 0
      %p173 = por %p171, %p172
      %s174 = ssub.s32 %s18, %s37
      %s175 = ssub.s32 %s19, %s33
      %s176 = sor.u32 %s174, %s175
      %p177 = scmp.eq.s32.totalorder %s176, 0
      %s179 = sadd.s32 %s178, 1
      %s180 = scalar_select %p177, %s178, %s179
      %p183 = pneg %p177
      %p184 = scmp.eq.s32.totalorder %s11, 35
      %p185 = por %p183, %p184
      %p186 = scmp.ne.s32.totalorder %s178, %s181
      %p187 = scmp.eq.s32.totalorder %s11, 0
      %p188 = por %p186, %p187
      %p189 = scmp.ne.s32.totalorder %s178, %s181
      %p190 = scmp.eq.s32.totalorder %s16, 35
      %p191 = por %p189, %p190
      %p192 = scmp.ne.s32.totalorder %s181, %s182
      %p193 = scmp.eq.s32.totalorder %s16, 0
      %p194 = por %p192, %p193
      %p195 = scmp.ne.s32.totalorder %s181, %s182
      %p196 = scmp.eq.s32.totalorder %s17, 35
      %p197 = por %p195, %p196
      %p199 = scmp.ne.s32.totalorder %s182, %s198
      %p200 = scmp.eq.s32.totalorder %s17, 0
      %p201 = por %p199, %p200
      %p202 = scmp.le.s32.totalorder 1, %s11
      %p203 = scmp.lt.s32.totalorder %s11, 37
      %p204 = pnand %p202, %p203
      %p205 = pneg %p204
      // Predicated region
      $region9: #{resnet_trunk_forward.25} parent=5 // pred_check
        _
      $region10: #{resnet_trunk_forward.25} parent=5 // pred_check_branch
        %207 = sbr.rel (%p204) target = $region12
      $region11: #{resnet_trunk_forward.25} parent=5 // pred_region
        %s208 = ssub.s32 %s11, 1
      $region12: #{resnet_trunk_forward.25} parent=5 // pred_fallthru
        _
      %p209 = scmp.lt.s32.totalorder %s11, 36
      // Predicated region
      $region13: #{resnet_trunk_forward.25} parent=5 // pred_check
        %p210 = pneg %p209
      $region14: #{resnet_trunk_forward.25} parent=5 // pred_check_branch
        %212 = sbr.rel (%p210) target = $region16
      $region15: #{resnet_trunk_forward.25} parent=5 // pred_region
        // Predicated region
        $region17: #{resnet_trunk_forward.25} parent=15 // pred_check
          %p213 = pneg %p52
        $region18: #{resnet_trunk_forward.25} parent=15 // pred_check_branch
          %215 = sbr.rel (%p213) target = $region20
        $region19: #{resnet_trunk_forward.25} parent=15 // pred_region
          %s216 = sand.u32 %s42, 1
          %s217 = sand.u32 %s42, 1
          %s218 = smul.addr %s217, 16
          %s219 = scalar_lea.vmem [#allocation3], %s218
          %s220 = smul.u32 2, %s18
          %s221 = smul.u32 2, %s20
          %s222 = smul.addr %s220, 36
          %s223 = sadd.s32 %s221, %s222
          %s224 = smul.addr %s223, 4
          %s225 = scalar_lea.vmem %s0, %s224
          // Predicated region
          $region21: #{resnet_trunk_forward.25} parent=19 // pred_check
            _
          $region22: #{resnet_trunk_forward.25} parent=19 // pred_check_branch
            %227 = sbr.rel (0) target = $region24
          $region23: #{resnet_trunk_forward.25} parent=19 // pred_region
            // Predicated region
            $region25: #{resnet_trunk_forward.25} parent=23 // pred_check
              _
            $region26: #{resnet_trunk_forward.25} parent=23 // pred_check_branch
              %229 = sbr.rel (0) target = $region28
            $region27: #{resnet_trunk_forward.25} parent=23 // pred_region
              // Predicated region
              $region40: #{resnet_trunk_forward.25} parent=27 // pred_check
                _
              $region41: #{resnet_trunk_forward.25} parent=27 // pred_check_branch
                %247 = sbr.rel (0) target = $region43
              $region42: #{resnet_trunk_forward.25} parent=27 // pred_region
                loop: start=0, step=1, limit=1
                $region44: #{resnet_trunk_forward.25} parent=42 // loop_pre_header
                  _
                $region45: #{resnet_trunk_forward.25} parent=42 // loop_header
                  %s249 = sphi 0, %s253
                  %p250 = scmp.ge.s32.totalorder %s249, 1
                  %s254 = sphi %s225, %s225
                  %s255 = sphi %s219, %s219
                $region46: #{resnet_trunk_forward.25} parent=42 // loop_header_branch
                  %252 = sbr.rel (%p250) target = $region50
                $region47: #{resnet_trunk_forward.25} parent=42 // loop_body
                  %v256 = vld [vmem:[%s254] sm:$0xff]
                  %257 = vst [vmem:[%s255] sm:$0xff] %v256
                  %v258 = vld [vmem:[%s254 + $0x90] sm:$0xff]
                  %259 = vst [vmem:[%s255 + $0x8] sm:$0xff] %v258
                $region48: #{resnet_trunk_forward.25} parent=42 // loop_footer
                  %s253 = sadd.s32 1, %s249
                $region49: #{resnet_trunk_forward.25} parent=42 // loop_footer_branch
                  %248 = sbr.rel target = $region45
                $region50: #{resnet_trunk_forward.25} parent=42 // loop_exit
                  _
              $region43: #{resnet_trunk_forward.25} parent=27 // pred_fallthru
                _
              // Predicated region
              $region51: #{resnet_trunk_forward.25} parent=27 // pred_check
                _
              $region52: #{resnet_trunk_forward.25} parent=27 // pred_check_branch
                %261 = sbr.rel target = $region54
              $region53: #{resnet_trunk_forward.25} parent=27 // pred_region
                _
              $region54: #{resnet_trunk_forward.25} parent=27 // pred_fallthru
                _
            $region28: #{resnet_trunk_forward.25} parent=23 // pred_fallthru
              _
            // Predicated region
            $region29: #{resnet_trunk_forward.25} parent=23 // pred_check
              _
            $region30: #{resnet_trunk_forward.25} parent=23 // pred_check_branch
              %231 = sbr.rel target = $region32
            $region31: #{resnet_trunk_forward.25} parent=23 // pred_region
              %s233 = ssub.s32 256, 1
              loop: start=0, step=1, limit=1
              $region33: #{resnet_trunk_forward.25} parent=31 // loop_pre_header
                _
              $region34: #{resnet_trunk_forward.25} parent=31 // loop_header
                %s235 = sphi 0, %s239
                %p236 = scmp.ge.s32.totalorder %s235, 1
                %s240 = sphi %s225, %s225
                %s241 = sphi %s219, %s219
              $region35: #{resnet_trunk_forward.25} parent=31 // loop_header_branch
                %238 = sbr.rel (%p236) target = $region39
              $region36: #{resnet_trunk_forward.25} parent=31 // loop_body
                %v242 = vld [vmem:[%s240] sm:%s233]
                %243 = vst [vmem:[%s241] sm:%s233] %v242
                %v244 = vld [vmem:[%s240 + $0x90] sm:%s233]
                %245 = vst [vmem:[%s241 + $0x8] sm:%s233] %v244
              $region37: #{resnet_trunk_forward.25} parent=31 // loop_footer
                %s239 = sadd.s32 1, %s235
              $region38: #{resnet_trunk_forward.25} parent=31 // loop_footer_branch
                %234 = sbr.rel target = $region34
              $region39: #{resnet_trunk_forward.25} parent=31 // loop_exit
                _
            $region32: #{resnet_trunk_forward.25} parent=23 // pred_fallthru
              _
          $region24: #{resnet_trunk_forward.25} parent=19 // pred_fallthru
            _
          %262 = vnop
        $region20: #{resnet_trunk_forward.25} parent=15 // pred_fallthru
          _
        // Predicated region
        $region55: #{resnet_trunk_forward.25} parent=15 // pred_check
          %p263 = pneg %p80
        $region56: #{resnet_trunk_forward.25} parent=15 // pred_check_branch
          %265 = sbr.rel (%p263) target = $region58
        $region57: #{resnet_trunk_forward.25} parent=15 // pred_region
          %s266 = sand.u32 %s70, 1
          %s267 = sand.u32 %s70, 1
          %s268 = smul.addr %s267, 256
          %s269 = scalar_lea.vmem [#allocation4], %s268
          %s270 = smul.u32 32, %s20
          %s271 = smul.u32 2, %s19
          %s272 = smul.addr %s270, 4
          %s273 = sadd.s32 %s271, %s272
          %s274 = smul.addr %s273, 4
          %s275 = scalar_lea.vmem %s1, %s274
          // Predicated region
          $region59: #{resnet_trunk_forward.25} parent=57 // pred_check
            _
          $region60: #{resnet_trunk_forward.25} parent=57 // pred_check_branch
            %277 = sbr.rel (0) target = $region62
          $region61: #{resnet_trunk_forward.25} parent=57 // pred_region
            // Predicated region
            $region63: #{resnet_trunk_forward.25} parent=61 // pred_check
              _
            $region64: #{resnet_trunk_forward.25} parent=61 // pred_check_branch
              %279 = sbr.rel (0) target = $region66
            $region65: #{resnet_trunk_forward.25} parent=61 // pred_region
              // Predicated region
              $region78: #{resnet_trunk_forward.25} parent=65 // pred_check
                _
              $region79: #{resnet_trunk_forward.25} parent=65 // pred_check_branch
                %357 = sbr.rel (0) target = $region81
              $region80: #{resnet_trunk_forward.25} parent=65 // pred_region
                loop: start=0, step=1, limit=1
                $region82: #{resnet_trunk_forward.25} parent=80 // loop_pre_header
                  _
                $region83: #{resnet_trunk_forward.25} parent=80 // loop_header
                  %s359 = sphi 0, %s363
                  %p360 = scmp.ge.s32.totalorder %s359, 1
                  %s364 = sphi %s275, %s275
                  %s365 = sphi %s269, %s269
                $region84: #{resnet_trunk_forward.25} parent=80 // loop_header_branch
                  %362 = sbr.rel (%p360) target = $region88
                $region85: #{resnet_trunk_forward.25} parent=80 // loop_body
                  %v366 = vld [vmem:[%s364] sm:$0xff]
                  %367 = vst [vmem:[%s365] sm:$0xff] %v366
                  %v368 = vld [vmem:[%s364 + $0x10] sm:$0xff]
                  %369 = vst [vmem:[%s365 + $0x8] sm:$0xff] %v368
                  %v370 = vld [vmem:[%s364 + $0x20] sm:$0xff]
                  %371 = vst [vmem:[%s365 + $0x10] sm:$0xff] %v370
                  %v372 = vld [vmem:[%s364 + $0x30] sm:$0xff]
                  %373 = vst [vmem:[%s365 + $0x18] sm:$0xff] %v372
                  %v374 = vld [vmem:[%s364 + $0x40] sm:$0xff]
                  %375 = vst [vmem:[%s365 + $0x20] sm:$0xff] %v374
                  %v376 = vld [vmem:[%s364 + $0x50] sm:$0xff]
                  %377 = vst [vmem:[%s365 + $0x28] sm:$0xff] %v376
                  %v378 = vld [vmem:[%s364 + $0x60] sm:$0xff]
                  %379 = vst [vmem:[%s365 + $0x30] sm:$0xff] %v378
                  %v380 = vld [vmem:[%s364 + $0x70] sm:$0xff]
                  %381 = vst [vmem:[%s365 + $0x38] sm:$0xff] %v380
                  %v382 = vld [vmem:[%s364 + $0x80] sm:$0xff]
                  %383 = vst [vmem:[%s365 + $0x40] sm:$0xff] %v382
                  %v384 = vld [vmem:[%s364 + $0x90] sm:$0xff]
                  %385 = vst [vmem:[%s365 + $0x48] sm:$0xff] %v384
                  %v386 = vld [vmem:[%s364 + $0xa0] sm:$0xff]
                  %387 = vst [vmem:[%s365 + $0x50] sm:$0xff] %v386
                  %v388 = vld [vmem:[%s364 + $0xb0] sm:$0xff]
                  %389 = vst [vmem:[%s365 + $0x58] sm:$0xff] %v388
                  %v390 = vld [vmem:[%s364 + $0xc0] sm:$0xff]
                  %391 = vst [vmem:[%s365 + $0x60] sm:$0xff] %v390
                  %v392 = vld [vmem:[%s364 + $0xd0] sm:$0xff]
                  %393 = vst [vmem:[%s365 + $0x68] sm:$0xff] %v392
                  %v394 = vld [vmem:[%s364 + $0xe0] sm:$0xff]
                  %395 = vst [vmem:[%s365 + $0x70] sm:$0xff] %v394
                  %v396 = vld [vmem:[%s364 + $0xf0] sm:$0xff]
                  %397 = vst [vmem:[%s365 + $0x78] sm:$0xff] %v396
                  %v398 = vld [vmem:[%s364 + $0x100] sm:$0xff]
                  %399 = vst [vmem:[%s365 + $0x80] sm:$0xff] %v398
                  %v400 = vld [vmem:[%s364 + $0x110] sm:$0xff]
                  %401 = vst [vmem:[%s365 + $0x88] sm:$0xff] %v400
                  %v402 = vld [vmem:[%s364 + $0x120] sm:$0xff]
                  %403 = vst [vmem:[%s365 + $0x90] sm:$0xff] %v402
                  %v404 = vld [vmem:[%s364 + $0x130] sm:$0xff]
                  %405 = vst [vmem:[%s365 + $0x98] sm:$0xff] %v404
                  %v406 = vld [vmem:[%s364 + $0x140] sm:$0xff]
                  %407 = vst [vmem:[%s365 + $0xa0] sm:$0xff] %v406
                  %v408 = vld [vmem:[%s364 + $0x150] sm:$0xff]
                  %409 = vst [vmem:[%s365 + $0xa8] sm:$0xff] %v408
                  %v410 = vld [vmem:[%s364 + $0x160] sm:$0xff]
                  %411 = vst [vmem:[%s365 + $0xb0] sm:$0xff] %v410
                  %v412 = vld [vmem:[%s364 + $0x170] sm:$0xff]
                  %413 = vst [vmem:[%s365 + $0xb8] sm:$0xff] %v412
                  %v414 = vld [vmem:[%s364 + $0x180] sm:$0xff]
                  %415 = vst [vmem:[%s365 + $0xc0] sm:$0xff] %v414
                  %v416 = vld [vmem:[%s364 + $0x190] sm:$0xff]
                  %417 = vst [vmem:[%s365 + $0xc8] sm:$0xff] %v416
                  %v418 = vld [vmem:[%s364 + $0x1a0] sm:$0xff]
                  %419 = vst [vmem:[%s365 + $0xd0] sm:$0xff] %v418
                  %v420 = vld [vmem:[%s364 + $0x1b0] sm:$0xff]
                  %421 = vst [vmem:[%s365 + $0xd8] sm:$0xff] %v420
                  %v422 = vld [vmem:[%s364 + $0x1c0] sm:$0xff]
                  %423 = vst [vmem:[%s365 + $0xe0] sm:$0xff] %v422
                  %v424 = vld [vmem:[%s364 + $0x1d0] sm:$0xff]
                  %425 = vst [vmem:[%s365 + $0xe8] sm:$0xff] %v424
                  %v426 = vld [vmem:[%s364 + $0x1e0] sm:$0xff]
                  %427 = vst [vmem:[%s365 + $0xf0] sm:$0xff] %v426
                  %v428 = vld [vmem:[%s364 + $0x1f0] sm:$0xff]
                  %429 = vst [vmem:[%s365 + $0xf8] sm:$0xff] %v428
                $region86: #{resnet_trunk_forward.25} parent=80 // loop_footer
                  %s363 = sadd.s32 1, %s359
                $region87: #{resnet_trunk_forward.25} parent=80 // loop_footer_branch
                  %358 = sbr.rel target = $region83
                $region88: #{resnet_trunk_forward.25} parent=80 // loop_exit
                  _
              $region81: #{resnet_trunk_forward.25} parent=65 // pred_fallthru
                _
              // Predicated region
              $region89: #{resnet_trunk_forward.25} parent=65 // pred_check
                _
              $region90: #{resnet_trunk_forward.25} parent=65 // pred_check_branch
                %431 = sbr.rel target = $region92
              $region91: #{resnet_trunk_forward.25} parent=65 // pred_region
                _
              $region92: #{resnet_trunk_forward.25} parent=65 // pred_fallthru
                _
            $region66: #{resnet_trunk_forward.25} parent=61 // pred_fallthru
              _
            // Predicated region
            $region67: #{resnet_trunk_forward.25} parent=61 // pred_check
              _
            $region68: #{resnet_trunk_forward.25} parent=61 // pred_check_branch
              %281 = sbr.rel target = $region70
            $region69: #{resnet_trunk_forward.25} parent=61 // pred_region
              %s283 = ssub.s32 256, 1
              loop: start=0, step=1, limit=1
              $region71: #{resnet_trunk_forward.25} parent=69 // loop_pre_header
                _
              $region72: #{resnet_trunk_forward.25} parent=69 // loop_header
                %s285 = sphi 0, %s289
                %p286 = scmp.ge.s32.totalorder %s285, 1
                %s290 = sphi %s275, %s275
                %s291 = sphi %s269, %s269
              $region73: #{resnet_trunk_forward.25} parent=69 // loop_header_branch
                %288 = sbr.rel (%p286) target = $region77
              $region74: #{resnet_trunk_forward.25} parent=69 // loop_body
                %v292 = vld [vmem:[%s290] sm:%s283]
                %293 = vst [vmem:[%s291] sm:%s283] %v292
                %v294 = vld [vmem:[%s290 + $0x10] sm:%s283]
                %295 = vst [vmem:[%s291 + $0x8] sm:%s283] %v294
                %v296 = vld [vmem:[%s290 + $0x20] sm:%s283]
                %297 = vst [vmem:[%s291 + $0x10] sm:%s283] %v296
                %v298 = vld [vmem:[%s290 + $0x30] sm:%s283]
                %299 = vst [vmem:[%s291 + $0x18] sm:%s283] %v298
                %v300 = vld [vmem:[%s290 + $0x40] sm:%s283]
                %301 = vst [vmem:[%s291 + $0x20] sm:%s283] %v300
                %v302 = vld [vmem:[%s290 + $0x50] sm:%s283]
                %303 = vst [vmem:[%s291 + $0x28] sm:%s283] %v302
                %v304 = vld [vmem:[%s290 + $0x60] sm:%s283]
                %305 = vst [vmem:[%s291 + $0x30] sm:%s283] %v304
                %v306 = vld [vmem:[%s290 + $0x70] sm:%s283]
                %307 = vst [vmem:[%s291 + $0x38] sm:%s283] %v306
                %v308 = vld [vmem:[%s290 + $0x80] sm:%s283]
                %309 = vst [vmem:[%s291 + $0x40] sm:%s283] %v308
                %v310 = vld [vmem:[%s290 + $0x90] sm:%s283]
                %311 = vst [vmem:[%s291 + $0x48] sm:%s283] %v310
                %v312 = vld [vmem:[%s290 + $0xa0] sm:%s283]
                %313 = vst [vmem:[%s291 + $0x50] sm:%s283] %v312
                %v314 = vld [vmem:[%s290 + $0xb0] sm:%s283]
                %315 = vst [vmem:[%s291 + $0x58] sm:%s283] %v314
                %v316 = vld [vmem:[%s290 + $0xc0] sm:%s283]
                %317 = vst [vmem:[%s291 + $0x60] sm:%s283] %v316
                %v318 = vld [vmem:[%s290 + $0xd0] sm:%s283]
                %319 = vst [vmem:[%s291 + $0x68] sm:%s283] %v318
                %v320 = vld [vmem:[%s290 + $0xe0] sm:%s283]
                %321 = vst [vmem:[%s291 + $0x70] sm:%s283] %v320
                %v322 = vld [vmem:[%s290 + $0xf0] sm:%s283]
                %323 = vst [vmem:[%s291 + $0x78] sm:%s283] %v322
                %v324 = vld [vmem:[%s290 + $0x100] sm:%s283]
                %325 = vst [vmem:[%s291 + $0x80] sm:%s283] %v324
                %v326 = vld [vmem:[%s290 + $0x110] sm:%s283]
                %327 = vst [vmem:[%s291 + $0x88] sm:%s283] %v326
                %v328 = vld [vmem:[%s290 + $0x120] sm:%s283]
                %329 = vst [vmem:[%s291 + $0x90] sm:%s283] %v328
                %v330 = vld [vmem:[%s290 + $0x130] sm:%s283]
                %331 = vst [vmem:[%s291 + $0x98] sm:%s283] %v330
                %v332 = vld [vmem:[%s290 + $0x140] sm:%s283]
                %333 = vst [vmem:[%s291 + $0xa0] sm:%s283] %v332
                %v334 = vld [vmem:[%s290 + $0x150] sm:%s283]
                %335 = vst [vmem:[%s291 + $0xa8] sm:%s283] %v334
                %v336 = vld [vmem:[%s290 + $0x160] sm:%s283]
                %337 = vst [vmem:[%s291 + $0xb0] sm:%s283] %v336
                %v338 = vld [vmem:[%s290 + $0x170] sm:%s283]
                %339 = vst [vmem:[%s291 + $0xb8] sm:%s283] %v338
                %v340 = vld [vmem:[%s290 + $0x180] sm:%s283]
                %341 = vst [vmem:[%s291 + $0xc0] sm:%s283] %v340
                %v342 = vld [vmem:[%s290 + $0x190] sm:%s283]
                %343 = vst [vmem:[%s291 + $0xc8] sm:%s283] %v342
                %v344 = vld [vmem:[%s290 + $0x1a0] sm:%s283]
                %345 = vst [vmem:[%s291 + $0xd0] sm:%s283] %v344
                %v346 = vld [vmem:[%s290 + $0x1b0] sm:%s283]
                %347 = vst [vmem:[%s291 + $0xd8] sm:%s283] %v346
                %v348 = vld [vmem:[%s290 + $0x1c0] sm:%s283]
                %349 = vst [vmem:[%s291 + $0xe0] sm:%s283] %v348
                %v350 = vld [vmem:[%s290 + $0x1d0] sm:%s283]
                %351 = vst [vmem:[%s291 + $0xe8] sm:%s283] %v350
                %v352 = vld [vmem:[%s290 + $0x1e0] sm:%s283]
                %353 = vst [vmem:[%s291 + $0xf0] sm:%s283] %v352
                %v354 = vld [vmem:[%s290 + $0x1f0] sm:%s283]
                %355 = vst [vmem:[%s291 + $0xf8] sm:%s283] %v354
              $region75: #{resnet_trunk_forward.25} parent=69 // loop_footer
                %s289 = sadd.s32 1, %s285
              $region76: #{resnet_trunk_forward.25} parent=69 // loop_footer_branch
                %284 = sbr.rel target = $region72
              $region77: #{resnet_trunk_forward.25} parent=69 // loop_exit
                _
            $region70: #{resnet_trunk_forward.25} parent=61 // pred_fallthru
              _
          $region62: #{resnet_trunk_forward.25} parent=57 // pred_fallthru
            _
          %432 = vnop
        $region58: #{resnet_trunk_forward.25} parent=15 // pred_fallthru
          _
        // Predicated region
        $region93: #{resnet_trunk_forward.25} parent=15 // pred_check
          %p433 = pneg %p106
        $region94: #{resnet_trunk_forward.25} parent=15 // pred_check_branch
          %435 = sbr.rel (%p433) target = $region96
        $region95: #{resnet_trunk_forward.25} parent=15 // pred_region
          %s436 = smul.u32 2, %s19
          %p437 = scmp.lt.s32.totalorder %s436, 3
          %s438 = scalar_select %p437, %s436, 3
          %s439 = scalar_lea.vmem %s2, %s438
          %s440 = smul.u32 2, %s19
        $region96: #{resnet_trunk_forward.25} parent=15 // pred_fallthru
          _
        // Predicated region
        $region97: #{resnet_trunk_forward.25} parent=15 // pred_check
          %p441 = pneg %p132
        $region98: #{resnet_trunk_forward.25} parent=15 // pred_check_branch
          %443 = sbr.rel (%p441) target = $region100
        $region99: #{resnet_trunk_forward.25} parent=15 // pred_region
          %s444 = smul.u32 2, %s19
          %p445 = scmp.lt.s32.totalorder %s444, 3
          %s446 = scalar_select %p445, %s444, 3
          %s447 = scalar_lea.vmem %s3, %s446
          %s448 = smul.u32 2, %s19
        $region100: #{resnet_trunk_forward.25} parent=15 // pred_fallthru
          _
        // Predicated region
        $region101: #{resnet_trunk_forward.25} parent=15 // pred_check
          %p449 = pneg %p160
        $region102: #{resnet_trunk_forward.25} parent=15 // pred_check_branch
          %451 = sbr.rel (%p449) target = $region104
        $region103: #{resnet_trunk_forward.25} parent=15 // pred_region
          %s452 = sand.u32 %s150, 1
          %s453 = sand.u32 %s150, 1
          %s454 = smul.addr %s453, 32
          %s455 = scalar_lea.vmem [#allocation5], %s454
          %s456 = smul.u32 2, %s18
          %s457 = smul.u32 2, %s19
          %s458 = smul.addr %s456, 4
          %s459 = sadd.s32 %s457, %s458
          %s460 = smul.addr %s459, 8
          %s461 = scalar_lea.vmem %s4, %s460
          // Predicated region
          $region105: #{resnet_trunk_forward.25} parent=103 // pred_check
            _
          $region106: #{resnet_trunk_forward.25} parent=103 // pred_check_branch
            %463 = sbr.rel (0) target = $region108
          $region107: #{resnet_trunk_forward.25} parent=103 // pred_region
            // Predicated region
            $region109: #{resnet_trunk_forward.25} parent=107 // pred_check
              _
            $region110: #{resnet_trunk_forward.25} parent=107 // pred_check_branch
              %465 = sbr.rel (0) target = $region112
            $region111: #{resnet_trunk_forward.25} parent=107 // pred_region
              loop: start=0, step=1, limit=1
              $region113: #{resnet_trunk_forward.25} parent=111 // loop_pre_header
                _
              $region114: #{resnet_trunk_forward.25} parent=111 // loop_header
                %s467 = sphi 0, %s471
                %p468 = scmp.ge.s32.totalorder %s467, 1
                %s472 = sphi %s461, %s461
                %s473 = sphi %s455, %s455
              $region115: #{resnet_trunk_forward.25} parent=111 // loop_header_branch
                %470 = sbr.rel (%p468) target = $region119
              $region116: #{resnet_trunk_forward.25} parent=111 // loop_body
                %v474 = vld [vmem:[%s472] sm:$0xff]
                %475 = vst [vmem:[%s473] sm:$0xff] %v474
                %v476 = vld [vmem:[%s472 + $0x8] sm:$0xff]
                %477 = vst [vmem:[%s473 + $0x8] sm:$0xff] %v476
                %v478 = vld [vmem:[%s472 + $0x20] sm:$0xff]
                %479 = vst [vmem:[%s473 + $0x10] sm:$0xff] %v478
                %v480 = vld [vmem:[%s472 + $0x28] sm:$0xff]
                %481 = vst [vmem:[%s473 + $0x18] sm:$0xff] %v480
              $region117: #{resnet_trunk_forward.25} parent=111 // loop_footer
                %s471 = sadd.s32 1, %s467
              $region118: #{resnet_trunk_forward.25} parent=111 // loop_footer_branch
                %466 = sbr.rel target = $region114
              $region119: #{resnet_trunk_forward.25} parent=111 // loop_exit
                _
            $region112: #{resnet_trunk_forward.25} parent=107 // pred_fallthru
              _
            // Predicated region
            $region120: #{resnet_trunk_forward.25} parent=107 // pred_check
              _
            $region121: #{resnet_trunk_forward.25} parent=107 // pred_check_branch
              %483 = sbr.rel target = $region123
            $region122: #{resnet_trunk_forward.25} parent=107 // pred_region
              _
            $region123: #{resnet_trunk_forward.25} parent=107 // pred_fallthru
              _
          $region108: #{resnet_trunk_forward.25} parent=103 // pred_fallthru
            _
          %484 = vnop
        $region104: #{resnet_trunk_forward.25} parent=15 // pred_fallthru
          _
      $region16: #{resnet_trunk_forward.25} parent=5 // pred_fallthru
        _
      %p485 = scmp.le.s32.totalorder 1, %s11
      %p486 = scmp.lt.s32.totalorder %s11, 37
      %p487 = pnand %p485, %p486
      %p488 = pneg %p487
      // Predicated region
      $region124: #{resnet_trunk_forward.25} parent=5 // pred_check
        _
      $region125: #{resnet_trunk_forward.25} parent=5 // pred_check_branch
        %490 = sbr.rel (%p487) target = $region127
      $region126: #{resnet_trunk_forward.25} parent=5 // pred_region
        %s491 = ssub.s32 %s11, 1
        %s492 = sand.u32 %s45, 1
        %s493 = sand.u32 %s45, 1
        %s494 = smul.addr %s493, 16
        %s495 = scalar_lea.vmem [#allocation3], %s494
        // Predicated region
        $region128: #{resnet_trunk_forward.25} parent=126 // pred_check
          %p496 = pneg %p58
        $region129: #{resnet_trunk_forward.25} parent=126 // pred_check_branch
          %498 = sbr.rel (%p496) target = $region131
        $region130: #{resnet_trunk_forward.25} parent=126 // pred_region
          _
        $region131: #{resnet_trunk_forward.25} parent=126 // pred_fallthru
          _
        %s499 = sand.u32 %s73, 1
        %s500 = sand.u32 %s73, 1
        %s501 = smul.addr %s500, 256
        %s502 = scalar_lea.vmem [#allocation4], %s501
        // Predicated region
        $region132: #{resnet_trunk_forward.25} parent=126 // pred_check
          %p503 = pneg %p86
        $region133: #{resnet_trunk_forward.25} parent=126 // pred_check_branch
          %505 = sbr.rel (%p503) target = $region135
        $region134: #{resnet_trunk_forward.25} parent=126 // pred_region
          _
        $region135: #{resnet_trunk_forward.25} parent=126 // pred_fallthru
          _
        %s506 = sand.u32 %s153, 1
        %s507 = sand.u32 %s153, 1
        %s508 = smul.addr %s507, 32
        %s509 = scalar_lea.vmem [#allocation5], %s508
        // Predicated region
        $region136: #{resnet_trunk_forward.25} parent=126 // pred_check
          %p510 = pneg %p166
        $region137: #{resnet_trunk_forward.25} parent=126 // pred_check_branch
          %512 = sbr.rel (%p510) target = $region139
        $region138: #{resnet_trunk_forward.25} parent=126 // pred_region
          _
        $region139: #{resnet_trunk_forward.25} parent=126 // pred_fallthru
          _
        %s513 = sand.u32 %s45, 1
        %s514 = sand.u32 %s45, 1
        %s515 = smul.addr %s514, 16
        %s516 = scalar_lea.vmem [#allocation3], %s515
        %p517 = pneg %p58
        %p518 = pneg %p55
        %s519 = sand.u32 %s73, 1
        %s520 = sand.u32 %s73, 1
        %s521 = smul.addr %s520, 256
        %s522 = scalar_lea.vmem [#allocation4], %s521
        %p523 = pneg %p86
        %p524 = pneg %p83
        %s525 = smul.u32 2, %s22
        %p526 = scmp.lt.s32.totalorder %s525, 3
        %s527 = scalar_select %p526, %s525, 3
        %s528 = scalar_lea.vmem %s2, %s527
        %p529 = pneg %p112
        %p530 = pneg %p109
        %s531 = smul.u32 2, %s22
        %p532 = scmp.lt.s32.totalorder %s531, 3
        %s533 = scalar_select %p532, %s531, 3
        %s534 = scalar_lea.vmem %s3, %s533
        %p535 = pneg %p138
        %p536 = pneg %p135
        %s537 = sand.u32 %s153, 1
        %s538 = sand.u32 %s153, 1
        %s539 = smul.addr %s538, 32
        %s540 = scalar_lea.vmem [#allocation5], %s539
        %p541 = pneg %p166
        %p542 = pneg %p163
        %p543 = pneg %p194
        %p544 = pneg %p191
        %s545 = sand.u32 %s181, 1
        %s546 = sand.u32 %s181, 1
        %s547 = smul.addr %s546, 32
        %s548 = scalar_lea.vmem [#allocation6], %s547
        %s549 = smul.u32 2, %s21
        %s550 = smul.u32 2, %s23
        %s551 = smul.u32 32, %s23
        %s552 = smul.u32 2, %s22
        %s553 = smul.u32 2, %s22
        %p554 = scmp.lt.s32.totalorder %s553, 3
        %s555 = scalar_select %p554, %s553, 3
        %s556 = scalar_lea.vmem %s2, %s555
        %s557 = smul.u32 2, %s22
        %s558 = smul.u32 2, %s22
        %p559 = scmp.lt.s32.totalorder %s558, 3
        %s560 = scalar_select %p559, %s558, 3
        %s561 = scalar_lea.vmem %s3, %s560
        %s562 = smul.u32 2, %s22
        %s563 = smul.u32 2, %s21
        %s564 = smul.u32 2, %s22
        %s565 = smul.u32 2, %s21
        %s566 = smul.u32 2, %s22
        %p567 = scmp.eq.s32.totalorder %s23, 0
        // Predicated region
        $region140: #{resnet_trunk_forward.25} parent=126 // pred_check
          %p568 = pneg %p567
        $region141: #{resnet_trunk_forward.25} parent=126 // pred_check_branch
          %570 = sbr.rel (%p568) target = $region143
        $region142: #{resnet_trunk_forward.25} parent=126 // pred_region
          %571 = vst [vmem:[#allocation2] sm:$0xff] 0.0
          %572 = vst [vmem:[#allocation2 + $0x8] sm:$0xff] 0.0
          %573 = vst [vmem:[#allocation2 + $0x10] sm:$0xff] 0.0
          %574 = vst [vmem:[#allocation2 + $0x18] sm:$0xff] 0.0
        $region143: #{resnet_trunk_forward.25} parent=126 // pred_fallthru
          _
        %v575 = vld [vmem:[#allocation2] sm:$0xff]
        %v576 = vld [vmem:[#allocation2 + $0x8] sm:$0xff]
        %v577 = vld [vmem:[#allocation2 + $0x10] sm:$0xff]
        %v578 = vld [vmem:[#allocation2 + $0x18] sm:$0xff]
        %v579 = vld [vmem:[%s495] sm:$0xff]
        %v580 = vld [vmem:[%s495 + $0x8] sm:$0xff]
        %v581 = vld [vmem:[%s502] sm:$0xff]
        %v582 = vld [vmem:[%s502 + $0x8] sm:$0xff]
        %v583 = vld [vmem:[%s502 + $0x10] sm:$0xff]
        %v584 = vld [vmem:[%s502 + $0x18] sm:$0xff]
        %v585 = vld [vmem:[%s502 + $0x20] sm:$0xff]
        %v586 = vld [vmem:[%s502 + $0x28] sm:$0xff]
        %v587 = vld [vmem:[%s502 + $0x30] sm:$0xff]
        %v588 = vld [vmem:[%s502 + $0x38] sm:$0xff]
        %v589 = vld [vmem:[%s502 + $0x40] sm:$0xff]
        %v590 = vld [vmem:[%s502 + $0x48] sm:$0xff]
        %v591 = vld [vmem:[%s502 + $0x50] sm:$0xff]
        %v592 = vld [vmem:[%s502 + $0x58] sm:$0xff]
        %v593 = vld [vmem:[%s502 + $0x60] sm:$0xff]
        %v594 = vld [vmem:[%s502 + $0x68] sm:$0xff]
        %v595 = vld [vmem:[%s502 + $0x70] sm:$0xff]
        %v596 = vld [vmem:[%s502 + $0x78] sm:$0xff]
        %v597 = vld [vmem:[%s502 + $0x80] sm:$0xff]
        %v598 = vld [vmem:[%s502 + $0x88] sm:$0xff]
        %v599 = vld [vmem:[%s502 + $0x90] sm:$0xff]
        %v600 = vld [vmem:[%s502 + $0x98] sm:$0xff]
        %v601 = vld [vmem:[%s502 + $0xa0] sm:$0xff]
        %v602 = vld [vmem:[%s502 + $0xa8] sm:$0xff]
        %v603 = vld [vmem:[%s502 + $0xb0] sm:$0xff]
        %v604 = vld [vmem:[%s502 + $0xb8] sm:$0xff]
        %v605 = vld [vmem:[%s502 + $0xc0] sm:$0xff]
        %v606 = vld [vmem:[%s502 + $0xc8] sm:$0xff]
        %v607 = vld [vmem:[%s502 + $0xd0] sm:$0xff]
        %v608 = vld [vmem:[%s502 + $0xd8] sm:$0xff]
        %v609 = vld [vmem:[%s502 + $0xe0] sm:$0xff]
        %v610 = vld [vmem:[%s502 + $0xe8] sm:$0xff]
        %v611 = vld [vmem:[%s502 + $0xf0] sm:$0xff]
        %v612 = vld [vmem:[%s502 + $0xf8] sm:$0xff]
        %v615 = vunpack.c.l.b16 %v579
        %v616 = vunpack.c.h.b16 %v579
        %v617 = vunpack.c.l.b16 %v580
        %v618 = vunpack.c.h.b16 %v580
        %v619 = vpack.c.b16 %v617, %v615
        %v620 = vpack.c.b16 %v618, %v616
        %v655 = vunpack.c.l.b16 %v581
        %v656 = vunpack.c.h.b16 %v581
        %v657 = vunpack.c.l.b16 %v582
        %v658 = vunpack.c.h.b16 %v582
        %v659 = vunpack.c.l.b16 %v583
        %v660 = vunpack.c.h.b16 %v583
        %v661 = vunpack.c.l.b16 %v584
        %v662 = vunpack.c.h.b16 %v584
        %v663 = vunpack.c.l.b16 %v585
        %v664 = vunpack.c.h.b16 %v585
        %v665 = vunpack.c.l.b16 %v586
        %v666 = vunpack.c.h.b16 %v586
        %v667 = vunpack.c.l.b16 %v587
        %v668 = vunpack.c.h.b16 %v587
        %v669 = vunpack.c.l.b16 %v588
        %v670 = vunpack.c.h.b16 %v588
        %v671 = vunpack.c.l.b16 %v589
        %v672 = vunpack.c.h.b16 %v589
        %v673 = vunpack.c.l.b16 %v590
        %v674 = vunpack.c.h.b16 %v590
        %v675 = vunpack.c.l.b16 %v591
        %v676 = vunpack.c.h.b16 %v591
        %v677 = vunpack.c.l.b16 %v592
        %v678 = vunpack.c.h.b16 %v592
        %v679 = vunpack.c.l.b16 %v593
        %v680 = vunpack.c.h.b16 %v593
        %v681 = vunpack.c.l.b16 %v594
        %v682 = vunpack.c.h.b16 %v594
        %v683 = vunpack.c.l.b16 %v595
        %v684 = vunpack.c.h.b16 %v595
        %v685 = vunpack.c.l.b16 %v596
        %v686 = vunpack.c.h.b16 %v596
        %v687 = vunpack.c.l.b16 %v597
        %v688 = vunpack.c.h.b16 %v597
        %v689 = vunpack.c.l.b16 %v598
        %v690 = vunpack.c.h.b16 %v598
        %v691 = vunpack.c.l.b16 %v599
        %v692 = vunpack.c.h.b16 %v599
        %v693 = vunpack.c.l.b16 %v600
        %v694 = vunpack.c.h.b16 %v600
        %v695 = vunpack.c.l.b16 %v601
        %v696 = vunpack.c.h.b16 %v601
        %v697 = vunpack.c.l.b16 %v602
        %v698 = vunpack.c.h.b16 %v602
        %v699 = vunpack.c.l.b16 %v603
        %v700 = vunpack.c.h.b16 %v603
        %v701 = vunpack.c.l.b16 %v604
        %v702 = vunpack.c.h.b16 %v604
        %v703 = vunpack.c.l.b16 %v605
        %v704 = vunpack.c.h.b16 %v605
        %v705 = vunpack.c.l.b16 %v606
        %v706 = vunpack.c.h.b16 %v606
        %v707 = vunpack.c.l.b16 %v607
        %v708 = vunpack.c.h.b16 %v607
        %v709 = vunpack.c.l.b16 %v608
        %v710 = vunpack.c.h.b16 %v608
        %v711 = vunpack.c.l.b16 %v609
        %v712 = vunpack.c.h.b16 %v609
        %v713 = vunpack.c.l.b16 %v610
        %v714 = vunpack.c.h.b16 %v610
        %v715 = vunpack.c.l.b16 %v611
        %v716 = vunpack.c.h.b16 %v611
        %v717 = vunpack.c.l.b16 %v612
        %v718 = vunpack.c.h.b16 %v612
        %v719 = vpack.c.b16 %v657, %v655
        %v720 = vpack.c.b16 %v658, %v656
        %v721 = vpack.c.b16 %v661, %v659
        %v722 = vpack.c.b16 %v662, %v660
        %v723 = vpack.c.b16 %v665, %v663
        %v724 = vpack.c.b16 %v666, %v664
        %v725 = vpack.c.b16 %v669, %v667
        %v726 = vpack.c.b16 %v670, %v668
        %v727 = vpack.c.b16 %v673, %v671
        %v728 = vpack.c.b16 %v674, %v672
        %v729 = vpack.c.b16 %v677, %v675
        %v730 = vpack.c.b16 %v678, %v676
        %v731 = vpack.c.b16 %v681, %v679
        %v732 = vpack.c.b16 %v682, %v680
        %v733 = vpack.c.b16 %v685, %v683
        %v734 = vpack.c.b16 %v686, %v684
        %v735 = vpack.c.b16 %v689, %v687
        %v736 = vpack.c.b16 %v690, %v688
        %v737 = vpack.c.b16 %v693, %v691
        %v738 = vpack.c.b16 %v694, %v692
        %v739 = vpack.c.b16 %v697, %v695
        %v740 = vpack.c.b16 %v698, %v696
        %v741 = vpack.c.b16 %v701, %v699
        %v742 = vpack.c.b16 %v702, %v700
        %v743 = vpack.c.b16 %v705, %v703
        %v744 = vpack.c.b16 %v706, %v704
        %v745 = vpack.c.b16 %v709, %v707
        %v746 = vpack.c.b16 %v710, %v708
        %v747 = vpack.c.b16 %v713, %v711
        %v748 = vpack.c.b16 %v714, %v712
        %v749 = vpack.c.b16 %v717, %v715
        %v750 = vpack.c.b16 %v718, %v716
        %783 = vmatprep.subr.bf16.mxu0 %v734
        %784 = vmatpush1.bf16.msra.mxu0 %v733
        %785 = vmatprep.subr.bf16.mxu0 %v732
        %786 = vmatpush1.bf16.msra.mxu0 %v731
        %787 = vmatprep.subr.bf16.mxu0 %v730
        %788 = vmatpush1.bf16.msra.mxu0 %v729
        %789 = vmatprep.subr.bf16.mxu0 %v728
        %790 = vmatpush1.bf16.msra.mxu0 %v727
        %791 = vmatprep.subr.bf16.mxu0 %v726
        %792 = vmatpush1.bf16.msra.mxu0 %v725
        %793 = vmatprep.subr.bf16.mxu0 %v724
        %794 = vmatpush1.bf16.msra.mxu0 %v723
        %795 = vmatprep.subr.bf16.mxu0 %v722
        %796 = vmatpush1.bf16.msra.mxu0 %v721
        %797 = vmatprep.subr.bf16.mxu0 %v720
        %798 = vmatpush1.bf16.msra.mxu0 %v719
        %799 = vmatprep.subr.bf16.mxu0 %v750
        %800 = vmatpush2.bf16.msra.mxu0 %v749
        %801 = vmatprep.subr.bf16.mxu0 %v748
        %802 = vmatpush2.bf16.msra.mxu0 %v747
        %803 = vmatprep.subr.bf16.mxu0 %v746
        %804 = vmatpush2.bf16.msra.mxu0 %v745
        %805 = vmatprep.subr.bf16.mxu0 %v744
        %806 = vmatpush2.bf16.msra.mxu0 %v743
        %807 = vmatprep.subr.bf16.mxu0 %v742
        %808 = vmatpush2.bf16.msra.mxu0 %v741
        %809 = vmatprep.subr.bf16.mxu0 %v740
        %810 = vmatpush2.bf16.msra.mxu0 %v739
        %811 = vmatprep.subr.bf16.mxu0 %v738
        %812 = vmatpush2.bf16.msra.mxu0 %v737
        %813 = vmatprep.subr.bf16.mxu0 %v736
        %814 = vmatpush2.bf16.msra.mxu0 %v735
        %815 = vmatprep.mubr.bf16.mxu0 %v620
        %816 = vmatmul.mubr.bf16.gmra.mxu0 %v619
        %v817 = vpop.f32.mrf.mxu0
        %v818 = vadd.f32 0.0, %v817
        %v819 = vpop.f32.mrf.mxu0
        %v820 = vadd.f32 0.0, %v819
        %v821 = vpop.f32.mrf.mxu0
        %v822 = vadd.f32 0.0, %v821
        %v823 = vpop.f32.mrf.mxu0
        %v824 = vadd.f32 0.0, %v823
        %825 = vdwg.mxu0
        %v826 = vadd.f32 %v575, %v818
        %v827 = vadd.f32 %v576, %v820
        %v828 = vadd.f32 %v577, %v822
        %v829 = vadd.f32 %v578, %v824
        %830 = vst [vmem:[#allocation2] sm:$0xff] %v826
        %831 = vst [vmem:[#allocation2 + $0x8] sm:$0xff] %v827
        %832 = vst [vmem:[#allocation2 + $0x10] sm:$0xff] %v828
        %833 = vst [vmem:[#allocation2 + $0x18] sm:$0xff] %v829
        %p834 = scmp.eq.s32.totalorder %s23, 17
        // Predicated region
        $region144: #{resnet_trunk_forward.25} parent=126 // pred_check
          %p835 = pneg %p834
        $region145: #{resnet_trunk_forward.25} parent=126 // pred_check_branch
          %837 = sbr.rel (%p835) target = $region147
        $region146: #{resnet_trunk_forward.25} parent=126 // pred_region
          %v838 = vld [vmem:[#allocation2] sm:$0xff]
          %v839 = vld [vmem:[#allocation2 + $0x8] sm:$0xff]
          %v840 = vld [vmem:[#allocation2 + $0x10] sm:$0xff]
          %v841 = vld [vmem:[#allocation2 + $0x18] sm:$0xff]
          %v842 = vld [vmem:[%s556] sm:$0x3]
          %v844 = vlaneseq
          %v845 = vshrl.u32 %v844, 7
          %v846 = vsub.s32 0, %v845
          %v847 = vrot.slane %v842, %v846
          %v848 = vlaneseq
          %v849 = vshrl.u32 %v848, 7
          %v850 = vsub.s32 1, %v849
          %v851 = vrot.slane %v842, %v850
          %v854 = vmul.f32 %v838, %v847
          %v855 = vmul.f32 %v839, %v851
          %v856 = vmul.f32 %v840, %v847
          %v857 = vmul.f32 %v841, %v851
          %v858 = vld [vmem:[%s561] sm:$0x3]
          %v860 = vlaneseq
          %v861 = vshrl.u32 %v860, 7
          %v862 = vsub.s32 0, %v861
          %v863 = vrot.slane %v858, %v862
          %v864 = vlaneseq
          %v865 = vshrl.u32 %v864, 7
          %v866 = vsub.s32 1, %v865
          %v867 = vrot.slane %v858, %v866
          %v870 = vadd.f32 %v854, %v863
          %v871 = vadd.f32 %v855, %v867
          %v872 = vadd.f32 %v856, %v863
          %v873 = vadd.f32 %v857, %v867
          %v874 = vld [vmem:[%s509] sm:$0xff]
          %v875 = vld [vmem:[%s509 + $0x8] sm:$0xff]
          %v876 = vld [vmem:[%s509 + $0x10] sm:$0xff]
          %v877 = vld [vmem:[%s509 + $0x18] sm:$0xff]
          %v878 = vadd.f32 %v870, %v874
          %v879 = vadd.f32 %v871, %v875
          %v880 = vadd.f32 %v872, %v876
          %v881 = vadd.f32 %v873, %v877
          %v882 = vmax.f32 %v878, 0.0
          %v883 = vmax.f32 %v879, 0.0
          %v884 = vmax.f32 %v880, 0.0
          %v885 = vmax.f32 %v881, 0.0
          %886 = vst [vmem:[%s548] sm:$0xff] %v882
          %887 = vst [vmem:[%s548 + $0x8] sm:$0xff] %v883
          %888 = vst [vmem:[%s548 + $0x10] sm:$0xff] %v884
          %889 = vst [vmem:[%s548 + $0x18] sm:$0xff] %v885
        $region147: #{resnet_trunk_forward.25} parent=126 // pred_fallthru
          _
        %s890 = sand.u32 %s181, 1
        %s891 = sand.u32 %s181, 1
        %s892 = smul.addr %s891, 32
        %s893 = scalar_lea.vmem [#allocation6], %s892
        // Predicated region
        $region148: #{resnet_trunk_forward.25} parent=126 // pred_check
          %p894 = pneg %p191
        $region149: #{resnet_trunk_forward.25} parent=126 // pred_check_branch
          %896 = sbr.rel (%p894) target = $region151
        $region150: #{resnet_trunk_forward.25} parent=126 // pred_region
          %s897 = smul.u32 2, %s21
          %s898 = smul.u32 2, %s22
          %s899 = smul.addr %s897, 4
          %s900 = sadd.s32 %s898, %s899
          %s901 = smul.addr %s900, 8
          %s902 = scalar_lea.vmem %s5, %s901
          // Predicated region
          $region152: #{resnet_trunk_forward.25} parent=150 // pred_check
            _
          $region153: #{resnet_trunk_forward.25} parent=150 // pred_check_branch
            %904 = sbr.rel (0) target = $region155
          $region154: #{resnet_trunk_forward.25} parent=150 // pred_region
            // Predicated region
            $region156: #{resnet_trunk_forward.25} parent=154 // pred_check
              _
            $region157: #{resnet_trunk_forward.25} parent=154 // pred_check_branch
              %906 = sbr.rel (0) target = $region159
            $region158: #{resnet_trunk_forward.25} parent=154 // pred_region
              loop: start=0, step=1, limit=1
              $region160: #{resnet_trunk_forward.25} parent=158 // loop_pre_header
                _
              $region161: #{resnet_trunk_forward.25} parent=158 // loop_header
                %s908 = sphi 0, %s912
                %p909 = scmp.ge.s32.totalorder %s908, 1
                %s913 = sphi %s893, %s893
                %s914 = sphi %s902, %s902
              $region162: #{resnet_trunk_forward.25} parent=158 // loop_header_branch
                %911 = sbr.rel (%p909) target = $region166
              $region163: #{resnet_trunk_forward.25} parent=158 // loop_body
                %v915 = vld [vmem:[%s913] sm:$0xff]
                %916 = vst [vmem:[%s914] sm:$0xff] %v915
                %v917 = vld [vmem:[%s913 + $0x8] sm:$0xff]
                %918 = vst [vmem:[%s914 + $0x8] sm:$0xff] %v917
                %v919 = vld [vmem:[%s913 + $0x10] sm:$0xff]
                %920 = vst [vmem:[%s914 + $0x20] sm:$0xff] %v919
                %v921 = vld [vmem:[%s913 + $0x18] sm:$0xff]
                %922 = vst [vmem:[%s914 + $0x28] sm:$0xff] %v921
              $region164: #{resnet_trunk_forward.25} parent=158 // loop_footer
                %s912 = sadd.s32 1, %s908
              $region165: #{resnet_trunk_forward.25} parent=158 // loop_footer_branch
                %907 = sbr.rel target = $region161
              $region166: #{resnet_trunk_forward.25} parent=158 // loop_exit
                _
            $region159: #{resnet_trunk_forward.25} parent=154 // pred_fallthru
              _
            // Predicated region
            $region167: #{resnet_trunk_forward.25} parent=154 // pred_check
              _
            $region168: #{resnet_trunk_forward.25} parent=154 // pred_check_branch
              %924 = sbr.rel target = $region170
            $region169: #{resnet_trunk_forward.25} parent=154 // pred_region
              _
            $region170: #{resnet_trunk_forward.25} parent=154 // pred_fallthru
              _
          $region155: #{resnet_trunk_forward.25} parent=150 // pred_fallthru
            _
          %925 = vnop
        $region151: #{resnet_trunk_forward.25} parent=126 // pred_fallthru
          _
      $region127: #{resnet_trunk_forward.25} parent=5 // pred_fallthru
        _
      %p926 = scmp.le.s32.totalorder 2, %s11
      // Predicated region
      $region171: #{resnet_trunk_forward.25} parent=5 // pred_check
        %p927 = pneg %p926
      $region172: #{resnet_trunk_forward.25} parent=5 // pred_check_branch
        %929 = sbr.rel (%p927) target = $region174
      $region173: #{resnet_trunk_forward.25} parent=5 // pred_region
        %s930 = ssub.s32 %s11, 2
        // Predicated region
        $region175: #{resnet_trunk_forward.25} parent=173 // pred_check
          %p931 = pneg %p197
        $region176: #{resnet_trunk_forward.25} parent=173 // pred_check_branch
          %933 = sbr.rel (%p931) target = $region178
        $region177: #{resnet_trunk_forward.25} parent=173 // pred_region
          %s934 = sand.u32 %s182, 1
          %s935 = sand.u32 %s182, 1
          %s936 = smul.addr %s935, 32
          %s937 = scalar_lea.vmem [#allocation6], %s936
        $region178: #{resnet_trunk_forward.25} parent=173 // pred_fallthru
          _
      $region174: #{resnet_trunk_forward.25} parent=5 // pred_fallthru
        _
    $region6: #{resnet_trunk_forward.25} parent=1 // loop_footer
      %s15 = sadd.s32 1, %s11
    $region7: #{resnet_trunk_forward.25} parent=1 // loop_footer_branch
      %10 = sbr.rel target = $region3
    $region8: #{resnet_trunk_forward.25} parent=1 // loop_exit
      _

</llo_original>
